<compile_context>
chip_gen: v5e
topology: v5e:2x2
jax: 0.10.0
libtpu: 0.0.40
codegen_flags: <defaults>
</compile_context>

<pallas_src>
import jax
import jax.numpy as jnp
from jax import lax
from jax.experimental import pallas as pl
from jax.experimental.pallas import tpu as pltpu

# ---------------------------------------------------------------------------
# Problem constants (224 / 3x3 / 75x are hard-coded in ImageFusionNet.upsample)
# ---------------------------------------------------------------------------
IMG = 224          # spatial size (hard-coded in the PyTorch module)
NCH = 3            # image channels
BLOCK = 3          # block_size -> 3x3 mix weight
UPSCALE = 75       # 3 * 75 = 225, cropped to 224
ENC_C = 32         # encoder output channels -> feature_dim = 2 * ENC_C


# ---------------------------------------------------------------------------
# Fused kernel: encoders + fc + separable upsample + mix, Bt batch elements
# ---------------------------------------------------------------------------
def make_fused_kernel(bt):
    def fused_kernel(x_ref, g_ref, wx_ref, bx_ref, wg_ref, bg_ref,
                     wfx_ref, wfg_ref, bfc_ref, out_ref):
        # x_ref/g_ref/out_ref : (bt, 3, 224, 224) VMEM blocks
        # wx_ref/wg_ref       : (3, 224, C) per-channel row-conv weights
        # bx_ref/bg_ref       : (1, C) encoder biases
        # wfx_ref/wfg_ref     : (C, 9) halves of the fc weight (concat == split matmul)
        # bfc_ref             : (1, 9) fc bias

        # Band masks for the 75x nearest upsample (shared by all bt elements).
        col = lax.broadcasted_iota(jnp.int32, (1, IMG), 1)          # (1, 224)
        row = lax.broadcasted_iota(jnp.int32, (IMG, 1), 0)          # (224, 1)
        cb1 = col >= UPSCALE
        cb2 = col >= 2 * UPSCALE
        rb1 = jnp.broadcast_to(row >= UPSCALE, (IMG, IMG))
        rb2 = jnp.broadcast_to(row >= 2 * UPSCALE, (IMG, IMG))

        def encode(img_ref, b, w_ref, bias_ref):
            # per-row (1x224) conv == 3 MXU matmuls, + ReLU + global mean pool
            pre = (jnp.dot(img_ref[b, 0].astype(jnp.float32), w_ref[0],
                           preferred_element_type=jnp.float32)
                   + jnp.dot(img_ref[b, 1].astype(jnp.float32), w_ref[1],
                             preferred_element_type=jnp.float32)
                   + jnp.dot(img_ref[b, 2].astype(jnp.float32), w_ref[2],
                             preferred_element_type=jnp.float32)
                   + bias_ref[...])                                  # (224, C)
            return jnp.mean(jnp.maximum(pre, 0.0), axis=0, keepdims=True)  # (1, C)

        for b in range(bt):
            fx = encode(x_ref, b, wx_ref, bx_ref)
            fg = encode(g_ref, b, wg_ref, bg_ref)

            # split-fc (== concat([fx, fg]) @ W_fc + b) -> (1, 9) mix weights
            w9 = (jnp.dot(fx, wfx_ref[...], preferred_element_type=jnp.float32)
                  + jnp.dot(fg, wfg_ref[...], preferred_element_type=jnp.float32)
                  + bfc_ref[...])                                    # (1, 9)

            # separable 75x nearest-upsample of the 3x3 weight -> (224, 224)
            def band(i):
                # (1, 224) row of the upsampled weight map for weight-row i
                return jnp.where(cb2, w9[:, 3 * i + 2:3 * i + 3],
                                 jnp.where(cb1, w9[:, 3 * i + 1:3 * i + 2],
                                           w9[:, 3 * i:3 * i + 1]))

            wr0 = jnp.broadcast_to(band(0), (IMG, IMG))
            wr1 = jnp.broadcast_to(band(1), (IMG, IMG))
            wr2 = jnp.broadcast_to(band(2), (IMG, IMG))
            wmap = jnp.where(rb2, wr2, jnp.where(rb1, wr1, wr0))     # (224, 224)

            # mix: out = g + w*(x - g)  (FMA form), all channels in one statement
            xb = x_ref[b].astype(jnp.float32)                        # (3, 224, 224)
            gb = g_ref[b].astype(jnp.float32)
            out_ref[b] = (gb + wmap[None] * (xb - gb)).astype(out_ref.dtype)

    return fused_kernel


def _pick_batch_tile(batch, bt_max):
    """Largest divisor of `batch` <= bt_max, preferring >=2 grid steps (megacore)."""
    divs = [d for d in range(1, min(bt_max, batch) + 1) if batch % d == 0]
    multi_step = [d for d in divs if batch // d >= 2]
    return max(multi_step) if multi_step else max(divs)


def image_fusion_net_forward(params, x, x_gen, *, bt_max=4):
    assert x.shape == x_gen.shape and x.dtype == x_gen.dtype
    B = x.shape[0]
    bt = _pick_batch_tile(B, bt_max)
    grid = (B // bt,)

    img_spec = pl.BlockSpec((bt, NCH, IMG, IMG), lambda b: (b, 0, 0, 0))
    full = lambda shape: pl.BlockSpec(shape, lambda b, _s=shape: tuple(0 for _ in _s))

    # VMEM sizing: x/g/out blocks are double-buffered; last dim pads 224 -> 256 lanes.
    itemsize = jnp.dtype(x.dtype).itemsize
    img_block_bytes = bt * NCH * IMG * 256 * itemsize
    vmem_needed = 3 * 2 * img_block_bytes + (4 << 20)     # + params / scratch headroom
    vmem_limit = int(min(max(int(vmem_needed * 5 // 4), 32 << 20), 96 << 20))

    return pl.pallas_call(
        make_fused_kernel(bt),
        out_shape=jax.ShapeDtypeStruct((B, NCH, IMG, IMG), x.dtype),
        grid=grid,
        in_specs=[
            img_spec,                              # x
            img_spec,                              # x_gen
            full((NCH, IMG, ENC_C)),               # w_enc_x
            full((1, ENC_C)),                      # b_enc_x
            full((NCH, IMG, ENC_C)),               # w_enc_g
            full((1, ENC_C)),                      # b_enc_g
            full((ENC_C, BLOCK * BLOCK)),          # w_fc_x
            full((ENC_C, BLOCK * BLOCK)),          # w_fc_g
            full((1, BLOCK * BLOCK)),              # b_fc
        ],
        out_specs=img_spec,
        compiler_params=pltpu.CompilerParams(
            dimension_semantics=("parallel",),     # batch-tile axis -> megacore/TCs
            vmem_limit_bytes=vmem_limit),
    )(x, x_gen,
      params["w_enc_x"], params["b_enc_x"],
      params["w_enc_g"], params["b_enc_g"],
      params["w_fc_x"], params["w_fc_g"], params["b_fc"])


# ---------------------------------------------------------------------------
# Pure-JAX reference matching the PyTorch semantics (with the same encoder)
# ---------------------------------------------------------------------------
def reference_forward(params, x, x_gen):
    def encode(img, W, b):
        # Conv2d(3, C, kernel=(1,224), stride=(1,224)) -> ReLU -> global pool
        pre = jnp.einsum("bchw,cwo->bho", img, W) + b           # (B, 224, C)
        return jax.nn.relu(pre).mean(axis=1)                    # (B, C)

    fx = encode(x, params["w_enc_x"], params["b_enc_x"])
    fg = encode(x_gen, params["w_enc_g"], params["b_enc_g"])
    feat = jnp.concatenate([fx, fg], axis=-1)                   # (B, 2C)
    w_fc = jnp.concatenate([params["w_fc_x"], params["w_fc_g"]], axis=0)
    w9 = feat @ w_fc + params["b_fc"]                           # (B, 9)
    w33 = w9.reshape(-1, BLOCK, BLOCK)
    wup = jnp.repeat(jnp.repeat(w33, UPSCALE, axis=1), UPSCALE, axis=2)
    wup = wup[:, None, :IMG, :IMG]                              # (B,1,224,224)
    return wup * x + (1.0 - wup) * x_gen


def init_params(key):
    ks = jax.random.split(key, 5)
    scale_enc = 1.0 / jnp.sqrt(NCH * IMG)
    scale_fc = 1.0 / jnp.sqrt(2 * ENC_C)
    return {
        # Conv2d(3, C, (1,224), stride=(1,224)) weights as (3, 224, C).
        "w_enc_x": jax.random.normal(ks[0], (NCH, IMG, ENC_C), jnp.float32) * scale_enc,
        "b_enc_x": jnp.zeros((1, ENC_C), jnp.float32),
        "w_enc_g": jax.random.normal(ks[1], (NCH, IMG, ENC_C), jnp.float32) * scale_enc,
        "b_enc_g": jnp.zeros((1, ENC_C), jnp.float32),
        # nn.Linear(2C, 9) split into the halves acting on each feature block.
        "w_fc_x": jax.random.normal(ks[2], (ENC_C, BLOCK * BLOCK), jnp.float32) * scale_fc,
        "w_fc_g": jax.random.normal(ks[3], (ENC_C, BLOCK * BLOCK), jnp.float32) * scale_fc,
        "b_fc": jax.random.normal(ks[4], (1, BLOCK * BLOCK), jnp.float32) * scale_fc,
    }


if __name__ == "__main__":
    key = jax.random.PRNGKey(0)
    kx, kg = jax.random.split(key)
    B = 4
    # 224x224 is hard-coded in ImageFusionNet.upsample, so we keep it.
    x = jax.random.uniform(kx, (B, NCH, IMG, IMG), jnp.float32)
    x_gen = jax.random.uniform(kg, (B, NCH, IMG, IMG), jnp.float32)

    params = init_params(jax.random.PRNGKey(42))

    out = jax.block_until_ready(image_fusion_net_forward(params, x, x_gen))
    ref = jax.block_until_ready(reference_forward(params, x, x_gen))

    assert out.shape == (B, NCH, IMG, IMG)
    err = float(jnp.max(jnp.abs(out - ref)))
    assert jnp.allclose(out, ref, atol=1e-4, rtol=1e-4), err
    print("KERNEL_OK")
</pallas_src>

<mosaic_0001>
module attributes {stable_mosaic.version = 11 : i64} {
  func.func @fused_kernel(%arg0: i32, %arg1: memref<2x3x224x224xf32, #tpu.memory_space<vmem>>, %arg2: memref<2x3x224x224xf32, #tpu.memory_space<vmem>>, %arg3: memref<3x224x32xf32, #tpu.memory_space<vmem>>, %arg4: memref<1x32xf32, #tpu.memory_space<vmem>>, %arg5: memref<3x224x32xf32, #tpu.memory_space<vmem>>, %arg6: memref<1x32xf32, #tpu.memory_space<vmem>>, %arg7: memref<32x9xf32, #tpu.memory_space<vmem>>, %arg8: memref<32x9xf32, #tpu.memory_space<vmem>>, %arg9: memref<1x9xf32, #tpu.memory_space<vmem>>, %arg10: memref<2x3x224x224xf32, #tpu.memory_space<vmem>>) attributes {dimension_semantics = [#tpu.dimension_semantics<parallel>], iteration_bounds = array<i64: 2>, scalar_prefetch = 0 : i64, scratch_operands = 0 : i64, tpu.core_type = #tpu.core_type<tc>, window_params = [{transform_indices = @transform_0, window_bounds = array<i64: 2, 3, 224, 224>}, {transform_indices = @transform_1, window_bounds = array<i64: 2, 3, 224, 224>}, {pipeline_mode = #tpu.pipeline_mode<synchronous>, transform_indices = @transform_2, window_bounds = array<i64: 3, 224, 32>}, {pipeline_mode = #tpu.pipeline_mode<synchronous>, transform_indices = @transform_3, window_bounds = array<i64: 1, 32>}, {pipeline_mode = #tpu.pipeline_mode<synchronous>, transform_indices = @transform_4, window_bounds = array<i64: 3, 224, 32>}, {pipeline_mode = #tpu.pipeline_mode<synchronous>, transform_indices = @transform_5, window_bounds = array<i64: 1, 32>}, {pipeline_mode = #tpu.pipeline_mode<synchronous>, transform_indices = @transform_6, window_bounds = array<i64: 32, 9>}, {pipeline_mode = #tpu.pipeline_mode<synchronous>, transform_indices = @transform_7, window_bounds = array<i64: 32, 9>}, {pipeline_mode = #tpu.pipeline_mode<synchronous>, transform_indices = @transform_8, window_bounds = array<i64: 1, 9>}, {transform_indices = @transform_9, window_bounds = array<i64: 2, 3, 224, 224>}]} {
    %0 = tpu.iota {dimensions = array<i32: 1>} : vector<1x224xi32>
    %1 = tpu.iota {dimensions = array<i32: 0>} : vector<224x1xi32>
    %c75_i32 = arith.constant 75 : i32
    %2 = vector.broadcast %c75_i32 : i32 to vector<1x224xi32>
    %3 = arith.cmpi sge, %0, %2 : vector<1x224xi32>
    %c150_i32 = arith.constant 150 : i32
    %4 = vector.broadcast %c150_i32 : i32 to vector<1x224xi32>
    %5 = arith.cmpi sge, %0, %4 : vector<1x224xi32>
    %c75_i32_0 = arith.constant 75 : i32
    %6 = vector.broadcast %c75_i32_0 : i32 to vector<224x1xi32>
    %7 = arith.cmpi sge, %1, %6 : vector<224x1xi32>
    %8 = vector.shape_cast %7 : vector<224x1xi1> to vector<224x1xi1>
    %9 = vector.broadcast %8 : vector<224x1xi1> to vector<224x224xi1>
    %c150_i32_1 = arith.constant 150 : i32
    %10 = vector.broadcast %c150_i32_1 : i32 to vector<224x1xi32>
    %11 = arith.cmpi sge, %1, %10 : vector<224x1xi32>
    %12 = vector.shape_cast %11 : vector<224x1xi1> to vector<224x1xi1>
    %13 = vector.broadcast %12 : vector<224x1xi1> to vector<224x224xi1>
    %c0 = arith.constant 0 : index
    %c0_2 = arith.constant 0 : index
    %c0_3 = arith.constant 0 : index
    %c0_4 = arith.constant 0 : index
    %14 = vector.load %arg1[%c0, %c0_2, %c0_3, %c0_4] : memref<2x3x224x224xf32, #tpu.memory_space<vmem>>, vector<1x1x224x224xf32>
    %15 = vector.shape_cast %14 : vector<1x1x224x224xf32> to vector<224x224xf32>
    %c0_5 = arith.constant 0 : index
    %c0_6 = arith.constant 0 : index
    %c0_7 = arith.constant 0 : index
    %16 = vector.load %arg3[%c0_5, %c0_6, %c0_7] : memref<3x224x32xf32, #tpu.memory_space<vmem>>, vector<1x224x32xf32>
    %17 = vector.shape_cast %16 : vector<1x224x32xf32> to vector<224x32xf32>
    %cst = arith.constant dense<0.000000e+00> : vector<224x32xf32>
    %18 = tpu.matmul %15, %17, %cst {dimension_numbers = #tpu.dot_dimension_numbers<[1], [0], [0], [1], [0, 0, 1, 1], [], []>} : vector<224x224xf32>, vector<224x32xf32>, vector<224x32xf32> -> vector<224x32xf32>
    %c0_8 = arith.constant 0 : index
    %c1 = arith.constant 1 : index
    %c0_9 = arith.constant 0 : index
    %c0_10 = arith.constant 0 : index
    %19 = vector.load %arg1[%c0_8, %c1, %c0_9, %c0_10] : memref<2x3x224x224xf32, #tpu.memory_space<vmem>>, vector<1x1x224x224xf32>
    %20 = vector.shape_cast %19 : vector<1x1x224x224xf32> to vector<224x224xf32>
    %c1_11 = arith.constant 1 : index
    %c0_12 = arith.constant 0 : index
    %c0_13 = arith.constant 0 : index
    %21 = vector.load %arg3[%c1_11, %c0_12, %c0_13] : memref<3x224x32xf32, #tpu.memory_space<vmem>>, vector<1x224x32xf32>
    %22 = vector.shape_cast %21 : vector<1x224x32xf32> to vector<224x32xf32>
    %cst_14 = arith.constant dense<0.000000e+00> : vector<224x32xf32>
    %23 = tpu.matmul %20, %22, %cst_14 {dimension_numbers = #tpu.dot_dimension_numbers<[1], [0], [0], [1], [0, 0, 1, 1], [], []>} : vector<224x224xf32>, vector<224x32xf32>, vector<224x32xf32> -> vector<224x32xf32>
    %24 = arith.addf %18, %23 : vector<224x32xf32>
    %c0_15 = arith.constant 0 : index
    %c2 = arith.constant 2 : index
    %c0_16 = arith.constant 0 : index
    %c0_17 = arith.constant 0 : index
    %25 = vector.load %arg1[%c0_15, %c2, %c0_16, %c0_17] : memref<2x3x224x224xf32, #tpu.memory_space<vmem>>, vector<1x1x224x224xf32>
    %26 = vector.shape_cast %25 : vector<1x1x224x224xf32> to vector<224x224xf32>
    %c2_18 = arith.constant 2 : index
    %c0_19 = arith.constant 0 : index
    %c0_20 = arith.constant 0 : index
    %27 = vector.load %arg3[%c2_18, %c0_19, %c0_20] : memref<3x224x32xf32, #tpu.memory_space<vmem>>, vector<1x224x32xf32>
    %28 = vector.shape_cast %27 : vector<1x224x32xf32> to vector<224x32xf32>
    %cst_21 = arith.constant dense<0.000000e+00> : vector<224x32xf32>
    %29 = tpu.matmul %26, %28, %cst_21 {dimension_numbers = #tpu.dot_dimension_numbers<[1], [0], [0], [1], [0, 0, 1, 1], [], []>} : vector<224x224xf32>, vector<224x32xf32>, vector<224x32xf32> -> vector<224x32xf32>
    %30 = arith.addf %24, %29 : vector<224x32xf32>
    %c0_22 = arith.constant 0 : index
    %c0_23 = arith.constant 0 : index
    %31 = vector.load %arg4[%c0_22, %c0_23] : memref<1x32xf32, #tpu.memory_space<vmem>>, vector<1x32xf32>
    %32 = vector.broadcast %31 : vector<1x32xf32> to vector<224x32xf32>
    %33 = arith.addf %30, %32 : vector<224x32xf32>
    %cst_24 = arith.constant 0.000000e+00 : f32
    %34 = vector.broadcast %cst_24 : f32 to vector<224x32xf32>
    %35 = arith.maximumf %33, %34 : vector<224x32xf32>
    %cst_25 = arith.constant dense<0.000000e+00> : vector<32xf32>
    %36 = vector.multi_reduction <add>, %35, %cst_25 [0] : vector<224x32xf32> to vector<32xf32>
    %37 = vector.shape_cast %36 : vector<32xf32> to vector<1x32xf32>
    %cst_26 = arith.constant 2.240000e+02 : f32
    %38 = vector.broadcast %cst_26 : f32 to vector<1x32xf32>
    %39 = arith.divf %37, %38 : vector<1x32xf32>
    %c0_27 = arith.constant 0 : index
    %c0_28 = arith.constant 0 : index
    %c0_29 = arith.constant 0 : index
    %c0_30 = arith.constant 0 : index
    %40 = vector.load %arg2[%c0_27, %c0_28, %c0_29, %c0_30] : memref<2x3x224x224xf32, #tpu.memory_space<vmem>>, vector<1x1x224x224xf32>
    %41 = vector.shape_cast %40 : vector<1x1x224x224xf32> to vector<224x224xf32>
    %c0_31 = arith.constant 0 : index
    %c0_32 = arith.constant 0 : index
    %c0_33 = arith.constant 0 : index
    %42 = vector.load %arg5[%c0_31, %c0_32, %c0_33] : memref<3x224x32xf32, #tpu.memory_space<vmem>>, vector<1x224x32xf32>
    %43 = vector.shape_cast %42 : vector<1x224x32xf32> to vector<224x32xf32>
    %cst_34 = arith.constant dense<0.000000e+00> : vector<224x32xf32>
    %44 = tpu.matmul %41, %43, %cst_34 {dimension_numbers = #tpu.dot_dimension_numbers<[1], [0], [0], [1], [0, 0, 1, 1], [], []>} : vector<224x224xf32>, vector<224x32xf32>, vector<224x32xf32> -> vector<224x32xf32>
    %c0_35 = arith.constant 0 : index
    %c1_36 = arith.constant 1 : index
    %c0_37 = arith.constant 0 : index
    %c0_38 = arith.constant 0 : index
    %45 = vector.load %arg2[%c0_35, %c1_36, %c0_37, %c0_38] : memref<2x3x224x224xf32, #tpu.memory_space<vmem>>, vector<1x1x224x224xf32>
    %46 = vector.shape_cast %45 : vector<1x1x224x224xf32> to vector<224x224xf32>
    %c1_39 = arith.constant 1 : index
    %c0_40 = arith.constant 0 : index
    %c0_41 = arith.constant 0 : index
    %47 = vector.load %arg5[%c1_39, %c0_40, %c0_41] : memref<3x224x32xf32, #tpu.memory_space<vmem>>, vector<1x224x32xf32>
    %48 = vector.shape_cast %47 : vector<1x224x32xf32> to vector<224x32xf32>
    %cst_42 = arith.constant dense<0.000000e+00> : vector<224x32xf32>
    %49 = tpu.matmul %46, %48, %cst_42 {dimension_numbers = #tpu.dot_dimension_numbers<[1], [0], [0], [1], [0, 0, 1, 1], [], []>} : vector<224x224xf32>, vector<224x32xf32>, vector<224x32xf32> -> vector<224x32xf32>
    %50 = arith.addf %44, %49 : vector<224x32xf32>
    %c0_43 = arith.constant 0 : index
    %c2_44 = arith.constant 2 : index
    %c0_45 = arith.constant 0 : index
    %c0_46 = arith.constant 0 : index
    %51 = vector.load %arg2[%c0_43, %c2_44, %c0_45, %c0_46] : memref<2x3x224x224xf32, #tpu.memory_space<vmem>>, vector<1x1x224x224xf32>
    %52 = vector.shape_cast %51 : vector<1x1x224x224xf32> to vector<224x224xf32>
    %c2_47 = arith.constant 2 : index
    %c0_48 = arith.constant 0 : index
    %c0_49 = arith.constant 0 : index
    %53 = vector.load %arg5[%c2_47, %c0_48, %c0_49] : memref<3x224x32xf32, #tpu.memory_space<vmem>>, vector<1x224x32xf32>
    %54 = vector.shape_cast %53 : vector<1x224x32xf32> to vector<224x32xf32>
    %cst_50 = arith.constant dense<0.000000e+00> : vector<224x32xf32>
    %55 = tpu.matmul %52, %54, %cst_50 {dimension_numbers = #tpu.dot_dimension_numbers<[1], [0], [0], [1], [0, 0, 1, 1], [], []>} : vector<224x224xf32>, vector<224x32xf32>, vector<224x32xf32> -> vector<224x32xf32>
    %56 = arith.addf %50, %55 : vector<224x32xf32>
    %c0_51 = arith.constant 0 : index
    %c0_52 = arith.constant 0 : index
    %57 = vector.load %arg6[%c0_51, %c0_52] : memref<1x32xf32, #tpu.memory_space<vmem>>, vector<1x32xf32>
    %58 = vector.broadcast %57 : vector<1x32xf32> to vector<224x32xf32>
    %59 = arith.addf %56, %58 : vector<224x32xf32>
    %cst_53 = arith.constant 0.000000e+00 : f32
    %60 = vector.broadcast %cst_53 : f32 to vector<224x32xf32>
    %61 = arith.maximumf %59, %60 : vector<224x32xf32>
    %cst_54 = arith.constant dense<0.000000e+00> : vector<32xf32>
    %62 = vector.multi_reduction <add>, %61, %cst_54 [0] : vector<224x32xf32> to vector<32xf32>
    %63 = vector.shape_cast %62 : vector<32xf32> to vector<1x32xf32>
    %cst_55 = arith.constant 2.240000e+02 : f32
    %64 = vector.broadcast %cst_55 : f32 to vector<1x32xf32>
    %65 = arith.divf %63, %64 : vector<1x32xf32>
    %c0_56 = arith.constant 0 : index
    %c0_57 = arith.constant 0 : index
    %66 = vector.load %arg7[%c0_56, %c0_57] : memref<32x9xf32, #tpu.memory_space<vmem>>, vector<32x9xf32>
    %cst_58 = arith.constant dense<0.000000e+00> : vector<1x9xf32>
    %67 = tpu.matmul %39, %66, %cst_58 {dimension_numbers = #tpu.dot_dimension_numbers<[1], [0], [0], [1], [0, 0, 1, 1], [], []>} : vector<1x32xf32>, vector<32x9xf32>, vector<1x9xf32> -> vector<1x9xf32>
    %c0_59 = arith.constant 0 : index
    %c0_60 = arith.constant 0 : index
    %68 = vector.load %arg8[%c0_59, %c0_60] : memref<32x9xf32, #tpu.memory_space<vmem>>, vector<32x9xf32>
    %cst_61 = arith.constant dense<0.000000e+00> : vector<1x9xf32>
    %69 = tpu.matmul %65, %68, %cst_61 {dimension_numbers = #tpu.dot_dimension_numbers<[1], [0], [0], [1], [0, 0, 1, 1], [], []>} : vector<1x32xf32>, vector<32x9xf32>, vector<1x9xf32> -> vector<1x9xf32>
    %70 = arith.addf %67, %69 : vector<1x9xf32>
    %c0_62 = arith.constant 0 : index
    %c0_63 = arith.constant 0 : index
    %71 = vector.load %arg9[%c0_62, %c0_63] : memref<1x9xf32, #tpu.memory_space<vmem>>, vector<1x9xf32>
    %72 = arith.addf %70, %71 : vector<1x9xf32>
    %73 = vector.extract_strided_slice %72 {offsets = [0, 2], sizes = [1, 1], strides = [1, 1]} : vector<1x9xf32> to vector<1x1xf32>
    %74 = vector.extract_strided_slice %72 {offsets = [0, 1], sizes = [1, 1], strides = [1, 1]} : vector<1x9xf32> to vector<1x1xf32>
    %75 = vector.extract_strided_slice %72 {offsets = [0, 0], sizes = [1, 1], strides = [1, 1]} : vector<1x9xf32> to vector<1x1xf32>
    %76 = vector.shape_cast %74 : vector<1x1xf32> to vector<1x1xf32>
    %77 = vector.broadcast %76 : vector<1x1xf32> to vector<1x224xf32>
    %78 = vector.shape_cast %75 : vector<1x1xf32> to vector<1x1xf32>
    %79 = vector.broadcast %78 : vector<1x1xf32> to vector<1x224xf32>
    %80 = arith.select %3, %77, %79 : vector<1x224xi1>, vector<1x224xf32>
    %81 = vector.shape_cast %73 : vector<1x1xf32> to vector<1x1xf32>
    %82 = vector.broadcast %81 : vector<1x1xf32> to vector<1x224xf32>
    %83 = arith.select %5, %82, %80 : vector<1x224xi1>, vector<1x224xf32>
    %84 = vector.shape_cast %83 : vector<1x224xf32> to vector<1x224xf32>
    %85 = vector.broadcast %84 : vector<1x224xf32> to vector<224x224xf32>
    %86 = vector.extract_strided_slice %72 {offsets = [0, 5], sizes = [1, 1], strides = [1, 1]} : vector<1x9xf32> to vector<1x1xf32>
    %87 = vector.extract_strided_slice %72 {offsets = [0, 4], sizes = [1, 1], strides = [1, 1]} : vector<1x9xf32> to vector<1x1xf32>
    %88 = vector.extract_strided_slice %72 {offsets = [0, 3], sizes = [1, 1], strides = [1, 1]} : vector<1x9xf32> to vector<1x1xf32>
    %89 = vector.shape_cast %87 : vector<1x1xf32> to vector<1x1xf32>
    %90 = vector.broadcast %89 : vector<1x1xf32> to vector<1x224xf32>
    %91 = vector.shape_cast %88 : vector<1x1xf32> to vector<1x1xf32>
    %92 = vector.broadcast %91 : vector<1x1xf32> to vector<1x224xf32>
    %93 = arith.select %3, %90, %92 : vector<1x224xi1>, vector<1x224xf32>
    %94 = vector.shape_cast %86 : vector<1x1xf32> to vector<1x1xf32>
    %95 = vector.broadcast %94 : vector<1x1xf32> to vector<1x224xf32>
    %96 = arith.select %5, %95, %93 : vector<1x224xi1>, vector<1x224xf32>
    %97 = vector.shape_cast %96 : vector<1x224xf32> to vector<1x224xf32>
    %98 = vector.broadcast %97 : vector<1x224xf32> to vector<224x224xf32>
    %99 = vector.extract_strided_slice %72 {offsets = [0, 8], sizes = [1, 1], strides = [1, 1]} : vector<1x9xf32> to vector<1x1xf32>
    %100 = vector.extract_strided_slice %72 {offsets = [0, 7], sizes = [1, 1], strides = [1, 1]} : vector<1x9xf32> to vector<1x1xf32>
    %101 = vector.extract_strided_slice %72 {offsets = [0, 6], sizes = [1, 1], strides = [1, 1]} : vector<1x9xf32> to vector<1x1xf32>
    %102 = vector.shape_cast %100 : vector<1x1xf32> to vector<1x1xf32>
    %103 = vector.broadcast %102 : vector<1x1xf32> to vector<1x224xf32>
    %104 = vector.shape_cast %101 : vector<1x1xf32> to vector<1x1xf32>
    %105 = vector.broadcast %104 : vector<1x1xf32> to vector<1x224xf32>
    %106 = arith.select %3, %103, %105 : vector<1x224xi1>, vector<1x224xf32>
    %107 = vector.shape_cast %99 : vector<1x1xf32> to vector<1x1xf32>
    %108 = vector.broadcast %107 : vector<1x1xf32> to vector<1x224xf32>
    %109 = arith.select %5, %108, %106 : vector<1x224xi1>, vector<1x224xf32>
    %110 = vector.shape_cast %109 : vector<1x224xf32> to vector<1x224xf32>
    %111 = vector.broadcast %110 : vector<1x224xf32> to vector<224x224xf32>
    %112 = arith.select %9, %98, %85 : vector<224x224xi1>, vector<224x224xf32>
    %113 = arith.select %13, %111, %112 : vector<224x224xi1>, vector<224x224xf32>
    %c0_64 = arith.constant 0 : index
    %c0_65 = arith.constant 0 : index
    %c0_66 = arith.constant 0 : index
    %c0_67 = arith.constant 0 : index
    %114 = vector.load %arg1[%c0_64, %c0_65, %c0_66, %c0_67] : memref<2x3x224x224xf32, #tpu.memory_space<vmem>>, vector<1x3x224x224xf32>
    %115 = vector.shape_cast %114 : vector<1x3x224x224xf32> to vector<3x224x224xf32>
    %c0_68 = arith.constant 0 : index
    %c0_69 = arith.constant 0 : index
    %c0_70 = arith.constant 0 : index
    %c0_71 = arith.constant 0 : index
    %116 = vector.load %arg2[%c0_68, %c0_69, %c0_70, %c0_71] : memref<2x3x224x224xf32, #tpu.memory_space<vmem>>, vector<1x3x224x224xf32>
    %117 = vector.shape_cast %116 : vector<1x3x224x224xf32> to vector<3x224x224xf32>
    %118 = vector.shape_cast %113 : vector<224x224xf32> to vector<1x224x224xf32>
    %119 = arith.subf %115, %117 : vector<3x224x224xf32>
    %120 = vector.broadcast %118 : vector<1x224x224xf32> to vector<3x224x224xf32>
    %121 = arith.mulf %120, %119 : vector<3x224x224xf32>
    %122 = arith.addf %117, %121 : vector<3x224x224xf32>
    %c0_72 = arith.constant 0 : index
    %c0_73 = arith.constant 0 : index
    %c0_74 = arith.constant 0 : index
    %c0_75 = arith.constant 0 : index
    %123 = vector.load %arg10[%c0_72, %c0_73, %c0_74, %c0_75] : memref<2x3x224x224xf32, #tpu.memory_space<vmem>>, vector<1x3x224x224xf32>
    %124 = vector.shape_cast %123 : vector<1x3x224x224xf32> to vector<3x224x224xf32>
    %125 = vector.shape_cast %122 : vector<3x224x224xf32> to vector<1x3x224x224xf32>
    tpu.vector_store %arg10[%c0_72, %c0_73, %c0_74, %c0_75], %125 {strides = array<i32>} : memref<2x3x224x224xf32, #tpu.memory_space<vmem>>, vector<1x3x224x224xf32>,
    %c1_76 = arith.constant 1 : index
    %c0_77 = arith.constant 0 : index
    %c0_78 = arith.constant 0 : index
    %c0_79 = arith.constant 0 : index
    %126 = vector.load %arg1[%c1_76, %c0_77, %c0_78, %c0_79] : memref<2x3x224x224xf32, #tpu.memory_space<vmem>>, vector<1x1x224x224xf32>
    %127 = vector.shape_cast %126 : vector<1x1x224x224xf32> to vector<224x224xf32>
    %c0_80 = arith.constant 0 : index
    %c0_81 = arith.constant 0 : index
    %c0_82 = arith.constant 0 : index
    %128 = vector.load %arg3[%c0_80, %c0_81, %c0_82] : memref<3x224x32xf32, #tpu.memory_space<vmem>>, vector<1x224x32xf32>
    %129 = vector.shape_cast %128 : vector<1x224x32xf32> to vector<224x32xf32>
    %cst_83 = arith.constant dense<0.000000e+00> : vector<224x32xf32>
    %130 = tpu.matmul %127, %129, %cst_83 {dimension_numbers = #tpu.dot_dimension_numbers<[1], [0], [0], [1], [0, 0, 1, 1], [], []>} : vector<224x224xf32>, vector<224x32xf32>, vector<224x32xf32> -> vector<224x32xf32>
    %c1_84 = arith.constant 1 : index
    %c1_85 = arith.constant 1 : index
    %c0_86 = arith.constant 0 : index
    %c0_87 = arith.constant 0 : index
    %131 = vector.load %arg1[%c1_84, %c1_85, %c0_86, %c0_87] : memref<2x3x224x224xf32, #tpu.memory_space<vmem>>, vector<1x1x224x224xf32>
    %132 = vector.shape_cast %131 : vector<1x1x224x224xf32> to vector<224x224xf32>
    %c1_88 = arith.constant 1 : index
    %c0_89 = arith.constant 0 : index
    %c0_90 = arith.constant 0 : index
    %133 = vector.load %arg3[%c1_88, %c0_89, %c0_90] : memref<3x224x32xf32, #tpu.memory_space<vmem>>, vector<1x224x32xf32>
    %134 = vector.shape_cast %133 : vector<1x224x32xf32> to vector<224x32xf32>
    %cst_91 = arith.constant dense<0.000000e+00> : vector<224x32xf32>
    %135 = tpu.matmul %132, %134, %cst_91 {dimension_numbers = #tpu.dot_dimension_numbers<[1], [0], [0], [1], [0, 0, 1, 1], [], []>} : vector<224x224xf32>, vector<224x32xf32>, vector<224x32xf32> -> vector<224x32xf32>
    %136 = arith.addf %130, %135 : vector<224x32xf32>
    %c1_92 = arith.constant 1 : index
    %c2_93 = arith.constant 2 : index
    %c0_94 = arith.constant 0 : index
    %c0_95 = arith.constant 0 : index
    %137 = vector.load %arg1[%c1_92, %c2_93, %c0_94, %c0_95] : memref<2x3x224x224xf32, #tpu.memory_space<vmem>>, vector<1x1x224x224xf32>
    %138 = vector.shape_cast %137 : vector<1x1x224x224xf32> to vector<224x224xf32>
    %c2_96 = arith.constant 2 : index
    %c0_97 = arith.constant 0 : index
    %c0_98 = arith.constant 0 : index
    %139 = vector.load %arg3[%c2_96, %c0_97, %c0_98] : memref<3x224x32xf32, #tpu.memory_space<vmem>>, vector<1x224x32xf32>
    %140 = vector.shape_cast %139 : vector<1x224x32xf32> to vector<224x32xf32>
    %cst_99 = arith.constant dense<0.000000e+00> : vector<224x32xf32>
    %141 = tpu.matmul %138, %140, %cst_99 {dimension_numbers = #tpu.dot_dimension_numbers<[1], [0], [0], [1], [0, 0, 1, 1], [], []>} : vector<224x224xf32>, vector<224x32xf32>, vector<224x32xf32> -> vector<224x32xf32>
    %142 = arith.addf %136, %141 : vector<224x32xf32>
    %c0_100 = arith.constant 0 : index
    %c0_101 = arith.constant 0 : index
    %143 = vector.load %arg4[%c0_100, %c0_101] : memref<1x32xf32, #tpu.memory_space<vmem>>, vector<1x32xf32>
    %144 = vector.broadcast %143 : vector<1x32xf32> to vector<224x32xf32>
    %145 = arith.addf %142, %144 : vector<224x32xf32>
    %cst_102 = arith.constant 0.000000e+00 : f32
    %146 = vector.broadcast %cst_102 : f32 to vector<224x32xf32>
    %147 = arith.maximumf %145, %146 : vector<224x32xf32>
    %cst_103 = arith.constant dense<0.000000e+00> : vector<32xf32>
    %148 = vector.multi_reduction <add>, %147, %cst_103 [0] : vector<224x32xf32> to vector<32xf32>
    %149 = vector.shape_cast %148 : vector<32xf32> to vector<1x32xf32>
    %cst_104 = arith.constant 2.240000e+02 : f32
    %150 = vector.broadcast %cst_104 : f32 to vector<1x32xf32>
    %151 = arith.divf %149, %150 : vector<1x32xf32>
    %c1_105 = arith.constant 1 : index
    %c0_106 = arith.constant 0 : index
    %c0_107 = arith.constant 0 : index
    %c0_108 = arith.constant 0 : index
    %152 = vector.load %arg2[%c1_105, %c0_106, %c0_107, %c0_108] : memref<2x3x224x224xf32, #tpu.memory_space<vmem>>, vector<1x1x224x224xf32>
    %153 = vector.shape_cast %152 : vector<1x1x224x224xf32> to vector<224x224xf32>
    %c0_109 = arith.constant 0 : index
    %c0_110 = arith.constant 0 : index
    %c0_111 = arith.constant 0 : index
    %154 = vector.load %arg5[%c0_109, %c0_110, %c0_111] : memref<3x224x32xf32, #tpu.memory_space<vmem>>, vector<1x224x32xf32>
    %155 = vector.shape_cast %154 : vector<1x224x32xf32> to vector<224x32xf32>
    %cst_112 = arith.constant dense<0.000000e+00> : vector<224x32xf32>
    %156 = tpu.matmul %153, %155, %cst_112 {dimension_numbers = #tpu.dot_dimension_numbers<[1], [0], [0], [1], [0, 0, 1, 1], [], []>} : vector<224x224xf32>, vector<224x32xf32>, vector<224x32xf32> -> vector<224x32xf32>
    %c1_113 = arith.constant 1 : index
    %c1_114 = arith.constant 1 : index
    %c0_115 = arith.constant 0 : index
    %c0_116 = arith.constant 0 : index
    %157 = vector.load %arg2[%c1_113, %c1_114, %c0_115, %c0_116] : memref<2x3x224x224xf32, #tpu.memory_space<vmem>>, vector<1x1x224x224xf32>
    %158 = vector.shape_cast %157 : vector<1x1x224x224xf32> to vector<224x224xf32>
    %c1_117 = arith.constant 1 : index
    %c0_118 = arith.constant 0 : index
    %c0_119 = arith.constant 0 : index
    %159 = vector.load %arg5[%c1_117, %c0_118, %c0_119] : memref<3x224x32xf32, #tpu.memory_space<vmem>>, vector<1x224x32xf32>
    %160 = vector.shape_cast %159 : vector<1x224x32xf32> to vector<224x32xf32>
    %cst_120 = arith.constant dense<0.000000e+00> : vector<224x32xf32>
    %161 = tpu.matmul %158, %160, %cst_120 {dimension_numbers = #tpu.dot_dimension_numbers<[1], [0], [0], [1], [0, 0, 1, 1], [], []>} : vector<224x224xf32>, vector<224x32xf32>, vector<224x32xf32> -> vector<224x32xf32>
    %162 = arith.addf %156, %161 : vector<224x32xf32>
    %c1_121 = arith.constant 1 : index
    %c2_122 = arith.constant 2 : index
    %c0_123 = arith.constant 0 : index
    %c0_124 = arith.constant 0 : index
    %163 = vector.load %arg2[%c1_121, %c2_122, %c0_123, %c0_124] : memref<2x3x224x224xf32, #tpu.memory_space<vmem>>, vector<1x1x224x224xf32>
    %164 = vector.shape_cast %163 : vector<1x1x224x224xf32> to vector<224x224xf32>
    %c2_125 = arith.constant 2 : index
    %c0_126 = arith.constant 0 : index
    %c0_127 = arith.constant 0 : index
    %165 = vector.load %arg5[%c2_125, %c0_126, %c0_127] : memref<3x224x32xf32, #tpu.memory_space<vmem>>, vector<1x224x32xf32>
    %166 = vector.shape_cast %165 : vector<1x224x32xf32> to vector<224x32xf32>
    %cst_128 = arith.constant dense<0.000000e+00> : vector<224x32xf32>
    %167 = tpu.matmul %164, %166, %cst_128 {dimension_numbers = #tpu.dot_dimension_numbers<[1], [0], [0], [1], [0, 0, 1, 1], [], []>} : vector<224x224xf32>, vector<224x32xf32>, vector<224x32xf32> -> vector<224x32xf32>
    %168 = arith.addf %162, %167 : vector<224x32xf32>
    %c0_129 = arith.constant 0 : index
    %c0_130 = arith.constant 0 : index
    %169 = vector.load %arg6[%c0_129, %c0_130] : memref<1x32xf32, #tpu.memory_space<vmem>>, vector<1x32xf32>
    %170 = vector.broadcast %169 : vector<1x32xf32> to vector<224x32xf32>
    %171 = arith.addf %168, %170 : vector<224x32xf32>
    %cst_131 = arith.constant 0.000000e+00 : f32
    %172 = vector.broadcast %cst_131 : f32 to vector<224x32xf32>
    %173 = arith.maximumf %171, %172 : vector<224x32xf32>
    %cst_132 = arith.constant dense<0.000000e+00> : vector<32xf32>
    %174 = vector.multi_reduction <add>, %173, %cst_132 [0] : vector<224x32xf32> to vector<32xf32>
    %175 = vector.shape_cast %174 : vector<32xf32> to vector<1x32xf32>
    %cst_133 = arith.constant 2.240000e+02 : f32
    %176 = vector.broadcast %cst_133 : f32 to vector<1x32xf32>
    %177 = arith.divf %175, %176 : vector<1x32xf32>
    %c0_134 = arith.constant 0 : index
    %c0_135 = arith.constant 0 : index
    %178 = vector.load %arg7[%c0_134, %c0_135] : memref<32x9xf32, #tpu.memory_space<vmem>>, vector<32x9xf32>
    %cst_136 = arith.constant dense<0.000000e+00> : vector<1x9xf32>
    %179 = tpu.matmul %151, %178, %cst_136 {dimension_numbers = #tpu.dot_dimension_numbers<[1], [0], [0], [1], [0, 0, 1, 1], [], []>} : vector<1x32xf32>, vector<32x9xf32>, vector<1x9xf32> -> vector<1x9xf32>
    %c0_137 = arith.constant 0 : index
    %c0_138 = arith.constant 0 : index
    %180 = vector.load %arg8[%c0_137, %c0_138] : memref<32x9xf32, #tpu.memory_space<vmem>>, vector<32x9xf32>
    %cst_139 = arith.constant dense<0.000000e+00> : vector<1x9xf32>
    %181 = tpu.matmul %177, %180, %cst_139 {dimension_numbers = #tpu.dot_dimension_numbers<[1], [0], [0], [1], [0, 0, 1, 1], [], []>} : vector<1x32xf32>, vector<32x9xf32>, vector<1x9xf32> -> vector<1x9xf32>
    %182 = arith.addf %179, %181 : vector<1x9xf32>
    %c0_140 = arith.constant 0 : index
    %c0_141 = arith.constant 0 : index
    %183 = vector.load %arg9[%c0_140, %c0_141] : memref<1x9xf32, #tpu.memory_space<vmem>>, vector<1x9xf32>
    %184 = arith.addf %182, %183 : vector<1x9xf32>
    %185 = vector.extract_strided_slice %184 {offsets = [0, 2], sizes = [1, 1], strides = [1, 1]} : vector<1x9xf32> to vector<1x1xf32>
    %186 = vector.extract_strided_slice %184 {offsets = [0, 1], sizes = [1, 1], strides = [1, 1]} : vector<1x9xf32> to vector<1x1xf32>
    %187 = vector.extract_strided_slice %184 {offsets = [0, 0], sizes = [1, 1], strides = [1, 1]} : vector<1x9xf32> to vector<1x1xf32>
    %188 = vector.shape_cast %186 : vector<1x1xf32> to vector<1x1xf32>
    %189 = vector.broadcast %188 : vector<1x1xf32> to vector<1x224xf32>
    %190 = vector.shape_cast %187 : vector<1x1xf32> to vector<1x1xf32>
    %191 = vector.broadcast %190 : vector<1x1xf32> to vector<1x224xf32>
    %192 = arith.select %3, %189, %191 : vector<1x224xi1>, vector<1x224xf32>
    %193 = vector.shape_cast %185 : vector<1x1xf32> to vector<1x1xf32>
    %194 = vector.broadcast %193 : vector<1x1xf32> to vector<1x224xf32>
    %195 = arith.select %5, %194, %192 : vector<1x224xi1>, vector<1x224xf32>
    %196 = vector.shape_cast %195 : vector<1x224xf32> to vector<1x224xf32>
    %197 = vector.broadcast %196 : vector<1x224xf32> to vector<224x224xf32>
    %198 = vector.extract_strided_slice %184 {offsets = [0, 5], sizes = [1, 1], strides = [1, 1]} : vector<1x9xf32> to vector<1x1xf32>
    %199 = vector.extract_strided_slice %184 {offsets = [0, 4], sizes = [1, 1], strides = [1, 1]} : vector<1x9xf32> to vector<1x1xf32>
    %200 = vector.extract_strided_slice %184 {offsets = [0, 3], sizes = [1, 1], strides = [1, 1]} : vector<1x9xf32> to vector<1x1xf32>
    %201 = vector.shape_cast %199 : vector<1x1xf32> to vector<1x1xf32>
    %202 = vector.broadcast %201 : vector<1x1xf32> to vector<1x224xf32>
    %203 = vector.shape_cast %200 : vector<1x1xf32> to vector<1x1xf32>
    %204 = vector.broadcast %203 : vector<1x1xf32> to vector<1x224xf32>
    %205 = arith.select %3, %202, %204 : vector<1x224xi1>, vector<1x224xf32>
    %206 = vector.shape_cast %198 : vector<1x1xf32> to vector<1x1xf32>
    %207 = vector.broadcast %206 : vector<1x1xf32> to vector<1x224xf32>
    %208 = arith.select %5, %207, %205 : vector<1x224xi1>, vector<1x224xf32>
    %209 = vector.shape_cast %208 : vector<1x224xf32> to vector<1x224xf32>
    %210 = vector.broadcast %209 : vector<1x224xf32> to vector<224x224xf32>
    %211 = vector.extract_strided_slice %184 {offsets = [0, 8], sizes = [1, 1], strides = [1, 1]} : vector<1x9xf32> to vector<1x1xf32>
    %212 = vector.extract_strided_slice %184 {offsets = [0, 7], sizes = [1, 1], strides = [1, 1]} : vector<1x9xf32> to vector<1x1xf32>
    %213 = vector.extract_strided_slice %184 {offsets = [0, 6], sizes = [1, 1], strides = [1, 1]} : vector<1x9xf32> to vector<1x1xf32>
    %214 = vector.shape_cast %212 : vector<1x1xf32> to vector<1x1xf32>
    %215 = vector.broadcast %214 : vector<1x1xf32> to vector<1x224xf32>
    %216 = vector.shape_cast %213 : vector<1x1xf32> to vector<1x1xf32>
    %217 = vector.broadcast %216 : vector<1x1xf32> to vector<1x224xf32>
    %218 = arith.select %3, %215, %217 : vector<1x224xi1>, vector<1x224xf32>
    %219 = vector.shape_cast %211 : vector<1x1xf32> to vector<1x1xf32>
    %220 = vector.broadcast %219 : vector<1x1xf32> to vector<1x224xf32>
    %221 = arith.select %5, %220, %218 : vector<1x224xi1>, vector<1x224xf32>
    %222 = vector.shape_cast %221 : vector<1x224xf32> to vector<1x224xf32>
    %223 = vector.broadcast %222 : vector<1x224xf32> to vector<224x224xf32>
    %224 = arith.select %9, %210, %197 : vector<224x224xi1>, vector<224x224xf32>
    %225 = arith.select %13, %223, %224 : vector<224x224xi1>, vector<224x224xf32>
    %c1_142 = arith.constant 1 : index
    %c0_143 = arith.constant 0 : index
    %c0_144 = arith.constant 0 : index
    %c0_145 = arith.constant 0 : index
    %226 = vector.load %arg1[%c1_142, %c0_143, %c0_144, %c0_145] : memref<2x3x224x224xf32, #tpu.memory_space<vmem>>, vector<1x3x224x224xf32>
    %227 = vector.shape_cast %226 : vector<1x3x224x224xf32> to vector<3x224x224xf32>
    %c1_146 = arith.constant 1 : index
    %c0_147 = arith.constant 0 : index
    %c0_148 = arith.constant 0 : index
    %c0_149 = arith.constant 0 : index
    %228 = vector.load %arg2[%c1_146, %c0_147, %c0_148, %c0_149] : memref<2x3x224x224xf32, #tpu.memory_space<vmem>>, vector<1x3x224x224xf32>
    %229 = vector.shape_cast %228 : vector<1x3x224x224xf32> to vector<3x224x224xf32>
    %230 = vector.shape_cast %225 : vector<224x224xf32> to vector<1x224x224xf32>
    %231 = arith.subf %227, %229 : vector<3x224x224xf32>
    %232 = vector.broadcast %230 : vector<1x224x224xf32> to vector<3x224x224xf32>
    %233 = arith.mulf %232, %231 : vector<3x224x224xf32>
    %234 = arith.addf %229, %233 : vector<3x224x224xf32>
    %c1_150 = arith.constant 1 : index
    %c0_151 = arith.constant 0 : index
    %c0_152 = arith.constant 0 : index
    %c0_153 = arith.constant 0 : index
    %235 = vector.load %arg10[%c1_150, %c0_151, %c0_152, %c0_153] : memref<2x3x224x224xf32, #tpu.memory_space<vmem>>, vector<1x3x224x224xf32>
    %236 = vector.shape_cast %235 : vector<1x3x224x224xf32> to vector<3x224x224xf32>
    %237 = vector.shape_cast %234 : vector<3x224x224xf32> to vector<1x3x224x224xf32>
    tpu.vector_store %arg10[%c1_150, %c0_151, %c0_152, %c0_153], %237 {strides = array<i32>} : memref<2x3x224x224xf32, #tpu.memory_space<vmem>>, vector<1x3x224x224xf32>,
    return
  }
  func.func @transform_0(%arg0: i32) -> (i32, i32, i32, i32) {
    %c0_i32 = arith.constant 0 : i32
    %c0_i32_0 = arith.constant 0 : i32
    %c0_i32_1 = arith.constant 0 : i32
    %c0_i32_2 = arith.constant 0 : i32
    return %arg0, %c0_i32, %c0_i32_0, %c0_i32_1 : i32, i32, i32, i32
  }
  func.func @transform_1(%arg0: i32) -> (i32, i32, i32, i32) {
    %c0_i32 = arith.constant 0 : i32
    %c0_i32_0 = arith.constant 0 : i32
    %c0_i32_1 = arith.constant 0 : i32
    %c0_i32_2 = arith.constant 0 : i32
    return %arg0, %c0_i32, %c0_i32_0, %c0_i32_1 : i32, i32, i32, i32
  }
  func.func @transform_2(%arg0: i32) -> (i32, i32, i32) {
    %c0_i32 = arith.constant 0 : i32
    %c0_i32_0 = arith.constant 0 : i32
    %c0_i32_1 = arith.constant 0 : i32
    %c0_i32_2 = arith.constant 0 : i32
    return %c0_i32, %c0_i32_0, %c0_i32_1 : i32, i32, i32
  }
  func.func @transform_3(%arg0: i32) -> (i32, i32) {
    %c0_i32 = arith.constant 0 : i32
    %c0_i32_0 = arith.constant 0 : i32
    %c0_i32_1 = arith.constant 0 : i32
    return %c0_i32, %c0_i32_0 : i32, i32
  }
  func.func @transform_4(%arg0: i32) -> (i32, i32, i32) {
    %c0_i32 = arith.constant 0 : i32
    %c0_i32_0 = arith.constant 0 : i32
    %c0_i32_1 = arith.constant 0 : i32
    %c0_i32_2 = arith.constant 0 : i32
    return %c0_i32, %c0_i32_0, %c0_i32_1 : i32, i32, i32
  }
  func.func @transform_5(%arg0: i32) -> (i32, i32) {
    %c0_i32 = arith.constant 0 : i32
    %c0_i32_0 = arith.constant 0 : i32
    %c0_i32_1 = arith.constant 0 : i32
    return %c0_i32, %c0_i32_0 : i32, i32
  }
  func.func @transform_6(%arg0: i32) -> (i32, i32) {
    %c0_i32 = arith.constant 0 : i32
    %c0_i32_0 = arith.constant 0 : i32
    %c0_i32_1 = arith.constant 0 : i32
    return %c0_i32, %c0_i32_0 : i32, i32
  }
  func.func @transform_7(%arg0: i32) -> (i32, i32) {
    %c0_i32 = arith.constant 0 : i32
    %c0_i32_0 = arith.constant 0 : i32
    %c0_i32_1 = arith.constant 0 : i32
    return %c0_i32, %c0_i32_0 : i32, i32
  }
  func.func @transform_8(%arg0: i32) -> (i32, i32) {
    %c0_i32 = arith.constant 0 : i32
    %c0_i32_0 = arith.constant 0 : i32
    %c0_i32_1 = arith.constant 0 : i32
    return %c0_i32, %c0_i32_0 : i32, i32
  }
  func.func @transform_9(%arg0: i32) -> (i32, i32, i32, i32) {
    %c0_i32 = arith.constant 0 : i32
    %c0_i32_0 = arith.constant 0 : i32
    %c0_i32_1 = arith.constant 0 : i32
    %c0_i32_2 = arith.constant 0 : i32
    return %arg0, %c0_i32, %c0_i32_0, %c0_i32_1 : i32, i32, i32, i32
  }
}

</mosaic_0001>

<llo_original>
// kernel: tpu_custom_call.1
$region0: #{tpu_custom_call.1}
  #allocation0 [shape = 'u32[]', space=smem, size = 0x4, offset = 0x4, fixed_abs, tag = 'smem constant byte address 0x4 - core index']
  #allocation1 [shape = 'u32[72,128]{1,0:T(1,128)}', space=vmem, size = 0x9000, scoped, tag = 'internal scratch']
  %s0 = inlined_call_operand.hbm [shape: f32[4,3,224,224], index: 0, kind: input, shape index: {}]
  %s1 = inlined_call_operand.hbm [shape: f32[4,3,224,224], index: 1, kind: input, shape index: {}]
  %s2 = inlined_call_operand.vmem [shape: f32[3,224,32], index: 2, kind: input, shape index: {}]
  %s3 = inlined_call_operand.hbm [shape: f32[1,32], index: 3, kind: input, shape index: {}]
  %s4 = inlined_call_operand.vmem [shape: f32[3,224,32], index: 4, kind: input, shape index: {}]
  %s5 = inlined_call_operand.hbm [shape: f32[1,32], index: 5, kind: input, shape index: {}]
  %s6 = inlined_call_operand.vmem [shape: f32[32,9], index: 6, kind: input, shape index: {}]
  %s7 = inlined_call_operand.vmem [shape: f32[32,9], index: 7, kind: input, shape index: {}]
  %s8 = inlined_call_operand.hbm [shape: f32[1,9], index: 8, kind: input, shape index: {}]
  %s9 = inlined_call_operand.hbm [shape: f32[4,3,224,224], index: 9, kind: output, shape index: {}]
  %s10 = sld [smem:[#allocation0]]
  $region89: #{tpu_custom_call.1} parent=0
    _
  %s12 = ssub.s32 1, %s10
  %s13 = scalar_select 0, %s12, %s10
  $region1: #{tpu_custom_call.1} parent=0
    #allocation2 [shape = 'u8[2752512]{0}', space=vmem, size = 0x2a0000, scoped, tag = 'input window, operand 0']
    #allocation3 [shape = 's32[2]{0}', space=sflag, size = 0x8, scoped, tag = 'scoped memory for tpu_custom_call.1']
    #allocation4 [shape = 's32[2]{0}', space=sflag, size = 0x8, scoped, tag = 'scoped memory for tpu_custom_call.1']
    #allocation5 [shape = 'u8[2752512]{0}', space=vmem, size = 0x2a0000, scoped, tag = 'input window, operand 1']
    #allocation6 [shape = 's32[2]{0}', space=sflag, size = 0x8, scoped, tag = 'scoped memory for tpu_custom_call.1']
    #allocation7 [shape = 'u8[512]{0}', space=vmem, size = 0x400, scoped, tag = 'input window, operand 3, single buffered']
    #allocation8 [shape = 'u8[512]{0}', space=vmem, size = 0x400, scoped, tag = 'input window, operand 5, single buffered']
    #allocation9 [shape = 's32[1]{0}', space=sflag, size = 0x4, scoped, tag = 'scoped memory for tpu_custom_call.1']
    #allocation10 [shape = 'u8[512]{0}', space=vmem, size = 0x400, scoped, tag = 'input window, operand 8, single buffered']
    #allocation11 [shape = 'u8[2752512]{0}', space=vmem, size = 0x2a0000, scoped, tag = 'output window, operand 0']
    %14 = vsyncpa [#allocation3], 0
    %s15 = scalar_lea.sflag [#allocation3], 1
    %16 = vsyncpa %s15, 0
    %17 = vsyncpa [#allocation6], 0
    %s18 = scalar_lea.sflag [#allocation6], 1
    %19 = vsyncpa %s18, 0
    %20 = vsyncpa [#allocation9], 0
    %21 = vsyncpa [#allocation4], 0
    %s22 = scalar_lea.sflag [#allocation4], 1
    %23 = vsyncpa %s22, 0
    loop: start=0, step=1, limit=4
    $region2: #{tpu_custom_call.1} parent=1 // loop_pre_header
      _
    $region3: #{tpu_custom_call.1} parent=1 // loop_header
      %s25 = sphi 0, %s29
      %p26 = scmp.ge.s32.totalorder %s25, 4
      %s35 = sphi 0, %s37
      %s38 = sphi 0, %s35
      %s39 = sphi 0, %s38
      %s55 = sphi 0, %s39
      %s61 = sphi 0, %s63
      %s64 = sphi 0, %s61
      %s65 = sphi 0, %s64
      %s81 = sphi 0, %s65
      %s85 = sphi 0, %s85
      %s87 = sphi 0, %s85
      %s88 = sphi 0, %s87
      %s102 = sphi 0, %s88
      %s106 = sphi 0, %s106
      %s108 = sphi 0, %s106
      %s109 = sphi 0, %s108
      %s123 = sphi 0, %s109
      %s127 = sphi 0, %s127
      %s129 = sphi 0, %s127
      %s130 = sphi 0, %s129
      %s144 = sphi 0, %s130
      %s148 = sphi 0, %s148
      %s150 = sphi 0, %s148
      %s151 = sphi 0, %s150
      %s165 = sphi 0, %s151
      %s169 = sphi 0, %s169
      %s171 = sphi 0, %s169
      %s172 = sphi 0, %s171
      %s186 = sphi 0, %s172
      %s190 = sphi 0, %s190
      %s192 = sphi 0, %s190
      %s193 = sphi 0, %s192
      %s207 = sphi 0, %s193
      %s211 = sphi 0, %s211
      %s213 = sphi 0, %s211
      %s214 = sphi 0, %s213
      %s228 = sphi 0, %s214
      %s234 = sphi 0, %s236
      %s237 = sphi 0, %s234
      %s238 = sphi 0, %s237
      %s254 = sphi 0, %s238
    $region4: #{tpu_custom_call.1} parent=1 // loop_header_branch
      %28 = sbr.rel (%p26) target = $region8
    $region5: #{tpu_custom_call.1} parent=1 // loop_body
      %s30 = ssub.s32 %s25, 1
      %s31 = ssub.s32 %s25, 2
      %s32 = sadd.s32 %s25, 1
      %s33 = ssub.s32 %s25, %s32
      %p34 = scmp.eq.s32.totalorder %s33, 0
      %s36 = sadd.s32 %s35, 1
      %s37 = scalar_select %p34, %s35, %s36
      %p40 = pneg %p34
      %p41 = scmp.eq.s32.totalorder %s25, 1
      %p42 = por %p40, %p41
      %p43 = scmp.ne.s32.totalorder %s35, %s38
      %p44 = scmp.eq.s32.totalorder %s25, 0
      %p45 = por %p43, %p44
      %p46 = scmp.ne.s32.totalorder %s35, %s38
      %p47 = scmp.eq.s32.totalorder %s30, 1
      %p48 = por %p46, %p47
      %p49 = scmp.ne.s32.totalorder %s38, %s39
      %p50 = scmp.eq.s32.totalorder %s30, 0
      %p51 = por %p49, %p50
      %p52 = scmp.ne.s32.totalorder %s38, %s39
      %p53 = scmp.eq.s32.totalorder %s31, 1
      %p54 = por %p52, %p53
      %p56 = scmp.ne.s32.totalorder %s39, %s55
      %p57 = scmp.eq.s32.totalorder %s31, 0
      %p58 = por %p56, %p57
      %s59 = ssub.s32 %s25, %s32
      %p60 = scmp.eq.s32.totalorder %s59, 0
      %s62 = sadd.s32 %s61, 1
      %s63 = scalar_select %p60, %s61, %s62
      %p66 = pneg %p60
      %p67 = scmp.eq.s32.totalorder %s25, 1
      %p68 = por %p66, %p67
      %p69 = scmp.ne.s32.totalorder %s61, %s64
      %p70 = scmp.eq.s32.totalorder %s25, 0
      %p71 = por %p69, %p70
      %p72 = scmp.ne.s32.totalorder %s61, %s64
      %p73 = scmp.eq.s32.totalorder %s30, 1
      %p74 = por %p72, %p73
      %p75 = scmp.ne.s32.totalorder %s64, %s65
      %p76 = scmp.eq.s32.totalorder %s30, 0
      %p77 = por %p75, %p76
      %p78 = scmp.ne.s32.totalorder %s64, %s65
      %p79 = scmp.eq.s32.totalorder %s31, 1
      %p80 = por %p78, %p79
      %p82 = scmp.ne.s32.totalorder %s65, %s81
      %p83 = scmp.eq.s32.totalorder %s31, 0
      %p84 = por %p82, %p83
      %s86 = sadd.s32 %s85, 1
      %p89 = scmp.eq.s32.totalorder %s25, 1
      %p90 = scmp.ne.s32.totalorder %s85, %s87
      %p91 = scmp.eq.s32.totalorder %s25, 0
      %p92 = por %p90, %p91
      %p93 = scmp.ne.s32.totalorder %s85, %s87
      %p94 = scmp.eq.s32.totalorder %s30, 1
      %p95 = por %p93, %p94
      %p96 = scmp.ne.s32.totalorder %s87, %s88
      %p97 = scmp.eq.s32.totalorder %s30, 0
      %p98 = por %p96, %p97
      %p99 = scmp.ne.s32.totalorder %s87, %s88
      %p100 = scmp.eq.s32.totalorder %s31, 1
      %p101 = por %p99, %p100
      %p103 = scmp.ne.s32.totalorder %s88, %s102
      %p104 = scmp.eq.s32.totalorder %s31, 0
      %p105 = por %p103, %p104
      %s107 = sadd.s32 %s106, 1
      %p110 = scmp.eq.s32.totalorder %s25, 1
      %p111 = scmp.ne.s32.totalorder %s106, %s108
      %p112 = scmp.eq.s32.totalorder %s25, 0
      %p113 = por %p111, %p112
      %p114 = scmp.ne.s32.totalorder %s106, %s108
      %p115 = scmp.eq.s32.totalorder %s30, 1
      %p116 = por %p114, %p115
      %p117 = scmp.ne.s32.totalorder %s108, %s109
      %p118 = scmp.eq.s32.totalorder %s30, 0
      %p119 = por %p117, %p118
      %p120 = scmp.ne.s32.totalorder %s108, %s109
      %p121 = scmp.eq.s32.totalorder %s31, 1
      %p122 = por %p120, %p121
      %p124 = scmp.ne.s32.totalorder %s109, %s123
      %p125 = scmp.eq.s32.totalorder %s31, 0
      %p126 = por %p124, %p125
      %s128 = sadd.s32 %s127, 1
      %p131 = scmp.eq.s32.totalorder %s25, 1
      %p132 = scmp.ne.s32.totalorder %s127, %s129
      %p133 = scmp.eq.s32.totalorder %s25, 0
      %p134 = por %p132, %p133
      %p135 = scmp.ne.s32.totalorder %s127, %s129
      %p136 = scmp.eq.s32.totalorder %s30, 1
      %p137 = por %p135, %p136
      %p138 = scmp.ne.s32.totalorder %s129, %s130
      %p139 = scmp.eq.s32.totalorder %s30, 0
      %p140 = por %p138, %p139
      %p141 = scmp.ne.s32.totalorder %s129, %s130
      %p142 = scmp.eq.s32.totalorder %s31, 1
      %p143 = por %p141, %p142
      %p145 = scmp.ne.s32.totalorder %s130, %s144
      %p146 = scmp.eq.s32.totalorder %s31, 0
      %p147 = por %p145, %p146
      %s149 = sadd.s32 %s148, 1
      %p152 = scmp.eq.s32.totalorder %s25, 1
      %p153 = scmp.ne.s32.totalorder %s148, %s150
      %p154 = scmp.eq.s32.totalorder %s25, 0
      %p155 = por %p153, %p154
      %p156 = scmp.ne.s32.totalorder %s148, %s150
      %p157 = scmp.eq.s32.totalorder %s30, 1
      %p158 = por %p156, %p157
      %p159 = scmp.ne.s32.totalorder %s150, %s151
      %p160 = scmp.eq.s32.totalorder %s30, 0
      %p161 = por %p159, %p160
      %p162 = scmp.ne.s32.totalorder %s150, %s151
      %p163 = scmp.eq.s32.totalorder %s31, 1
      %p164 = por %p162, %p163
      %p166 = scmp.ne.s32.totalorder %s151, %s165
      %p167 = scmp.eq.s32.totalorder %s31, 0
      %p168 = por %p166, %p167
      %s170 = sadd.s32 %s169, 1
      %p173 = scmp.eq.s32.totalorder %s25, 1
      %p174 = scmp.ne.s32.totalorder %s169, %s171
      %p175 = scmp.eq.s32.totalorder %s25, 0
      %p176 = por %p174, %p175
      %p177 = scmp.ne.s32.totalorder %s169, %s171
      %p178 = scmp.eq.s32.totalorder %s30, 1
      %p179 = por %p177, %p178
      %p180 = scmp.ne.s32.totalorder %s171, %s172
      %p181 = scmp.eq.s32.totalorder %s30, 0
      %p182 = por %p180, %p181
      %p183 = scmp.ne.s32.totalorder %s171, %s172
      %p184 = scmp.eq.s32.totalorder %s31, 1
      %p185 = por %p183, %p184
      %p187 = scmp.ne.s32.totalorder %s172, %s186
      %p188 = scmp.eq.s32.totalorder %s31, 0
      %p189 = por %p187, %p188
      %s191 = sadd.s32 %s190, 1
      %p194 = scmp.eq.s32.totalorder %s25, 1
      %p195 = scmp.ne.s32.totalorder %s190, %s192
      %p196 = scmp.eq.s32.totalorder %s25, 0
      %p197 = por %p195, %p196
      %p198 = scmp.ne.s32.totalorder %s190, %s192
      %p199 = scmp.eq.s32.totalorder %s30, 1
      %p200 = por %p198, %p199
      %p201 = scmp.ne.s32.totalorder %s192, %s193
      %p202 = scmp.eq.s32.totalorder %s30, 0
      %p203 = por %p201, %p202
      %p204 = scmp.ne.s32.totalorder %s192, %s193
      %p205 = scmp.eq.s32.totalorder %s31, 1
      %p206 = por %p204, %p205
      %p208 = scmp.ne.s32.totalorder %s193, %s207
      %p209 = scmp.eq.s32.totalorder %s31, 0
      %p210 = por %p208, %p209
      %s212 = sadd.s32 %s211, 1
      %p215 = scmp.eq.s32.totalorder %s25, 1
      %p216 = scmp.ne.s32.totalorder %s211, %s213
      %p217 = scmp.eq.s32.totalorder %s25, 0
      %p218 = por %p216, %p217
      %p219 = scmp.ne.s32.totalorder %s211, %s213
      %p220 = scmp.eq.s32.totalorder %s30, 1
      %p221 = por %p219, %p220
      %p222 = scmp.ne.s32.totalorder %s213, %s214
      %p223 = scmp.eq.s32.totalorder %s30, 0
      %p224 = por %p222, %p223
      %p225 = scmp.ne.s32.totalorder %s213, %s214
      %p226 = scmp.eq.s32.totalorder %s31, 1
      %p227 = por %p225, %p226
      %p229 = scmp.ne.s32.totalorder %s214, %s228
      %p230 = scmp.eq.s32.totalorder %s31, 0
      %p231 = por %p229, %p230
      %s232 = ssub.s32 %s25, %s32
      %p233 = scmp.eq.s32.totalorder %s232, 0
      %s235 = sadd.s32 %s234, 1
      %s236 = scalar_select %p233, %s234, %s235
      %p239 = pneg %p233
      %p240 = scmp.eq.s32.totalorder %s25, 1
      %p241 = por %p239, %p240
      %p242 = scmp.ne.s32.totalorder %s234, %s237
      %p243 = scmp.eq.s32.totalorder %s25, 0
      %p244 = por %p242, %p243
      %p245 = scmp.ne.s32.totalorder %s234, %s237
      %p246 = scmp.eq.s32.totalorder %s30, 1
      %p247 = por %p245, %p246
      %p248 = scmp.ne.s32.totalorder %s237, %s238
      %p249 = scmp.eq.s32.totalorder %s30, 0
      %p250 = por %p248, %p249
      %p251 = scmp.ne.s32.totalorder %s237, %s238
      %p252 = scmp.eq.s32.totalorder %s31, 1
      %p253 = por %p251, %p252
      %p255 = scmp.ne.s32.totalorder %s238, %s254
      %p256 = scmp.eq.s32.totalorder %s31, 0
      %p257 = por %p255, %p256
      %p258 = scmp.le.s32.totalorder 1, %s25
      %p259 = scmp.lt.s32.totalorder %s25, 3
      %p260 = pnand %p258, %p259
      %p261 = pneg %p260
      // Predicated region
      $region9: #{tpu_custom_call.1} parent=5 // pred_check
        _
      $region10: #{tpu_custom_call.1} parent=5 // pred_check_branch
        %263 = sbr.rel (%p260) target = $region12
      $region11: #{tpu_custom_call.1} parent=5 // pred_region
        %s264 = ssub.s32 %s25, 1
        // Predicated region
        $region13: #{tpu_custom_call.1} parent=11 // pred_check
          %p265 = pneg %p98
        $region14: #{tpu_custom_call.1} parent=11 // pred_check_branch
          %267 = sbr.rel (%p265) target = $region16
        $region15: #{tpu_custom_call.1} parent=11 // pred_region
          _
        $region16: #{tpu_custom_call.1} parent=11 // pred_fallthru
          _
        // Predicated region
        $region17: #{tpu_custom_call.1} parent=11 // pred_check
          %p268 = pneg %p119
        $region18: #{tpu_custom_call.1} parent=11 // pred_check_branch
          %270 = sbr.rel (%p268) target = $region20
        $region19: #{tpu_custom_call.1} parent=11 // pred_region
          %272 = vsyncadd [#allocation6], 0
          %s274 = sshll.u32 %s3, 4
          %s275 = int_to_ptr.hbm [resolvable:$true] %s274
          %s276 = sshll.u32 [#allocation7], 4
          %s277 = int_to_ptr.vmem [resolvable:$true] %s276
          %279 = dma.hbm_to_vmem [thread:$0]  %s275, 16, %s277, [#allocation6]
        $region20: #{tpu_custom_call.1} parent=11 // pred_fallthru
          _
        // Predicated region
        $region21: #{tpu_custom_call.1} parent=11 // pred_check
          %p280 = pneg %p140
        $region22: #{tpu_custom_call.1} parent=11 // pred_check_branch
          %282 = sbr.rel (%p280) target = $region24
        $region23: #{tpu_custom_call.1} parent=11 // pred_region
          _
        $region24: #{tpu_custom_call.1} parent=11 // pred_fallthru
          _
        // Predicated region
        $region25: #{tpu_custom_call.1} parent=11 // pred_check
          %p283 = pneg %p161
        $region26: #{tpu_custom_call.1} parent=11 // pred_check_branch
          %285 = sbr.rel (%p283) target = $region28
        $region27: #{tpu_custom_call.1} parent=11 // pred_region
          %287 = vsyncadd [#allocation9], 0
          %s289 = sshll.u32 %s5, 4
          %s290 = int_to_ptr.hbm [resolvable:$true] %s289
          %s291 = sshll.u32 [#allocation8], 4
          %s292 = int_to_ptr.vmem [resolvable:$true] %s291
          %294 = dma.hbm_to_vmem [thread:$0]  %s290, 16, %s292, [#allocation9]
        $region28: #{tpu_custom_call.1} parent=11 // pred_fallthru
          _
        // Predicated region
        $region29: #{tpu_custom_call.1} parent=11 // pred_check
          %p295 = pneg %p182
        $region30: #{tpu_custom_call.1} parent=11 // pred_check_branch
          %297 = sbr.rel (%p295) target = $region32
        $region31: #{tpu_custom_call.1} parent=11 // pred_region
          _
        $region32: #{tpu_custom_call.1} parent=11 // pred_fallthru
          _
        // Predicated region
        $region33: #{tpu_custom_call.1} parent=11 // pred_check
          %p298 = pneg %p203
        $region34: #{tpu_custom_call.1} parent=11 // pred_check_branch
          %300 = sbr.rel (%p298) target = $region36
        $region35: #{tpu_custom_call.1} parent=11 // pred_region
          _
        $region36: #{tpu_custom_call.1} parent=11 // pred_fallthru
          _
        // Predicated region
        $region37: #{tpu_custom_call.1} parent=11 // pred_check
          %p301 = pneg %p224
        $region38: #{tpu_custom_call.1} parent=11 // pred_check_branch
          %303 = sbr.rel (%p301) target = $region40
        $region39: #{tpu_custom_call.1} parent=11 // pred_region
          %305 = vsyncadd [#allocation9], 0
          %s307 = sshll.u32 %s8, 4
          %s308 = int_to_ptr.hbm [resolvable:$true] %s307
          %s309 = sshll.u32 [#allocation10], 4
          %s310 = int_to_ptr.vmem [resolvable:$true] %s309
          %312 = dma.hbm_to_vmem [thread:$0]  %s308, 16, %s310, [#allocation9]
        $region40: #{tpu_custom_call.1} parent=11 // pred_fallthru
          _
      $region12: #{tpu_custom_call.1} parent=5 // pred_fallthru
        _
      %p313 = scmp.lt.s32.totalorder %s25, 2
      // Predicated region
      $region41: #{tpu_custom_call.1} parent=5 // pred_check
        %p314 = pneg %p313
      $region42: #{tpu_custom_call.1} parent=5 // pred_check_branch
        %316 = sbr.rel (%p314) target = $region44
      $region43: #{tpu_custom_call.1} parent=5 // pred_region
        // Predicated region
        $region45: #{tpu_custom_call.1} parent=43 // pred_check
          %p317 = pneg %p45
        $region46: #{tpu_custom_call.1} parent=43 // pred_check_branch
          %319 = sbr.rel (%p317) target = $region48
        $region47: #{tpu_custom_call.1} parent=43 // pred_region
          %s320 = sand.u32 %s35, 1
          %s321 = scalar_lea.sflag [#allocation3], %s320
          %s322 = sand.u32 %s35, 1
          %s323 = smul.addr %s322, 2688
          %s324 = scalar_lea.vmem [#allocation2], %s323
          %s325 = smul.u32 2, %s25
          %327 = vsyncadd %s321, 0
          %s328 = smul.addr %s325, 168
          %s329 = smul.addr %s328, 8
          %s330 = scalar_lea.hbm %s0, %s329
          %s331 = sshll.u32 %s330, 4
          %s332 = int_to_ptr.hbm [resolvable:$true] %s331
          %s333 = sshll.u32 %s324, 4
          %s334 = int_to_ptr.vmem [resolvable:$true] %s333
          %339 = dma.hbm_to_vmem [thread:$0]  %s332, 43008, %s334, %s321, 256, 256, 16
        $region48: #{tpu_custom_call.1} parent=43 // pred_fallthru
          _
        // Predicated region
        $region49: #{tpu_custom_call.1} parent=43 // pred_check
          %p340 = pneg %p71
        $region50: #{tpu_custom_call.1} parent=43 // pred_check_branch
          %342 = sbr.rel (%p340) target = $region52
        $region51: #{tpu_custom_call.1} parent=43 // pred_region
          %s343 = sand.u32 %s25, 1
          %s344 = scalar_lea.sflag [#allocation6], %s343
          %s345 = sand.u32 %s61, 1
          %s346 = smul.addr %s345, 2688
          %s347 = scalar_lea.vmem [#allocation5], %s346
          %s348 = smul.u32 2, %s25
          %350 = vsyncadd %s344, 0
          %s351 = smul.addr %s348, 168
          %s352 = smul.addr %s351, 8
          %s353 = scalar_lea.hbm %s1, %s352
          %s354 = sshll.u32 %s353, 4
          %s355 = int_to_ptr.hbm [resolvable:$true] %s354
          %s356 = sshll.u32 %s347, 4
          %s357 = int_to_ptr.vmem [resolvable:$true] %s356
          %362 = dma.hbm_to_vmem [thread:$0]  %s355, 43008, %s357, %s344, 256, 256, 16
        $region52: #{tpu_custom_call.1} parent=43 // pred_fallthru
          _
      $region44: #{tpu_custom_call.1} parent=5 // pred_fallthru
        _
      %p363 = scmp.le.s32.totalorder 1, %s25
      %p364 = scmp.lt.s32.totalorder %s25, 3
      %p365 = pnand %p363, %p364
      %p366 = pneg %p365
      // Predicated region
      $region53: #{tpu_custom_call.1} parent=5 // pred_check
        _
      $region54: #{tpu_custom_call.1} parent=5 // pred_check_branch
        %368 = sbr.rel (%p365) target = $region56
      $region55: #{tpu_custom_call.1} parent=5 // pred_region
        %s369 = ssub.s32 %s25, 1
        %s370 = sand.u32 %s38, 1
        %s371 = scalar_lea.sflag [#allocation3], %s370
        %s372 = sand.u32 %s38, 1
        %s373 = smul.addr %s372, 2688
        %s374 = scalar_lea.vmem [#allocation2], %s373
        // Predicated region
        $region57: #{tpu_custom_call.1} parent=55 // pred_check
          %p375 = pneg %p51
        $region58: #{tpu_custom_call.1} parent=55 // pred_check_branch
          %377 = sbr.rel (%p375) target = $region60
        $region59: #{tpu_custom_call.1} parent=55 // pred_region
          %379 = dma.done %s371, 43008
        $region60: #{tpu_custom_call.1} parent=55 // pred_fallthru
          _
        %s380 = sand.u32 %s30, 1
        %s381 = scalar_lea.sflag [#allocation6], %s380
        %s382 = sand.u32 %s64, 1
        %s383 = smul.addr %s382, 2688
        %s384 = scalar_lea.vmem [#allocation5], %s383
        // Predicated region
        $region61: #{tpu_custom_call.1} parent=55 // pred_check
          %p385 = pneg %p77
        $region62: #{tpu_custom_call.1} parent=55 // pred_check_branch
          %387 = sbr.rel (%p385) target = $region64
        $region63: #{tpu_custom_call.1} parent=55 // pred_region
          %389 = dma.done %s381, 43008
        $region64: #{tpu_custom_call.1} parent=55 // pred_fallthru
          _
        // Predicated region
        $region65: #{tpu_custom_call.1} parent=55 // pred_check
          %p390 = pneg %p119
        $region66: #{tpu_custom_call.1} parent=55 // pred_check_branch
          %392 = sbr.rel (%p390) target = $region68
        $region67: #{tpu_custom_call.1} parent=55 // pred_region
          %394 = dma.done [#allocation6], 16
        $region68: #{tpu_custom_call.1} parent=55 // pred_fallthru
          _
        // Predicated region
        $region69: #{tpu_custom_call.1} parent=55 // pred_check
          %p395 = pneg %p161
        $region70: #{tpu_custom_call.1} parent=55 // pred_check_branch
          %397 = sbr.rel (%p395) target = $region72
        $region71: #{tpu_custom_call.1} parent=55 // pred_region
          %399 = dma.done [#allocation9], 16
        $region72: #{tpu_custom_call.1} parent=55 // pred_fallthru
          _
        // Predicated region
        $region73: #{tpu_custom_call.1} parent=55 // pred_check
          %p400 = pneg %p224
        $region74: #{tpu_custom_call.1} parent=55 // pred_check_branch
          %402 = sbr.rel (%p400) target = $region76
        $region75: #{tpu_custom_call.1} parent=55 // pred_region
          %404 = dma.done [#allocation9], 16
        $region76: #{tpu_custom_call.1} parent=55 // pred_fallthru
          _
        %s405 = sand.u32 %s38, 1
        %s406 = scalar_lea.sflag [#allocation3], %s405
        %s407 = sand.u32 %s38, 1
        %s408 = smul.addr %s407, 2688
        %s409 = scalar_lea.vmem [#allocation2], %s408
        %p410 = pneg %p51
        %p411 = pneg %p48
        %s412 = sand.u32 %s30, 1
        %s413 = scalar_lea.sflag [#allocation6], %s412
        %s414 = sand.u32 %s64, 1
        %s415 = smul.addr %s414, 2688
        %s416 = scalar_lea.vmem [#allocation5], %s415
        %p417 = pneg %p77
        %p418 = pneg %p74
        %p419 = pneg %p98
        %p420 = pneg %p95
        %p421 = pneg %p119
        %p422 = pneg %p116
        %p423 = pneg %p140
        %p424 = pneg %p137
        %p425 = pneg %p161
        %p426 = pneg %p158
        %p427 = pneg %p182
        %p428 = pneg %p179
        %p429 = pneg %p203
        %p430 = pneg %p200
        %p431 = pneg %p224
        %p432 = pneg %p221
        %p433 = pneg %p250
        %p434 = pneg %p247
        %s435 = sand.u32 %s237, 1
        %s436 = scalar_lea.sflag [#allocation4], %s435
        %s437 = sand.u32 %s237, 1
        %s438 = smul.addr %s437, 2688
        %s439 = scalar_lea.vmem [#allocation11], %s438
        %s440 = smul.u32 2, %s30
        %s441 = smul.u32 2, %s30
        %s442 = smul.u32 2, %s30
        %v443 = vlaneseq
        %v444 = vand.u32 %v443, 127
        %v445 = vadd.s32 %v444, 128
        %v446 = vlaneseq
        %v447 = vshrl.u32 %v446, 7
        %v448 = vadd.s32 %v447, 8
        %v449 = vadd.s32 %v447, 16
        %v450 = vadd.s32 %v447, 24
        %v451 = vadd.s32 %v447, 32
        %v452 = vadd.s32 %v447, 40
        %v453 = vadd.s32 %v447, 48
        %v454 = vadd.s32 %v447, 56
        %v455 = vadd.s32 %v447, 64
        %v456 = vadd.s32 %v447, 72
        %v457 = vadd.s32 %v447, 80
        %v458 = vadd.s32 %v447, 88
        %v459 = vadd.s32 %v447, 96
        %v460 = vadd.s32 %v447, 104
        %v461 = vadd.s32 %v447, 112
        %v462 = vadd.s32 %v447, 120
        %v463 = vadd.s32 %v447, 128
        %v464 = vadd.s32 %v447, 136
        %v465 = vadd.s32 %v447, 144
        %v466 = vadd.s32 %v447, 152
        %v467 = vadd.s32 %v447, 160
        %v468 = vadd.s32 %v447, 168
        %v469 = vadd.s32 %v447, 176
        %v470 = vadd.s32 %v447, 184
        %v471 = vadd.s32 %v447, 192
        %v472 = vadd.s32 %v447, 200
        %v473 = vadd.s32 %v447, 208
        %v474 = vadd.s32 %v447, 216
        %vm475 = vcmp.ge.s32.totalorder %v444, 75
        %vm476 = vcmp.ge.s32.totalorder %v445, 75
        %vm477 = vcmp.ge.s32.totalorder %v444, 150
        %vm478 = vcmp.ge.s32.totalorder %v445, 150
        %vm479 = vcmp.ge.s32.totalorder %v447, 75
        %vm480 = vcmp.ge.s32.totalorder %v448, 75
        %vm481 = vcmp.ge.s32.totalorder %v449, 75
        %vm482 = vcmp.ge.s32.totalorder %v450, 75
        %vm483 = vcmp.ge.s32.totalorder %v451, 75
        %vm484 = vcmp.ge.s32.totalorder %v452, 75
        %vm485 = vcmp.ge.s32.totalorder %v453, 75
        %vm486 = vcmp.ge.s32.totalorder %v454, 75
        %vm487 = vcmp.ge.s32.totalorder %v455, 75
        %vm488 = vcmp.ge.s32.totalorder %v456, 75
        %vm489 = vcmp.ge.s32.totalorder %v457, 75
        %vm490 = vcmp.ge.s32.totalorder %v458, 75
        %vm491 = vcmp.ge.s32.totalorder %v459, 75
        %vm492 = vcmp.ge.s32.totalorder %v460, 75
        %vm493 = vcmp.ge.s32.totalorder %v461, 75
        %vm494 = vcmp.ge.s32.totalorder %v462, 75
        %vm495 = vcmp.ge.s32.totalorder %v463, 75
        %vm496 = vcmp.ge.s32.totalorder %v464, 75
        %vm497 = vcmp.ge.s32.totalorder %v465, 75
        %vm498 = vcmp.ge.s32.totalorder %v466, 75
        %vm499 = vcmp.ge.s32.totalorder %v467, 75
        %vm500 = vcmp.ge.s32.totalorder %v468, 75
        %vm501 = vcmp.ge.s32.totalorder %v469, 75
        %vm502 = vcmp.ge.s32.totalorder %v470, 75
        %vm503 = vcmp.ge.s32.totalorder %v471, 75
        %vm504 = vcmp.ge.s32.totalorder %v472, 75
        %vm505 = vcmp.ge.s32.totalorder %v473, 75
        %vm506 = vcmp.ge.s32.totalorder %v474, 75
        %v507 = vsel %vm479, 1, 0
        %v508 = vsel %vm480, 1, 0
        %v509 = vsel %vm481, 1, 0
        %v510 = vsel %vm482, 1, 0
        %v511 = vsel %vm483, 1, 0
        %v512 = vsel %vm484, 1, 0
        %v513 = vsel %vm485, 1, 0
        %v514 = vsel %vm486, 1, 0
        %v515 = vsel %vm487, 1, 0
        %v516 = vsel %vm488, 1, 0
        %v517 = vsel %vm489, 1, 0
        %v518 = vsel %vm490, 1, 0
        %v519 = vsel %vm491, 1, 0
        %v520 = vsel %vm492, 1, 0
        %v521 = vsel %vm493, 1, 0
        %v522 = vsel %vm494, 1, 0
        %v523 = vsel %vm495, 1, 0
        %v524 = vsel %vm496, 1, 0
        %v525 = vsel %vm497, 1, 0
        %v526 = vsel %vm498, 1, 0
        %v527 = vsel %vm499, 1, 0
        %v528 = vsel %vm500, 1, 0
        %v529 = vsel %vm501, 1, 0
        %v530 = vsel %vm502, 1, 0
        %v531 = vsel %vm503, 1, 0
        %v532 = vsel %vm504, 1, 0
        %v533 = vsel %vm505, 1, 0
        %v534 = vsel %vm506, 1, 0
        %vm535 = vcmp.eq.s32.totalorder %v507, 1
        %vm536 = vcmp.eq.s32.totalorder %v508, 1
        %vm537 = vcmp.eq.s32.totalorder %v509, 1
        %vm538 = vcmp.eq.s32.totalorder %v510, 1
        %vm539 = vcmp.eq.s32.totalorder %v511, 1
        %vm540 = vcmp.eq.s32.totalorder %v512, 1
        %vm541 = vcmp.eq.s32.totalorder %v513, 1
        %vm542 = vcmp.eq.s32.totalorder %v514, 1
        %vm543 = vcmp.eq.s32.totalorder %v515, 1
        %vm544 = vcmp.eq.s32.totalorder %v516, 1
        %vm545 = vcmp.eq.s32.totalorder %v517, 1
        %vm546 = vcmp.eq.s32.totalorder %v518, 1
        %vm547 = vcmp.eq.s32.totalorder %v519, 1
        %vm548 = vcmp.eq.s32.totalorder %v520, 1
        %vm549 = vcmp.eq.s32.totalorder %v521, 1
        %vm550 = vcmp.eq.s32.totalorder %v522, 1
        %vm551 = vcmp.eq.s32.totalorder %v523, 1
        %vm552 = vcmp.eq.s32.totalorder %v524, 1
        %vm553 = vcmp.eq.s32.totalorder %v525, 1
        %vm554 = vcmp.eq.s32.totalorder %v526, 1
        %vm555 = vcmp.eq.s32.totalorder %v527, 1
        %vm556 = vcmp.eq.s32.totalorder %v528, 1
        %vm557 = vcmp.eq.s32.totalorder %v529, 1
        %vm558 = vcmp.eq.s32.totalorder %v530, 1
        %vm559 = vcmp.eq.s32.totalorder %v531, 1
        %vm560 = vcmp.eq.s32.totalorder %v532, 1
        %vm561 = vcmp.eq.s32.totalorder %v533, 1
        %vm562 = vcmp.eq.s32.totalorder %v534, 1
        %vm563 = vcmp.ge.s32.totalorder %v447, 150
        %vm564 = vcmp.ge.s32.totalorder %v448, 150
        %vm565 = vcmp.ge.s32.totalorder %v449, 150
        %vm566 = vcmp.ge.s32.totalorder %v450, 150
        %vm567 = vcmp.ge.s32.totalorder %v451, 150
        %vm568 = vcmp.ge.s32.totalorder %v452, 150
        %vm569 = vcmp.ge.s32.totalorder %v453, 150
        %vm570 = vcmp.ge.s32.totalorder %v454, 150
        %vm571 = vcmp.ge.s32.totalorder %v455, 150
        %vm572 = vcmp.ge.s32.totalorder %v456, 150
        %vm573 = vcmp.ge.s32.totalorder %v457, 150
        %vm574 = vcmp.ge.s32.totalorder %v458, 150
        %vm575 = vcmp.ge.s32.totalorder %v459, 150
        %vm576 = vcmp.ge.s32.totalorder %v460, 150
        %vm577 = vcmp.ge.s32.totalorder %v461, 150
        %vm578 = vcmp.ge.s32.totalorder %v462, 150
        %vm579 = vcmp.ge.s32.totalorder %v463, 150
        %vm580 = vcmp.ge.s32.totalorder %v464, 150
        %vm581 = vcmp.ge.s32.totalorder %v465, 150
        %vm582 = vcmp.ge.s32.totalorder %v466, 150
        %vm583 = vcmp.ge.s32.totalorder %v467, 150
        %vm584 = vcmp.ge.s32.totalorder %v468, 150
        %vm585 = vcmp.ge.s32.totalorder %v469, 150
        %vm586 = vcmp.ge.s32.totalorder %v470, 150
        %vm587 = vcmp.ge.s32.totalorder %v471, 150
        %vm588 = vcmp.ge.s32.totalorder %v472, 150
        %vm589 = vcmp.ge.s32.totalorder %v473, 150
        %vm590 = vcmp.ge.s32.totalorder %v474, 150
        %v591 = vsel %vm563, 1, 0
        %v592 = vsel %vm564, 1, 0
        %v593 = vsel %vm565, 1, 0
        %v594 = vsel %vm566, 1, 0
        %v595 = vsel %vm567, 1, 0
        %v596 = vsel %vm568, 1, 0
        %v597 = vsel %vm569, 1, 0
        %v598 = vsel %vm570, 1, 0
        %v599 = vsel %vm571, 1, 0
        %v600 = vsel %vm572, 1, 0
        %v601 = vsel %vm573, 1, 0
        %v602 = vsel %vm574, 1, 0
        %v603 = vsel %vm575, 1, 0
        %v604 = vsel %vm576, 1, 0
        %v605 = vsel %vm577, 1, 0
        %v606 = vsel %vm578, 1, 0
        %v607 = vsel %vm579, 1, 0
        %v608 = vsel %vm580, 1, 0
        %v609 = vsel %vm581, 1, 0
        %v610 = vsel %vm582, 1, 0
        %v611 = vsel %vm583, 1, 0
        %v612 = vsel %vm584, 1, 0
        %v613 = vsel %vm585, 1, 0
        %v614 = vsel %vm586, 1, 0
        %v615 = vsel %vm587, 1, 0
        %v616 = vsel %vm588, 1, 0
        %v617 = vsel %vm589, 1, 0
        %v618 = vsel %vm590, 1, 0
        %vm619 = vcmp.eq.s32.totalorder %v591, 1
        %vm620 = vcmp.eq.s32.totalorder %v592, 1
        %vm621 = vcmp.eq.s32.totalorder %v593, 1
        %vm622 = vcmp.eq.s32.totalorder %v594, 1
        %vm623 = vcmp.eq.s32.totalorder %v595, 1
        %vm624 = vcmp.eq.s32.totalorder %v596, 1
        %vm625 = vcmp.eq.s32.totalorder %v597, 1
        %vm626 = vcmp.eq.s32.totalorder %v598, 1
        %vm627 = vcmp.eq.s32.totalorder %v599, 1
        %vm628 = vcmp.eq.s32.totalorder %v600, 1
        %vm629 = vcmp.eq.s32.totalorder %v601, 1
        %vm630 = vcmp.eq.s32.totalorder %v602, 1
        %vm631 = vcmp.eq.s32.totalorder %v603, 1
        %vm632 = vcmp.eq.s32.totalorder %v604, 1
        %vm633 = vcmp.eq.s32.totalorder %v605, 1
        %vm634 = vcmp.eq.s32.totalorder %v606, 1
        %vm635 = vcmp.eq.s32.totalorder %v607, 1
        %vm636 = vcmp.eq.s32.totalorder %v608, 1
        %vm637 = vcmp.eq.s32.totalorder %v609, 1
        %vm638 = vcmp.eq.s32.totalorder %v610, 1
        %vm639 = vcmp.eq.s32.totalorder %v611, 1
        %vm640 = vcmp.eq.s32.totalorder %v612, 1
        %vm641 = vcmp.eq.s32.totalorder %v613, 1
        %vm642 = vcmp.eq.s32.totalorder %v614, 1
        %vm643 = vcmp.eq.s32.totalorder %v615, 1
        %vm644 = vcmp.eq.s32.totalorder %v616, 1
        %vm645 = vcmp.eq.s32.totalorder %v617, 1
        %vm646 = vcmp.eq.s32.totalorder %v618, 1
        %v647 = vld [vmem:[%s374] sm:$0xff]
        %v648 = vld [vmem:[%s374 + $0x8] sm:$0xff]
        %v649 = vld [vmem:[%s374 + $0x10] sm:$0xff]
        %v650 = vld [vmem:[%s374 + $0x18] sm:$0xff]
        %v651 = vld [vmem:[%s374 + $0x20] sm:$0xff]
        %v652 = vld [vmem:[%s374 + $0x28] sm:$0xff]
        %v653 = vld [vmem:[%s374 + $0x30] sm:$0xff]
        %v654 = vld [vmem:[%s374 + $0x38] sm:$0xff]
        %v655 = vld [vmem:[%s374 + $0x40] sm:$0xff]
        %v656 = vld [vmem:[%s374 + $0x48] sm:$0xff]
        %v657 = vld [vmem:[%s374 + $0x50] sm:$0xff]
        %v658 = vld [vmem:[%s374 + $0x58] sm:$0xff]
        %v659 = vld [vmem:[%s374 + $0x60] sm:$0xff]
        %v660 = vld [vmem:[%s374 + $0x68] sm:$0xff]
        %v661 = vld [vmem:[%s374 + $0x70] sm:$0xff]
        %v662 = vld [vmem:[%s374 + $0x78] sm:$0xff]
        %v663 = vld [vmem:[%s374 + $0x80] sm:$0xff]
        %v664 = vld [vmem:[%s374 + $0x88] sm:$0xff]
        %v665 = vld [vmem:[%s374 + $0x90] sm:$0xff]
        %v666 = vld [vmem:[%s374 + $0x98] sm:$0xff]
        %v667 = vld [vmem:[%s374 + $0xa0] sm:$0xff]
        %v668 = vld [vmem:[%s374 + $0xa8] sm:$0xff]
        %v669 = vld [vmem:[%s374 + $0xb0] sm:$0xff]
        %v670 = vld [vmem:[%s374 + $0xb8] sm:$0xff]
        %v671 = vld [vmem:[%s374 + $0xc0] sm:$0xff]
        %v672 = vld [vmem:[%s374 + $0xc8] sm:$0xff]
        %v673 = vld [vmem:[%s374 + $0xd0] sm:$0xff]
        %v674 = vld [vmem:[%s374 + $0xd8] sm:$0xff]
        %v675 = vld [vmem:[%s374 + $0xe0] sm:$0xff]
        %v676 = vld [vmem:[%s374 + $0xe8] sm:$0xff]
        %v677 = vld [vmem:[%s374 + $0xf0] sm:$0xff]
        %v678 = vld [vmem:[%s374 + $0xf8] sm:$0xff]
        %v679 = vld [vmem:[%s374 + $0x100] sm:$0xff]
        %v680 = vld [vmem:[%s374 + $0x108] sm:$0xff]
        %v681 = vld [vmem:[%s374 + $0x110] sm:$0xff]
        %v682 = vld [vmem:[%s374 + $0x118] sm:$0xff]
        %v683 = vld [vmem:[%s374 + $0x120] sm:$0xff]
        %v684 = vld [vmem:[%s374 + $0x128] sm:$0xff]
        %v685 = vld [vmem:[%s374 + $0x130] sm:$0xff]
        %v686 = vld [vmem:[%s374 + $0x138] sm:$0xff]
        %v687 = vld [vmem:[%s374 + $0x140] sm:$0xff]
        %v688 = vld [vmem:[%s374 + $0x148] sm:$0xff]
        %v689 = vld [vmem:[%s374 + $0x150] sm:$0xff]
        %v690 = vld [vmem:[%s374 + $0x158] sm:$0xff]
        %v691 = vld [vmem:[%s374 + $0x160] sm:$0xff]
        %v692 = vld [vmem:[%s374 + $0x168] sm:$0xff]
        %v693 = vld [vmem:[%s374 + $0x170] sm:$0xff]
        %v694 = vld [vmem:[%s374 + $0x178] sm:$0xff]
        %v695 = vld [vmem:[%s374 + $0x180] sm:$0xff]
        %v696 = vld [vmem:[%s374 + $0x188] sm:$0xff]
        %v697 = vld [vmem:[%s374 + $0x190] sm:$0xff]
        %v698 = vld [vmem:[%s374 + $0x198] sm:$0xff]
        %v699 = vld [vmem:[%s374 + $0x1a0] sm:$0xff]
        %v700 = vld [vmem:[%s374 + $0x1a8] sm:$0xff]
        %v701 = vld [vmem:[%s374 + $0x1b0] sm:$0xff]
        %v702 = vld [vmem:[%s374 + $0x1b8] sm:$0xff]
        %v703 = vld [vmem:[%s2] sm:$0xff]
        %v704 = vld [vmem:[%s2 + $0x8] sm:$0xff]
        %v705 = vld [vmem:[%s2 + $0x10] sm:$0xff]
        %v706 = vld [vmem:[%s2 + $0x18] sm:$0xff]
        %v707 = vld [vmem:[%s2 + $0x20] sm:$0xff]
        %v708 = vld [vmem:[%s2 + $0x28] sm:$0xff]
        %v709 = vld [vmem:[%s2 + $0x30] sm:$0xff]
        %v710 = vld [vmem:[%s2 + $0x38] sm:$0xff]
        %v711 = vld [vmem:[%s2 + $0x40] sm:$0xff]
        %v712 = vld [vmem:[%s2 + $0x48] sm:$0xff]
        %v713 = vld [vmem:[%s2 + $0x50] sm:$0xff]
        %v714 = vld [vmem:[%s2 + $0x58] sm:$0xff]
        %v715 = vld [vmem:[%s2 + $0x60] sm:$0xff]
        %v716 = vld [vmem:[%s2 + $0x68] sm:$0xff]
        %v717 = vld [vmem:[%s2 + $0x70] sm:$0xff]
        %v718 = vld [vmem:[%s2 + $0x78] sm:$0xff]
        %v719 = vld [vmem:[%s2 + $0x80] sm:$0xff]
        %v720 = vld [vmem:[%s2 + $0x88] sm:$0xff]
        %v721 = vld [vmem:[%s2 + $0x90] sm:$0xff]
        %v722 = vld [vmem:[%s2 + $0x98] sm:$0xff]
        %v723 = vld [vmem:[%s2 + $0xa0] sm:$0xff]
        %v724 = vld [vmem:[%s2 + $0xa8] sm:$0xff]
        %v725 = vld [vmem:[%s2 + $0xb0] sm:$0xff]
        %v726 = vld [vmem:[%s2 + $0xb8] sm:$0xff]
        %v727 = vld [vmem:[%s2 + $0xc0] sm:$0xff]
        %v728 = vld [vmem:[%s2 + $0xc8] sm:$0xff]
        %v729 = vld [vmem:[%s2 + $0xd0] sm:$0xff]
        %v730 = vld [vmem:[%s2 + $0xd8] sm:$0xff]
        %s731 = scalar_lea.vmem %s374, 448 [#allocation2]
        %v732 = vld [vmem:[%s731] sm:$0xff]
        %v733 = vld [vmem:[%s731 + $0x8] sm:$0xff]
        %v734 = vld [vmem:[%s731 + $0x10] sm:$0xff]
        %v735 = vld [vmem:[%s731 + $0x18] sm:$0xff]
        %v736 = vld [vmem:[%s731 + $0x20] sm:$0xff]
        %v737 = vld [vmem:[%s731 + $0x28] sm:$0xff]
        %v738 = vld [vmem:[%s731 + $0x30] sm:$0xff]
        %v739 = vld [vmem:[%s731 + $0x38] sm:$0xff]
        %v740 = vld [vmem:[%s731 + $0x40] sm:$0xff]
        %v741 = vld [vmem:[%s731 + $0x48] sm:$0xff]
        %v742 = vld [vmem:[%s731 + $0x50] sm:$0xff]
        %v743 = vld [vmem:[%s731 + $0x58] sm:$0xff]
        %v744 = vld [vmem:[%s731 + $0x60] sm:$0xff]
        %v745 = vld [vmem:[%s731 + $0x68] sm:$0xff]
        %v746 = vld [vmem:[%s731 + $0x70] sm:$0xff]
        %v747 = vld [vmem:[%s731 + $0x78] sm:$0xff]
        %v748 = vld [vmem:[%s731 + $0x80] sm:$0xff]
        %v749 = vld [vmem:[%s731 + $0x88] sm:$0xff]
        %v750 = vld [vmem:[%s731 + $0x90] sm:$0xff]
        %v751 = vld [vmem:[%s731 + $0x98] sm:$0xff]
        %v752 = vld [vmem:[%s731 + $0xa0] sm:$0xff]
        %v753 = vld [vmem:[%s731 + $0xa8] sm:$0xff]
        %v754 = vld [vmem:[%s731 + $0xb0] sm:$0xff]
        %v755 = vld [vmem:[%s731 + $0xb8] sm:$0xff]
        %v756 = vld [vmem:[%s731 + $0xc0] sm:$0xff]
        %v757 = vld [vmem:[%s731 + $0xc8] sm:$0xff]
        %v758 = vld [vmem:[%s731 + $0xd0] sm:$0xff]
        %v759 = vld [vmem:[%s731 + $0xd8] sm:$0xff]
        %v760 = vld [vmem:[%s731 + $0xe0] sm:$0xff]
        %v761 = vld [vmem:[%s731 + $0xe8] sm:$0xff]
        %v762 = vld [vmem:[%s731 + $0xf0] sm:$0xff]
        %v763 = vld [vmem:[%s731 + $0xf8] sm:$0xff]
        %v764 = vld [vmem:[%s731 + $0x100] sm:$0xff]
        %v765 = vld [vmem:[%s731 + $0x108] sm:$0xff]
        %v766 = vld [vmem:[%s731 + $0x110] sm:$0xff]
        %v767 = vld [vmem:[%s731 + $0x118] sm:$0xff]
        %v768 = vld [vmem:[%s731 + $0x120] sm:$0xff]
        %v769 = vld [vmem:[%s731 + $0x128] sm:$0xff]
        %v770 = vld [vmem:[%s731 + $0x130] sm:$0xff]
        %v771 = vld [vmem:[%s731 + $0x138] sm:$0xff]
        %v772 = vld [vmem:[%s731 + $0x140] sm:$0xff]
        %v773 = vld [vmem:[%s731 + $0x148] sm:$0xff]
        %v774 = vld [vmem:[%s731 + $0x150] sm:$0xff]
        %v775 = vld [vmem:[%s731 + $0x158] sm:$0xff]
        %v776 = vld [vmem:[%s731 + $0x160] sm:$0xff]
        %v777 = vld [vmem:[%s731 + $0x168] sm:$0xff]
        %v778 = vld [vmem:[%s731 + $0x170] sm:$0xff]
        %v779 = vld [vmem:[%s731 + $0x178] sm:$0xff]
        %v780 = vld [vmem:[%s731 + $0x180] sm:$0xff]
        %v781 = vld [vmem:[%s731 + $0x188] sm:$0xff]
        %v782 = vld [vmem:[%s731 + $0x190] sm:$0xff]
        %v783 = vld [vmem:[%s731 + $0x198] sm:$0xff]
        %v784 = vld [vmem:[%s731 + $0x1a0] sm:$0xff]
        %v785 = vld [vmem:[%s731 + $0x1a8] sm:$0xff]
        %v786 = vld [vmem:[%s731 + $0x1b0] sm:$0xff]
        %v787 = vld [vmem:[%s731 + $0x1b8] sm:$0xff]
        %s788 = scalar_lea.vmem %s2, 224
        %v789 = vld [vmem:[%s788] sm:$0xff]
        %v790 = vld [vmem:[%s788 + $0x8] sm:$0xff]
        %v791 = vld [vmem:[%s788 + $0x10] sm:$0xff]
        %v792 = vld [vmem:[%s788 + $0x18] sm:$0xff]
        %v793 = vld [vmem:[%s788 + $0x20] sm:$0xff]
        %v794 = vld [vmem:[%s788 + $0x28] sm:$0xff]
        %v795 = vld [vmem:[%s788 + $0x30] sm:$0xff]
        %v796 = vld [vmem:[%s788 + $0x38] sm:$0xff]
        %v797 = vld [vmem:[%s788 + $0x40] sm:$0xff]
        %v798 = vld [vmem:[%s788 + $0x48] sm:$0xff]
        %v799 = vld [vmem:[%s788 + $0x50] sm:$0xff]
        %v800 = vld [vmem:[%s788 + $0x58] sm:$0xff]
        %v801 = vld [vmem:[%s788 + $0x60] sm:$0xff]
        %v802 = vld [vmem:[%s788 + $0x68] sm:$0xff]
        %v803 = vld [vmem:[%s788 + $0x70] sm:$0xff]
        %v804 = vld [vmem:[%s788 + $0x78] sm:$0xff]
        %v805 = vld [vmem:[%s788 + $0x80] sm:$0xff]
        %v806 = vld [vmem:[%s788 + $0x88] sm:$0xff]
        %v807 = vld [vmem:[%s788 + $0x90] sm:$0xff]
        %v808 = vld [vmem:[%s788 + $0x98] sm:$0xff]
        %v809 = vld [vmem:[%s788 + $0xa0] sm:$0xff]
        %v810 = vld [vmem:[%s788 + $0xa8] sm:$0xff]
        %v811 = vld [vmem:[%s788 + $0xb0] sm:$0xff]
        %v812 = vld [vmem:[%s788 + $0xb8] sm:$0xff]
        %v813 = vld [vmem:[%s788 + $0xc0] sm:$0xff]
        %v814 = vld [vmem:[%s788 + $0xc8] sm:$0xff]
        %v815 = vld [vmem:[%s788 + $0xd0] sm:$0xff]
        %v816 = vld [vmem:[%s788 + $0xd8] sm:$0xff]
        %vm817 = vcmask 785408
        %v819 = vsel %vm817, %v733, 0
        %v822 = vsel %vm817, %v735, 0
        %v825 = vsel %vm817, %v737, 0
        %v828 = vsel %vm817, %v739, 0
        %v831 = vsel %vm817, %v741, 0
        %v834 = vsel %vm817, %v743, 0
        %v837 = vsel %vm817, %v745, 0
        %v840 = vsel %vm817, %v747, 0
        %v843 = vsel %vm817, %v749, 0
        %v846 = vsel %vm817, %v751, 0
        %v849 = vsel %vm817, %v753, 0
        %v852 = vsel %vm817, %v755, 0
        %v855 = vsel %vm817, %v757, 0
        %v858 = vsel %vm817, %v759, 0
        %v861 = vsel %vm817, %v761, 0
        %v864 = vsel %vm817, %v763, 0
        %v867 = vsel %vm817, %v765, 0
        %v870 = vsel %vm817, %v767, 0
        %v873 = vsel %vm817, %v769, 0
        %v876 = vsel %vm817, %v771, 0
        %v879 = vsel %vm817, %v773, 0
        %v882 = vsel %vm817, %v775, 0
        %v885 = vsel %vm817, %v777, 0
        %v888 = vsel %vm817, %v779, 0
        %v891 = vsel %vm817, %v781, 0
        %v894 = vsel %vm817, %v783, 0
        %v897 = vsel %vm817, %v785, 0
        %v900 = vsel %vm817, %v787, 0
        %902 = vmatpush.msra.mxu0 %v804
        %903 = vmatpush.msra.mxu0 %v803
        %904 = vmatpush.msra.mxu0 %v802
        %905 = vmatpush.msra.mxu0 %v801
        %906 = vmatpush.msra.mxu0 %v800
        %907 = vmatpush.msra.mxu0 %v799
        %908 = vmatpush.msra.mxu0 %v798
        %909 = vmatpush.msra.mxu0 %v797
        %910 = vmatpush.msra.mxu0 %v796
        %911 = vmatpush.msra.mxu0 %v795
        %912 = vmatpush.msra.mxu0 %v794
        %913 = vmatpush.msra.mxu0 %v793
        %914 = vmatpush.msra.mxu0 %v792
        %915 = vmatpush.msra.mxu0 %v791
        %916 = vmatpush.msra.mxu0 %v790
        %917 = vmatpush.msra.mxu0 %v789
        %918 = vmatmul.f32.gmra.mxu0 %v732
        %v919 = vpop.f32.mrf.mxu0
        %v920 = vadd.f32 0.0, %v919
        %921 = vmatmul.f32.gmra.mxu0 %v734
        %v922 = vpop.f32.mrf.mxu0
        %v923 = vadd.f32 0.0, %v922
        %924 = vmatmul.f32.gmra.mxu0 %v736
        %v925 = vpop.f32.mrf.mxu0
        %v926 = vadd.f32 0.0, %v925
        %927 = vmatmul.f32.gmra.mxu0 %v738
        %v928 = vpop.f32.mrf.mxu0
        %v929 = vadd.f32 0.0, %v928
        %930 = vmatmul.f32.gmra.mxu0 %v740
        %v931 = vpop.f32.mrf.mxu0
        %v932 = vadd.f32 0.0, %v931
        %933 = vmatmul.f32.gmra.mxu0 %v742
        %v934 = vpop.f32.mrf.mxu0
        %v935 = vadd.f32 0.0, %v934
        %936 = vmatmul.f32.gmra.mxu0 %v744
        %v937 = vpop.f32.mrf.mxu0
        %v938 = vadd.f32 0.0, %v937
        %939 = vmatmul.f32.gmra.mxu0 %v746
        %v940 = vpop.f32.mrf.mxu0
        %v941 = vadd.f32 0.0, %v940
        %942 = vmatmul.f32.gmra.mxu0 %v748
        %v943 = vpop.f32.mrf.mxu0
        %v944 = vadd.f32 0.0, %v943
        %945 = vmatmul.f32.gmra.mxu0 %v750
        %v946 = vpop.f32.mrf.mxu0
        %v947 = vadd.f32 0.0, %v946
        %948 = vmatmul.f32.gmra.mxu0 %v752
        %v949 = vpop.f32.mrf.mxu0
        %v950 = vadd.f32 0.0, %v949
        %951 = vmatmul.f32.gmra.mxu0 %v754
        %v952 = vpop.f32.mrf.mxu0
        %v953 = vadd.f32 0.0, %v952
        %954 = vmatmul.f32.gmra.mxu0 %v756
        %v955 = vpop.f32.mrf.mxu0
        %v956 = vadd.f32 0.0, %v955
        %957 = vmatmul.f32.gmra.mxu0 %v758
        %v958 = vpop.f32.mrf.mxu0
        %v959 = vadd.f32 0.0, %v958
        %960 = vmatmul.f32.gmra.mxu0 %v760
        %v961 = vpop.f32.mrf.mxu0
        %v962 = vadd.f32 0.0, %v961
        %963 = vmatmul.f32.gmra.mxu0 %v762
        %v964 = vpop.f32.mrf.mxu0
        %v965 = vadd.f32 0.0, %v964
        %966 = vmatmul.f32.gmra.mxu0 %v764
        %v967 = vpop.f32.mrf.mxu0
        %v968 = vadd.f32 0.0, %v967
        %969 = vmatmul.f32.gmra.mxu0 %v766
        %v970 = vpop.f32.mrf.mxu0
        %v971 = vadd.f32 0.0, %v970
        %972 = vmatmul.f32.gmra.mxu0 %v768
        %v973 = vpop.f32.mrf.mxu0
        %v974 = vadd.f32 0.0, %v973
        %975 = vmatmul.f32.gmra.mxu0 %v770
        %v976 = vpop.f32.mrf.mxu0
        %v977 = vadd.f32 0.0, %v976
        %978 = vmatmul.f32.gmra.mxu0 %v772
        %v979 = vpop.f32.mrf.mxu0
        %v980 = vadd.f32 0.0, %v979
        %981 = vmatmul.f32.gmra.mxu0 %v774
        %v982 = vpop.f32.mrf.mxu0
        %v983 = vadd.f32 0.0, %v982
        %984 = vmatmul.f32.gmra.mxu0 %v776
        %v985 = vpop.f32.mrf.mxu0
        %v986 = vadd.f32 0.0, %v985
        %987 = vmatmul.f32.gmra.mxu0 %v778
        %v988 = vpop.f32.mrf.mxu0
        %v989 = vadd.f32 0.0, %v988
        %990 = vmatmul.f32.gmra.mxu0 %v780
        %v991 = vpop.f32.mrf.mxu0
        %v992 = vadd.f32 0.0, %v991
        %993 = vmatmul.f32.gmra.mxu0 %v782
        %v994 = vpop.f32.mrf.mxu0
        %v995 = vadd.f32 0.0, %v994
        %996 = vmatmul.f32.gmra.mxu0 %v784
        %v997 = vpop.f32.mrf.mxu0
        %v998 = vadd.f32 0.0, %v997
        %999 = vmatmul.f32.gmra.mxu0 %v786
        %v1000 = vpop.f32.mrf.mxu0
        %v1001 = vadd.f32 0.0, %v1000
        %1002 = vdwg.mxu0
        %1003 = vmatpush.msra.mxu0 0.0
        %1004 = vmatpush.msra.mxu0 0.0
        %1005 = vmatpush.msra.mxu0 0.0
        %1006 = vmatpush.msra.mxu0 0.0
        %1007 = vmatpush.msra.mxu0 %v816
        %1008 = vmatpush.msra.mxu0 %v815
        %1009 = vmatpush.msra.mxu0 %v814
        %1010 = vmatpush.msra.mxu0 %v813
        %1011 = vmatpush.msra.mxu0 %v812
        %1012 = vmatpush.msra.mxu0 %v811
        %1013 = vmatpush.msra.mxu0 %v810
        %1014 = vmatpush.msra.mxu0 %v809
        %1015 = vmatpush.msra.mxu0 %v808
        %1016 = vmatpush.msra.mxu0 %v807
        %1017 = vmatpush.msra.mxu0 %v806
        %1018 = vmatpush.msra.mxu0 %v805
        %1019 = vmatmul.f32.gmra.mxu0 %v819
        %v1020 = vpop.f32.mrf.mxu0
        %v1021 = vadd.f32 %v920, %v1020
        %1022 = vmatmul.f32.gmra.mxu0 %v822
        %v1023 = vpop.f32.mrf.mxu0
        %v1024 = vadd.f32 %v923, %v1023
        %1025 = vmatmul.f32.gmra.mxu0 %v825
        %v1026 = vpop.f32.mrf.mxu0
        %v1027 = vadd.f32 %v926, %v1026
        %1028 = vmatmul.f32.gmra.mxu0 %v828
        %v1029 = vpop.f32.mrf.mxu0
        %v1030 = vadd.f32 %v929, %v1029
        %1031 = vmatmul.f32.gmra.mxu0 %v831
        %v1032 = vpop.f32.mrf.mxu0
        %v1033 = vadd.f32 %v932, %v1032
        %1034 = vmatmul.f32.gmra.mxu0 %v834
        %v1035 = vpop.f32.mrf.mxu0
        %v1036 = vadd.f32 %v935, %v1035
        %1037 = vmatmul.f32.gmra.mxu0 %v837
        %v1038 = vpop.f32.mrf.mxu0
        %v1039 = vadd.f32 %v938, %v1038
        %1040 = vmatmul.f32.gmra.mxu0 %v840
        %v1041 = vpop.f32.mrf.mxu0
        %v1042 = vadd.f32 %v941, %v1041
        %1043 = vmatmul.f32.gmra.mxu0 %v843
        %v1044 = vpop.f32.mrf.mxu0
        %v1045 = vadd.f32 %v944, %v1044
        %1046 = vmatmul.f32.gmra.mxu0 %v846
        %v1047 = vpop.f32.mrf.mxu0
        %v1048 = vadd.f32 %v947, %v1047
        %1049 = vmatmul.f32.gmra.mxu0 %v849
        %v1050 = vpop.f32.mrf.mxu0
        %v1051 = vadd.f32 %v950, %v1050
        %1052 = vmatmul.f32.gmra.mxu0 %v852
        %v1053 = vpop.f32.mrf.mxu0
        %v1054 = vadd.f32 %v953, %v1053
        %1055 = vmatmul.f32.gmra.mxu0 %v855
        %v1056 = vpop.f32.mrf.mxu0
        %v1057 = vadd.f32 %v956, %v1056
        %1058 = vmatmul.f32.gmra.mxu0 %v858
        %v1059 = vpop.f32.mrf.mxu0
        %v1060 = vadd.f32 %v959, %v1059
        %1061 = vmatmul.f32.gmra.mxu0 %v861
        %v1062 = vpop.f32.mrf.mxu0
        %v1063 = vadd.f32 %v962, %v1062
        %1064 = vmatmul.f32.gmra.mxu0 %v864
        %v1065 = vpop.f32.mrf.mxu0
        %v1066 = vadd.f32 %v965, %v1065
        %1067 = vmatmul.f32.gmra.mxu0 %v867
        %v1068 = vpop.f32.mrf.mxu0
        %v1069 = vadd.f32 %v968, %v1068
        %1070 = vmatmul.f32.gmra.mxu0 %v870
        %v1071 = vpop.f32.mrf.mxu0
        %v1072 = vadd.f32 %v971, %v1071
        %1073 = vmatmul.f32.gmra.mxu0 %v873
        %v1074 = vpop.f32.mrf.mxu0
        %v1075 = vadd.f32 %v974, %v1074
        %1076 = vmatmul.f32.gmra.mxu0 %v876
        %v1077 = vpop.f32.mrf.mxu0
        %v1078 = vadd.f32 %v977, %v1077
        %1079 = vmatmul.f32.gmra.mxu0 %v879
        %v1080 = vpop.f32.mrf.mxu0
        %v1081 = vadd.f32 %v980, %v1080
        %1082 = vmatmul.f32.gmra.mxu0 %v882
        %v1083 = vpop.f32.mrf.mxu0
        %v1084 = vadd.f32 %v983, %v1083
        %1085 = vmatmul.f32.gmra.mxu0 %v885
        %v1086 = vpop.f32.mrf.mxu0
        %v1087 = vadd.f32 %v986, %v1086
        %1088 = vmatmul.f32.gmra.mxu0 %v888
        %v1089 = vpop.f32.mrf.mxu0
        %v1090 = vadd.f32 %v989, %v1089
        %1091 = vmatmul.f32.gmra.mxu0 %v891
        %v1092 = vpop.f32.mrf.mxu0
        %v1093 = vadd.f32 %v992, %v1092
        %1094 = vmatmul.f32.gmra.mxu0 %v894
        %v1095 = vpop.f32.mrf.mxu0
        %v1096 = vadd.f32 %v995, %v1095
        %1097 = vmatmul.f32.gmra.mxu0 %v897
        %v1098 = vpop.f32.mrf.mxu0
        %v1099 = vadd.f32 %v998, %v1098
        %1100 = vmatmul.f32.gmra.mxu0 %v900
        %v1101 = vpop.f32.mrf.mxu0
        %v1102 = vadd.f32 %v1001, %v1101
        %1103 = vdwg.mxu0
        %v1105 = vsel %vm817, %v648, 0
        %v1108 = vsel %vm817, %v650, 0
        %v1111 = vsel %vm817, %v652, 0
        %v1114 = vsel %vm817, %v654, 0
        %v1117 = vsel %vm817, %v656, 0
        %v1120 = vsel %vm817, %v658, 0
        %v1123 = vsel %vm817, %v660, 0
        %v1126 = vsel %vm817, %v662, 0
        %v1129 = vsel %vm817, %v664, 0
        %v1132 = vsel %vm817, %v666, 0
        %v1135 = vsel %vm817, %v668, 0
        %v1138 = vsel %vm817, %v670, 0
        %v1141 = vsel %vm817, %v672, 0
        %v1144 = vsel %vm817, %v674, 0
        %v1147 = vsel %vm817, %v676, 0
        %v1150 = vsel %vm817, %v678, 0
        %v1153 = vsel %vm817, %v680, 0
        %v1156 = vsel %vm817, %v682, 0
        %v1159 = vsel %vm817, %v684, 0
        %v1162 = vsel %vm817, %v686, 0
        %v1165 = vsel %vm817, %v688, 0
        %v1168 = vsel %vm817, %v690, 0
        %v1171 = vsel %vm817, %v692, 0
        %v1174 = vsel %vm817, %v694, 0
        %v1177 = vsel %vm817, %v696, 0
        %v1180 = vsel %vm817, %v698, 0
        %v1183 = vsel %vm817, %v700, 0
        %v1186 = vsel %vm817, %v702, 0
        %1188 = vmatpush.msra.mxu0 %v718
        %1189 = vmatpush.msra.mxu0 %v717
        %1190 = vmatpush.msra.mxu0 %v716
        %1191 = vmatpush.msra.mxu0 %v715
        %1192 = vmatpush.msra.mxu0 %v714
        %1193 = vmatpush.msra.mxu0 %v713
        %1194 = vmatpush.msra.mxu0 %v712
        %1195 = vmatpush.msra.mxu0 %v711
        %1196 = vmatpush.msra.mxu0 %v710
        %1197 = vmatpush.msra.mxu0 %v709
        %1198 = vmatpush.msra.mxu0 %v708
        %1199 = vmatpush.msra.mxu0 %v707
        %1200 = vmatpush.msra.mxu0 %v706
        %1201 = vmatpush.msra.mxu0 %v705
        %1202 = vmatpush.msra.mxu0 %v704
        %1203 = vmatpush.msra.mxu0 %v703
        %1204 = vmatmul.f32.gmra.mxu0 %v647
        %v1205 = vpop.f32.mrf.mxu0
        %v1206 = vadd.f32 %v1021, %v1205
        %1207 = vmatmul.f32.gmra.mxu0 %v649
        %v1208 = vpop.f32.mrf.mxu0
        %v1209 = vadd.f32 %v1024, %v1208
        %1210 = vmatmul.f32.gmra.mxu0 %v651
        %v1211 = vpop.f32.mrf.mxu0
        %v1212 = vadd.f32 %v1027, %v1211
        %1213 = vmatmul.f32.gmra.mxu0 %v653
        %v1214 = vpop.f32.mrf.mxu0
        %v1215 = vadd.f32 %v1030, %v1214
        %1216 = vmatmul.f32.gmra.mxu0 %v655
        %v1217 = vpop.f32.mrf.mxu0
        %v1218 = vadd.f32 %v1033, %v1217
        %1219 = vmatmul.f32.gmra.mxu0 %v657
        %v1220 = vpop.f32.mrf.mxu0
        %v1221 = vadd.f32 %v1036, %v1220
        %1222 = vmatmul.f32.gmra.mxu0 %v659
        %v1223 = vpop.f32.mrf.mxu0
        %v1224 = vadd.f32 %v1039, %v1223
        %1225 = vmatmul.f32.gmra.mxu0 %v661
        %v1226 = vpop.f32.mrf.mxu0
        %v1227 = vadd.f32 %v1042, %v1226
        %1228 = vmatmul.f32.gmra.mxu0 %v663
        %v1229 = vpop.f32.mrf.mxu0
        %v1230 = vadd.f32 %v1045, %v1229
        %1231 = vmatmul.f32.gmra.mxu0 %v665
        %v1232 = vpop.f32.mrf.mxu0
        %v1233 = vadd.f32 %v1048, %v1232
        %1234 = vmatmul.f32.gmra.mxu0 %v667
        %v1235 = vpop.f32.mrf.mxu0
        %v1236 = vadd.f32 %v1051, %v1235
        %1237 = vmatmul.f32.gmra.mxu0 %v669
        %v1238 = vpop.f32.mrf.mxu0
        %v1239 = vadd.f32 %v1054, %v1238
        %1240 = vmatmul.f32.gmra.mxu0 %v671
        %v1241 = vpop.f32.mrf.mxu0
        %v1242 = vadd.f32 %v1057, %v1241
        %1243 = vmatmul.f32.gmra.mxu0 %v673
        %v1244 = vpop.f32.mrf.mxu0
        %v1245 = vadd.f32 %v1060, %v1244
        %1246 = vmatmul.f32.gmra.mxu0 %v675
        %v1247 = vpop.f32.mrf.mxu0
        %v1248 = vadd.f32 %v1063, %v1247
        %1249 = vmatmul.f32.gmra.mxu0 %v677
        %v1250 = vpop.f32.mrf.mxu0
        %v1251 = vadd.f32 %v1066, %v1250
        %1252 = vmatmul.f32.gmra.mxu0 %v679
        %v1253 = vpop.f32.mrf.mxu0
        %v1254 = vadd.f32 %v1069, %v1253
        %1255 = vmatmul.f32.gmra.mxu0 %v681
        %v1256 = vpop.f32.mrf.mxu0
        %v1257 = vadd.f32 %v1072, %v1256
        %1258 = vmatmul.f32.gmra.mxu0 %v683
        %v1259 = vpop.f32.mrf.mxu0
        %v1260 = vadd.f32 %v1075, %v1259
        %1261 = vmatmul.f32.gmra.mxu0 %v685
        %v1262 = vpop.f32.mrf.mxu0
        %v1263 = vadd.f32 %v1078, %v1262
        %1264 = vmatmul.f32.gmra.mxu0 %v687
        %v1265 = vpop.f32.mrf.mxu0
        %v1266 = vadd.f32 %v1081, %v1265
        %1267 = vmatmul.f32.gmra.mxu0 %v689
        %v1268 = vpop.f32.mrf.mxu0
        %v1269 = vadd.f32 %v1084, %v1268
        %1270 = vmatmul.f32.gmra.mxu0 %v691
        %v1271 = vpop.f32.mrf.mxu0
        %v1272 = vadd.f32 %v1087, %v1271
        %1273 = vmatmul.f32.gmra.mxu0 %v693
        %v1274 = vpop.f32.mrf.mxu0
        %v1275 = vadd.f32 %v1090, %v1274
        %1276 = vmatmul.f32.gmra.mxu0 %v695
        %v1277 = vpop.f32.mrf.mxu0
        %v1278 = vadd.f32 %v1093, %v1277
        %1279 = vmatmul.f32.gmra.mxu0 %v697
        %v1280 = vpop.f32.mrf.mxu0
        %v1281 = vadd.f32 %v1096, %v1280
        %1282 = vmatmul.f32.gmra.mxu0 %v699
        %v1283 = vpop.f32.mrf.mxu0
        %v1284 = vadd.f32 %v1099, %v1283
        %1285 = vmatmul.f32.gmra.mxu0 %v701
        %v1286 = vpop.f32.mrf.mxu0
        %v1287 = vadd.f32 %v1102, %v1286
        %1288 = vdwg.mxu0
        %1289 = vmatpush.msra.mxu0 0.0
        %1290 = vmatpush.msra.mxu0 0.0
        %1291 = vmatpush.msra.mxu0 0.0
        %1292 = vmatpush.msra.mxu0 0.0
        %1293 = vmatpush.msra.mxu0 %v730
        %1294 = vmatpush.msra.mxu0 %v729
        %1295 = vmatpush.msra.mxu0 %v728
        %1296 = vmatpush.msra.mxu0 %v727
        %1297 = vmatpush.msra.mxu0 %v726
        %1298 = vmatpush.msra.mxu0 %v725
        %1299 = vmatpush.msra.mxu0 %v724
        %1300 = vmatpush.msra.mxu0 %v723
        %1301 = vmatpush.msra.mxu0 %v722
        %1302 = vmatpush.msra.mxu0 %v721
        %1303 = vmatpush.msra.mxu0 %v720
        %1304 = vmatpush.msra.mxu0 %v719
        %1305 = vmatmul.f32.gmra.mxu0 %v1105
        %v1306 = vpop.f32.mrf.mxu0
        %v1307 = vadd.f32 %v1206, %v1306
        %1308 = vmatmul.f32.gmra.mxu0 %v1108
        %v1309 = vpop.f32.mrf.mxu0
        %v1310 = vadd.f32 %v1209, %v1309
        %1311 = vmatmul.f32.gmra.mxu0 %v1111
        %v1312 = vpop.f32.mrf.mxu0
        %v1313 = vadd.f32 %v1212, %v1312
        %1314 = vmatmul.f32.gmra.mxu0 %v1114
        %v1315 = vpop.f32.mrf.mxu0
        %v1316 = vadd.f32 %v1215, %v1315
        %1317 = vmatmul.f32.gmra.mxu0 %v1117
        %v1318 = vpop.f32.mrf.mxu0
        %v1319 = vadd.f32 %v1218, %v1318
        %1320 = vmatmul.f32.gmra.mxu0 %v1120
        %v1321 = vpop.f32.mrf.mxu0
        %v1322 = vadd.f32 %v1221, %v1321
        %1323 = vmatmul.f32.gmra.mxu0 %v1123
        %v1324 = vpop.f32.mrf.mxu0
        %v1325 = vadd.f32 %v1224, %v1324
        %1326 = vmatmul.f32.gmra.mxu0 %v1126
        %v1327 = vpop.f32.mrf.mxu0
        %v1328 = vadd.f32 %v1227, %v1327
        %1329 = vmatmul.f32.gmra.mxu0 %v1129
        %v1330 = vpop.f32.mrf.mxu0
        %v1331 = vadd.f32 %v1230, %v1330
        %1332 = vmatmul.f32.gmra.mxu0 %v1132
        %v1333 = vpop.f32.mrf.mxu0
        %v1334 = vadd.f32 %v1233, %v1333
        %1335 = vmatmul.f32.gmra.mxu0 %v1135
        %v1336 = vpop.f32.mrf.mxu0
        %v1337 = vadd.f32 %v1236, %v1336
        %1338 = vmatmul.f32.gmra.mxu0 %v1138
        %v1339 = vpop.f32.mrf.mxu0
        %v1340 = vadd.f32 %v1239, %v1339
        %1341 = vmatmul.f32.gmra.mxu0 %v1141
        %v1342 = vpop.f32.mrf.mxu0
        %v1343 = vadd.f32 %v1242, %v1342
        %1344 = vmatmul.f32.gmra.mxu0 %v1144
        %v1345 = vpop.f32.mrf.mxu0
        %v1346 = vadd.f32 %v1245, %v1345
        %1347 = vmatmul.f32.gmra.mxu0 %v1147
        %v1348 = vpop.f32.mrf.mxu0
        %v1349 = vadd.f32 %v1248, %v1348
        %1350 = vmatmul.f32.gmra.mxu0 %v1150
        %v1351 = vpop.f32.mrf.mxu0
        %v1352 = vadd.f32 %v1251, %v1351
        %1353 = vmatmul.f32.gmra.mxu0 %v1153
        %v1354 = vpop.f32.mrf.mxu0
        %v1355 = vadd.f32 %v1254, %v1354
        %1356 = vmatmul.f32.gmra.mxu0 %v1156
        %v1357 = vpop.f32.mrf.mxu0
        %v1358 = vadd.f32 %v1257, %v1357
        %1359 = vmatmul.f32.gmra.mxu0 %v1159
        %v1360 = vpop.f32.mrf.mxu0
        %v1361 = vadd.f32 %v1260, %v1360
        %1362 = vmatmul.f32.gmra.mxu0 %v1162
        %v1363 = vpop.f32.mrf.mxu0
        %v1364 = vadd.f32 %v1263, %v1363
        %1365 = vmatmul.f32.gmra.mxu0 %v1165
        %v1366 = vpop.f32.mrf.mxu0
        %v1367 = vadd.f32 %v1266, %v1366
        %1368 = vmatmul.f32.gmra.mxu0 %v1168
        %v1369 = vpop.f32.mrf.mxu0
        %v1370 = vadd.f32 %v1269, %v1369
        %1371 = vmatmul.f32.gmra.mxu0 %v1171
        %v1372 = vpop.f32.mrf.mxu0
        %v1373 = vadd.f32 %v1272, %v1372
        %1374 = vmatmul.f32.gmra.mxu0 %v1174
        %v1375 = vpop.f32.mrf.mxu0
        %v1376 = vadd.f32 %v1275, %v1375
        %1377 = vmatmul.f32.gmra.mxu0 %v1177
        %v1378 = vpop.f32.mrf.mxu0
        %v1379 = vadd.f32 %v1278, %v1378
        %1380 = vmatmul.f32.gmra.mxu0 %v1180
        %v1381 = vpop.f32.mrf.mxu0
        %v1382 = vadd.f32 %v1281, %v1381
        %1383 = vmatmul.f32.gmra.mxu0 %v1183
        %v1384 = vpop.f32.mrf.mxu0
        %v1385 = vadd.f32 %v1284, %v1384
        %1386 = vmatmul.f32.gmra.mxu0 %v1186
        %v1387 = vpop.f32.mrf.mxu0
        %v1388 = vadd.f32 %v1287, %v1387
        %1389 = vdwg.mxu0
        %s1390 = scalar_lea.vmem %s374, 896 [#allocation2]
        %v1391 = vld [vmem:[%s1390] sm:$0xff]
        %v1392 = vld [vmem:[%s1390 + $0x8] sm:$0xff]
        %v1393 = vld [vmem:[%s1390 + $0x10] sm:$0xff]
        %v1394 = vld [vmem:[%s1390 + $0x18] sm:$0xff]
        %v1395 = vld [vmem:[%s1390 + $0x20] sm:$0xff]
        %v1396 = vld [vmem:[%s1390 + $0x28] sm:$0xff]
        %v1397 = vld [vmem:[%s1390 + $0x30] sm:$0xff]
        %v1398 = vld [vmem:[%s1390 + $0x38] sm:$0xff]
        %v1399 = vld [vmem:[%s1390 + $0x40] sm:$0xff]
        %v1400 = vld [vmem:[%s1390 + $0x48] sm:$0xff]
        %v1401 = vld [vmem:[%s1390 + $0x50] sm:$0xff]
        %v1402 = vld [vmem:[%s1390 + $0x58] sm:$0xff]
        %v1403 = vld [vmem:[%s1390 + $0x60] sm:$0xff]
        %v1404 = vld [vmem:[%s1390 + $0x68] sm:$0xff]
        %v1405 = vld [vmem:[%s1390 + $0x70] sm:$0xff]
        %v1406 = vld [vmem:[%s1390 + $0x78] sm:$0xff]
        %v1407 = vld [vmem:[%s1390 + $0x80] sm:$0xff]
        %v1408 = vld [vmem:[%s1390 + $0x88] sm:$0xff]
        %v1409 = vld [vmem:[%s1390 + $0x90] sm:$0xff]
        %v1410 = vld [vmem:[%s1390 + $0x98] sm:$0xff]
        %v1411 = vld [vmem:[%s1390 + $0xa0] sm:$0xff]
        %v1412 = vld [vmem:[%s1390 + $0xa8] sm:$0xff]
        %v1413 = vld [vmem:[%s1390 + $0xb0] sm:$0xff]
        %v1414 = vld [vmem:[%s1390 + $0xb8] sm:$0xff]
        %v1415 = vld [vmem:[%s1390 + $0xc0] sm:$0xff]
        %v1416 = vld [vmem:[%s1390 + $0xc8] sm:$0xff]
        %v1417 = vld [vmem:[%s1390 + $0xd0] sm:$0xff]
        %v1418 = vld [vmem:[%s1390 + $0xd8] sm:$0xff]
        %v1419 = vld [vmem:[%s1390 + $0xe0] sm:$0xff]
        %v1420 = vld [vmem:[%s1390 + $0xe8] sm:$0xff]
        %v1421 = vld [vmem:[%s1390 + $0xf0] sm:$0xff]
        %v1422 = vld [vmem:[%s1390 + $0xf8] sm:$0xff]
        %v1423 = vld [vmem:[%s1390 + $0x100] sm:$0xff]
        %v1424 = vld [vmem:[%s1390 + $0x108] sm:$0xff]
        %v1425 = vld [vmem:[%s1390 + $0x110] sm:$0xff]
        %v1426 = vld [vmem:[%s1390 + $0x118] sm:$0xff]
        %v1427 = vld [vmem:[%s1390 + $0x120] sm:$0xff]
        %v1428 = vld [vmem:[%s1390 + $0x128] sm:$0xff]
        %v1429 = vld [vmem:[%s1390 + $0x130] sm:$0xff]
        %v1430 = vld [vmem:[%s1390 + $0x138] sm:$0xff]
        %v1431 = vld [vmem:[%s1390 + $0x140] sm:$0xff]
        %v1432 = vld [vmem:[%s1390 + $0x148] sm:$0xff]
        %v1433 = vld [vmem:[%s1390 + $0x150] sm:$0xff]
        %v1434 = vld [vmem:[%s1390 + $0x158] sm:$0xff]
        %v1435 = vld [vmem:[%s1390 + $0x160] sm:$0xff]
        %v1436 = vld [vmem:[%s1390 + $0x168] sm:$0xff]
        %v1437 = vld [vmem:[%s1390 + $0x170] sm:$0xff]
        %v1438 = vld [vmem:[%s1390 + $0x178] sm:$0xff]
        %v1439 = vld [vmem:[%s1390 + $0x180] sm:$0xff]
        %v1440 = vld [vmem:[%s1390 + $0x188] sm:$0xff]
        %v1441 = vld [vmem:[%s1390 + $0x190] sm:$0xff]
        %v1442 = vld [vmem:[%s1390 + $0x198] sm:$0xff]
        %v1443 = vld [vmem:[%s1390 + $0x1a0] sm:$0xff]
        %v1444 = vld [vmem:[%s1390 + $0x1a8] sm:$0xff]
        %v1445 = vld [vmem:[%s1390 + $0x1b0] sm:$0xff]
        %v1446 = vld [vmem:[%s1390 + $0x1b8] sm:$0xff]
        %s1447 = scalar_lea.vmem %s2, 448
        %v1448 = vld [vmem:[%s1447] sm:$0xff]
        %v1449 = vld [vmem:[%s1447 + $0x8] sm:$0xff]
        %v1450 = vld [vmem:[%s1447 + $0x10] sm:$0xff]
        %v1451 = vld [vmem:[%s1447 + $0x18] sm:$0xff]
        %v1452 = vld [vmem:[%s1447 + $0x20] sm:$0xff]
        %v1453 = vld [vmem:[%s1447 + $0x28] sm:$0xff]
        %v1454 = vld [vmem:[%s1447 + $0x30] sm:$0xff]
        %v1455 = vld [vmem:[%s1447 + $0x38] sm:$0xff]
        %v1456 = vld [vmem:[%s1447 + $0x40] sm:$0xff]
        %v1457 = vld [vmem:[%s1447 + $0x48] sm:$0xff]
        %v1458 = vld [vmem:[%s1447 + $0x50] sm:$0xff]
        %v1459 = vld [vmem:[%s1447 + $0x58] sm:$0xff]
        %v1460 = vld [vmem:[%s1447 + $0x60] sm:$0xff]
        %v1461 = vld [vmem:[%s1447 + $0x68] sm:$0xff]
        %v1462 = vld [vmem:[%s1447 + $0x70] sm:$0xff]
        %v1463 = vld [vmem:[%s1447 + $0x78] sm:$0xff]
        %v1464 = vld [vmem:[%s1447 + $0x80] sm:$0xff]
        %v1465 = vld [vmem:[%s1447 + $0x88] sm:$0xff]
        %v1466 = vld [vmem:[%s1447 + $0x90] sm:$0xff]
        %v1467 = vld [vmem:[%s1447 + $0x98] sm:$0xff]
        %v1468 = vld [vmem:[%s1447 + $0xa0] sm:$0xff]
        %v1469 = vld [vmem:[%s1447 + $0xa8] sm:$0xff]
        %v1470 = vld [vmem:[%s1447 + $0xb0] sm:$0xff]
        %v1471 = vld [vmem:[%s1447 + $0xb8] sm:$0xff]
        %v1472 = vld [vmem:[%s1447 + $0xc0] sm:$0xff]
        %v1473 = vld [vmem:[%s1447 + $0xc8] sm:$0xff]
        %v1474 = vld [vmem:[%s1447 + $0xd0] sm:$0xff]
        %v1475 = vld [vmem:[%s1447 + $0xd8] sm:$0xff]
        %v1477 = vsel %vm817, %v1392, 0
        %v1480 = vsel %vm817, %v1394, 0
        %v1483 = vsel %vm817, %v1396, 0
        %v1486 = vsel %vm817, %v1398, 0
        %v1489 = vsel %vm817, %v1400, 0
        %v1492 = vsel %vm817, %v1402, 0
        %v1495 = vsel %vm817, %v1404, 0
        %v1498 = vsel %vm817, %v1406, 0
        %v1501 = vsel %vm817, %v1408, 0
        %v1504 = vsel %vm817, %v1410, 0
        %v1507 = vsel %vm817, %v1412, 0
        %v1510 = vsel %vm817, %v1414, 0
        %v1513 = vsel %vm817, %v1416, 0
        %v1516 = vsel %vm817, %v1418, 0
        %v1519 = vsel %vm817, %v1420, 0
        %v1522 = vsel %vm817, %v1422, 0
        %v1525 = vsel %vm817, %v1424, 0
        %v1528 = vsel %vm817, %v1426, 0
        %v1531 = vsel %vm817, %v1428, 0
        %v1534 = vsel %vm817, %v1430, 0
        %v1537 = vsel %vm817, %v1432, 0
        %v1540 = vsel %vm817, %v1434, 0
        %v1543 = vsel %vm817, %v1436, 0
        %v1546 = vsel %vm817, %v1438, 0
        %v1549 = vsel %vm817, %v1440, 0
        %v1552 = vsel %vm817, %v1442, 0
        %v1555 = vsel %vm817, %v1444, 0
        %v1558 = vsel %vm817, %v1446, 0
        %1560 = vmatpush.msra.mxu0 %v1463
        %1561 = vmatpush.msra.mxu0 %v1462
        %1562 = vmatpush.msra.mxu0 %v1461
        %1563 = vmatpush.msra.mxu0 %v1460
        %1564 = vmatpush.msra.mxu0 %v1459
        %1565 = vmatpush.msra.mxu0 %v1458
        %1566 = vmatpush.msra.mxu0 %v1457
        %1567 = vmatpush.msra.mxu0 %v1456
        %1568 = vmatpush.msra.mxu0 %v1455
        %1569 = vmatpush.msra.mxu0 %v1454
        %1570 = vmatpush.msra.mxu0 %v1453
        %1571 = vmatpush.msra.mxu0 %v1452
        %1572 = vmatpush.msra.mxu0 %v1451
        %1573 = vmatpush.msra.mxu0 %v1450
        %1574 = vmatpush.msra.mxu0 %v1449
        %1575 = vmatpush.msra.mxu0 %v1448
        %1576 = vmatmul.f32.gmra.mxu0 %v1391
        %v1577 = vpop.f32.mrf.mxu0
        %v1578 = vadd.f32 0.0, %v1577
        %1579 = vmatmul.f32.gmra.mxu0 %v1393
        %v1580 = vpop.f32.mrf.mxu0
        %v1581 = vadd.f32 0.0, %v1580
        %1582 = vmatmul.f32.gmra.mxu0 %v1395
        %v1583 = vpop.f32.mrf.mxu0
        %v1584 = vadd.f32 0.0, %v1583
        %1585 = vmatmul.f32.gmra.mxu0 %v1397
        %v1586 = vpop.f32.mrf.mxu0
        %v1587 = vadd.f32 0.0, %v1586
        %1588 = vmatmul.f32.gmra.mxu0 %v1399
        %v1589 = vpop.f32.mrf.mxu0
        %v1590 = vadd.f32 0.0, %v1589
        %1591 = vmatmul.f32.gmra.mxu0 %v1401
        %v1592 = vpop.f32.mrf.mxu0
        %v1593 = vadd.f32 0.0, %v1592
        %1594 = vmatmul.f32.gmra.mxu0 %v1403
        %v1595 = vpop.f32.mrf.mxu0
        %v1596 = vadd.f32 0.0, %v1595
        %1597 = vmatmul.f32.gmra.mxu0 %v1405
        %v1598 = vpop.f32.mrf.mxu0
        %v1599 = vadd.f32 0.0, %v1598
        %1600 = vmatmul.f32.gmra.mxu0 %v1407
        %v1601 = vpop.f32.mrf.mxu0
        %v1602 = vadd.f32 0.0, %v1601
        %1603 = vmatmul.f32.gmra.mxu0 %v1409
        %v1604 = vpop.f32.mrf.mxu0
        %v1605 = vadd.f32 0.0, %v1604
        %1606 = vmatmul.f32.gmra.mxu0 %v1411
        %v1607 = vpop.f32.mrf.mxu0
        %v1608 = vadd.f32 0.0, %v1607
        %1609 = vmatmul.f32.gmra.mxu0 %v1413
        %v1610 = vpop.f32.mrf.mxu0
        %v1611 = vadd.f32 0.0, %v1610
        %1612 = vmatmul.f32.gmra.mxu0 %v1415
        %v1613 = vpop.f32.mrf.mxu0
        %v1614 = vadd.f32 0.0, %v1613
        %1615 = vmatmul.f32.gmra.mxu0 %v1417
        %v1616 = vpop.f32.mrf.mxu0
        %v1617 = vadd.f32 0.0, %v1616
        %1618 = vmatmul.f32.gmra.mxu0 %v1419
        %v1619 = vpop.f32.mrf.mxu0
        %v1620 = vadd.f32 0.0, %v1619
        %1621 = vmatmul.f32.gmra.mxu0 %v1421
        %v1622 = vpop.f32.mrf.mxu0
        %v1623 = vadd.f32 0.0, %v1622
        %1624 = vmatmul.f32.gmra.mxu0 %v1423
        %v1625 = vpop.f32.mrf.mxu0
        %v1626 = vadd.f32 0.0, %v1625
        %1627 = vmatmul.f32.gmra.mxu0 %v1425
        %v1628 = vpop.f32.mrf.mxu0
        %v1629 = vadd.f32 0.0, %v1628
        %1630 = vmatmul.f32.gmra.mxu0 %v1427
        %v1631 = vpop.f32.mrf.mxu0
        %v1632 = vadd.f32 0.0, %v1631
        %1633 = vmatmul.f32.gmra.mxu0 %v1429
        %v1634 = vpop.f32.mrf.mxu0
        %v1635 = vadd.f32 0.0, %v1634
        %1636 = vmatmul.f32.gmra.mxu0 %v1431
        %v1637 = vpop.f32.mrf.mxu0
        %v1638 = vadd.f32 0.0, %v1637
        %1639 = vmatmul.f32.gmra.mxu0 %v1433
        %v1640 = vpop.f32.mrf.mxu0
        %v1641 = vadd.f32 0.0, %v1640
        %1642 = vmatmul.f32.gmra.mxu0 %v1435
        %v1643 = vpop.f32.mrf.mxu0
        %v1644 = vadd.f32 0.0, %v1643
        %1645 = vmatmul.f32.gmra.mxu0 %v1437
        %v1646 = vpop.f32.mrf.mxu0
        %v1647 = vadd.f32 0.0, %v1646
        %1648 = vmatmul.f32.gmra.mxu0 %v1439
        %v1649 = vpop.f32.mrf.mxu0
        %v1650 = vadd.f32 0.0, %v1649
        %1651 = vmatmul.f32.gmra.mxu0 %v1441
        %v1652 = vpop.f32.mrf.mxu0
        %v1653 = vadd.f32 0.0, %v1652
        %1654 = vmatmul.f32.gmra.mxu0 %v1443
        %v1655 = vpop.f32.mrf.mxu0
        %v1656 = vadd.f32 0.0, %v1655
        %1657 = vmatmul.f32.gmra.mxu0 %v1445
        %v1658 = vpop.f32.mrf.mxu0
        %v1659 = vadd.f32 0.0, %v1658
        %1660 = vdwg.mxu0
        %1661 = vmatpush.msra.mxu0 0.0
        %1662 = vmatpush.msra.mxu0 0.0
        %1663 = vmatpush.msra.mxu0 0.0
        %1664 = vmatpush.msra.mxu0 0.0
        %1665 = vmatpush.msra.mxu0 %v1475
        %1666 = vmatpush.msra.mxu0 %v1474
        %1667 = vmatpush.msra.mxu0 %v1473
        %1668 = vmatpush.msra.mxu0 %v1472
        %1669 = vmatpush.msra.mxu0 %v1471
        %1670 = vmatpush.msra.mxu0 %v1470
        %1671 = vmatpush.msra.mxu0 %v1469
        %1672 = vmatpush.msra.mxu0 %v1468
        %1673 = vmatpush.msra.mxu0 %v1467
        %1674 = vmatpush.msra.mxu0 %v1466
        %1675 = vmatpush.msra.mxu0 %v1465
        %1676 = vmatpush.msra.mxu0 %v1464
        %1677 = vmatmul.f32.gmra.mxu0 %v1477
        %v1678 = vpop.f32.mrf.mxu0
        %v1679 = vadd.f32 %v1578, %v1678
        %1680 = vmatmul.f32.gmra.mxu0 %v1480
        %v1681 = vpop.f32.mrf.mxu0
        %v1682 = vadd.f32 %v1581, %v1681
        %1683 = vmatmul.f32.gmra.mxu0 %v1483
        %v1684 = vpop.f32.mrf.mxu0
        %v1685 = vadd.f32 %v1584, %v1684
        %1686 = vmatmul.f32.gmra.mxu0 %v1486
        %v1687 = vpop.f32.mrf.mxu0
        %v1688 = vadd.f32 %v1587, %v1687
        %1689 = vmatmul.f32.gmra.mxu0 %v1489
        %v1690 = vpop.f32.mrf.mxu0
        %v1691 = vadd.f32 %v1590, %v1690
        %1692 = vmatmul.f32.gmra.mxu0 %v1492
        %v1693 = vpop.f32.mrf.mxu0
        %v1694 = vadd.f32 %v1593, %v1693
        %1695 = vmatmul.f32.gmra.mxu0 %v1495
        %v1696 = vpop.f32.mrf.mxu0
        %v1697 = vadd.f32 %v1596, %v1696
        %1698 = vmatmul.f32.gmra.mxu0 %v1498
        %v1699 = vpop.f32.mrf.mxu0
        %v1700 = vadd.f32 %v1599, %v1699
        %1701 = vmatmul.f32.gmra.mxu0 %v1501
        %v1702 = vpop.f32.mrf.mxu0
        %v1703 = vadd.f32 %v1602, %v1702
        %1704 = vmatmul.f32.gmra.mxu0 %v1504
        %v1705 = vpop.f32.mrf.mxu0
        %v1706 = vadd.f32 %v1605, %v1705
        %1707 = vmatmul.f32.gmra.mxu0 %v1507
        %v1708 = vpop.f32.mrf.mxu0
        %v1709 = vadd.f32 %v1608, %v1708
        %1710 = vmatmul.f32.gmra.mxu0 %v1510
        %v1711 = vpop.f32.mrf.mxu0
        %v1712 = vadd.f32 %v1611, %v1711
        %1713 = vmatmul.f32.gmra.mxu0 %v1513
        %v1714 = vpop.f32.mrf.mxu0
        %v1715 = vadd.f32 %v1614, %v1714
        %1716 = vmatmul.f32.gmra.mxu0 %v1516
        %v1717 = vpop.f32.mrf.mxu0
        %v1718 = vadd.f32 %v1617, %v1717
        %1719 = vmatmul.f32.gmra.mxu0 %v1519
        %v1720 = vpop.f32.mrf.mxu0
        %v1721 = vadd.f32 %v1620, %v1720
        %1722 = vmatmul.f32.gmra.mxu0 %v1522
        %v1723 = vpop.f32.mrf.mxu0
        %v1724 = vadd.f32 %v1623, %v1723
        %1725 = vmatmul.f32.gmra.mxu0 %v1525
        %v1726 = vpop.f32.mrf.mxu0
        %v1727 = vadd.f32 %v1626, %v1726
        %1728 = vmatmul.f32.gmra.mxu0 %v1528
        %v1729 = vpop.f32.mrf.mxu0
        %v1730 = vadd.f32 %v1629, %v1729
        %1731 = vmatmul.f32.gmra.mxu0 %v1531
        %v1732 = vpop.f32.mrf.mxu0
        %v1733 = vadd.f32 %v1632, %v1732
        %1734 = vmatmul.f32.gmra.mxu0 %v1534
        %v1735 = vpop.f32.mrf.mxu0
        %v1736 = vadd.f32 %v1635, %v1735
        %1737 = vmatmul.f32.gmra.mxu0 %v1537
        %v1738 = vpop.f32.mrf.mxu0
        %v1739 = vadd.f32 %v1638, %v1738
        %1740 = vmatmul.f32.gmra.mxu0 %v1540
        %v1741 = vpop.f32.mrf.mxu0
        %v1742 = vadd.f32 %v1641, %v1741
        %1743 = vmatmul.f32.gmra.mxu0 %v1543
        %v1744 = vpop.f32.mrf.mxu0
        %v1745 = vadd.f32 %v1644, %v1744
        %1746 = vmatmul.f32.gmra.mxu0 %v1546
        %v1747 = vpop.f32.mrf.mxu0
        %v1748 = vadd.f32 %v1647, %v1747
        %1749 = vmatmul.f32.gmra.mxu0 %v1549
        %v1750 = vpop.f32.mrf.mxu0
        %v1751 = vadd.f32 %v1650, %v1750
        %1752 = vmatmul.f32.gmra.mxu0 %v1552
        %v1753 = vpop.f32.mrf.mxu0
        %v1754 = vadd.f32 %v1653, %v1753
        %1755 = vmatmul.f32.gmra.mxu0 %v1555
        %v1756 = vpop.f32.mrf.mxu0
        %v1757 = vadd.f32 %v1656, %v1756
        %1758 = vmatmul.f32.gmra.mxu0 %v1558
        %v1759 = vpop.f32.mrf.mxu0
        %v1760 = vadd.f32 %v1659, %v1759
        %1761 = vdwg.mxu0
        %v1762 = vadd.f32 %v1307, %v1679
        %v1763 = vadd.f32 %v1310, %v1682
        %v1764 = vadd.f32 %v1313, %v1685
        %v1765 = vadd.f32 %v1316, %v1688
        %v1766 = vadd.f32 %v1319, %v1691
        %v1767 = vadd.f32 %v1322, %v1694
        %v1768 = vadd.f32 %v1325, %v1697
        %v1769 = vadd.f32 %v1328, %v1700
        %v1770 = vadd.f32 %v1331, %v1703
        %v1771 = vadd.f32 %v1334, %v1706
        %v1772 = vadd.f32 %v1337, %v1709
        %v1773 = vadd.f32 %v1340, %v1712
        %v1774 = vadd.f32 %v1343, %v1715
        %v1775 = vadd.f32 %v1346, %v1718
        %v1776 = vadd.f32 %v1349, %v1721
        %v1777 = vadd.f32 %v1352, %v1724
        %v1778 = vadd.f32 %v1355, %v1727
        %v1779 = vadd.f32 %v1358, %v1730
        %v1780 = vadd.f32 %v1361, %v1733
        %v1781 = vadd.f32 %v1364, %v1736
        %v1782 = vadd.f32 %v1367, %v1739
        %v1783 = vadd.f32 %v1370, %v1742
        %v1784 = vadd.f32 %v1373, %v1745
        %v1785 = vadd.f32 %v1376, %v1748
        %v1786 = vadd.f32 %v1379, %v1751
        %v1787 = vadd.f32 %v1382, %v1754
        %v1788 = vadd.f32 %v1385, %v1757
        %v1789 = vadd.f32 %v1388, %v1760
        %v1790 = vld [vmem:[#allocation7] sm:$0x1]
        %v1792 = vperm.slane %v1790, 0
        %v1794 = vadd.f32 %v1762, %v1792
        %v1795 = vadd.f32 %v1763, %v1792
        %v1796 = vadd.f32 %v1764, %v1792
        %v1797 = vadd.f32 %v1765, %v1792
        %v1798 = vadd.f32 %v1766, %v1792
        %v1799 = vadd.f32 %v1767, %v1792
        %v1800 = vadd.f32 %v1768, %v1792
        %v1801 = vadd.f32 %v1769, %v1792
        %v1802 = vadd.f32 %v1770, %v1792
        %v1803 = vadd.f32 %v1771, %v1792
        %v1804 = vadd.f32 %v1772, %v1792
        %v1805 = vadd.f32 %v1773, %v1792
        %v1806 = vadd.f32 %v1774, %v1792
        %v1807 = vadd.f32 %v1775, %v1792
        %v1808 = vadd.f32 %v1776, %v1792
        %v1809 = vadd.f32 %v1777, %v1792
        %v1810 = vadd.f32 %v1778, %v1792
        %v1811 = vadd.f32 %v1779, %v1792
        %v1812 = vadd.f32 %v1780, %v1792
        %v1813 = vadd.f32 %v1781, %v1792
        %v1814 = vadd.f32 %v1782, %v1792
        %v1815 = vadd.f32 %v1783, %v1792
        %v1816 = vadd.f32 %v1784, %v1792
        %v1817 = vadd.f32 %v1785, %v1792
        %v1818 = vadd.f32 %v1786, %v1792
        %v1819 = vadd.f32 %v1787, %v1792
        %v1820 = vadd.f32 %v1788, %v1792
        %v1821 = vadd.f32 %v1789, %v1792
        %v1822 = vmax.f32 %v1794, 0.0
        %v1823 = vmax.f32 %v1795, 0.0
        %v1824 = vmax.f32 %v1796, 0.0
        %v1825 = vmax.f32 %v1797, 0.0
        %v1826 = vmax.f32 %v1798, 0.0
        %v1827 = vmax.f32 %v1799, 0.0
        %v1828 = vmax.f32 %v1800, 0.0
        %v1829 = vmax.f32 %v1801, 0.0
        %v1830 = vmax.f32 %v1802, 0.0
        %v1831 = vmax.f32 %v1803, 0.0
        %v1832 = vmax.f32 %v1804, 0.0
        %v1833 = vmax.f32 %v1805, 0.0
        %v1834 = vmax.f32 %v1806, 0.0
        %v1835 = vmax.f32 %v1807, 0.0
        %v1836 = vmax.f32 %v1808, 0.0
        %v1837 = vmax.f32 %v1809, 0.0
        %v1838 = vmax.f32 %v1810, 0.0
        %v1839 = vmax.f32 %v1811, 0.0
        %v1840 = vmax.f32 %v1812, 0.0
        %v1841 = vmax.f32 %v1813, 0.0
        %v1842 = vmax.f32 %v1814, 0.0
        %v1843 = vmax.f32 %v1815, 0.0
        %v1844 = vmax.f32 %v1816, 0.0
        %v1845 = vmax.f32 %v1817, 0.0
        %v1846 = vmax.f32 %v1818, 0.0
        %v1847 = vmax.f32 %v1819, 0.0
        %v1848 = vmax.f32 %v1820, 0.0
        %v1849 = vmax.f32 %v1821, 0.0
        %vm1850 = vcmask 261120
        %v1851 = vsel %vm1850, %v1822, 0.0
        %v1852 = vsel %vm1850, %v1823, 0.0
        %v1853 = vadd.f32 %v1851, %v1852
        %v1854 = vsel %vm1850, %v1824, 0.0
        %v1855 = vadd.f32 %v1853, %v1854
        %v1856 = vsel %vm1850, %v1825, 0.0
        %v1857 = vadd.f32 %v1855, %v1856
        %v1858 = vsel %vm1850, %v1826, 0.0
        %v1859 = vadd.f32 %v1857, %v1858
        %v1860 = vsel %vm1850, %v1827, 0.0
        %v1861 = vadd.f32 %v1859, %v1860
        %v1862 = vsel %vm1850, %v1828, 0.0
        %v1863 = vadd.f32 %v1861, %v1862
        %v1864 = vsel %vm1850, %v1829, 0.0
        %v1865 = vadd.f32 %v1863, %v1864
        %v1866 = vsel %vm1850, %v1830, 0.0
        %v1867 = vadd.f32 %v1865, %v1866
        %v1868 = vsel %vm1850, %v1831, 0.0
        %v1869 = vadd.f32 %v1867, %v1868
        %v1870 = vsel %vm1850, %v1832, 0.0
        %v1871 = vadd.f32 %v1869, %v1870
        %v1872 = vsel %vm1850, %v1833, 0.0
        %v1873 = vadd.f32 %v1871, %v1872
        %v1874 = vsel %vm1850, %v1834, 0.0
        %v1875 = vadd.f32 %v1873, %v1874
        %v1876 = vsel %vm1850, %v1835, 0.0
        %v1877 = vadd.f32 %v1875, %v1876
        %v1878 = vsel %vm1850, %v1836, 0.0
        %v1879 = vadd.f32 %v1877, %v1878
        %v1880 = vsel %vm1850, %v1837, 0.0
        %v1881 = vadd.f32 %v1879, %v1880
        %v1882 = vsel %vm1850, %v1838, 0.0
        %v1883 = vadd.f32 %v1881, %v1882
        %v1884 = vsel %vm1850, %v1839, 0.0
        %v1885 = vadd.f32 %v1883, %v1884
        %v1886 = vsel %vm1850, %v1840, 0.0
        %v1887 = vadd.f32 %v1885, %v1886
        %v1888 = vsel %vm1850, %v1841, 0.0
        %v1889 = vadd.f32 %v1887, %v1888
        %v1890 = vsel %vm1850, %v1842, 0.0
        %v1891 = vadd.f32 %v1889, %v1890
        %v1892 = vsel %vm1850, %v1843, 0.0
        %v1893 = vadd.f32 %v1891, %v1892
        %v1894 = vsel %vm1850, %v1844, 0.0
        %v1895 = vadd.f32 %v1893, %v1894
        %v1896 = vsel %vm1850, %v1845, 0.0
        %v1897 = vadd.f32 %v1895, %v1896
        %v1898 = vsel %vm1850, %v1846, 0.0
        %v1899 = vadd.f32 %v1897, %v1898
        %v1900 = vsel %vm1850, %v1847, 0.0
        %v1901 = vadd.f32 %v1899, %v1900
        %v1902 = vsel %vm1850, %v1848, 0.0
        %v1903 = vadd.f32 %v1901, %v1902
        %v1904 = vsel %vm1850, %v1849, 0.0
        %v1905 = vadd.f32 %v1903, %v1904
        %v1906 = vrot.slane %v1905, 4
        %v1907 = vadd.f32 %v1905, %v1906
        %v1908 = vrot.slane %v1907, 2
        %v1909 = vadd.f32 %v1907, %v1908
        %v1910 = vrot.slane %v1909, 1
        %v1911 = vadd.f32 %v1909, %v1910
        %v1912 = vrcp.pop 224.0
        %v1913 = vmul.f32 224.0, %v1912
        %v1914 = vsub.f32 1.0, %v1913
        %v1915 = vmul.f32 %v1912, %v1914
        %v1916 = vadd.f32 %v1912, %v1915
        %vm1917 = vweird.f32 %v1912
        %v1918 = vsel %vm1917, %v1912, %v1916
        %v1919 = vmul.f32 %v1911, %v1918
        %v1920 = vld [vmem:[%s384] sm:$0xff]
        %v1921 = vld [vmem:[%s384 + $0x8] sm:$0xff]
        %v1922 = vld [vmem:[%s384 + $0x10] sm:$0xff]
        %v1923 = vld [vmem:[%s384 + $0x18] sm:$0xff]
        %v1924 = vld [vmem:[%s384 + $0x20] sm:$0xff]
        %v1925 = vld [vmem:[%s384 + $0x28] sm:$0xff]
        %v1926 = vld [vmem:[%s384 + $0x30] sm:$0xff]
        %v1927 = vld [vmem:[%s384 + $0x38] sm:$0xff]
        %v1928 = vld [vmem:[%s384 + $0x40] sm:$0xff]
        %v1929 = vld [vmem:[%s384 + $0x48] sm:$0xff]
        %v1930 = vld [vmem:[%s384 + $0x50] sm:$0xff]
        %v1931 = vld [vmem:[%s384 + $0x58] sm:$0xff]
        %v1932 = vld [vmem:[%s384 + $0x60] sm:$0xff]
        %v1933 = vld [vmem:[%s384 + $0x68] sm:$0xff]
        %v1934 = vld [vmem:[%s384 + $0x70] sm:$0xff]
        %v1935 = vld [vmem:[%s384 + $0x78] sm:$0xff]
        %v1936 = vld [vmem:[%s384 + $0x80] sm:$0xff]
        %v1937 = vld [vmem:[%s384 + $0x88] sm:$0xff]
        %v1938 = vld [vmem:[%s384 + $0x90] sm:$0xff]
        %v1939 = vld [vmem:[%s384 + $0x98] sm:$0xff]
        %v1940 = vld [vmem:[%s384 + $0xa0] sm:$0xff]
        %v1941 = vld [vmem:[%s384 + $0xa8] sm:$0xff]
        %v1942 = vld [vmem:[%s384 + $0xb0] sm:$0xff]
        %v1943 = vld [vmem:[%s384 + $0xb8] sm:$0xff]
        %v1944 = vld [vmem:[%s384 + $0xc0] sm:$0xff]
        %v1945 = vld [vmem:[%s384 + $0xc8] sm:$0xff]
        %v1946 = vld [vmem:[%s384 + $0xd0] sm:$0xff]
        %v1947 = vld [vmem:[%s384 + $0xd8] sm:$0xff]
        %v1948 = vld [vmem:[%s384 + $0xe0] sm:$0xff]
        %v1949 = vld [vmem:[%s384 + $0xe8] sm:$0xff]
        %v1950 = vld [vmem:[%s384 + $0xf0] sm:$0xff]
        %v1951 = vld [vmem:[%s384 + $0xf8] sm:$0xff]
        %v1952 = vld [vmem:[%s384 + $0x100] sm:$0xff]
        %v1953 = vld [vmem:[%s384 + $0x108] sm:$0xff]
        %v1954 = vld [vmem:[%s384 + $0x110] sm:$0xff]
        %v1955 = vld [vmem:[%s384 + $0x118] sm:$0xff]
        %v1956 = vld [vmem:[%s384 + $0x120] sm:$0xff]
        %v1957 = vld [vmem:[%s384 + $0x128] sm:$0xff]
        %v1958 = vld [vmem:[%s384 + $0x130] sm:$0xff]
        %v1959 = vld [vmem:[%s384 + $0x138] sm:$0xff]
        %v1960 = vld [vmem:[%s384 + $0x140] sm:$0xff]
        %v1961 = vld [vmem:[%s384 + $0x148] sm:$0xff]
        %v1962 = vld [vmem:[%s384 + $0x150] sm:$0xff]
        %v1963 = vld [vmem:[%s384 + $0x158] sm:$0xff]
        %v1964 = vld [vmem:[%s384 + $0x160] sm:$0xff]
        %v1965 = vld [vmem:[%s384 + $0x168] sm:$0xff]
        %v1966 = vld [vmem:[%s384 + $0x170] sm:$0xff]
        %v1967 = vld [vmem:[%s384 + $0x178] sm:$0xff]
        %v1968 = vld [vmem:[%s384 + $0x180] sm:$0xff]
        %v1969 = vld [vmem:[%s384 + $0x188] sm:$0xff]
        %v1970 = vld [vmem:[%s384 + $0x190] sm:$0xff]
        %v1971 = vld [vmem:[%s384 + $0x198] sm:$0xff]
        %v1972 = vld [vmem:[%s384 + $0x1a0] sm:$0xff]
        %v1973 = vld [vmem:[%s384 + $0x1a8] sm:$0xff]
        %v1974 = vld [vmem:[%s384 + $0x1b0] sm:$0xff]
        %v1975 = vld [vmem:[%s384 + $0x1b8] sm:$0xff]
        %v1976 = vld [vmem:[%s4] sm:$0xff]
        %v1977 = vld [vmem:[%s4 + $0x8] sm:$0xff]
        %v1978 = vld [vmem:[%s4 + $0x10] sm:$0xff]
        %v1979 = vld [vmem:[%s4 + $0x18] sm:$0xff]
        %v1980 = vld [vmem:[%s4 + $0x20] sm:$0xff]
        %v1981 = vld [vmem:[%s4 + $0x28] sm:$0xff]
        %v1982 = vld [vmem:[%s4 + $0x30] sm:$0xff]
        %v1983 = vld [vmem:[%s4 + $0x38] sm:$0xff]
        %v1984 = vld [vmem:[%s4 + $0x40] sm:$0xff]
        %v1985 = vld [vmem:[%s4 + $0x48] sm:$0xff]
        %v1986 = vld [vmem:[%s4 + $0x50] sm:$0xff]
        %v1987 = vld [vmem:[%s4 + $0x58] sm:$0xff]
        %v1988 = vld [vmem:[%s4 + $0x60] sm:$0xff]
        %v1989 = vld [vmem:[%s4 + $0x68] sm:$0xff]
        %v1990 = vld [vmem:[%s4 + $0x70] sm:$0xff]
        %v1991 = vld [vmem:[%s4 + $0x78] sm:$0xff]
        %v1992 = vld [vmem:[%s4 + $0x80] sm:$0xff]
        %v1993 = vld [vmem:[%s4 + $0x88] sm:$0xff]
        %v1994 = vld [vmem:[%s4 + $0x90] sm:$0xff]
        %v1995 = vld [vmem:[%s4 + $0x98] sm:$0xff]
        %v1996 = vld [vmem:[%s4 + $0xa0] sm:$0xff]
        %v1997 = vld [vmem:[%s4 + $0xa8] sm:$0xff]
        %v1998 = vld [vmem:[%s4 + $0xb0] sm:$0xff]
        %v1999 = vld [vmem:[%s4 + $0xb8] sm:$0xff]
        %v2000 = vld [vmem:[%s4 + $0xc0] sm:$0xff]
        %v2001 = vld [vmem:[%s4 + $0xc8] sm:$0xff]
        %v2002 = vld [vmem:[%s4 + $0xd0] sm:$0xff]
        %v2003 = vld [vmem:[%s4 + $0xd8] sm:$0xff]
        %s2004 = scalar_lea.vmem %s384, 448 [#allocation5]
        %v2005 = vld [vmem:[%s2004] sm:$0xff]
        %v2006 = vld [vmem:[%s2004 + $0x8] sm:$0xff]
        %v2007 = vld [vmem:[%s2004 + $0x10] sm:$0xff]
        %v2008 = vld [vmem:[%s2004 + $0x18] sm:$0xff]
        %v2009 = vld [vmem:[%s2004 + $0x20] sm:$0xff]
        %v2010 = vld [vmem:[%s2004 + $0x28] sm:$0xff]
        %v2011 = vld [vmem:[%s2004 + $0x30] sm:$0xff]
        %v2012 = vld [vmem:[%s2004 + $0x38] sm:$0xff]
        %v2013 = vld [vmem:[%s2004 + $0x40] sm:$0xff]
        %v2014 = vld [vmem:[%s2004 + $0x48] sm:$0xff]
        %v2015 = vld [vmem:[%s2004 + $0x50] sm:$0xff]
        %v2016 = vld [vmem:[%s2004 + $0x58] sm:$0xff]
        %v2017 = vld [vmem:[%s2004 + $0x60] sm:$0xff]
        %v2018 = vld [vmem:[%s2004 + $0x68] sm:$0xff]
        %v2019 = vld [vmem:[%s2004 + $0x70] sm:$0xff]
        %v2020 = vld [vmem:[%s2004 + $0x78] sm:$0xff]
        %v2021 = vld [vmem:[%s2004 + $0x80] sm:$0xff]
        %v2022 = vld [vmem:[%s2004 + $0x88] sm:$0xff]
        %v2023 = vld [vmem:[%s2004 + $0x90] sm:$0xff]
        %v2024 = vld [vmem:[%s2004 + $0x98] sm:$0xff]
        %v2025 = vld [vmem:[%s2004 + $0xa0] sm:$0xff]
        %v2026 = vld [vmem:[%s2004 + $0xa8] sm:$0xff]
        %v2027 = vld [vmem:[%s2004 + $0xb0] sm:$0xff]
        %v2028 = vld [vmem:[%s2004 + $0xb8] sm:$0xff]
        %v2029 = vld [vmem:[%s2004 + $0xc0] sm:$0xff]
        %v2030 = vld [vmem:[%s2004 + $0xc8] sm:$0xff]
        %v2031 = vld [vmem:[%s2004 + $0xd0] sm:$0xff]
        %v2032 = vld [vmem:[%s2004 + $0xd8] sm:$0xff]
        %v2033 = vld [vmem:[%s2004 + $0xe0] sm:$0xff]
        %v2034 = vld [vmem:[%s2004 + $0xe8] sm:$0xff]
        %v2035 = vld [vmem:[%s2004 + $0xf0] sm:$0xff]
        %v2036 = vld [vmem:[%s2004 + $0xf8] sm:$0xff]
        %v2037 = vld [vmem:[%s2004 + $0x100] sm:$0xff]
        %v2038 = vld [vmem:[%s2004 + $0x108] sm:$0xff]
        %v2039 = vld [vmem:[%s2004 + $0x110] sm:$0xff]
        %v2040 = vld [vmem:[%s2004 + $0x118] sm:$0xff]
        %v2041 = vld [vmem:[%s2004 + $0x120] sm:$0xff]
        %v2042 = vld [vmem:[%s2004 + $0x128] sm:$0xff]
        %v2043 = vld [vmem:[%s2004 + $0x130] sm:$0xff]
        %v2044 = vld [vmem:[%s2004 + $0x138] sm:$0xff]
        %v2045 = vld [vmem:[%s2004 + $0x140] sm:$0xff]
        %v2046 = vld [vmem:[%s2004 + $0x148] sm:$0xff]
        %v2047 = vld [vmem:[%s2004 + $0x150] sm:$0xff]
        %v2048 = vld [vmem:[%s2004 + $0x158] sm:$0xff]
        %v2049 = vld [vmem:[%s2004 + $0x160] sm:$0xff]
        %v2050 = vld [vmem:[%s2004 + $0x168] sm:$0xff]
        %v2051 = vld [vmem:[%s2004 + $0x170] sm:$0xff]
        %v2052 = vld [vmem:[%s2004 + $0x178] sm:$0xff]
        %v2053 = vld [vmem:[%s2004 + $0x180] sm:$0xff]
        %v2054 = vld [vmem:[%s2004 + $0x188] sm:$0xff]
        %v2055 = vld [vmem:[%s2004 + $0x190] sm:$0xff]
        %v2056 = vld [vmem:[%s2004 + $0x198] sm:$0xff]
        %v2057 = vld [vmem:[%s2004 + $0x1a0] sm:$0xff]
        %v2058 = vld [vmem:[%s2004 + $0x1a8] sm:$0xff]
        %v2059 = vld [vmem:[%s2004 + $0x1b0] sm:$0xff]
        %v2060 = vld [vmem:[%s2004 + $0x1b8] sm:$0xff]
        %s2061 = scalar_lea.vmem %s4, 224
        %v2062 = vld [vmem:[%s2061] sm:$0xff]
        %v2063 = vld [vmem:[%s2061 + $0x8] sm:$0xff]
        %v2064 = vld [vmem:[%s2061 + $0x10] sm:$0xff]
        %v2065 = vld [vmem:[%s2061 + $0x18] sm:$0xff]
        %v2066 = vld [vmem:[%s2061 + $0x20] sm:$0xff]
        %v2067 = vld [vmem:[%s2061 + $0x28] sm:$0xff]
        %v2068 = vld [vmem:[%s2061 + $0x30] sm:$0xff]
        %v2069 = vld [vmem:[%s2061 + $0x38] sm:$0xff]
        %v2070 = vld [vmem:[%s2061 + $0x40] sm:$0xff]
        %v2071 = vld [vmem:[%s2061 + $0x48] sm:$0xff]
        %v2072 = vld [vmem:[%s2061 + $0x50] sm:$0xff]
        %v2073 = vld [vmem:[%s2061 + $0x58] sm:$0xff]
        %v2074 = vld [vmem:[%s2061 + $0x60] sm:$0xff]
        %v2075 = vld [vmem:[%s2061 + $0x68] sm:$0xff]
        %v2076 = vld [vmem:[%s2061 + $0x70] sm:$0xff]
        %v2077 = vld [vmem:[%s2061 + $0x78] sm:$0xff]
        %v2078 = vld [vmem:[%s2061 + $0x80] sm:$0xff]
        %v2079 = vld [vmem:[%s2061 + $0x88] sm:$0xff]
        %v2080 = vld [vmem:[%s2061 + $0x90] sm:$0xff]
        %v2081 = vld [vmem:[%s2061 + $0x98] sm:$0xff]
        %v2082 = vld [vmem:[%s2061 + $0xa0] sm:$0xff]
        %v2083 = vld [vmem:[%s2061 + $0xa8] sm:$0xff]
        %v2084 = vld [vmem:[%s2061 + $0xb0] sm:$0xff]
        %v2085 = vld [vmem:[%s2061 + $0xb8] sm:$0xff]
        %v2086 = vld [vmem:[%s2061 + $0xc0] sm:$0xff]
        %v2087 = vld [vmem:[%s2061 + $0xc8] sm:$0xff]
        %v2088 = vld [vmem:[%s2061 + $0xd0] sm:$0xff]
        %v2089 = vld [vmem:[%s2061 + $0xd8] sm:$0xff]
        %v2091 = vsel %vm817, %v2006, 0
        %v2094 = vsel %vm817, %v2008, 0
        %v2097 = vsel %vm817, %v2010, 0
        %v2100 = vsel %vm817, %v2012, 0
        %v2103 = vsel %vm817, %v2014, 0
        %v2106 = vsel %vm817, %v2016, 0
        %v2109 = vsel %vm817, %v2018, 0
        %v2112 = vsel %vm817, %v2020, 0
        %v2115 = vsel %vm817, %v2022, 0
        %v2118 = vsel %vm817, %v2024, 0
        %v2121 = vsel %vm817, %v2026, 0
        %v2124 = vsel %vm817, %v2028, 0
        %v2127 = vsel %vm817, %v2030, 0
        %v2130 = vsel %vm817, %v2032, 0
        %v2133 = vsel %vm817, %v2034, 0
        %v2136 = vsel %vm817, %v2036, 0
        %v2139 = vsel %vm817, %v2038, 0
        %v2142 = vsel %vm817, %v2040, 0
        %v2145 = vsel %vm817, %v2042, 0
        %v2148 = vsel %vm817, %v2044, 0
        %v2151 = vsel %vm817, %v2046, 0
        %v2154 = vsel %vm817, %v2048, 0
        %v2157 = vsel %vm817, %v2050, 0
        %v2160 = vsel %vm817, %v2052, 0
        %v2163 = vsel %vm817, %v2054, 0
        %v2166 = vsel %vm817, %v2056, 0
        %v2169 = vsel %vm817, %v2058, 0
        %v2172 = vsel %vm817, %v2060, 0
        %2174 = vmatpush.msra.mxu0 %v2077
        %2175 = vmatpush.msra.mxu0 %v2076
        %2176 = vmatpush.msra.mxu0 %v2075
        %2177 = vmatpush.msra.mxu0 %v2074
        %2178 = vmatpush.msra.mxu0 %v2073
        %2179 = vmatpush.msra.mxu0 %v2072
        %2180 = vmatpush.msra.mxu0 %v2071
        %2181 = vmatpush.msra.mxu0 %v2070
        %2182 = vmatpush.msra.mxu0 %v2069
        %2183 = vmatpush.msra.mxu0 %v2068
        %2184 = vmatpush.msra.mxu0 %v2067
        %2185 = vmatpush.msra.mxu0 %v2066
        %2186 = vmatpush.msra.mxu0 %v2065
        %2187 = vmatpush.msra.mxu0 %v2064
        %2188 = vmatpush.msra.mxu0 %v2063
        %2189 = vmatpush.msra.mxu0 %v2062
        %2190 = vmatmul.f32.gmra.mxu0 %v2005
        %v2191 = vpop.f32.mrf.mxu0
        %v2192 = vadd.f32 0.0, %v2191
        %2193 = vmatmul.f32.gmra.mxu0 %v2007
        %v2194 = vpop.f32.mrf.mxu0
        %v2195 = vadd.f32 0.0, %v2194
        %2196 = vmatmul.f32.gmra.mxu0 %v2009
        %v2197 = vpop.f32.mrf.mxu0
        %v2198 = vadd.f32 0.0, %v2197
        %2199 = vmatmul.f32.gmra.mxu0 %v2011
        %v2200 = vpop.f32.mrf.mxu0
        %v2201 = vadd.f32 0.0, %v2200
        %2202 = vmatmul.f32.gmra.mxu0 %v2013
        %v2203 = vpop.f32.mrf.mxu0
        %v2204 = vadd.f32 0.0, %v2203
        %2205 = vmatmul.f32.gmra.mxu0 %v2015
        %v2206 = vpop.f32.mrf.mxu0
        %v2207 = vadd.f32 0.0, %v2206
        %2208 = vmatmul.f32.gmra.mxu0 %v2017
        %v2209 = vpop.f32.mrf.mxu0
        %v2210 = vadd.f32 0.0, %v2209
        %2211 = vmatmul.f32.gmra.mxu0 %v2019
        %v2212 = vpop.f32.mrf.mxu0
        %v2213 = vadd.f32 0.0, %v2212
        %2214 = vmatmul.f32.gmra.mxu0 %v2021
        %v2215 = vpop.f32.mrf.mxu0
        %v2216 = vadd.f32 0.0, %v2215
        %2217 = vmatmul.f32.gmra.mxu0 %v2023
        %v2218 = vpop.f32.mrf.mxu0
        %v2219 = vadd.f32 0.0, %v2218
        %2220 = vmatmul.f32.gmra.mxu0 %v2025
        %v2221 = vpop.f32.mrf.mxu0
        %v2222 = vadd.f32 0.0, %v2221
        %2223 = vmatmul.f32.gmra.mxu0 %v2027
        %v2224 = vpop.f32.mrf.mxu0
        %v2225 = vadd.f32 0.0, %v2224
        %2226 = vmatmul.f32.gmra.mxu0 %v2029
        %v2227 = vpop.f32.mrf.mxu0
        %v2228 = vadd.f32 0.0, %v2227
        %2229 = vmatmul.f32.gmra.mxu0 %v2031
        %v2230 = vpop.f32.mrf.mxu0
        %v2231 = vadd.f32 0.0, %v2230
        %2232 = vmatmul.f32.gmra.mxu0 %v2033
        %v2233 = vpop.f32.mrf.mxu0
        %v2234 = vadd.f32 0.0, %v2233
        %2235 = vmatmul.f32.gmra.mxu0 %v2035
        %v2236 = vpop.f32.mrf.mxu0
        %v2237 = vadd.f32 0.0, %v2236
        %2238 = vmatmul.f32.gmra.mxu0 %v2037
        %v2239 = vpop.f32.mrf.mxu0
        %v2240 = vadd.f32 0.0, %v2239
        %2241 = vmatmul.f32.gmra.mxu0 %v2039
        %v2242 = vpop.f32.mrf.mxu0
        %v2243 = vadd.f32 0.0, %v2242
        %2244 = vmatmul.f32.gmra.mxu0 %v2041
        %v2245 = vpop.f32.mrf.mxu0
        %v2246 = vadd.f32 0.0, %v2245
        %2247 = vmatmul.f32.gmra.mxu0 %v2043
        %v2248 = vpop.f32.mrf.mxu0
        %v2249 = vadd.f32 0.0, %v2248
        %2250 = vmatmul.f32.gmra.mxu0 %v2045
        %v2251 = vpop.f32.mrf.mxu0
        %v2252 = vadd.f32 0.0, %v2251
        %2253 = vmatmul.f32.gmra.mxu0 %v2047
        %v2254 = vpop.f32.mrf.mxu0
        %v2255 = vadd.f32 0.0, %v2254
        %2256 = vmatmul.f32.gmra.mxu0 %v2049
        %v2257 = vpop.f32.mrf.mxu0
        %v2258 = vadd.f32 0.0, %v2257
        %2259 = vmatmul.f32.gmra.mxu0 %v2051
        %v2260 = vpop.f32.mrf.mxu0
        %v2261 = vadd.f32 0.0, %v2260
        %2262 = vmatmul.f32.gmra.mxu0 %v2053
        %v2263 = vpop.f32.mrf.mxu0
        %v2264 = vadd.f32 0.0, %v2263
        %2265 = vmatmul.f32.gmra.mxu0 %v2055
        %v2266 = vpop.f32.mrf.mxu0
        %v2267 = vadd.f32 0.0, %v2266
        %2268 = vmatmul.f32.gmra.mxu0 %v2057
        %v2269 = vpop.f32.mrf.mxu0
        %v2270 = vadd.f32 0.0, %v2269
        %2271 = vmatmul.f32.gmra.mxu0 %v2059
        %v2272 = vpop.f32.mrf.mxu0
        %v2273 = vadd.f32 0.0, %v2272
        %2274 = vdwg.mxu0
        %2275 = vmatpush.msra.mxu0 0.0
        %2276 = vmatpush.msra.mxu0 0.0
        %2277 = vmatpush.msra.mxu0 0.0
        %2278 = vmatpush.msra.mxu0 0.0
        %2279 = vmatpush.msra.mxu0 %v2089
        %2280 = vmatpush.msra.mxu0 %v2088
        %2281 = vmatpush.msra.mxu0 %v2087
        %2282 = vmatpush.msra.mxu0 %v2086
        %2283 = vmatpush.msra.mxu0 %v2085
        %2284 = vmatpush.msra.mxu0 %v2084
        %2285 = vmatpush.msra.mxu0 %v2083
        %2286 = vmatpush.msra.mxu0 %v2082
        %2287 = vmatpush.msra.mxu0 %v2081
        %2288 = vmatpush.msra.mxu0 %v2080
        %2289 = vmatpush.msra.mxu0 %v2079
        %2290 = vmatpush.msra.mxu0 %v2078
        %2291 = vmatmul.f32.gmra.mxu0 %v2091
        %v2292 = vpop.f32.mrf.mxu0
        %v2293 = vadd.f32 %v2192, %v2292
        %2294 = vmatmul.f32.gmra.mxu0 %v2094
        %v2295 = vpop.f32.mrf.mxu0
        %v2296 = vadd.f32 %v2195, %v2295
        %2297 = vmatmul.f32.gmra.mxu0 %v2097
        %v2298 = vpop.f32.mrf.mxu0
        %v2299 = vadd.f32 %v2198, %v2298
        %2300 = vmatmul.f32.gmra.mxu0 %v2100
        %v2301 = vpop.f32.mrf.mxu0
        %v2302 = vadd.f32 %v2201, %v2301
        %2303 = vmatmul.f32.gmra.mxu0 %v2103
        %v2304 = vpop.f32.mrf.mxu0
        %v2305 = vadd.f32 %v2204, %v2304
        %2306 = vmatmul.f32.gmra.mxu0 %v2106
        %v2307 = vpop.f32.mrf.mxu0
        %v2308 = vadd.f32 %v2207, %v2307
        %2309 = vmatmul.f32.gmra.mxu0 %v2109
        %v2310 = vpop.f32.mrf.mxu0
        %v2311 = vadd.f32 %v2210, %v2310
        %2312 = vmatmul.f32.gmra.mxu0 %v2112
        %v2313 = vpop.f32.mrf.mxu0
        %v2314 = vadd.f32 %v2213, %v2313
        %2315 = vmatmul.f32.gmra.mxu0 %v2115
        %v2316 = vpop.f32.mrf.mxu0
        %v2317 = vadd.f32 %v2216, %v2316
        %2318 = vmatmul.f32.gmra.mxu0 %v2118
        %v2319 = vpop.f32.mrf.mxu0
        %v2320 = vadd.f32 %v2219, %v2319
        %2321 = vmatmul.f32.gmra.mxu0 %v2121
        %v2322 = vpop.f32.mrf.mxu0
        %v2323 = vadd.f32 %v2222, %v2322
        %2324 = vmatmul.f32.gmra.mxu0 %v2124
        %v2325 = vpop.f32.mrf.mxu0
        %v2326 = vadd.f32 %v2225, %v2325
        %2327 = vmatmul.f32.gmra.mxu0 %v2127
        %v2328 = vpop.f32.mrf.mxu0
        %v2329 = vadd.f32 %v2228, %v2328
        %2330 = vmatmul.f32.gmra.mxu0 %v2130
        %v2331 = vpop.f32.mrf.mxu0
        %v2332 = vadd.f32 %v2231, %v2331
        %2333 = vmatmul.f32.gmra.mxu0 %v2133
        %v2334 = vpop.f32.mrf.mxu0
        %v2335 = vadd.f32 %v2234, %v2334
        %2336 = vmatmul.f32.gmra.mxu0 %v2136
        %v2337 = vpop.f32.mrf.mxu0
        %v2338 = vadd.f32 %v2237, %v2337
        %2339 = vmatmul.f32.gmra.mxu0 %v2139
        %v2340 = vpop.f32.mrf.mxu0
        %v2341 = vadd.f32 %v2240, %v2340
        %2342 = vmatmul.f32.gmra.mxu0 %v2142
        %v2343 = vpop.f32.mrf.mxu0
        %v2344 = vadd.f32 %v2243, %v2343
        %2345 = vmatmul.f32.gmra.mxu0 %v2145
        %v2346 = vpop.f32.mrf.mxu0
        %v2347 = vadd.f32 %v2246, %v2346
        %2348 = vmatmul.f32.gmra.mxu0 %v2148
        %v2349 = vpop.f32.mrf.mxu0
        %v2350 = vadd.f32 %v2249, %v2349
        %2351 = vmatmul.f32.gmra.mxu0 %v2151
        %v2352 = vpop.f32.mrf.mxu0
        %v2353 = vadd.f32 %v2252, %v2352
        %2354 = vmatmul.f32.gmra.mxu0 %v2154
        %v2355 = vpop.f32.mrf.mxu0
        %v2356 = vadd.f32 %v2255, %v2355
        %2357 = vmatmul.f32.gmra.mxu0 %v2157
        %v2358 = vpop.f32.mrf.mxu0
        %v2359 = vadd.f32 %v2258, %v2358
        %2360 = vmatmul.f32.gmra.mxu0 %v2160
        %v2361 = vpop.f32.mrf.mxu0
        %v2362 = vadd.f32 %v2261, %v2361
        %2363 = vmatmul.f32.gmra.mxu0 %v2163
        %v2364 = vpop.f32.mrf.mxu0
        %v2365 = vadd.f32 %v2264, %v2364
        %2366 = vmatmul.f32.gmra.mxu0 %v2166
        %v2367 = vpop.f32.mrf.mxu0
        %v2368 = vadd.f32 %v2267, %v2367
        %2369 = vmatmul.f32.gmra.mxu0 %v2169
        %v2370 = vpop.f32.mrf.mxu0
        %v2371 = vadd.f32 %v2270, %v2370
        %2372 = vmatmul.f32.gmra.mxu0 %v2172
        %v2373 = vpop.f32.mrf.mxu0
        %v2374 = vadd.f32 %v2273, %v2373
        %2375 = vdwg.mxu0
        %v2377 = vsel %vm817, %v1921, 0
        %v2380 = vsel %vm817, %v1923, 0
        %v2383 = vsel %vm817, %v1925, 0
        %v2386 = vsel %vm817, %v1927, 0
        %v2389 = vsel %vm817, %v1929, 0
        %v2392 = vsel %vm817, %v1931, 0
        %v2395 = vsel %vm817, %v1933, 0
        %v2398 = vsel %vm817, %v1935, 0
        %v2401 = vsel %vm817, %v1937, 0
        %v2404 = vsel %vm817, %v1939, 0
        %v2407 = vsel %vm817, %v1941, 0
        %v2410 = vsel %vm817, %v1943, 0
        %v2413 = vsel %vm817, %v1945, 0
        %v2416 = vsel %vm817, %v1947, 0
        %v2419 = vsel %vm817, %v1949, 0
        %v2422 = vsel %vm817, %v1951, 0
        %v2425 = vsel %vm817, %v1953, 0
        %v2428 = vsel %vm817, %v1955, 0
        %v2431 = vsel %vm817, %v1957, 0
        %v2434 = vsel %vm817, %v1959, 0
        %v2437 = vsel %vm817, %v1961, 0
        %v2440 = vsel %vm817, %v1963, 0
        %v2443 = vsel %vm817, %v1965, 0
        %v2446 = vsel %vm817, %v1967, 0
        %v2449 = vsel %vm817, %v1969, 0
        %v2452 = vsel %vm817, %v1971, 0
        %v2455 = vsel %vm817, %v1973, 0
        %v2458 = vsel %vm817, %v1975, 0
        %2460 = vmatpush.msra.mxu0 %v1991
        %2461 = vmatpush.msra.mxu0 %v1990
        %2462 = vmatpush.msra.mxu0 %v1989
        %2463 = vmatpush.msra.mxu0 %v1988
        %2464 = vmatpush.msra.mxu0 %v1987
        %2465 = vmatpush.msra.mxu0 %v1986
        %2466 = vmatpush.msra.mxu0 %v1985
        %2467 = vmatpush.msra.mxu0 %v1984
        %2468 = vmatpush.msra.mxu0 %v1983
        %2469 = vmatpush.msra.mxu0 %v1982
        %2470 = vmatpush.msra.mxu0 %v1981
        %2471 = vmatpush.msra.mxu0 %v1980
        %2472 = vmatpush.msra.mxu0 %v1979
        %2473 = vmatpush.msra.mxu0 %v1978
        %2474 = vmatpush.msra.mxu0 %v1977
        %2475 = vmatpush.msra.mxu0 %v1976
        %2476 = vmatmul.f32.gmra.mxu0 %v1920
        %v2477 = vpop.f32.mrf.mxu0
        %v2478 = vadd.f32 %v2293, %v2477
        %2479 = vmatmul.f32.gmra.mxu0 %v1922
        %v2480 = vpop.f32.mrf.mxu0
        %v2481 = vadd.f32 %v2296, %v2480
        %2482 = vmatmul.f32.gmra.mxu0 %v1924
        %v2483 = vpop.f32.mrf.mxu0
        %v2484 = vadd.f32 %v2299, %v2483
        %2485 = vmatmul.f32.gmra.mxu0 %v1926
        %v2486 = vpop.f32.mrf.mxu0
        %v2487 = vadd.f32 %v2302, %v2486
        %2488 = vmatmul.f32.gmra.mxu0 %v1928
        %v2489 = vpop.f32.mrf.mxu0
        %v2490 = vadd.f32 %v2305, %v2489
        %2491 = vmatmul.f32.gmra.mxu0 %v1930
        %v2492 = vpop.f32.mrf.mxu0
        %v2493 = vadd.f32 %v2308, %v2492
        %2494 = vmatmul.f32.gmra.mxu0 %v1932
        %v2495 = vpop.f32.mrf.mxu0
        %v2496 = vadd.f32 %v2311, %v2495
        %2497 = vmatmul.f32.gmra.mxu0 %v1934
        %v2498 = vpop.f32.mrf.mxu0
        %v2499 = vadd.f32 %v2314, %v2498
        %2500 = vmatmul.f32.gmra.mxu0 %v1936
        %v2501 = vpop.f32.mrf.mxu0
        %v2502 = vadd.f32 %v2317, %v2501
        %2503 = vmatmul.f32.gmra.mxu0 %v1938
        %v2504 = vpop.f32.mrf.mxu0
        %v2505 = vadd.f32 %v2320, %v2504
        %2506 = vmatmul.f32.gmra.mxu0 %v1940
        %v2507 = vpop.f32.mrf.mxu0
        %v2508 = vadd.f32 %v2323, %v2507
        %2509 = vmatmul.f32.gmra.mxu0 %v1942
        %v2510 = vpop.f32.mrf.mxu0
        %v2511 = vadd.f32 %v2326, %v2510
        %2512 = vmatmul.f32.gmra.mxu0 %v1944
        %v2513 = vpop.f32.mrf.mxu0
        %v2514 = vadd.f32 %v2329, %v2513
        %2515 = vmatmul.f32.gmra.mxu0 %v1946
        %v2516 = vpop.f32.mrf.mxu0
        %v2517 = vadd.f32 %v2332, %v2516
        %2518 = vmatmul.f32.gmra.mxu0 %v1948
        %v2519 = vpop.f32.mrf.mxu0
        %v2520 = vadd.f32 %v2335, %v2519
        %2521 = vmatmul.f32.gmra.mxu0 %v1950
        %v2522 = vpop.f32.mrf.mxu0
        %v2523 = vadd.f32 %v2338, %v2522
        %2524 = vmatmul.f32.gmra.mxu0 %v1952
        %v2525 = vpop.f32.mrf.mxu0
        %v2526 = vadd.f32 %v2341, %v2525
        %2527 = vmatmul.f32.gmra.mxu0 %v1954
        %v2528 = vpop.f32.mrf.mxu0
        %v2529 = vadd.f32 %v2344, %v2528
        %2530 = vmatmul.f32.gmra.mxu0 %v1956
        %v2531 = vpop.f32.mrf.mxu0
        %v2532 = vadd.f32 %v2347, %v2531
        %2533 = vmatmul.f32.gmra.mxu0 %v1958
        %v2534 = vpop.f32.mrf.mxu0
        %v2535 = vadd.f32 %v2350, %v2534
        %2536 = vmatmul.f32.gmra.mxu0 %v1960
        %v2537 = vpop.f32.mrf.mxu0
        %v2538 = vadd.f32 %v2353, %v2537
        %2539 = vmatmul.f32.gmra.mxu0 %v1962
        %v2540 = vpop.f32.mrf.mxu0
        %v2541 = vadd.f32 %v2356, %v2540
        %2542 = vmatmul.f32.gmra.mxu0 %v1964
        %v2543 = vpop.f32.mrf.mxu0
        %v2544 = vadd.f32 %v2359, %v2543
        %2545 = vmatmul.f32.gmra.mxu0 %v1966
        %v2546 = vpop.f32.mrf.mxu0
        %v2547 = vadd.f32 %v2362, %v2546
        %2548 = vmatmul.f32.gmra.mxu0 %v1968
        %v2549 = vpop.f32.mrf.mxu0
        %v2550 = vadd.f32 %v2365, %v2549
        %2551 = vmatmul.f32.gmra.mxu0 %v1970
        %v2552 = vpop.f32.mrf.mxu0
        %v2553 = vadd.f32 %v2368, %v2552
        %2554 = vmatmul.f32.gmra.mxu0 %v1972
        %v2555 = vpop.f32.mrf.mxu0
        %v2556 = vadd.f32 %v2371, %v2555
        %2557 = vmatmul.f32.gmra.mxu0 %v1974
        %v2558 = vpop.f32.mrf.mxu0
        %v2559 = vadd.f32 %v2374, %v2558
        %2560 = vdwg.mxu0
        %2561 = vmatpush.msra.mxu0 0.0
        %2562 = vmatpush.msra.mxu0 0.0
        %2563 = vmatpush.msra.mxu0 0.0
        %2564 = vmatpush.msra.mxu0 0.0
        %2565 = vmatpush.msra.mxu0 %v2003
        %2566 = vmatpush.msra.mxu0 %v2002
        %2567 = vmatpush.msra.mxu0 %v2001
        %2568 = vmatpush.msra.mxu0 %v2000
        %2569 = vmatpush.msra.mxu0 %v1999
        %2570 = vmatpush.msra.mxu0 %v1998
        %2571 = vmatpush.msra.mxu0 %v1997
        %2572 = vmatpush.msra.mxu0 %v1996
        %2573 = vmatpush.msra.mxu0 %v1995
        %2574 = vmatpush.msra.mxu0 %v1994
        %2575 = vmatpush.msra.mxu0 %v1993
        %2576 = vmatpush.msra.mxu0 %v1992
        %2577 = vmatmul.f32.gmra.mxu0 %v2377
        %v2578 = vpop.f32.mrf.mxu0
        %v2579 = vadd.f32 %v2478, %v2578
        %2580 = vmatmul.f32.gmra.mxu0 %v2380
        %v2581 = vpop.f32.mrf.mxu0
        %v2582 = vadd.f32 %v2481, %v2581
        %2583 = vmatmul.f32.gmra.mxu0 %v2383
        %v2584 = vpop.f32.mrf.mxu0
        %v2585 = vadd.f32 %v2484, %v2584
        %2586 = vmatmul.f32.gmra.mxu0 %v2386
        %v2587 = vpop.f32.mrf.mxu0
        %v2588 = vadd.f32 %v2487, %v2587
        %2589 = vmatmul.f32.gmra.mxu0 %v2389
        %v2590 = vpop.f32.mrf.mxu0
        %v2591 = vadd.f32 %v2490, %v2590
        %2592 = vmatmul.f32.gmra.mxu0 %v2392
        %v2593 = vpop.f32.mrf.mxu0
        %v2594 = vadd.f32 %v2493, %v2593
        %2595 = vmatmul.f32.gmra.mxu0 %v2395
        %v2596 = vpop.f32.mrf.mxu0
        %v2597 = vadd.f32 %v2496, %v2596
        %2598 = vmatmul.f32.gmra.mxu0 %v2398
        %v2599 = vpop.f32.mrf.mxu0
        %v2600 = vadd.f32 %v2499, %v2599
        %2601 = vmatmul.f32.gmra.mxu0 %v2401
        %v2602 = vpop.f32.mrf.mxu0
        %v2603 = vadd.f32 %v2502, %v2602
        %2604 = vmatmul.f32.gmra.mxu0 %v2404
        %v2605 = vpop.f32.mrf.mxu0
        %v2606 = vadd.f32 %v2505, %v2605
        %2607 = vmatmul.f32.gmra.mxu0 %v2407
        %v2608 = vpop.f32.mrf.mxu0
        %v2609 = vadd.f32 %v2508, %v2608
        %2610 = vmatmul.f32.gmra.mxu0 %v2410
        %v2611 = vpop.f32.mrf.mxu0
        %v2612 = vadd.f32 %v2511, %v2611
        %2613 = vmatmul.f32.gmra.mxu0 %v2413
        %v2614 = vpop.f32.mrf.mxu0
        %v2615 = vadd.f32 %v2514, %v2614
        %2616 = vmatmul.f32.gmra.mxu0 %v2416
        %v2617 = vpop.f32.mrf.mxu0
        %v2618 = vadd.f32 %v2517, %v2617
        %2619 = vmatmul.f32.gmra.mxu0 %v2419
        %v2620 = vpop.f32.mrf.mxu0
        %v2621 = vadd.f32 %v2520, %v2620
        %2622 = vmatmul.f32.gmra.mxu0 %v2422
        %v2623 = vpop.f32.mrf.mxu0
        %v2624 = vadd.f32 %v2523, %v2623
        %2625 = vmatmul.f32.gmra.mxu0 %v2425
        %v2626 = vpop.f32.mrf.mxu0
        %v2627 = vadd.f32 %v2526, %v2626
        %2628 = vmatmul.f32.gmra.mxu0 %v2428
        %v2629 = vpop.f32.mrf.mxu0
        %v2630 = vadd.f32 %v2529, %v2629
        %2631 = vmatmul.f32.gmra.mxu0 %v2431
        %v2632 = vpop.f32.mrf.mxu0
        %v2633 = vadd.f32 %v2532, %v2632
        %2634 = vmatmul.f32.gmra.mxu0 %v2434
        %v2635 = vpop.f32.mrf.mxu0
        %v2636 = vadd.f32 %v2535, %v2635
        %2637 = vmatmul.f32.gmra.mxu0 %v2437
        %v2638 = vpop.f32.mrf.mxu0
        %v2639 = vadd.f32 %v2538, %v2638
        %2640 = vmatmul.f32.gmra.mxu0 %v2440
        %v2641 = vpop.f32.mrf.mxu0
        %v2642 = vadd.f32 %v2541, %v2641
        %2643 = vmatmul.f32.gmra.mxu0 %v2443
        %v2644 = vpop.f32.mrf.mxu0
        %v2645 = vadd.f32 %v2544, %v2644
        %2646 = vmatmul.f32.gmra.mxu0 %v2446
        %v2647 = vpop.f32.mrf.mxu0
        %v2648 = vadd.f32 %v2547, %v2647
        %2649 = vmatmul.f32.gmra.mxu0 %v2449
        %v2650 = vpop.f32.mrf.mxu0
        %v2651 = vadd.f32 %v2550, %v2650
        %2652 = vmatmul.f32.gmra.mxu0 %v2452
        %v2653 = vpop.f32.mrf.mxu0
        %v2654 = vadd.f32 %v2553, %v2653
        %2655 = vmatmul.f32.gmra.mxu0 %v2455
        %v2656 = vpop.f32.mrf.mxu0
        %v2657 = vadd.f32 %v2556, %v2656
        %2658 = vmatmul.f32.gmra.mxu0 %v2458
        %v2659 = vpop.f32.mrf.mxu0
        %v2660 = vadd.f32 %v2559, %v2659
        %2661 = vdwg.mxu0
        %s2662 = scalar_lea.vmem %s384, 896 [#allocation5]
        %v2663 = vld [vmem:[%s2662] sm:$0xff]
        %v2664 = vld [vmem:[%s2662 + $0x8] sm:$0xff]
        %v2665 = vld [vmem:[%s2662 + $0x10] sm:$0xff]
        %v2666 = vld [vmem:[%s2662 + $0x18] sm:$0xff]
        %v2667 = vld [vmem:[%s2662 + $0x20] sm:$0xff]
        %v2668 = vld [vmem:[%s2662 + $0x28] sm:$0xff]
        %v2669 = vld [vmem:[%s2662 + $0x30] sm:$0xff]
        %v2670 = vld [vmem:[%s2662 + $0x38] sm:$0xff]
        %v2671 = vld [vmem:[%s2662 + $0x40] sm:$0xff]
        %v2672 = vld [vmem:[%s2662 + $0x48] sm:$0xff]
        %v2673 = vld [vmem:[%s2662 + $0x50] sm:$0xff]
        %v2674 = vld [vmem:[%s2662 + $0x58] sm:$0xff]
        %v2675 = vld [vmem:[%s2662 + $0x60] sm:$0xff]
        %v2676 = vld [vmem:[%s2662 + $0x68] sm:$0xff]
        %v2677 = vld [vmem:[%s2662 + $0x70] sm:$0xff]
        %v2678 = vld [vmem:[%s2662 + $0x78] sm:$0xff]
        %v2679 = vld [vmem:[%s2662 + $0x80] sm:$0xff]
        %v2680 = vld [vmem:[%s2662 + $0x88] sm:$0xff]
        %v2681 = vld [vmem:[%s2662 + $0x90] sm:$0xff]
        %v2682 = vld [vmem:[%s2662 + $0x98] sm:$0xff]
        %v2683 = vld [vmem:[%s2662 + $0xa0] sm:$0xff]
        %v2684 = vld [vmem:[%s2662 + $0xa8] sm:$0xff]
        %v2685 = vld [vmem:[%s2662 + $0xb0] sm:$0xff]
        %v2686 = vld [vmem:[%s2662 + $0xb8] sm:$0xff]
        %v2687 = vld [vmem:[%s2662 + $0xc0] sm:$0xff]
        %v2688 = vld [vmem:[%s2662 + $0xc8] sm:$0xff]
        %v2689 = vld [vmem:[%s2662 + $0xd0] sm:$0xff]
        %v2690 = vld [vmem:[%s2662 + $0xd8] sm:$0xff]
        %v2691 = vld [vmem:[%s2662 + $0xe0] sm:$0xff]
        %v2692 = vld [vmem:[%s2662 + $0xe8] sm:$0xff]
        %v2693 = vld [vmem:[%s2662 + $0xf0] sm:$0xff]
        %v2694 = vld [vmem:[%s2662 + $0xf8] sm:$0xff]
        %v2695 = vld [vmem:[%s2662 + $0x100] sm:$0xff]
        %v2696 = vld [vmem:[%s2662 + $0x108] sm:$0xff]
        %v2697 = vld [vmem:[%s2662 + $0x110] sm:$0xff]
        %v2698 = vld [vmem:[%s2662 + $0x118] sm:$0xff]
        %v2699 = vld [vmem:[%s2662 + $0x120] sm:$0xff]
        %v2700 = vld [vmem:[%s2662 + $0x128] sm:$0xff]
        %v2701 = vld [vmem:[%s2662 + $0x130] sm:$0xff]
        %v2702 = vld [vmem:[%s2662 + $0x138] sm:$0xff]
        %v2703 = vld [vmem:[%s2662 + $0x140] sm:$0xff]
        %v2704 = vld [vmem:[%s2662 + $0x148] sm:$0xff]
        %v2705 = vld [vmem:[%s2662 + $0x150] sm:$0xff]
        %v2706 = vld [vmem:[%s2662 + $0x158] sm:$0xff]
        %v2707 = vld [vmem:[%s2662 + $0x160] sm:$0xff]
        %v2708 = vld [vmem:[%s2662 + $0x168] sm:$0xff]
        %v2709 = vld [vmem:[%s2662 + $0x170] sm:$0xff]
        %v2710 = vld [vmem:[%s2662 + $0x178] sm:$0xff]
        %v2711 = vld [vmem:[%s2662 + $0x180] sm:$0xff]
        %v2712 = vld [vmem:[%s2662 + $0x188] sm:$0xff]
        %v2713 = vld [vmem:[%s2662 + $0x190] sm:$0xff]
        %v2714 = vld [vmem:[%s2662 + $0x198] sm:$0xff]
        %v2715 = vld [vmem:[%s2662 + $0x1a0] sm:$0xff]
        %v2716 = vld [vmem:[%s2662 + $0x1a8] sm:$0xff]
        %v2717 = vld [vmem:[%s2662 + $0x1b0] sm:$0xff]
        %v2718 = vld [vmem:[%s2662 + $0x1b8] sm:$0xff]
        %s2719 = scalar_lea.vmem %s4, 448
        %v2720 = vld [vmem:[%s2719] sm:$0xff]
        %v2721 = vld [vmem:[%s2719 + $0x8] sm:$0xff]
        %v2722 = vld [vmem:[%s2719 + $0x10] sm:$0xff]
        %v2723 = vld [vmem:[%s2719 + $0x18] sm:$0xff]
        %v2724 = vld [vmem:[%s2719 + $0x20] sm:$0xff]
        %v2725 = vld [vmem:[%s2719 + $0x28] sm:$0xff]
        %v2726 = vld [vmem:[%s2719 + $0x30] sm:$0xff]
        %v2727 = vld [vmem:[%s2719 + $0x38] sm:$0xff]
        %v2728 = vld [vmem:[%s2719 + $0x40] sm:$0xff]
        %v2729 = vld [vmem:[%s2719 + $0x48] sm:$0xff]
        %v2730 = vld [vmem:[%s2719 + $0x50] sm:$0xff]
        %v2731 = vld [vmem:[%s2719 + $0x58] sm:$0xff]
        %v2732 = vld [vmem:[%s2719 + $0x60] sm:$0xff]
        %v2733 = vld [vmem:[%s2719 + $0x68] sm:$0xff]
        %v2734 = vld [vmem:[%s2719 + $0x70] sm:$0xff]
        %v2735 = vld [vmem:[%s2719 + $0x78] sm:$0xff]
        %v2736 = vld [vmem:[%s2719 + $0x80] sm:$0xff]
        %v2737 = vld [vmem:[%s2719 + $0x88] sm:$0xff]
        %v2738 = vld [vmem:[%s2719 + $0x90] sm:$0xff]
        %v2739 = vld [vmem:[%s2719 + $0x98] sm:$0xff]
        %v2740 = vld [vmem:[%s2719 + $0xa0] sm:$0xff]
        %v2741 = vld [vmem:[%s2719 + $0xa8] sm:$0xff]
        %v2742 = vld [vmem:[%s2719 + $0xb0] sm:$0xff]
        %v2743 = vld [vmem:[%s2719 + $0xb8] sm:$0xff]
        %v2744 = vld [vmem:[%s2719 + $0xc0] sm:$0xff]
        %v2745 = vld [vmem:[%s2719 + $0xc8] sm:$0xff]
        %v2746 = vld [vmem:[%s2719 + $0xd0] sm:$0xff]
        %v2747 = vld [vmem:[%s2719 + $0xd8] sm:$0xff]
        %v2749 = vsel %vm817, %v2664, 0
        %v2752 = vsel %vm817, %v2666, 0
        %v2755 = vsel %vm817, %v2668, 0
        %v2758 = vsel %vm817, %v2670, 0
        %v2761 = vsel %vm817, %v2672, 0
        %v2764 = vsel %vm817, %v2674, 0
        %v2767 = vsel %vm817, %v2676, 0
        %v2770 = vsel %vm817, %v2678, 0
        %v2773 = vsel %vm817, %v2680, 0
        %v2776 = vsel %vm817, %v2682, 0
        %v2779 = vsel %vm817, %v2684, 0
        %v2782 = vsel %vm817, %v2686, 0
        %v2785 = vsel %vm817, %v2688, 0
        %v2788 = vsel %vm817, %v2690, 0
        %v2791 = vsel %vm817, %v2692, 0
        %v2794 = vsel %vm817, %v2694, 0
        %v2797 = vsel %vm817, %v2696, 0
        %v2800 = vsel %vm817, %v2698, 0
        %v2803 = vsel %vm817, %v2700, 0
        %v2806 = vsel %vm817, %v2702, 0
        %v2809 = vsel %vm817, %v2704, 0
        %v2812 = vsel %vm817, %v2706, 0
        %v2815 = vsel %vm817, %v2708, 0
        %v2818 = vsel %vm817, %v2710, 0
        %v2821 = vsel %vm817, %v2712, 0
        %v2824 = vsel %vm817, %v2714, 0
        %v2827 = vsel %vm817, %v2716, 0
        %v2830 = vsel %vm817, %v2718, 0
        %2832 = vmatpush.msra.mxu0 %v2735
        %2833 = vmatpush.msra.mxu0 %v2734
        %2834 = vmatpush.msra.mxu0 %v2733
        %2835 = vmatpush.msra.mxu0 %v2732
        %2836 = vmatpush.msra.mxu0 %v2731
        %2837 = vmatpush.msra.mxu0 %v2730
        %2838 = vmatpush.msra.mxu0 %v2729
        %2839 = vmatpush.msra.mxu0 %v2728
        %2840 = vmatpush.msra.mxu0 %v2727
        %2841 = vmatpush.msra.mxu0 %v2726
        %2842 = vmatpush.msra.mxu0 %v2725
        %2843 = vmatpush.msra.mxu0 %v2724
        %2844 = vmatpush.msra.mxu0 %v2723
        %2845 = vmatpush.msra.mxu0 %v2722
        %2846 = vmatpush.msra.mxu0 %v2721
        %2847 = vmatpush.msra.mxu0 %v2720
        %2848 = vmatmul.f32.gmra.mxu0 %v2663
        %v2849 = vpop.f32.mrf.mxu0
        %v2850 = vadd.f32 0.0, %v2849
        %2851 = vmatmul.f32.gmra.mxu0 %v2665
        %v2852 = vpop.f32.mrf.mxu0
        %v2853 = vadd.f32 0.0, %v2852
        %2854 = vmatmul.f32.gmra.mxu0 %v2667
        %v2855 = vpop.f32.mrf.mxu0
        %v2856 = vadd.f32 0.0, %v2855
        %2857 = vmatmul.f32.gmra.mxu0 %v2669
        %v2858 = vpop.f32.mrf.mxu0
        %v2859 = vadd.f32 0.0, %v2858
        %2860 = vmatmul.f32.gmra.mxu0 %v2671
        %v2861 = vpop.f32.mrf.mxu0
        %v2862 = vadd.f32 0.0, %v2861
        %2863 = vmatmul.f32.gmra.mxu0 %v2673
        %v2864 = vpop.f32.mrf.mxu0
        %v2865 = vadd.f32 0.0, %v2864
        %2866 = vmatmul.f32.gmra.mxu0 %v2675
        %v2867 = vpop.f32.mrf.mxu0
        %v2868 = vadd.f32 0.0, %v2867
        %2869 = vmatmul.f32.gmra.mxu0 %v2677
        %v2870 = vpop.f32.mrf.mxu0
        %v2871 = vadd.f32 0.0, %v2870
        %2872 = vmatmul.f32.gmra.mxu0 %v2679
        %v2873 = vpop.f32.mrf.mxu0
        %v2874 = vadd.f32 0.0, %v2873
        %2875 = vmatmul.f32.gmra.mxu0 %v2681
        %v2876 = vpop.f32.mrf.mxu0
        %v2877 = vadd.f32 0.0, %v2876
        %2878 = vmatmul.f32.gmra.mxu0 %v2683
        %v2879 = vpop.f32.mrf.mxu0
        %v2880 = vadd.f32 0.0, %v2879
        %2881 = vmatmul.f32.gmra.mxu0 %v2685
        %v2882 = vpop.f32.mrf.mxu0
        %v2883 = vadd.f32 0.0, %v2882
        %2884 = vmatmul.f32.gmra.mxu0 %v2687
        %v2885 = vpop.f32.mrf.mxu0
        %v2886 = vadd.f32 0.0, %v2885
        %2887 = vmatmul.f32.gmra.mxu0 %v2689
        %v2888 = vpop.f32.mrf.mxu0
        %v2889 = vadd.f32 0.0, %v2888
        %2890 = vmatmul.f32.gmra.mxu0 %v2691
        %v2891 = vpop.f32.mrf.mxu0
        %v2892 = vadd.f32 0.0, %v2891
        %2893 = vmatmul.f32.gmra.mxu0 %v2693
        %v2894 = vpop.f32.mrf.mxu0
        %v2895 = vadd.f32 0.0, %v2894
        %2896 = vmatmul.f32.gmra.mxu0 %v2695
        %v2897 = vpop.f32.mrf.mxu0
        %v2898 = vadd.f32 0.0, %v2897
        %2899 = vmatmul.f32.gmra.mxu0 %v2697
        %v2900 = vpop.f32.mrf.mxu0
        %v2901 = vadd.f32 0.0, %v2900
        %2902 = vmatmul.f32.gmra.mxu0 %v2699
        %v2903 = vpop.f32.mrf.mxu0
        %v2904 = vadd.f32 0.0, %v2903
        %2905 = vmatmul.f32.gmra.mxu0 %v2701
        %v2906 = vpop.f32.mrf.mxu0
        %v2907 = vadd.f32 0.0, %v2906
        %2908 = vmatmul.f32.gmra.mxu0 %v2703
        %v2909 = vpop.f32.mrf.mxu0
        %v2910 = vadd.f32 0.0, %v2909
        %2911 = vmatmul.f32.gmra.mxu0 %v2705
        %v2912 = vpop.f32.mrf.mxu0
        %v2913 = vadd.f32 0.0, %v2912
        %2914 = vmatmul.f32.gmra.mxu0 %v2707
        %v2915 = vpop.f32.mrf.mxu0
        %v2916 = vadd.f32 0.0, %v2915
        %2917 = vmatmul.f32.gmra.mxu0 %v2709
        %v2918 = vpop.f32.mrf.mxu0
        %v2919 = vadd.f32 0.0, %v2918
        %2920 = vmatmul.f32.gmra.mxu0 %v2711
        %v2921 = vpop.f32.mrf.mxu0
        %v2922 = vadd.f32 0.0, %v2921
        %2923 = vmatmul.f32.gmra.mxu0 %v2713
        %v2924 = vpop.f32.mrf.mxu0
        %v2925 = vadd.f32 0.0, %v2924
        %2926 = vmatmul.f32.gmra.mxu0 %v2715
        %v2927 = vpop.f32.mrf.mxu0
        %v2928 = vadd.f32 0.0, %v2927
        %2929 = vmatmul.f32.gmra.mxu0 %v2717
        %v2930 = vpop.f32.mrf.mxu0
        %v2931 = vadd.f32 0.0, %v2930
        %2932 = vdwg.mxu0
        %2933 = vmatpush.msra.mxu0 0.0
        %2934 = vmatpush.msra.mxu0 0.0
        %2935 = vmatpush.msra.mxu0 0.0
        %2936 = vmatpush.msra.mxu0 0.0
        %2937 = vmatpush.msra.mxu0 %v2747
        %2938 = vmatpush.msra.mxu0 %v2746
        %2939 = vmatpush.msra.mxu0 %v2745
        %2940 = vmatpush.msra.mxu0 %v2744
        %2941 = vmatpush.msra.mxu0 %v2743
        %2942 = vmatpush.msra.mxu0 %v2742
        %2943 = vmatpush.msra.mxu0 %v2741
        %2944 = vmatpush.msra.mxu0 %v2740
        %2945 = vmatpush.msra.mxu0 %v2739
        %2946 = vmatpush.msra.mxu0 %v2738
        %2947 = vmatpush.msra.mxu0 %v2737
        %2948 = vmatpush.msra.mxu0 %v2736
        %2949 = vmatmul.f32.gmra.mxu0 %v2749
        %v2950 = vpop.f32.mrf.mxu0
        %v2951 = vadd.f32 %v2850, %v2950
        %2952 = vmatmul.f32.gmra.mxu0 %v2752
        %v2953 = vpop.f32.mrf.mxu0
        %v2954 = vadd.f32 %v2853, %v2953
        %2955 = vmatmul.f32.gmra.mxu0 %v2755
        %v2956 = vpop.f32.mrf.mxu0
        %v2957 = vadd.f32 %v2856, %v2956
        %2958 = vmatmul.f32.gmra.mxu0 %v2758
        %v2959 = vpop.f32.mrf.mxu0
        %v2960 = vadd.f32 %v2859, %v2959
        %2961 = vmatmul.f32.gmra.mxu0 %v2761
        %v2962 = vpop.f32.mrf.mxu0
        %v2963 = vadd.f32 %v2862, %v2962
        %2964 = vmatmul.f32.gmra.mxu0 %v2764
        %v2965 = vpop.f32.mrf.mxu0
        %v2966 = vadd.f32 %v2865, %v2965
        %2967 = vmatmul.f32.gmra.mxu0 %v2767
        %v2968 = vpop.f32.mrf.mxu0
        %v2969 = vadd.f32 %v2868, %v2968
        %2970 = vmatmul.f32.gmra.mxu0 %v2770
        %v2971 = vpop.f32.mrf.mxu0
        %v2972 = vadd.f32 %v2871, %v2971
        %2973 = vmatmul.f32.gmra.mxu0 %v2773
        %v2974 = vpop.f32.mrf.mxu0
        %v2975 = vadd.f32 %v2874, %v2974
        %2976 = vmatmul.f32.gmra.mxu0 %v2776
        %v2977 = vpop.f32.mrf.mxu0
        %v2978 = vadd.f32 %v2877, %v2977
        %2979 = vmatmul.f32.gmra.mxu0 %v2779
        %v2980 = vpop.f32.mrf.mxu0
        %v2981 = vadd.f32 %v2880, %v2980
        %2982 = vmatmul.f32.gmra.mxu0 %v2782
        %v2983 = vpop.f32.mrf.mxu0
        %v2984 = vadd.f32 %v2883, %v2983
        %2985 = vmatmul.f32.gmra.mxu0 %v2785
        %v2986 = vpop.f32.mrf.mxu0
        %v2987 = vadd.f32 %v2886, %v2986
        %2988 = vmatmul.f32.gmra.mxu0 %v2788
        %v2989 = vpop.f32.mrf.mxu0
        %v2990 = vadd.f32 %v2889, %v2989
        %2991 = vmatmul.f32.gmra.mxu0 %v2791
        %v2992 = vpop.f32.mrf.mxu0
        %v2993 = vadd.f32 %v2892, %v2992
        %2994 = vmatmul.f32.gmra.mxu0 %v2794
        %v2995 = vpop.f32.mrf.mxu0
        %v2996 = vadd.f32 %v2895, %v2995
        %2997 = vmatmul.f32.gmra.mxu0 %v2797
        %v2998 = vpop.f32.mrf.mxu0
        %v2999 = vadd.f32 %v2898, %v2998
        %3000 = vmatmul.f32.gmra.mxu0 %v2800
        %v3001 = vpop.f32.mrf.mxu0
        %v3002 = vadd.f32 %v2901, %v3001
        %3003 = vmatmul.f32.gmra.mxu0 %v2803
        %v3004 = vpop.f32.mrf.mxu0
        %v3005 = vadd.f32 %v2904, %v3004
        %3006 = vmatmul.f32.gmra.mxu0 %v2806
        %v3007 = vpop.f32.mrf.mxu0
        %v3008 = vadd.f32 %v2907, %v3007
        %3009 = vmatmul.f32.gmra.mxu0 %v2809
        %v3010 = vpop.f32.mrf.mxu0
        %v3011 = vadd.f32 %v2910, %v3010
        %3012 = vmatmul.f32.gmra.mxu0 %v2812
        %v3013 = vpop.f32.mrf.mxu0
        %v3014 = vadd.f32 %v2913, %v3013
        %3015 = vmatmul.f32.gmra.mxu0 %v2815
        %v3016 = vpop.f32.mrf.mxu0
        %v3017 = vadd.f32 %v2916, %v3016
        %3018 = vmatmul.f32.gmra.mxu0 %v2818
        %v3019 = vpop.f32.mrf.mxu0
        %v3020 = vadd.f32 %v2919, %v3019
        %3021 = vmatmul.f32.gmra.mxu0 %v2821
        %v3022 = vpop.f32.mrf.mxu0
        %v3023 = vadd.f32 %v2922, %v3022
        %3024 = vmatmul.f32.gmra.mxu0 %v2824
        %v3025 = vpop.f32.mrf.mxu0
        %v3026 = vadd.f32 %v2925, %v3025
        %3027 = vmatmul.f32.gmra.mxu0 %v2827
        %v3028 = vpop.f32.mrf.mxu0
        %v3029 = vadd.f32 %v2928, %v3028
        %3030 = vmatmul.f32.gmra.mxu0 %v2830
        %v3031 = vpop.f32.mrf.mxu0
        %v3032 = vadd.f32 %v2931, %v3031
        %3033 = vdwg.mxu0
        %v3034 = vadd.f32 %v2579, %v2951
        %v3035 = vadd.f32 %v2582, %v2954
        %v3036 = vadd.f32 %v2585, %v2957
        %v3037 = vadd.f32 %v2588, %v2960
        %v3038 = vadd.f32 %v2591, %v2963
        %v3039 = vadd.f32 %v2594, %v2966
        %v3040 = vadd.f32 %v2597, %v2969
        %v3041 = vadd.f32 %v2600, %v2972
        %v3042 = vadd.f32 %v2603, %v2975
        %v3043 = vadd.f32 %v2606, %v2978
        %v3044 = vadd.f32 %v2609, %v2981
        %v3045 = vadd.f32 %v2612, %v2984
        %v3046 = vadd.f32 %v2615, %v2987
        %v3047 = vadd.f32 %v2618, %v2990
        %v3048 = vadd.f32 %v2621, %v2993
        %v3049 = vadd.f32 %v2624, %v2996
        %v3050 = vadd.f32 %v2627, %v2999
        %v3051 = vadd.f32 %v2630, %v3002
        %v3052 = vadd.f32 %v2633, %v3005
        %v3053 = vadd.f32 %v2636, %v3008
        %v3054 = vadd.f32 %v2639, %v3011
        %v3055 = vadd.f32 %v2642, %v3014
        %v3056 = vadd.f32 %v2645, %v3017
        %v3057 = vadd.f32 %v2648, %v3020
        %v3058 = vadd.f32 %v2651, %v3023
        %v3059 = vadd.f32 %v2654, %v3026
        %v3060 = vadd.f32 %v2657, %v3029
        %v3061 = vadd.f32 %v2660, %v3032
        %v3062 = vld [vmem:[#allocation8] sm:$0x1]
        %v3064 = vperm.slane %v3062, 0
        %v3066 = vadd.f32 %v3034, %v3064
        %v3067 = vadd.f32 %v3035, %v3064
        %v3068 = vadd.f32 %v3036, %v3064
        %v3069 = vadd.f32 %v3037, %v3064
        %v3070 = vadd.f32 %v3038, %v3064
        %v3071 = vadd.f32 %v3039, %v3064
        %v3072 = vadd.f32 %v3040, %v3064
        %v3073 = vadd.f32 %v3041, %v3064
        %v3074 = vadd.f32 %v3042, %v3064
        %v3075 = vadd.f32 %v3043, %v3064
        %v3076 = vadd.f32 %v3044, %v3064
        %v3077 = vadd.f32 %v3045, %v3064
        %v3078 = vadd.f32 %v3046, %v3064
        %v3079 = vadd.f32 %v3047, %v3064
        %v3080 = vadd.f32 %v3048, %v3064
        %v3081 = vadd.f32 %v3049, %v3064
        %v3082 = vadd.f32 %v3050, %v3064
        %v3083 = vadd.f32 %v3051, %v3064
        %v3084 = vadd.f32 %v3052, %v3064
        %v3085 = vadd.f32 %v3053, %v3064
        %v3086 = vadd.f32 %v3054, %v3064
        %v3087 = vadd.f32 %v3055, %v3064
        %v3088 = vadd.f32 %v3056, %v3064
        %v3089 = vadd.f32 %v3057, %v3064
        %v3090 = vadd.f32 %v3058, %v3064
        %v3091 = vadd.f32 %v3059, %v3064
        %v3092 = vadd.f32 %v3060, %v3064
        %v3093 = vadd.f32 %v3061, %v3064
        %v3094 = vmax.f32 %v3066, 0.0
        %v3095 = vmax.f32 %v3067, 0.0
        %v3096 = vmax.f32 %v3068, 0.0
        %v3097 = vmax.f32 %v3069, 0.0
        %v3098 = vmax.f32 %v3070, 0.0
        %v3099 = vmax.f32 %v3071, 0.0
        %v3100 = vmax.f32 %v3072, 0.0
        %v3101 = vmax.f32 %v3073, 0.0
        %v3102 = vmax.f32 %v3074, 0.0
        %v3103 = vmax.f32 %v3075, 0.0
        %v3104 = vmax.f32 %v3076, 0.0
        %v3105 = vmax.f32 %v3077, 0.0
        %v3106 = vmax.f32 %v3078, 0.0
        %v3107 = vmax.f32 %v3079, 0.0
        %v3108 = vmax.f32 %v3080, 0.0
        %v3109 = vmax.f32 %v3081, 0.0
        %v3110 = vmax.f32 %v3082, 0.0
        %v3111 = vmax.f32 %v3083, 0.0
        %v3112 = vmax.f32 %v3084, 0.0
        %v3113 = vmax.f32 %v3085, 0.0
        %v3114 = vmax.f32 %v3086, 0.0
        %v3115 = vmax.f32 %v3087, 0.0
        %v3116 = vmax.f32 %v3088, 0.0
        %v3117 = vmax.f32 %v3089, 0.0
        %v3118 = vmax.f32 %v3090, 0.0
        %v3119 = vmax.f32 %v3091, 0.0
        %v3120 = vmax.f32 %v3092, 0.0
        %v3121 = vmax.f32 %v3093, 0.0
        %v3122 = vsel %vm1850, %v3094, 0.0
        %v3123 = vsel %vm1850, %v3095, 0.0
        %v3124 = vadd.f32 %v3122, %v3123
        %v3125 = vsel %vm1850, %v3096, 0.0
        %v3126 = vadd.f32 %v3124, %v3125
        %v3127 = vsel %vm1850, %v3097, 0.0
        %v3128 = vadd.f32 %v3126, %v3127
        %v3129 = vsel %vm1850, %v3098, 0.0
        %v3130 = vadd.f32 %v3128, %v3129
        %v3131 = vsel %vm1850, %v3099, 0.0
        %v3132 = vadd.f32 %v3130, %v3131
        %v3133 = vsel %vm1850, %v3100, 0.0
        %v3134 = vadd.f32 %v3132, %v3133
        %v3135 = vsel %vm1850, %v3101, 0.0
        %v3136 = vadd.f32 %v3134, %v3135
        %v3137 = vsel %vm1850, %v3102, 0.0
        %v3138 = vadd.f32 %v3136, %v3137
        %v3139 = vsel %vm1850, %v3103, 0.0
        %v3140 = vadd.f32 %v3138, %v3139
        %v3141 = vsel %vm1850, %v3104, 0.0
        %v3142 = vadd.f32 %v3140, %v3141
        %v3143 = vsel %vm1850, %v3105, 0.0
        %v3144 = vadd.f32 %v3142, %v3143
        %v3145 = vsel %vm1850, %v3106, 0.0
        %v3146 = vadd.f32 %v3144, %v3145
        %v3147 = vsel %vm1850, %v3107, 0.0
        %v3148 = vadd.f32 %v3146, %v3147
        %v3149 = vsel %vm1850, %v3108, 0.0
        %v3150 = vadd.f32 %v3148, %v3149
        %v3151 = vsel %vm1850, %v3109, 0.0
        %v3152 = vadd.f32 %v3150, %v3151
        %v3153 = vsel %vm1850, %v3110, 0.0
        %v3154 = vadd.f32 %v3152, %v3153
        %v3155 = vsel %vm1850, %v3111, 0.0
        %v3156 = vadd.f32 %v3154, %v3155
        %v3157 = vsel %vm1850, %v3112, 0.0
        %v3158 = vadd.f32 %v3156, %v3157
        %v3159 = vsel %vm1850, %v3113, 0.0
        %v3160 = vadd.f32 %v3158, %v3159
        %v3161 = vsel %vm1850, %v3114, 0.0
        %v3162 = vadd.f32 %v3160, %v3161
        %v3163 = vsel %vm1850, %v3115, 0.0
        %v3164 = vadd.f32 %v3162, %v3163
        %v3165 = vsel %vm1850, %v3116, 0.0
        %v3166 = vadd.f32 %v3164, %v3165
        %v3167 = vsel %vm1850, %v3117, 0.0
        %v3168 = vadd.f32 %v3166, %v3167
        %v3169 = vsel %vm1850, %v3118, 0.0
        %v3170 = vadd.f32 %v3168, %v3169
        %v3171 = vsel %vm1850, %v3119, 0.0
        %v3172 = vadd.f32 %v3170, %v3171
        %v3173 = vsel %vm1850, %v3120, 0.0
        %v3174 = vadd.f32 %v3172, %v3173
        %v3175 = vsel %vm1850, %v3121, 0.0
        %v3176 = vadd.f32 %v3174, %v3175
        %v3177 = vrot.slane %v3176, 4
        %v3178 = vadd.f32 %v3176, %v3177
        %v3179 = vrot.slane %v3178, 2
        %v3180 = vadd.f32 %v3178, %v3179
        %v3181 = vrot.slane %v3180, 1
        %v3182 = vadd.f32 %v3180, %v3181
        %v3183 = vmul.f32 %v3182, %v1918
        %v3184 = vld [vmem:[%s6] sm:$0xff]
        %v3185 = vld [vmem:[%s6 + $0x8] sm:$0xff]
        %v3186 = vld [vmem:[%s6 + $0x10] sm:$0xff]
        %v3187 = vld [vmem:[%s6 + $0x18] sm:$0xff]
        %v3188 = vld [vmem:[%s7] sm:$0xff]
        %v3189 = vld [vmem:[%s7 + $0x8] sm:$0xff]
        %v3190 = vld [vmem:[%s7 + $0x10] sm:$0xff]
        %v3191 = vld [vmem:[%s7 + $0x18] sm:$0xff]
        %v3193 = vsel %vm1850, %v3183, 0
        %3195 = vmatpush.msra.mxu0 0.0
        %3196 = vmatpush.msra.mxu0 0.0
        %3197 = vmatpush.msra.mxu0 0.0
        %3198 = vmatpush.msra.mxu0 0.0
        %3199 = vmatpush.msra.mxu0 0.0
        %3200 = vmatpush.msra.mxu0 0.0
        %3201 = vmatpush.msra.mxu0 0.0
        %3202 = vmatpush.msra.mxu0 0.0
        %3203 = vmatpush.msra.mxu0 0.0
        %3204 = vmatpush.msra.mxu0 0.0
        %3205 = vmatpush.msra.mxu0 0.0
        %3206 = vmatpush.msra.mxu0 0.0
        %3207 = vmatpush.msra.mxu0 %v3191
        %3208 = vmatpush.msra.mxu0 %v3190
        %3209 = vmatpush.msra.mxu0 %v3189
        %3210 = vmatpush.msra.mxu0 %v3188
        %3211 = vmatmul.f32.gmra.mxu0 %v3193
        %v3212 = vpop.f32.mrf.mxu0
        %v3213 = vadd.f32 0.0, %v3212
        %3214 = vdwg.mxu0
        %v3216 = vsel %vm1850, %v1919, 0
        %3218 = vmatpush.msra.mxu0 0.0
        %3219 = vmatpush.msra.mxu0 0.0
        %3220 = vmatpush.msra.mxu0 0.0
        %3221 = vmatpush.msra.mxu0 0.0
        %3222 = vmatpush.msra.mxu0 0.0
        %3223 = vmatpush.msra.mxu0 0.0
        %3224 = vmatpush.msra.mxu0 0.0
        %3225 = vmatpush.msra.mxu0 0.0
        %3226 = vmatpush.msra.mxu0 0.0
        %3227 = vmatpush.msra.mxu0 0.0
        %3228 = vmatpush.msra.mxu0 0.0
        %3229 = vmatpush.msra.mxu0 0.0
        %3230 = vmatpush.msra.mxu0 %v3187
        %3231 = vmatpush.msra.mxu0 %v3186
        %3232 = vmatpush.msra.mxu0 %v3185
        %3233 = vmatpush.msra.mxu0 %v3184
        %3234 = vmatmul.f32.gmra.mxu0 %v3216
        %v3235 = vpop.f32.mrf.mxu0
        %v3236 = vadd.f32 %v3213, %v3235
        %3237 = vdwg.mxu0
        %v3238 = vld [vmem:[#allocation10] sm:$0x1]
        %v3239 = vadd.f32 %v3236, %v3238
        %3241 = vset.pattern.permute.xlu0 1
        %3242 = vperm.xlu0 %3241, %v3239
        %v3243 = vpop.permute.xlu0 %3242
        %3245 = vset.pattern.permute.xlu0 0
        %3246 = vperm.xlu0 %3245, %v3239
        %v3247 = vpop.permute.xlu0 %3246
        %v3249 = vsel %vm475, %v3243, %v3247
        %v3250 = vsel %vm476, %v3243, %v3247
        %3251 = vset.pattern.permute.xlu0 2
        %3252 = vperm.xlu0 %3251, %v3239
        %v3253 = vpop.permute.xlu0 %3252
        %v3255 = vsel %vm477, %v3253, %v3249
        %v3256 = vsel %vm478, %v3253, %v3250
        %v3257 = vperm.slane %v3255, 0
        %v3258 = vperm.slane %v3256, 0
        %3259 = vset.pattern.permute.xlu0 4
        %3260 = vperm.xlu0 %3259, %v3239
        %v3261 = vpop.permute.xlu0 %3260
        %3263 = vset.pattern.permute.xlu0 3
        %3264 = vperm.xlu0 %3263, %v3239
        %v3265 = vpop.permute.xlu0 %3264
        %v3267 = vsel %vm475, %v3261, %v3265
        %v3268 = vsel %vm476, %v3261, %v3265
        %3269 = vset.pattern.permute.xlu0 5
        %3270 = vperm.xlu0 %3269, %v3239
        %v3271 = vpop.permute.xlu0 %3270
        %v3273 = vsel %vm477, %v3271, %v3267
        %v3274 = vsel %vm478, %v3271, %v3268
        %v3275 = vperm.slane %v3273, 0
        %v3276 = vperm.slane %v3274, 0
        %3277 = vset.pattern.permute.xlu0 7
        %3278 = vperm.xlu0 %3277, %v3239
        %v3279 = vpop.permute.xlu0 %3278
        %3281 = vset.pattern.permute.xlu0 6
        %3282 = vperm.xlu0 %3281, %v3239
        %v3283 = vpop.permute.xlu0 %3282
        %v3285 = vsel %vm475, %v3279, %v3283
        %v3286 = vsel %vm476, %v3279, %v3283
        %3287 = vset.pattern.permute.xlu0 8
        %3288 = vperm.xlu0 %3287, %v3239
        %v3289 = vpop.permute.xlu0 %3288
        %v3291 = vsel %vm477, %v3289, %v3285
        %v3292 = vsel %vm478, %v3289, %v3286
        %v3293 = vperm.slane %v3291, 0
        %v3294 = vperm.slane %v3292, 0
        %v3295 = vsel %vm535, %v3275, %v3257
        %v3296 = vsel %vm535, %v3276, %v3258
        %v3297 = vsel %vm536, %v3275, %v3257
        %v3298 = vsel %vm536, %v3276, %v3258
        %v3299 = vsel %vm537, %v3275, %v3257
        %v3300 = vsel %vm537, %v3276, %v3258
        %v3301 = vsel %vm538, %v3275, %v3257
        %v3302 = vsel %vm538, %v3276, %v3258
        %v3303 = vsel %vm539, %v3275, %v3257
        %v3304 = vsel %vm539, %v3276, %v3258
        %v3305 = vsel %vm540, %v3275, %v3257
        %v3306 = vsel %vm540, %v3276, %v3258
        %v3307 = vsel %vm541, %v3275, %v3257
        %v3308 = vsel %vm541, %v3276, %v3258
        %v3309 = vsel %vm542, %v3275, %v3257
        %v3310 = vsel %vm542, %v3276, %v3258
        %v3311 = vsel %vm543, %v3275, %v3257
        %v3312 = vsel %vm543, %v3276, %v3258
        %v3313 = vsel %vm544, %v3275, %v3257
        %v3314 = vsel %vm544, %v3276, %v3258
        %v3315 = vsel %vm545, %v3275, %v3257
        %v3316 = vsel %vm545, %v3276, %v3258
        %v3317 = vsel %vm546, %v3275, %v3257
        %v3318 = vsel %vm546, %v3276, %v3258
        %v3319 = vsel %vm547, %v3275, %v3257
        %v3320 = vsel %vm547, %v3276, %v3258
        %v3321 = vsel %vm548, %v3275, %v3257
        %v3322 = vsel %vm548, %v3276, %v3258
        %v3323 = vsel %vm549, %v3275, %v3257
        %v3324 = vsel %vm549, %v3276, %v3258
        %v3325 = vsel %vm550, %v3275, %v3257
        %v3326 = vsel %vm550, %v3276, %v3258
        %v3327 = vsel %vm551, %v3275, %v3257
        %v3328 = vsel %vm551, %v3276, %v3258
        %v3329 = vsel %vm552, %v3275, %v3257
        %v3330 = vsel %vm552, %v3276, %v3258
        %v3331 = vsel %vm553, %v3275, %v3257
        %v3332 = vsel %vm553, %v3276, %v3258
        %v3333 = vsel %vm554, %v3275, %v3257
        %v3334 = vsel %vm554, %v3276, %v3258
        %v3335 = vsel %vm555, %v3275, %v3257
        %v3336 = vsel %vm555, %v3276, %v3258
        %v3337 = vsel %vm556, %v3275, %v3257
        %v3338 = vsel %vm556, %v3276, %v3258
        %v3339 = vsel %vm557, %v3275, %v3257
        %v3340 = vsel %vm557, %v3276, %v3258
        %v3341 = vsel %vm558, %v3275, %v3257
        %v3342 = vsel %vm558, %v3276, %v3258
        %v3343 = vsel %vm559, %v3275, %v3257
        %v3344 = vsel %vm559, %v3276, %v3258
        %v3345 = vsel %vm560, %v3275, %v3257
        %v3346 = vsel %vm560, %v3276, %v3258
        %v3347 = vsel %vm561, %v3275, %v3257
        %v3348 = vsel %vm561, %v3276, %v3258
        %v3349 = vsel %vm562, %v3275, %v3257
        %v3350 = vsel %vm562, %v3276, %v3258
        %v3351 = vsel %vm619, %v3293, %v3295
        %v3352 = vsel %vm619, %v3294, %v3296
        %v3353 = vsel %vm620, %v3293, %v3297
        %v3354 = vsel %vm620, %v3294, %v3298
        %v3355 = vsel %vm621, %v3293, %v3299
        %v3356 = vsel %vm621, %v3294, %v3300
        %v3357 = vsel %vm622, %v3293, %v3301
        %v3358 = vsel %vm622, %v3294, %v3302
        %v3359 = vsel %vm623, %v3293, %v3303
        %v3360 = vsel %vm623, %v3294, %v3304
        %v3361 = vsel %vm624, %v3293, %v3305
        %v3362 = vsel %vm624, %v3294, %v3306
        %v3363 = vsel %vm625, %v3293, %v3307
        %v3364 = vsel %vm625, %v3294, %v3308
        %v3365 = vsel %vm626, %v3293, %v3309
        %v3366 = vsel %vm626, %v3294, %v3310
        %v3367 = vsel %vm627, %v3293, %v3311
        %v3368 = vsel %vm627, %v3294, %v3312
        %v3369 = vsel %vm628, %v3293, %v3313
        %v3370 = vsel %vm628, %v3294, %v3314
        %v3371 = vsel %vm629, %v3293, %v3315
        %v3372 = vsel %vm629, %v3294, %v3316
        %v3373 = vsel %vm630, %v3293, %v3317
        %v3374 = vsel %vm630, %v3294, %v3318
        %v3375 = vsel %vm631, %v3293, %v3319
        %v3376 = vsel %vm631, %v3294, %v3320
        %v3377 = vsel %vm632, %v3293, %v3321
        %v3378 = vsel %vm632, %v3294, %v3322
        %v3379 = vsel %vm633, %v3293, %v3323
        %v3380 = vsel %vm633, %v3294, %v3324
        %v3381 = vsel %vm634, %v3293, %v3325
        %v3382 = vsel %vm634, %v3294, %v3326
        %v3383 = vsel %vm635, %v3293, %v3327
        %v3384 = vsel %vm635, %v3294, %v3328
        %v3385 = vsel %vm636, %v3293, %v3329
        %v3386 = vsel %vm636, %v3294, %v3330
        %v3387 = vsel %vm637, %v3293, %v3331
        %v3388 = vsel %vm637, %v3294, %v3332
        %v3389 = vsel %vm638, %v3293, %v3333
        %v3390 = vsel %vm638, %v3294, %v3334
        %v3391 = vsel %vm639, %v3293, %v3335
        %v3392 = vsel %vm639, %v3294, %v3336
        %v3393 = vsel %vm640, %v3293, %v3337
        %v3394 = vsel %vm640, %v3294, %v3338
        %v3395 = vsel %vm641, %v3293, %v3339
        %v3396 = vsel %vm641, %v3294, %v3340
        %v3397 = vsel %vm642, %v3293, %v3341
        %v3398 = vsel %vm642, %v3294, %v3342
        %v3399 = vsel %vm643, %v3293, %v3343
        %v3400 = vsel %vm643, %v3294, %v3344
        %v3401 = vsel %vm644, %v3293, %v3345
        %v3402 = vsel %vm644, %v3294, %v3346
        %v3403 = vsel %vm645, %v3293, %v3347
        %v3404 = vsel %vm645, %v3294, %v3348
        %v3405 = vsel %vm646, %v3293, %v3349
        %v3406 = vsel %vm646, %v3294, %v3350
        %v3407 = vld [vmem:[%s374] sm:$0xff]
        %v3408 = vld [vmem:[%s374 + $0x8] sm:$0xff]
        %v3409 = vld [vmem:[%s374 + $0x10] sm:$0xff]
        %v3410 = vld [vmem:[%s374 + $0x18] sm:$0xff]
        %v3411 = vld [vmem:[%s374 + $0x20] sm:$0xff]
        %v3412 = vld [vmem:[%s374 + $0x28] sm:$0xff]
        %v3413 = vld [vmem:[%s374 + $0x30] sm:$0xff]
        %v3414 = vld [vmem:[%s374 + $0x38] sm:$0xff]
        %v3415 = vld [vmem:[%s374 + $0x40] sm:$0xff]
        %v3416 = vld [vmem:[%s374 + $0x48] sm:$0xff]
        %v3417 = vld [vmem:[%s374 + $0x50] sm:$0xff]
        %v3418 = vld [vmem:[%s374 + $0x58] sm:$0xff]
        %v3419 = vld [vmem:[%s374 + $0x60] sm:$0xff]
        %v3420 = vld [vmem:[%s374 + $0x68] sm:$0xff]
        %v3421 = vld [vmem:[%s374 + $0x70] sm:$0xff]
        %v3422 = vld [vmem:[%s374 + $0x78] sm:$0xff]
        %v3423 = vld [vmem:[%s374 + $0x80] sm:$0xff]
        %v3424 = vld [vmem:[%s374 + $0x88] sm:$0xff]
        %v3425 = vld [vmem:[%s374 + $0x90] sm:$0xff]
        %v3426 = vld [vmem:[%s374 + $0x98] sm:$0xff]
        %v3427 = vld [vmem:[%s374 + $0xa0] sm:$0xff]
        %v3428 = vld [vmem:[%s374 + $0xa8] sm:$0xff]
        %v3429 = vld [vmem:[%s374 + $0xb0] sm:$0xff]
        %v3430 = vld [vmem:[%s374 + $0xb8] sm:$0xff]
        %v3431 = vld [vmem:[%s374 + $0xc0] sm:$0xff]
        %v3432 = vld [vmem:[%s374 + $0xc8] sm:$0xff]
        %v3433 = vld [vmem:[%s374 + $0xd0] sm:$0xff]
        %v3434 = vld [vmem:[%s374 + $0xd8] sm:$0xff]
        %v3435 = vld [vmem:[%s374 + $0xe0] sm:$0xff]
        %v3436 = vld [vmem:[%s374 + $0xe8] sm:$0xff]
        %v3437 = vld [vmem:[%s374 + $0xf0] sm:$0xff]
        %v3438 = vld [vmem:[%s374 + $0xf8] sm:$0xff]
        %v3439 = vld [vmem:[%s374 + $0x100] sm:$0xff]
        %v3440 = vld [vmem:[%s374 + $0x108] sm:$0xff]
        %v3441 = vld [vmem:[%s374 + $0x110] sm:$0xff]
        %v3442 = vld [vmem:[%s374 + $0x118] sm:$0xff]
        %v3443 = vld [vmem:[%s374 + $0x120] sm:$0xff]
        %v3444 = vld [vmem:[%s374 + $0x128] sm:$0xff]
        %v3445 = vld [vmem:[%s374 + $0x130] sm:$0xff]
        %v3446 = vld [vmem:[%s374 + $0x138] sm:$0xff]
        %v3447 = vld [vmem:[%s374 + $0x140] sm:$0xff]
        %v3448 = vld [vmem:[%s374 + $0x148] sm:$0xff]
        %v3449 = vld [vmem:[%s374 + $0x150] sm:$0xff]
        %v3450 = vld [vmem:[%s374 + $0x158] sm:$0xff]
        %v3451 = vld [vmem:[%s374 + $0x160] sm:$0xff]
        %v3452 = vld [vmem:[%s374 + $0x168] sm:$0xff]
        %v3453 = vld [vmem:[%s374 + $0x170] sm:$0xff]
        %v3454 = vld [vmem:[%s374 + $0x178] sm:$0xff]
        %v3455 = vld [vmem:[%s374 + $0x180] sm:$0xff]
        %v3456 = vld [vmem:[%s374 + $0x188] sm:$0xff]
        %v3457 = vld [vmem:[%s374 + $0x190] sm:$0xff]
        %v3458 = vld [vmem:[%s374 + $0x198] sm:$0xff]
        %v3459 = vld [vmem:[%s374 + $0x1a0] sm:$0xff]
        %v3460 = vld [vmem:[%s374 + $0x1a8] sm:$0xff]
        %v3461 = vld [vmem:[%s374 + $0x1b0] sm:$0xff]
        %v3462 = vld [vmem:[%s374 + $0x1b8] sm:$0xff]
        %v3463 = vld [vmem:[%s374 + $0x1c0] sm:$0xff]
        %v3464 = vld [vmem:[%s374 + $0x1c8] sm:$0xff]
        %v3465 = vld [vmem:[%s374 + $0x1d0] sm:$0xff]
        %v3466 = vld [vmem:[%s374 + $0x1d8] sm:$0xff]
        %v3467 = vld [vmem:[%s374 + $0x1e0] sm:$0xff]
        %v3468 = vld [vmem:[%s374 + $0x1e8] sm:$0xff]
        %v3469 = vld [vmem:[%s374 + $0x1f0] sm:$0xff]
        %v3470 = vld [vmem:[%s374 + $0x1f8] sm:$0xff]
        %v3471 = vld [vmem:[%s374 + $0x200] sm:$0xff]
        %v3472 = vld [vmem:[%s374 + $0x208] sm:$0xff]
        %v3473 = vld [vmem:[%s374 + $0x210] sm:$0xff]
        %v3474 = vld [vmem:[%s374 + $0x218] sm:$0xff]
        %v3475 = vld [vmem:[%s374 + $0x220] sm:$0xff]
        %v3476 = vld [vmem:[%s374 + $0x228] sm:$0xff]
        %v3477 = vld [vmem:[%s374 + $0x230] sm:$0xff]
        %v3478 = vld [vmem:[%s374 + $0x238] sm:$0xff]
        %v3479 = vld [vmem:[%s374 + $0x240] sm:$0xff]
        %v3480 = vld [vmem:[%s374 + $0x248] sm:$0xff]
        %v3481 = vld [vmem:[%s374 + $0x250] sm:$0xff]
        %v3482 = vld [vmem:[%s374 + $0x258] sm:$0xff]
        %v3483 = vld [vmem:[%s374 + $0x260] sm:$0xff]
        %v3484 = vld [vmem:[%s374 + $0x268] sm:$0xff]
        %v3485 = vld [vmem:[%s374 + $0x270] sm:$0xff]
        %v3486 = vld [vmem:[%s374 + $0x278] sm:$0xff]
        %v3487 = vld [vmem:[%s374 + $0x280] sm:$0xff]
        %v3488 = vld [vmem:[%s374 + $0x288] sm:$0xff]
        %v3489 = vld [vmem:[%s374 + $0x290] sm:$0xff]
        %v3490 = vld [vmem:[%s374 + $0x298] sm:$0xff]
        %v3491 = vld [vmem:[%s374 + $0x2a0] sm:$0xff]
        %v3492 = vld [vmem:[%s374 + $0x2a8] sm:$0xff]
        %v3493 = vld [vmem:[%s374 + $0x2b0] sm:$0xff]
        %v3494 = vld [vmem:[%s374 + $0x2b8] sm:$0xff]
        %v3495 = vld [vmem:[%s374 + $0x2c0] sm:$0xff]
        %v3496 = vld [vmem:[%s374 + $0x2c8] sm:$0xff]
        %v3497 = vld [vmem:[%s374 + $0x2d0] sm:$0xff]
        %v3498 = vld [vmem:[%s374 + $0x2d8] sm:$0xff]
        %v3499 = vld [vmem:[%s374 + $0x2e0] sm:$0xff]
        %v3500 = vld [vmem:[%s374 + $0x2e8] sm:$0xff]
        %v3501 = vld [vmem:[%s374 + $0x2f0] sm:$0xff]
        %v3502 = vld [vmem:[%s374 + $0x2f8] sm:$0xff]
        %v3503 = vld [vmem:[%s374 + $0x300] sm:$0xff]
        %v3504 = vld [vmem:[%s374 + $0x308] sm:$0xff]
        %v3505 = vld [vmem:[%s374 + $0x310] sm:$0xff]
        %v3506 = vld [vmem:[%s374 + $0x318] sm:$0xff]
        %v3507 = vld [vmem:[%s374 + $0x320] sm:$0xff]
        %v3508 = vld [vmem:[%s374 + $0x328] sm:$0xff]
        %v3509 = vld [vmem:[%s374 + $0x330] sm:$0xff]
        %v3510 = vld [vmem:[%s374 + $0x338] sm:$0xff]
        %v3511 = vld [vmem:[%s374 + $0x340] sm:$0xff]
        %v3512 = vld [vmem:[%s374 + $0x348] sm:$0xff]
        %v3513 = vld [vmem:[%s374 + $0x350] sm:$0xff]
        %v3514 = vld [vmem:[%s374 + $0x358] sm:$0xff]
        %v3515 = vld [vmem:[%s374 + $0x360] sm:$0xff]
        %v3516 = vld [vmem:[%s374 + $0x368] sm:$0xff]
        %v3517 = vld [vmem:[%s374 + $0x370] sm:$0xff]
        %v3518 = vld [vmem:[%s374 + $0x378] sm:$0xff]
        %v3519 = vld [vmem:[%s374 + $0x380] sm:$0xff]
        %v3520 = vld [vmem:[%s374 + $0x388] sm:$0xff]
        %v3521 = vld [vmem:[%s374 + $0x390] sm:$0xff]
        %v3522 = vld [vmem:[%s374 + $0x398] sm:$0xff]
        %v3523 = vld [vmem:[%s374 + $0x3a0] sm:$0xff]
        %v3524 = vld [vmem:[%s374 + $0x3a8] sm:$0xff]
        %v3525 = vld [vmem:[%s374 + $0x3b0] sm:$0xff]
        %v3526 = vld [vmem:[%s374 + $0x3b8] sm:$0xff]
        %v3527 = vld [vmem:[%s374 + $0x3c0] sm:$0xff]
        %v3528 = vld [vmem:[%s374 + $0x3c8] sm:$0xff]
        %v3529 = vld [vmem:[%s374 + $0x3d0] sm:$0xff]
        %v3530 = vld [vmem:[%s374 + $0x3d8] sm:$0xff]
        %v3531 = vld [vmem:[%s374 + $0x3e0] sm:$0xff]
        %v3532 = vld [vmem:[%s374 + $0x3e8] sm:$0xff]
        %v3533 = vld [vmem:[%s374 + $0x3f0] sm:$0xff]
        %v3534 = vld [vmem:[%s374 + $0x3f8] sm:$0xff]
        %v3535 = vld [vmem:[%s374 + $0x400] sm:$0xff]
        %v3536 = vld [vmem:[%s374 + $0x408] sm:$0xff]
        %v3537 = vld [vmem:[%s374 + $0x410] sm:$0xff]
        %v3538 = vld [vmem:[%s374 + $0x418] sm:$0xff]
        %v3539 = vld [vmem:[%s374 + $0x420] sm:$0xff]
        %v3540 = vld [vmem:[%s374 + $0x428] sm:$0xff]
        %v3541 = vld [vmem:[%s374 + $0x430] sm:$0xff]
        %v3542 = vld [vmem:[%s374 + $0x438] sm:$0xff]
        %v3543 = vld [vmem:[%s374 + $0x440] sm:$0xff]
        %v3544 = vld [vmem:[%s374 + $0x448] sm:$0xff]
        %v3545 = vld [vmem:[%s374 + $0x450] sm:$0xff]
        %v3546 = vld [vmem:[%s374 + $0x458] sm:$0xff]
        %v3547 = vld [vmem:[%s374 + $0x460] sm:$0xff]
        %v3548 = vld [vmem:[%s374 + $0x468] sm:$0xff]
        %v3549 = vld [vmem:[%s374 + $0x470] sm:$0xff]
        %v3550 = vld [vmem:[%s374 + $0x478] sm:$0xff]
        %v3551 = vld [vmem:[%s374 + $0x480] sm:$0xff]
        %v3552 = vld [vmem:[%s374 + $0x488] sm:$0xff]
        %v3553 = vld [vmem:[%s374 + $0x490] sm:$0xff]
        %v3554 = vld [vmem:[%s374 + $0x498] sm:$0xff]
        %v3555 = vld [vmem:[%s374 + $0x4a0] sm:$0xff]
        %v3556 = vld [vmem:[%s374 + $0x4a8] sm:$0xff]
        %v3557 = vld [vmem:[%s374 + $0x4b0] sm:$0xff]
        %v3558 = vld [vmem:[%s374 + $0x4b8] sm:$0xff]
        %v3559 = vld [vmem:[%s374 + $0x4c0] sm:$0xff]
        %v3560 = vld [vmem:[%s374 + $0x4c8] sm:$0xff]
        %v3561 = vld [vmem:[%s374 + $0x4d0] sm:$0xff]
        %v3562 = vld [vmem:[%s374 + $0x4d8] sm:$0xff]
        %v3563 = vld [vmem:[%s374 + $0x4e0] sm:$0xff]
        %v3564 = vld [vmem:[%s374 + $0x4e8] sm:$0xff]
        %v3565 = vld [vmem:[%s374 + $0x4f0] sm:$0xff]
        %v3566 = vld [vmem:[%s374 + $0x4f8] sm:$0xff]
        %v3567 = vld [vmem:[%s374 + $0x500] sm:$0xff]
        %v3568 = vld [vmem:[%s374 + $0x508] sm:$0xff]
        %v3569 = vld [vmem:[%s374 + $0x510] sm:$0xff]
        %v3570 = vld [vmem:[%s374 + $0x518] sm:$0xff]
        %v3571 = vld [vmem:[%s374 + $0x520] sm:$0xff]
        %v3572 = vld [vmem:[%s374 + $0x528] sm:$0xff]
        %v3573 = vld [vmem:[%s374 + $0x530] sm:$0xff]
        %v3574 = vld [vmem:[%s374 + $0x538] sm:$0xff]
        %v3575 = vld [vmem:[%s384] sm:$0xff]
        %v3576 = vld [vmem:[%s384 + $0x8] sm:$0xff]
        %v3577 = vld [vmem:[%s384 + $0x10] sm:$0xff]
        %v3578 = vld [vmem:[%s384 + $0x18] sm:$0xff]
        %v3579 = vld [vmem:[%s384 + $0x20] sm:$0xff]
        %v3580 = vld [vmem:[%s384 + $0x28] sm:$0xff]
        %v3581 = vld [vmem:[%s384 + $0x30] sm:$0xff]
        %v3582 = vld [vmem:[%s384 + $0x38] sm:$0xff]
        %v3583 = vld [vmem:[%s384 + $0x40] sm:$0xff]
        %v3584 = vld [vmem:[%s384 + $0x48] sm:$0xff]
        %v3585 = vld [vmem:[%s384 + $0x50] sm:$0xff]
        %v3586 = vld [vmem:[%s384 + $0x58] sm:$0xff]
        %v3587 = vld [vmem:[%s384 + $0x60] sm:$0xff]
        %v3588 = vld [vmem:[%s384 + $0x68] sm:$0xff]
        %v3589 = vld [vmem:[%s384 + $0x70] sm:$0xff]
        %v3590 = vld [vmem:[%s384 + $0x78] sm:$0xff]
        %v3591 = vld [vmem:[%s384 + $0x80] sm:$0xff]
        %v3592 = vld [vmem:[%s384 + $0x88] sm:$0xff]
        %v3593 = vld [vmem:[%s384 + $0x90] sm:$0xff]
        %v3594 = vld [vmem:[%s384 + $0x98] sm:$0xff]
        %v3595 = vld [vmem:[%s384 + $0xa0] sm:$0xff]
        %v3596 = vld [vmem:[%s384 + $0xa8] sm:$0xff]
        %v3597 = vld [vmem:[%s384 + $0xb0] sm:$0xff]
        %v3598 = vld [vmem:[%s384 + $0xb8] sm:$0xff]
        %v3599 = vld [vmem:[%s384 + $0xc0] sm:$0xff]
        %v3600 = vld [vmem:[%s384 + $0xc8] sm:$0xff]
        %v3601 = vld [vmem:[%s384 + $0xd0] sm:$0xff]
        %v3602 = vld [vmem:[%s384 + $0xd8] sm:$0xff]
        %v3603 = vld [vmem:[%s384 + $0xe0] sm:$0xff]
        %v3604 = vld [vmem:[%s384 + $0xe8] sm:$0xff]
        %v3605 = vld [vmem:[%s384 + $0xf0] sm:$0xff]
        %v3606 = vld [vmem:[%s384 + $0xf8] sm:$0xff]
        %v3607 = vld [vmem:[%s384 + $0x100] sm:$0xff]
        %v3608 = vld [vmem:[%s384 + $0x108] sm:$0xff]
        %v3609 = vld [vmem:[%s384 + $0x110] sm:$0xff]
        %v3610 = vld [vmem:[%s384 + $0x118] sm:$0xff]
        %v3611 = vld [vmem:[%s384 + $0x120] sm:$0xff]
        %v3612 = vld [vmem:[%s384 + $0x128] sm:$0xff]
        %v3613 = vld [vmem:[%s384 + $0x130] sm:$0xff]
        %v3614 = vld [vmem:[%s384 + $0x138] sm:$0xff]
        %v3615 = vld [vmem:[%s384 + $0x140] sm:$0xff]
        %v3616 = vld [vmem:[%s384 + $0x148] sm:$0xff]
        %v3617 = vld [vmem:[%s384 + $0x150] sm:$0xff]
        %v3618 = vld [vmem:[%s384 + $0x158] sm:$0xff]
        %v3619 = vld [vmem:[%s384 + $0x160] sm:$0xff]
        %v3620 = vld [vmem:[%s384 + $0x168] sm:$0xff]
        %v3621 = vld [vmem:[%s384 + $0x170] sm:$0xff]
        %v3622 = vld [vmem:[%s384 + $0x178] sm:$0xff]
        %v3623 = vld [vmem:[%s384 + $0x180] sm:$0xff]
        %v3624 = vld [vmem:[%s384 + $0x188] sm:$0xff]
        %v3625 = vld [vmem:[%s384 + $0x190] sm:$0xff]
        %v3626 = vld [vmem:[%s384 + $0x198] sm:$0xff]
        %v3627 = vld [vmem:[%s384 + $0x1a0] sm:$0xff]
        %v3628 = vld [vmem:[%s384 + $0x1a8] sm:$0xff]
        %v3629 = vld [vmem:[%s384 + $0x1b0] sm:$0xff]
        %v3630 = vld [vmem:[%s384 + $0x1b8] sm:$0xff]
        %v3631 = vld [vmem:[%s384 + $0x1c0] sm:$0xff]
        %v3632 = vld [vmem:[%s384 + $0x1c8] sm:$0xff]
        %v3633 = vld [vmem:[%s384 + $0x1d0] sm:$0xff]
        %v3634 = vld [vmem:[%s384 + $0x1d8] sm:$0xff]
        %v3635 = vld [vmem:[%s384 + $0x1e0] sm:$0xff]
        %v3636 = vld [vmem:[%s384 + $0x1e8] sm:$0xff]
        %v3637 = vld [vmem:[%s384 + $0x1f0] sm:$0xff]
        %v3638 = vld [vmem:[%s384 + $0x1f8] sm:$0xff]
        %v3639 = vld [vmem:[%s384 + $0x200] sm:$0xff]
        %v3640 = vld [vmem:[%s384 + $0x208] sm:$0xff]
        %v3641 = vld [vmem:[%s384 + $0x210] sm:$0xff]
        %v3642 = vld [vmem:[%s384 + $0x218] sm:$0xff]
        %v3643 = vld [vmem:[%s384 + $0x220] sm:$0xff]
        %v3644 = vld [vmem:[%s384 + $0x228] sm:$0xff]
        %v3645 = vld [vmem:[%s384 + $0x230] sm:$0xff]
        %v3646 = vld [vmem:[%s384 + $0x238] sm:$0xff]
        %v3647 = vld [vmem:[%s384 + $0x240] sm:$0xff]
        %v3648 = vld [vmem:[%s384 + $0x248] sm:$0xff]
        %v3649 = vld [vmem:[%s384 + $0x250] sm:$0xff]
        %v3650 = vld [vmem:[%s384 + $0x258] sm:$0xff]
        %v3651 = vld [vmem:[%s384 + $0x260] sm:$0xff]
        %v3652 = vld [vmem:[%s384 + $0x268] sm:$0xff]
        %v3653 = vld [vmem:[%s384 + $0x270] sm:$0xff]
        %v3654 = vld [vmem:[%s384 + $0x278] sm:$0xff]
        %v3655 = vld [vmem:[%s384 + $0x280] sm:$0xff]
        %v3656 = vld [vmem:[%s384 + $0x288] sm:$0xff]
        %v3657 = vld [vmem:[%s384 + $0x290] sm:$0xff]
        %v3658 = vld [vmem:[%s384 + $0x298] sm:$0xff]
        %v3659 = vld [vmem:[%s384 + $0x2a0] sm:$0xff]
        %v3660 = vld [vmem:[%s384 + $0x2a8] sm:$0xff]
        %v3661 = vld [vmem:[%s384 + $0x2b0] sm:$0xff]
        %v3662 = vld [vmem:[%s384 + $0x2b8] sm:$0xff]
        %v3663 = vld [vmem:[%s384 + $0x2c0] sm:$0xff]
        %v3664 = vld [vmem:[%s384 + $0x2c8] sm:$0xff]
        %v3665 = vld [vmem:[%s384 + $0x2d0] sm:$0xff]
        %v3666 = vld [vmem:[%s384 + $0x2d8] sm:$0xff]
        %v3667 = vld [vmem:[%s384 + $0x2e0] sm:$0xff]
        %v3668 = vld [vmem:[%s384 + $0x2e8] sm:$0xff]
        %v3669 = vld [vmem:[%s384 + $0x2f0] sm:$0xff]
        %v3670 = vld [vmem:[%s384 + $0x2f8] sm:$0xff]
        %v3671 = vld [vmem:[%s384 + $0x300] sm:$0xff]
        %v3672 = vld [vmem:[%s384 + $0x308] sm:$0xff]
        %v3673 = vld [vmem:[%s384 + $0x310] sm:$0xff]
        %v3674 = vld [vmem:[%s384 + $0x318] sm:$0xff]
        %v3675 = vld [vmem:[%s384 + $0x320] sm:$0xff]
        %v3676 = vld [vmem:[%s384 + $0x328] sm:$0xff]
        %v3677 = vld [vmem:[%s384 + $0x330] sm:$0xff]
        %v3678 = vld [vmem:[%s384 + $0x338] sm:$0xff]
        %v3679 = vld [vmem:[%s384 + $0x340] sm:$0xff]
        %v3680 = vld [vmem:[%s384 + $0x348] sm:$0xff]
        %v3681 = vld [vmem:[%s384 + $0x350] sm:$0xff]
        %v3682 = vld [vmem:[%s384 + $0x358] sm:$0xff]
        %v3683 = vld [vmem:[%s384 + $0x360] sm:$0xff]
        %v3684 = vld [vmem:[%s384 + $0x368] sm:$0xff]
        %v3685 = vld [vmem:[%s384 + $0x370] sm:$0xff]
        %v3686 = vld [vmem:[%s384 + $0x378] sm:$0xff]
        %v3687 = vld [vmem:[%s384 + $0x380] sm:$0xff]
        %v3688 = vld [vmem:[%s384 + $0x388] sm:$0xff]
        %v3689 = vld [vmem:[%s384 + $0x390] sm:$0xff]
        %v3690 = vld [vmem:[%s384 + $0x398] sm:$0xff]
        %v3691 = vld [vmem:[%s384 + $0x3a0] sm:$0xff]
        %v3692 = vld [vmem:[%s384 + $0x3a8] sm:$0xff]
        %v3693 = vld [vmem:[%s384 + $0x3b0] sm:$0xff]
        %v3694 = vld [vmem:[%s384 + $0x3b8] sm:$0xff]
        %v3695 = vld [vmem:[%s384 + $0x3c0] sm:$0xff]
        %v3696 = vld [vmem:[%s384 + $0x3c8] sm:$0xff]
        %v3697 = vld [vmem:[%s384 + $0x3d0] sm:$0xff]
        %v3698 = vld [vmem:[%s384 + $0x3d8] sm:$0xff]
        %v3699 = vld [vmem:[%s384 + $0x3e0] sm:$0xff]
        %v3700 = vld [vmem:[%s384 + $0x3e8] sm:$0xff]
        %v3701 = vld [vmem:[%s384 + $0x3f0] sm:$0xff]
        %v3702 = vld [vmem:[%s384 + $0x3f8] sm:$0xff]
        %v3703 = vld [vmem:[%s384 + $0x400] sm:$0xff]
        %v3704 = vld [vmem:[%s384 + $0x408] sm:$0xff]
        %v3705 = vld [vmem:[%s384 + $0x410] sm:$0xff]
        %v3706 = vld [vmem:[%s384 + $0x418] sm:$0xff]
        %v3707 = vld [vmem:[%s384 + $0x420] sm:$0xff]
        %v3708 = vld [vmem:[%s384 + $0x428] sm:$0xff]
        %v3709 = vld [vmem:[%s384 + $0x430] sm:$0xff]
        %v3710 = vld [vmem:[%s384 + $0x438] sm:$0xff]
        %v3711 = vld [vmem:[%s384 + $0x440] sm:$0xff]
        %v3712 = vld [vmem:[%s384 + $0x448] sm:$0xff]
        %v3713 = vld [vmem:[%s384 + $0x450] sm:$0xff]
        %v3714 = vld [vmem:[%s384 + $0x458] sm:$0xff]
        %v3715 = vld [vmem:[%s384 + $0x460] sm:$0xff]
        %v3716 = vld [vmem:[%s384 + $0x468] sm:$0xff]
        %v3717 = vld [vmem:[%s384 + $0x470] sm:$0xff]
        %v3718 = vld [vmem:[%s384 + $0x478] sm:$0xff]
        %v3719 = vld [vmem:[%s384 + $0x480] sm:$0xff]
        %v3720 = vld [vmem:[%s384 + $0x488] sm:$0xff]
        %v3721 = vld [vmem:[%s384 + $0x490] sm:$0xff]
        %v3722 = vld [vmem:[%s384 + $0x498] sm:$0xff]
        %v3723 = vld [vmem:[%s384 + $0x4a0] sm:$0xff]
        %v3724 = vld [vmem:[%s384 + $0x4a8] sm:$0xff]
        %v3725 = vld [vmem:[%s384 + $0x4b0] sm:$0xff]
        %v3726 = vld [vmem:[%s384 + $0x4b8] sm:$0xff]
        %v3727 = vld [vmem:[%s384 + $0x4c0] sm:$0xff]
        %v3728 = vld [vmem:[%s384 + $0x4c8] sm:$0xff]
        %v3729 = vld [vmem:[%s384 + $0x4d0] sm:$0xff]
        %v3730 = vld [vmem:[%s384 + $0x4d8] sm:$0xff]
        %v3731 = vld [vmem:[%s384 + $0x4e0] sm:$0xff]
        %v3732 = vld [vmem:[%s384 + $0x4e8] sm:$0xff]
        %v3733 = vld [vmem:[%s384 + $0x4f0] sm:$0xff]
        %v3734 = vld [vmem:[%s384 + $0x4f8] sm:$0xff]
        %v3735 = vld [vmem:[%s384 + $0x500] sm:$0xff]
        %v3736 = vld [vmem:[%s384 + $0x508] sm:$0xff]
        %v3737 = vld [vmem:[%s384 + $0x510] sm:$0xff]
        %v3738 = vld [vmem:[%s384 + $0x518] sm:$0xff]
        %v3739 = vld [vmem:[%s384 + $0x520] sm:$0xff]
        %v3740 = vld [vmem:[%s384 + $0x528] sm:$0xff]
        %v3741 = vld [vmem:[%s384 + $0x530] sm:$0xff]
        %v3742 = vld [vmem:[%s384 + $0x538] sm:$0xff]
        %v3743 = vsub.f32 %v3407, %v3575
        %v3744 = vsub.f32 %v3408, %v3576
        %v3745 = vsub.f32 %v3409, %v3577
        %v3746 = vsub.f32 %v3410, %v3578
        %v3747 = vsub.f32 %v3411, %v3579
        %v3748 = vsub.f32 %v3412, %v3580
        %v3749 = vsub.f32 %v3413, %v3581
        %v3750 = vsub.f32 %v3414, %v3582
        %v3751 = vsub.f32 %v3415, %v3583
        %v3752 = vsub.f32 %v3416, %v3584
        %v3753 = vsub.f32 %v3417, %v3585
        %v3754 = vsub.f32 %v3418, %v3586
        %v3755 = vsub.f32 %v3419, %v3587
        %v3756 = vsub.f32 %v3420, %v3588
        %v3757 = vsub.f32 %v3421, %v3589
        %v3758 = vsub.f32 %v3422, %v3590
        %v3759 = vsub.f32 %v3423, %v3591
        %v3760 = vsub.f32 %v3424, %v3592
        %v3761 = vsub.f32 %v3425, %v3593
        %v3762 = vsub.f32 %v3426, %v3594
        %v3763 = vsub.f32 %v3427, %v3595
        %v3764 = vsub.f32 %v3428, %v3596
        %v3765 = vsub.f32 %v3429, %v3597
        %v3766 = vsub.f32 %v3430, %v3598
        %v3767 = vsub.f32 %v3431, %v3599
        %v3768 = vsub.f32 %v3432, %v3600
        %v3769 = vsub.f32 %v3433, %v3601
        %v3770 = vsub.f32 %v3434, %v3602
        %v3771 = vsub.f32 %v3435, %v3603
        %v3772 = vsub.f32 %v3436, %v3604
        %v3773 = vsub.f32 %v3437, %v3605
        %v3774 = vsub.f32 %v3438, %v3606
        %v3775 = vsub.f32 %v3439, %v3607
        %v3776 = vsub.f32 %v3440, %v3608
        %v3777 = vsub.f32 %v3441, %v3609
        %v3778 = vsub.f32 %v3442, %v3610
        %v3779 = vsub.f32 %v3443, %v3611
        %v3780 = vsub.f32 %v3444, %v3612
        %v3781 = vsub.f32 %v3445, %v3613
        %v3782 = vsub.f32 %v3446, %v3614
        %v3783 = vsub.f32 %v3447, %v3615
        %v3784 = vsub.f32 %v3448, %v3616
        %v3785 = vsub.f32 %v3449, %v3617
        %v3786 = vsub.f32 %v3450, %v3618
        %v3787 = vsub.f32 %v3451, %v3619
        %v3788 = vsub.f32 %v3452, %v3620
        %v3789 = vsub.f32 %v3453, %v3621
        %v3790 = vsub.f32 %v3454, %v3622
        %v3791 = vsub.f32 %v3455, %v3623
        %v3792 = vsub.f32 %v3456, %v3624
        %v3793 = vsub.f32 %v3457, %v3625
        %v3794 = vsub.f32 %v3458, %v3626
        %v3795 = vsub.f32 %v3459, %v3627
        %v3796 = vsub.f32 %v3460, %v3628
        %v3797 = vsub.f32 %v3461, %v3629
        %v3798 = vsub.f32 %v3462, %v3630
        %v3799 = vsub.f32 %v3463, %v3631
        %v3800 = vsub.f32 %v3464, %v3632
        %v3801 = vsub.f32 %v3465, %v3633
        %v3802 = vsub.f32 %v3466, %v3634
        %v3803 = vsub.f32 %v3467, %v3635
        %v3804 = vsub.f32 %v3468, %v3636
        %v3805 = vsub.f32 %v3469, %v3637
        %v3806 = vsub.f32 %v3470, %v3638
        %v3807 = vsub.f32 %v3471, %v3639
        %v3808 = vsub.f32 %v3472, %v3640
        %v3809 = vsub.f32 %v3473, %v3641
        %v3810 = vsub.f32 %v3474, %v3642
        %v3811 = vsub.f32 %v3475, %v3643
        %v3812 = vsub.f32 %v3476, %v3644
        %v3813 = vsub.f32 %v3477, %v3645
        %v3814 = vsub.f32 %v3478, %v3646
        %v3815 = vsub.f32 %v3479, %v3647
        %v3816 = vsub.f32 %v3480, %v3648
        %v3817 = vsub.f32 %v3481, %v3649
        %v3818 = vsub.f32 %v3482, %v3650
        %v3819 = vsub.f32 %v3483, %v3651
        %v3820 = vsub.f32 %v3484, %v3652
        %v3821 = vsub.f32 %v3485, %v3653
        %v3822 = vsub.f32 %v3486, %v3654
        %v3823 = vsub.f32 %v3487, %v3655
        %v3824 = vsub.f32 %v3488, %v3656
        %v3825 = vsub.f32 %v3489, %v3657
        %v3826 = vsub.f32 %v3490, %v3658
        %v3827 = vsub.f32 %v3491, %v3659
        %v3828 = vsub.f32 %v3492, %v3660
        %v3829 = vsub.f32 %v3493, %v3661
        %v3830 = vsub.f32 %v3494, %v3662
        %v3831 = vsub.f32 %v3495, %v3663
        %v3832 = vsub.f32 %v3496, %v3664
        %v3833 = vsub.f32 %v3497, %v3665
        %v3834 = vsub.f32 %v3498, %v3666
        %v3835 = vsub.f32 %v3499, %v3667
        %v3836 = vsub.f32 %v3500, %v3668
        %v3837 = vsub.f32 %v3501, %v3669
        %v3838 = vsub.f32 %v3502, %v3670
        %v3839 = vsub.f32 %v3503, %v3671
        %v3840 = vsub.f32 %v3504, %v3672
        %v3841 = vsub.f32 %v3505, %v3673
        %v3842 = vsub.f32 %v3506, %v3674
        %v3843 = vsub.f32 %v3507, %v3675
        %v3844 = vsub.f32 %v3508, %v3676
        %v3845 = vsub.f32 %v3509, %v3677
        %v3846 = vsub.f32 %v3510, %v3678
        %v3847 = vsub.f32 %v3511, %v3679
        %v3848 = vsub.f32 %v3512, %v3680
        %v3849 = vsub.f32 %v3513, %v3681
        %v3850 = vsub.f32 %v3514, %v3682
        %v3851 = vsub.f32 %v3515, %v3683
        %v3852 = vsub.f32 %v3516, %v3684
        %v3853 = vsub.f32 %v3517, %v3685
        %v3854 = vsub.f32 %v3518, %v3686
        %v3855 = vsub.f32 %v3519, %v3687
        %v3856 = vsub.f32 %v3520, %v3688
        %v3857 = vsub.f32 %v3521, %v3689
        %v3858 = vsub.f32 %v3522, %v3690
        %v3859 = vsub.f32 %v3523, %v3691
        %v3860 = vsub.f32 %v3524, %v3692
        %v3861 = vsub.f32 %v3525, %v3693
        %v3862 = vsub.f32 %v3526, %v3694
        %v3863 = vsub.f32 %v3527, %v3695
        %v3864 = vsub.f32 %v3528, %v3696
        %v3865 = vsub.f32 %v3529, %v3697
        %v3866 = vsub.f32 %v3530, %v3698
        %v3867 = vsub.f32 %v3531, %v3699
        %v3868 = vsub.f32 %v3532, %v3700
        %v3869 = vsub.f32 %v3533, %v3701
        %v3870 = vsub.f32 %v3534, %v3702
        %v3871 = vsub.f32 %v3535, %v3703
        %v3872 = vsub.f32 %v3536, %v3704
        %v3873 = vsub.f32 %v3537, %v3705
        %v3874 = vsub.f32 %v3538, %v3706
        %v3875 = vsub.f32 %v3539, %v3707
        %v3876 = vsub.f32 %v3540, %v3708
        %v3877 = vsub.f32 %v3541, %v3709
        %v3878 = vsub.f32 %v3542, %v3710
        %v3879 = vsub.f32 %v3543, %v3711
        %v3880 = vsub.f32 %v3544, %v3712
        %v3881 = vsub.f32 %v3545, %v3713
        %v3882 = vsub.f32 %v3546, %v3714
        %v3883 = vsub.f32 %v3547, %v3715
        %v3884 = vsub.f32 %v3548, %v3716
        %v3885 = vsub.f32 %v3549, %v3717
        %v3886 = vsub.f32 %v3550, %v3718
        %v3887 = vsub.f32 %v3551, %v3719
        %v3888 = vsub.f32 %v3552, %v3720
        %v3889 = vsub.f32 %v3553, %v3721
        %v3890 = vsub.f32 %v3554, %v3722
        %v3891 = vsub.f32 %v3555, %v3723
        %v3892 = vsub.f32 %v3556, %v3724
        %v3893 = vsub.f32 %v3557, %v3725
        %v3894 = vsub.f32 %v3558, %v3726
        %v3895 = vsub.f32 %v3559, %v3727
        %v3896 = vsub.f32 %v3560, %v3728
        %v3897 = vsub.f32 %v3561, %v3729
        %v3898 = vsub.f32 %v3562, %v3730
        %v3899 = vsub.f32 %v3563, %v3731
        %v3900 = vsub.f32 %v3564, %v3732
        %v3901 = vsub.f32 %v3565, %v3733
        %v3902 = vsub.f32 %v3566, %v3734
        %v3903 = vsub.f32 %v3567, %v3735
        %v3904 = vsub.f32 %v3568, %v3736
        %v3905 = vsub.f32 %v3569, %v3737
        %v3906 = vsub.f32 %v3570, %v3738
        %v3907 = vsub.f32 %v3571, %v3739
        %v3908 = vsub.f32 %v3572, %v3740
        %v3909 = vsub.f32 %v3573, %v3741
        %v3910 = vsub.f32 %v3574, %v3742
        %v3911 = vmul.f32 %v3351, %v3743
        %v3912 = vmul.f32 %v3352, %v3744
        %v3913 = vmul.f32 %v3353, %v3745
        %v3914 = vmul.f32 %v3354, %v3746
        %v3915 = vmul.f32 %v3355, %v3747
        %v3916 = vmul.f32 %v3356, %v3748
        %v3917 = vmul.f32 %v3357, %v3749
        %v3918 = vmul.f32 %v3358, %v3750
        %v3919 = vmul.f32 %v3359, %v3751
        %v3920 = vmul.f32 %v3360, %v3752
        %v3921 = vmul.f32 %v3361, %v3753
        %v3922 = vmul.f32 %v3362, %v3754
        %v3923 = vmul.f32 %v3363, %v3755
        %v3924 = vmul.f32 %v3364, %v3756
        %v3925 = vmul.f32 %v3365, %v3757
        %v3926 = vmul.f32 %v3366, %v3758
        %v3927 = vmul.f32 %v3367, %v3759
        %v3928 = vmul.f32 %v3368, %v3760
        %v3929 = vmul.f32 %v3369, %v3761
        %v3930 = vmul.f32 %v3370, %v3762
        %v3931 = vmul.f32 %v3371, %v3763
        %v3932 = vmul.f32 %v3372, %v3764
        %v3933 = vmul.f32 %v3373, %v3765
        %v3934 = vmul.f32 %v3374, %v3766
        %v3935 = vmul.f32 %v3375, %v3767
        %v3936 = vmul.f32 %v3376, %v3768
        %v3937 = vmul.f32 %v3377, %v3769
        %v3938 = vmul.f32 %v3378, %v3770
        %v3939 = vmul.f32 %v3379, %v3771
        %v3940 = vmul.f32 %v3380, %v3772
        %v3941 = vmul.f32 %v3381, %v3773
        %v3942 = vmul.f32 %v3382, %v3774
        %v3943 = vmul.f32 %v3383, %v3775
        %v3944 = vmul.f32 %v3384, %v3776
        %v3945 = vmul.f32 %v3385, %v3777
        %v3946 = vmul.f32 %v3386, %v3778
        %v3947 = vmul.f32 %v3387, %v3779
        %v3948 = vmul.f32 %v3388, %v3780
        %v3949 = vmul.f32 %v3389, %v3781
        %v3950 = vmul.f32 %v3390, %v3782
        %v3951 = vmul.f32 %v3391, %v3783
        %v3952 = vmul.f32 %v3392, %v3784
        %v3953 = vmul.f32 %v3393, %v3785
        %v3954 = vmul.f32 %v3394, %v3786
        %v3955 = vmul.f32 %v3395, %v3787
        %v3956 = vmul.f32 %v3396, %v3788
        %v3957 = vmul.f32 %v3397, %v3789
        %v3958 = vmul.f32 %v3398, %v3790
        %v3959 = vmul.f32 %v3399, %v3791
        %v3960 = vmul.f32 %v3400, %v3792
        %v3961 = vmul.f32 %v3401, %v3793
        %v3962 = vmul.f32 %v3402, %v3794
        %v3963 = vmul.f32 %v3403, %v3795
        %v3964 = vmul.f32 %v3404, %v3796
        %v3965 = vmul.f32 %v3405, %v3797
        %v3966 = vmul.f32 %v3406, %v3798
        %v3967 = vmul.f32 %v3351, %v3799
        %v3968 = vmul.f32 %v3352, %v3800
        %v3969 = vmul.f32 %v3353, %v3801
        %v3970 = vmul.f32 %v3354, %v3802
        %v3971 = vmul.f32 %v3355, %v3803
        %v3972 = vmul.f32 %v3356, %v3804
        %v3973 = vmul.f32 %v3357, %v3805
        %v3974 = vmul.f32 %v3358, %v3806
        %v3975 = vmul.f32 %v3359, %v3807
        %v3976 = vmul.f32 %v3360, %v3808
        %v3977 = vmul.f32 %v3361, %v3809
        %v3978 = vmul.f32 %v3362, %v3810
        %v3979 = vmul.f32 %v3363, %v3811
        %v3980 = vmul.f32 %v3364, %v3812
        %v3981 = vmul.f32 %v3365, %v3813
        %v3982 = vmul.f32 %v3366, %v3814
        %v3983 = vmul.f32 %v3367, %v3815
        %v3984 = vmul.f32 %v3368, %v3816
        %v3985 = vmul.f32 %v3369, %v3817
        %v3986 = vmul.f32 %v3370, %v3818
        %v3987 = vmul.f32 %v3371, %v3819
        %v3988 = vmul.f32 %v3372, %v3820
        %v3989 = vmul.f32 %v3373, %v3821
        %v3990 = vmul.f32 %v3374, %v3822
        %v3991 = vmul.f32 %v3375, %v3823
        %v3992 = vmul.f32 %v3376, %v3824
        %v3993 = vmul.f32 %v3377, %v3825
        %v3994 = vmul.f32 %v3378, %v3826
        %v3995 = vmul.f32 %v3379, %v3827
        %v3996 = vmul.f32 %v3380, %v3828
        %v3997 = vmul.f32 %v3381, %v3829
        %v3998 = vmul.f32 %v3382, %v3830
        %v3999 = vmul.f32 %v3383, %v3831
        %v4000 = vmul.f32 %v3384, %v3832
        %v4001 = vmul.f32 %v3385, %v3833
        %v4002 = vmul.f32 %v3386, %v3834
        %v4003 = vmul.f32 %v3387, %v3835
        %v4004 = vmul.f32 %v3388, %v3836
        %v4005 = vmul.f32 %v3389, %v3837
        %v4006 = vmul.f32 %v3390, %v3838
        %v4007 = vmul.f32 %v3391, %v3839
        %v4008 = vmul.f32 %v3392, %v3840
        %v4009 = vmul.f32 %v3393, %v3841
        %v4010 = vmul.f32 %v3394, %v3842
        %v4011 = vmul.f32 %v3395, %v3843
        %v4012 = vmul.f32 %v3396, %v3844
        %v4013 = vmul.f32 %v3397, %v3845
        %v4014 = vmul.f32 %v3398, %v3846
        %v4015 = vmul.f32 %v3399, %v3847
        %v4016 = vmul.f32 %v3400, %v3848
        %v4017 = vmul.f32 %v3401, %v3849
        %v4018 = vmul.f32 %v3402, %v3850
        %v4019 = vmul.f32 %v3403, %v3851
        %v4020 = vmul.f32 %v3404, %v3852
        %v4021 = vmul.f32 %v3405, %v3853
        %v4022 = vmul.f32 %v3406, %v3854
        %v4023 = vmul.f32 %v3351, %v3855
        %v4024 = vmul.f32 %v3352, %v3856
        %v4025 = vmul.f32 %v3353, %v3857
        %v4026 = vmul.f32 %v3354, %v3858
        %v4027 = vmul.f32 %v3355, %v3859
        %v4028 = vmul.f32 %v3356, %v3860
        %v4029 = vmul.f32 %v3357, %v3861
        %v4030 = vmul.f32 %v3358, %v3862
        %v4031 = vmul.f32 %v3359, %v3863
        %v4032 = vmul.f32 %v3360, %v3864
        %v4033 = vmul.f32 %v3361, %v3865
        %v4034 = vmul.f32 %v3362, %v3866
        %v4035 = vmul.f32 %v3363, %v3867
        %v4036 = vmul.f32 %v3364, %v3868
        %v4037 = vmul.f32 %v3365, %v3869
        %v4038 = vmul.f32 %v3366, %v3870
        %v4039 = vmul.f32 %v3367, %v3871
        %v4040 = vmul.f32 %v3368, %v3872
        %v4041 = vmul.f32 %v3369, %v3873
        %v4042 = vmul.f32 %v3370, %v3874
        %v4043 = vmul.f32 %v3371, %v3875
        %v4044 = vmul.f32 %v3372, %v3876
        %v4045 = vmul.f32 %v3373, %v3877
        %v4046 = vmul.f32 %v3374, %v3878
        %v4047 = vmul.f32 %v3375, %v3879
        %v4048 = vmul.f32 %v3376, %v3880
        %v4049 = vmul.f32 %v3377, %v3881
        %v4050 = vmul.f32 %v3378, %v3882
        %v4051 = vmul.f32 %v3379, %v3883
        %v4052 = vmul.f32 %v3380, %v3884
        %v4053 = vmul.f32 %v3381, %v3885
        %v4054 = vmul.f32 %v3382, %v3886
        %v4055 = vmul.f32 %v3383, %v3887
        %v4056 = vmul.f32 %v3384, %v3888
        %v4057 = vmul.f32 %v3385, %v3889
        %v4058 = vmul.f32 %v3386, %v3890
        %v4059 = vmul.f32 %v3387, %v3891
        %v4060 = vmul.f32 %v3388, %v3892
        %v4061 = vmul.f32 %v3389, %v3893
        %v4062 = vmul.f32 %v3390, %v3894
        %v4063 = vmul.f32 %v3391, %v3895
        %v4064 = vmul.f32 %v3392, %v3896
        %v4065 = vmul.f32 %v3393, %v3897
        %v4066 = vmul.f32 %v3394, %v3898
        %v4067 = vmul.f32 %v3395, %v3899
        %v4068 = vmul.f32 %v3396, %v3900
        %v4069 = vmul.f32 %v3397, %v3901
        %v4070 = vmul.f32 %v3398, %v3902
        %v4071 = vmul.f32 %v3399, %v3903
        %v4072 = vmul.f32 %v3400, %v3904
        %v4073 = vmul.f32 %v3401, %v3905
        %v4074 = vmul.f32 %v3402, %v3906
        %v4075 = vmul.f32 %v3403, %v3907
        %v4076 = vmul.f32 %v3404, %v3908
        %v4077 = vmul.f32 %v3405, %v3909
        %v4078 = vmul.f32 %v3406, %v3910
        %v4079 = vadd.f32 %v3575, %v3911
        %v4080 = vadd.f32 %v3576, %v3912
        %v4081 = vadd.f32 %v3577, %v3913
        %v4082 = vadd.f32 %v3578, %v3914
        %v4083 = vadd.f32 %v3579, %v3915
        %v4084 = vadd.f32 %v3580, %v3916
        %v4085 = vadd.f32 %v3581, %v3917
        %v4086 = vadd.f32 %v3582, %v3918
        %v4087 = vadd.f32 %v3583, %v3919
        %v4088 = vadd.f32 %v3584, %v3920
        %v4089 = vadd.f32 %v3585, %v3921
        %v4090 = vadd.f32 %v3586, %v3922
        %v4091 = vadd.f32 %v3587, %v3923
        %v4092 = vadd.f32 %v3588, %v3924
        %v4093 = vadd.f32 %v3589, %v3925
        %v4094 = vadd.f32 %v3590, %v3926
        %v4095 = vadd.f32 %v3591, %v3927
        %v4096 = vadd.f32 %v3592, %v3928
        %v4097 = vadd.f32 %v3593, %v3929
        %v4098 = vadd.f32 %v3594, %v3930
        %v4099 = vadd.f32 %v3595, %v3931
        %v4100 = vadd.f32 %v3596, %v3932
        %v4101 = vadd.f32 %v3597, %v3933
        %v4102 = vadd.f32 %v3598, %v3934
        %v4103 = vadd.f32 %v3599, %v3935
        %v4104 = vadd.f32 %v3600, %v3936
        %v4105 = vadd.f32 %v3601, %v3937
        %v4106 = vadd.f32 %v3602, %v3938
        %v4107 = vadd.f32 %v3603, %v3939
        %v4108 = vadd.f32 %v3604, %v3940
        %v4109 = vadd.f32 %v3605, %v3941
        %v4110 = vadd.f32 %v3606, %v3942
        %v4111 = vadd.f32 %v3607, %v3943
        %v4112 = vadd.f32 %v3608, %v3944
        %v4113 = vadd.f32 %v3609, %v3945
        %v4114 = vadd.f32 %v3610, %v3946
        %v4115 = vadd.f32 %v3611, %v3947
        %v4116 = vadd.f32 %v3612, %v3948
        %v4117 = vadd.f32 %v3613, %v3949
        %v4118 = vadd.f32 %v3614, %v3950
        %v4119 = vadd.f32 %v3615, %v3951
        %v4120 = vadd.f32 %v3616, %v3952
        %v4121 = vadd.f32 %v3617, %v3953
        %v4122 = vadd.f32 %v3618, %v3954
        %v4123 = vadd.f32 %v3619, %v3955
        %v4124 = vadd.f32 %v3620, %v3956
        %v4125 = vadd.f32 %v3621, %v3957
        %v4126 = vadd.f32 %v3622, %v3958
        %v4127 = vadd.f32 %v3623, %v3959
        %v4128 = vadd.f32 %v3624, %v3960
        %v4129 = vadd.f32 %v3625, %v3961
        %v4130 = vadd.f32 %v3626, %v3962
        %v4131 = vadd.f32 %v3627, %v3963
        %v4132 = vadd.f32 %v3628, %v3964
        %v4133 = vadd.f32 %v3629, %v3965
        %v4134 = vadd.f32 %v3630, %v3966
        %v4135 = vadd.f32 %v3631, %v3967
        %v4136 = vadd.f32 %v3632, %v3968
        %v4137 = vadd.f32 %v3633, %v3969
        %v4138 = vadd.f32 %v3634, %v3970
        %v4139 = vadd.f32 %v3635, %v3971
        %v4140 = vadd.f32 %v3636, %v3972
        %v4141 = vadd.f32 %v3637, %v3973
        %v4142 = vadd.f32 %v3638, %v3974
        %v4143 = vadd.f32 %v3639, %v3975
        %v4144 = vadd.f32 %v3640, %v3976
        %v4145 = vadd.f32 %v3641, %v3977
        %v4146 = vadd.f32 %v3642, %v3978
        %v4147 = vadd.f32 %v3643, %v3979
        %v4148 = vadd.f32 %v3644, %v3980
        %v4149 = vadd.f32 %v3645, %v3981
        %v4150 = vadd.f32 %v3646, %v3982
        %v4151 = vadd.f32 %v3647, %v3983
        %v4152 = vadd.f32 %v3648, %v3984
        %v4153 = vadd.f32 %v3649, %v3985
        %v4154 = vadd.f32 %v3650, %v3986
        %v4155 = vadd.f32 %v3651, %v3987
        %v4156 = vadd.f32 %v3652, %v3988
        %v4157 = vadd.f32 %v3653, %v3989
        %v4158 = vadd.f32 %v3654, %v3990
        %v4159 = vadd.f32 %v3655, %v3991
        %v4160 = vadd.f32 %v3656, %v3992
        %v4161 = vadd.f32 %v3657, %v3993
        %v4162 = vadd.f32 %v3658, %v3994
        %v4163 = vadd.f32 %v3659, %v3995
        %v4164 = vadd.f32 %v3660, %v3996
        %v4165 = vadd.f32 %v3661, %v3997
        %v4166 = vadd.f32 %v3662, %v3998
        %v4167 = vadd.f32 %v3663, %v3999
        %v4168 = vadd.f32 %v3664, %v4000
        %v4169 = vadd.f32 %v3665, %v4001
        %v4170 = vadd.f32 %v3666, %v4002
        %v4171 = vadd.f32 %v3667, %v4003
        %v4172 = vadd.f32 %v3668, %v4004
        %v4173 = vadd.f32 %v3669, %v4005
        %v4174 = vadd.f32 %v3670, %v4006
        %v4175 = vadd.f32 %v3671, %v4007
        %v4176 = vadd.f32 %v3672, %v4008
        %v4177 = vadd.f32 %v3673, %v4009
        %v4178 = vadd.f32 %v3674, %v4010
        %v4179 = vadd.f32 %v3675, %v4011
        %v4180 = vadd.f32 %v3676, %v4012
        %v4181 = vadd.f32 %v3677, %v4013
        %v4182 = vadd.f32 %v3678, %v4014
        %v4183 = vadd.f32 %v3679, %v4015
        %v4184 = vadd.f32 %v3680, %v4016
        %v4185 = vadd.f32 %v3681, %v4017
        %v4186 = vadd.f32 %v3682, %v4018
        %v4187 = vadd.f32 %v3683, %v4019
        %v4188 = vadd.f32 %v3684, %v4020
        %v4189 = vadd.f32 %v3685, %v4021
        %v4190 = vadd.f32 %v3686, %v4022
        %v4191 = vadd.f32 %v3687, %v4023
        %v4192 = vadd.f32 %v3688, %v4024
        %v4193 = vadd.f32 %v3689, %v4025
        %v4194 = vadd.f32 %v3690, %v4026
        %v4195 = vadd.f32 %v3691, %v4027
        %v4196 = vadd.f32 %v3692, %v4028
        %v4197 = vadd.f32 %v3693, %v4029
        %v4198 = vadd.f32 %v3694, %v4030
        %v4199 = vadd.f32 %v3695, %v4031
        %v4200 = vadd.f32 %v3696, %v4032
        %v4201 = vadd.f32 %v3697, %v4033
        %v4202 = vadd.f32 %v3698, %v4034
        %v4203 = vadd.f32 %v3699, %v4035
        %v4204 = vadd.f32 %v3700, %v4036
        %v4205 = vadd.f32 %v3701, %v4037
        %v4206 = vadd.f32 %v3702, %v4038
        %v4207 = vadd.f32 %v3703, %v4039
        %v4208 = vadd.f32 %v3704, %v4040
        %v4209 = vadd.f32 %v3705, %v4041
        %v4210 = vadd.f32 %v3706, %v4042
        %v4211 = vadd.f32 %v3707, %v4043
        %v4212 = vadd.f32 %v3708, %v4044
        %v4213 = vadd.f32 %v3709, %v4045
        %v4214 = vadd.f32 %v3710, %v4046
        %v4215 = vadd.f32 %v3711, %v4047
        %v4216 = vadd.f32 %v3712, %v4048
        %v4217 = vadd.f32 %v3713, %v4049
        %v4218 = vadd.f32 %v3714, %v4050
        %v4219 = vadd.f32 %v3715, %v4051
        %v4220 = vadd.f32 %v3716, %v4052
        %v4221 = vadd.f32 %v3717, %v4053
        %v4222 = vadd.f32 %v3718, %v4054
        %v4223 = vadd.f32 %v3719, %v4055
        %v4224 = vadd.f32 %v3720, %v4056
        %v4225 = vadd.f32 %v3721, %v4057
        %v4226 = vadd.f32 %v3722, %v4058
        %v4227 = vadd.f32 %v3723, %v4059
        %v4228 = vadd.f32 %v3724, %v4060
        %v4229 = vadd.f32 %v3725, %v4061
        %v4230 = vadd.f32 %v3726, %v4062
        %v4231 = vadd.f32 %v3727, %v4063
        %v4232 = vadd.f32 %v3728, %v4064
        %v4233 = vadd.f32 %v3729, %v4065
        %v4234 = vadd.f32 %v3730, %v4066
        %v4235 = vadd.f32 %v3731, %v4067
        %v4236 = vadd.f32 %v3732, %v4068
        %v4237 = vadd.f32 %v3733, %v4069
        %v4238 = vadd.f32 %v3734, %v4070
        %v4239 = vadd.f32 %v3735, %v4071
        %v4240 = vadd.f32 %v3736, %v4072
        %v4241 = vadd.f32 %v3737, %v4073
        %v4242 = vadd.f32 %v3738, %v4074
        %v4243 = vadd.f32 %v3739, %v4075
        %v4244 = vadd.f32 %v3740, %v4076
        %v4245 = vadd.f32 %v3741, %v4077
        %v4246 = vadd.f32 %v3742, %v4078
        %4247 = vst [vmem:[%s439] sm:$0xff] %v4079
        %4248 = vst.msk [vmem:[%s439 + $0x8] sm:$0xff] %vm817, %v4080
        %4249 = vst [vmem:[%s439 + $0x10] sm:$0xff] %v4081
        %4250 = vst.msk [vmem:[%s439 + $0x18] sm:$0xff] %vm817, %v4082
        %4251 = vst [vmem:[%s439 + $0x20] sm:$0xff] %v4083
        %4252 = vst.msk [vmem:[%s439 + $0x28] sm:$0xff] %vm817, %v4084
        %4253 = vst [vmem:[%s439 + $0x30] sm:$0xff] %v4085
        %4254 = vst.msk [vmem:[%s439 + $0x38] sm:$0xff] %vm817, %v4086
        %4255 = vst [vmem:[%s439 + $0x40] sm:$0xff] %v4087
        %4256 = vst.msk [vmem:[%s439 + $0x48] sm:$0xff] %vm817, %v4088
        %4257 = vst [vmem:[%s439 + $0x50] sm:$0xff] %v4089
        %4258 = vst.msk [vmem:[%s439 + $0x58] sm:$0xff] %vm817, %v4090
        %4259 = vst [vmem:[%s439 + $0x60] sm:$0xff] %v4091
        %4260 = vst.msk [vmem:[%s439 + $0x68] sm:$0xff] %vm817, %v4092
        %4261 = vst [vmem:[%s439 + $0x70] sm:$0xff] %v4093
        %4262 = vst.msk [vmem:[%s439 + $0x78] sm:$0xff] %vm817, %v4094
        %4263 = vst [vmem:[%s439 + $0x80] sm:$0xff] %v4095
        %4264 = vst.msk [vmem:[%s439 + $0x88] sm:$0xff] %vm817, %v4096
        %4265 = vst [vmem:[%s439 + $0x90] sm:$0xff] %v4097
        %4266 = vst.msk [vmem:[%s439 + $0x98] sm:$0xff] %vm817, %v4098
        %4267 = vst [vmem:[%s439 + $0xa0] sm:$0xff] %v4099
        %4268 = vst.msk [vmem:[%s439 + $0xa8] sm:$0xff] %vm817, %v4100
        %4269 = vst [vmem:[%s439 + $0xb0] sm:$0xff] %v4101
        %4270 = vst.msk [vmem:[%s439 + $0xb8] sm:$0xff] %vm817, %v4102
        %4271 = vst [vmem:[%s439 + $0xc0] sm:$0xff] %v4103
        %4272 = vst.msk [vmem:[%s439 + $0xc8] sm:$0xff] %vm817, %v4104
        %4273 = vst [vmem:[%s439 + $0xd0] sm:$0xff] %v4105
        %4274 = vst.msk [vmem:[%s439 + $0xd8] sm:$0xff] %vm817, %v4106
        %4275 = vst [vmem:[%s439 + $0xe0] sm:$0xff] %v4107
        %4276 = vst.msk [vmem:[%s439 + $0xe8] sm:$0xff] %vm817, %v4108
        %4277 = vst [vmem:[%s439 + $0xf0] sm:$0xff] %v4109
        %4278 = vst.msk [vmem:[%s439 + $0xf8] sm:$0xff] %vm817, %v4110
        %4279 = vst [vmem:[%s439 + $0x100] sm:$0xff] %v4111
        %4280 = vst.msk [vmem:[%s439 + $0x108] sm:$0xff] %vm817, %v4112
        %4281 = vst [vmem:[%s439 + $0x110] sm:$0xff] %v4113
        %4282 = vst.msk [vmem:[%s439 + $0x118] sm:$0xff] %vm817, %v4114
        %4283 = vst [vmem:[%s439 + $0x120] sm:$0xff] %v4115
        %4284 = vst.msk [vmem:[%s439 + $0x128] sm:$0xff] %vm817, %v4116
        %4285 = vst [vmem:[%s439 + $0x130] sm:$0xff] %v4117
        %4286 = vst.msk [vmem:[%s439 + $0x138] sm:$0xff] %vm817, %v4118
        %4287 = vst [vmem:[%s439 + $0x140] sm:$0xff] %v4119
        %4288 = vst.msk [vmem:[%s439 + $0x148] sm:$0xff] %vm817, %v4120
        %4289 = vst [vmem:[%s439 + $0x150] sm:$0xff] %v4121
        %4290 = vst.msk [vmem:[%s439 + $0x158] sm:$0xff] %vm817, %v4122
        %4291 = vst [vmem:[%s439 + $0x160] sm:$0xff] %v4123
        %4292 = vst.msk [vmem:[%s439 + $0x168] sm:$0xff] %vm817, %v4124
        %4293 = vst [vmem:[%s439 + $0x170] sm:$0xff] %v4125
        %4294 = vst.msk [vmem:[%s439 + $0x178] sm:$0xff] %vm817, %v4126
        %4295 = vst [vmem:[%s439 + $0x180] sm:$0xff] %v4127
        %4296 = vst.msk [vmem:[%s439 + $0x188] sm:$0xff] %vm817, %v4128
        %4297 = vst [vmem:[%s439 + $0x190] sm:$0xff] %v4129
        %4298 = vst.msk [vmem:[%s439 + $0x198] sm:$0xff] %vm817, %v4130
        %4299 = vst [vmem:[%s439 + $0x1a0] sm:$0xff] %v4131
        %4300 = vst.msk [vmem:[%s439 + $0x1a8] sm:$0xff] %vm817, %v4132
        %4301 = vst [vmem:[%s439 + $0x1b0] sm:$0xff] %v4133
        %4302 = vst.msk [vmem:[%s439 + $0x1b8] sm:$0xff] %vm817, %v4134
        %4303 = vst [vmem:[%s439 + $0x1c0] sm:$0xff] %v4135
        %4304 = vst.msk [vmem:[%s439 + $0x1c8] sm:$0xff] %vm817, %v4136
        %4305 = vst [vmem:[%s439 + $0x1d0] sm:$0xff] %v4137
        %4306 = vst.msk [vmem:[%s439 + $0x1d8] sm:$0xff] %vm817, %v4138
        %4307 = vst [vmem:[%s439 + $0x1e0] sm:$0xff] %v4139
        %4308 = vst.msk [vmem:[%s439 + $0x1e8] sm:$0xff] %vm817, %v4140
        %4309 = vst [vmem:[%s439 + $0x1f0] sm:$0xff] %v4141
        %4310 = vst.msk [vmem:[%s439 + $0x1f8] sm:$0xff] %vm817, %v4142
        %4311 = vst [vmem:[%s439 + $0x200] sm:$0xff] %v4143
        %4312 = vst.msk [vmem:[%s439 + $0x208] sm:$0xff] %vm817, %v4144
        %4313 = vst [vmem:[%s439 + $0x210] sm:$0xff] %v4145
        %4314 = vst.msk [vmem:[%s439 + $0x218] sm:$0xff] %vm817, %v4146
        %4315 = vst [vmem:[%s439 + $0x220] sm:$0xff] %v4147
        %4316 = vst.msk [vmem:[%s439 + $0x228] sm:$0xff] %vm817, %v4148
        %4317 = vst [vmem:[%s439 + $0x230] sm:$0xff] %v4149
        %4318 = vst.msk [vmem:[%s439 + $0x238] sm:$0xff] %vm817, %v4150
        %4319 = vst [vmem:[%s439 + $0x240] sm:$0xff] %v4151
        %4320 = vst.msk [vmem:[%s439 + $0x248] sm:$0xff] %vm817, %v4152
        %4321 = vst [vmem:[%s439 + $0x250] sm:$0xff] %v4153
        %4322 = vst.msk [vmem:[%s439 + $0x258] sm:$0xff] %vm817, %v4154
        %4323 = vst [vmem:[%s439 + $0x260] sm:$0xff] %v4155
        %4324 = vst.msk [vmem:[%s439 + $0x268] sm:$0xff] %vm817, %v4156
        %4325 = vst [vmem:[%s439 + $0x270] sm:$0xff] %v4157
        %4326 = vst.msk [vmem:[%s439 + $0x278] sm:$0xff] %vm817, %v4158
        %4327 = vst [vmem:[%s439 + $0x280] sm:$0xff] %v4159
        %4328 = vst.msk [vmem:[%s439 + $0x288] sm:$0xff] %vm817, %v4160
        %4329 = vst [vmem:[%s439 + $0x290] sm:$0xff] %v4161
        %4330 = vst.msk [vmem:[%s439 + $0x298] sm:$0xff] %vm817, %v4162
        %4331 = vst [vmem:[%s439 + $0x2a0] sm:$0xff] %v4163
        %4332 = vst.msk [vmem:[%s439 + $0x2a8] sm:$0xff] %vm817, %v4164
        %4333 = vst [vmem:[%s439 + $0x2b0] sm:$0xff] %v4165
        %4334 = vst.msk [vmem:[%s439 + $0x2b8] sm:$0xff] %vm817, %v4166
        %4335 = vst [vmem:[%s439 + $0x2c0] sm:$0xff] %v4167
        %4336 = vst.msk [vmem:[%s439 + $0x2c8] sm:$0xff] %vm817, %v4168
        %4337 = vst [vmem:[%s439 + $0x2d0] sm:$0xff] %v4169
        %4338 = vst.msk [vmem:[%s439 + $0x2d8] sm:$0xff] %vm817, %v4170
        %4339 = vst [vmem:[%s439 + $0x2e0] sm:$0xff] %v4171
        %4340 = vst.msk [vmem:[%s439 + $0x2e8] sm:$0xff] %vm817, %v4172
        %4341 = vst [vmem:[%s439 + $0x2f0] sm:$0xff] %v4173
        %4342 = vst.msk [vmem:[%s439 + $0x2f8] sm:$0xff] %vm817, %v4174
        %4343 = vst [vmem:[%s439 + $0x300] sm:$0xff] %v4175
        %4344 = vst.msk [vmem:[%s439 + $0x308] sm:$0xff] %vm817, %v4176
        %4345 = vst [vmem:[%s439 + $0x310] sm:$0xff] %v4177
        %4346 = vst.msk [vmem:[%s439 + $0x318] sm:$0xff] %vm817, %v4178
        %4347 = vst [vmem:[%s439 + $0x320] sm:$0xff] %v4179
        %4348 = vst.msk [vmem:[%s439 + $0x328] sm:$0xff] %vm817, %v4180
        %4349 = vst [vmem:[%s439 + $0x330] sm:$0xff] %v4181
        %4350 = vst.msk [vmem:[%s439 + $0x338] sm:$0xff] %vm817, %v4182
        %4351 = vst [vmem:[%s439 + $0x340] sm:$0xff] %v4183
        %4352 = vst.msk [vmem:[%s439 + $0x348] sm:$0xff] %vm817, %v4184
        %4353 = vst [vmem:[%s439 + $0x350] sm:$0xff] %v4185
        %4354 = vst.msk [vmem:[%s439 + $0x358] sm:$0xff] %vm817, %v4186
        %4355 = vst [vmem:[%s439 + $0x360] sm:$0xff] %v4187
        %4356 = vst.msk [vmem:[%s439 + $0x368] sm:$0xff] %vm817, %v4188
        %4357 = vst [vmem:[%s439 + $0x370] sm:$0xff] %v4189
        %4358 = vst.msk [vmem:[%s439 + $0x378] sm:$0xff] %vm817, %v4190
        %4359 = vst [vmem:[%s439 + $0x380] sm:$0xff] %v4191
        %4360 = vst.msk [vmem:[%s439 + $0x388] sm:$0xff] %vm817, %v4192
        %4361 = vst [vmem:[%s439 + $0x390] sm:$0xff] %v4193
        %4362 = vst.msk [vmem:[%s439 + $0x398] sm:$0xff] %vm817, %v4194
        %4363 = vst [vmem:[%s439 + $0x3a0] sm:$0xff] %v4195
        %4364 = vst.msk [vmem:[%s439 + $0x3a8] sm:$0xff] %vm817, %v4196
        %4365 = vst [vmem:[%s439 + $0x3b0] sm:$0xff] %v4197
        %4366 = vst.msk [vmem:[%s439 + $0x3b8] sm:$0xff] %vm817, %v4198
        %4367 = vst [vmem:[%s439 + $0x3c0] sm:$0xff] %v4199
        %4368 = vst.msk [vmem:[%s439 + $0x3c8] sm:$0xff] %vm817, %v4200
        %4369 = vst [vmem:[%s439 + $0x3d0] sm:$0xff] %v4201
        %4370 = vst.msk [vmem:[%s439 + $0x3d8] sm:$0xff] %vm817, %v4202
        %4371 = vst [vmem:[%s439 + $0x3e0] sm:$0xff] %v4203
        %4372 = vst.msk [vmem:[%s439 + $0x3e8] sm:$0xff] %vm817, %v4204
        %4373 = vst [vmem:[%s439 + $0x3f0] sm:$0xff] %v4205
        %4374 = vst.msk [vmem:[%s439 + $0x3f8] sm:$0xff] %vm817, %v4206
        %4375 = vst [vmem:[%s439 + $0x400] sm:$0xff] %v4207
        %4376 = vst.msk [vmem:[%s439 + $0x408] sm:$0xff] %vm817, %v4208
        %4377 = vst [vmem:[%s439 + $0x410] sm:$0xff] %v4209
        %4378 = vst.msk [vmem:[%s439 + $0x418] sm:$0xff] %vm817, %v4210
        %4379 = vst [vmem:[%s439 + $0x420] sm:$0xff] %v4211
        %4380 = vst.msk [vmem:[%s439 + $0x428] sm:$0xff] %vm817, %v4212
        %4381 = vst [vmem:[%s439 + $0x430] sm:$0xff] %v4213
        %4382 = vst.msk [vmem:[%s439 + $0x438] sm:$0xff] %vm817, %v4214
        %4383 = vst [vmem:[%s439 + $0x440] sm:$0xff] %v4215
        %4384 = vst.msk [vmem:[%s439 + $0x448] sm:$0xff] %vm817, %v4216
        %4385 = vst [vmem:[%s439 + $0x450] sm:$0xff] %v4217
        %4386 = vst.msk [vmem:[%s439 + $0x458] sm:$0xff] %vm817, %v4218
        %4387 = vst [vmem:[%s439 + $0x460] sm:$0xff] %v4219
        %4388 = vst.msk [vmem:[%s439 + $0x468] sm:$0xff] %vm817, %v4220
        %4389 = vst [vmem:[%s439 + $0x470] sm:$0xff] %v4221
        %4390 = vst.msk [vmem:[%s439 + $0x478] sm:$0xff] %vm817, %v4222
        %4391 = vst [vmem:[%s439 + $0x480] sm:$0xff] %v4223
        %4392 = vst.msk [vmem:[%s439 + $0x488] sm:$0xff] %vm817, %v4224
        %4393 = vst [vmem:[%s439 + $0x490] sm:$0xff] %v4225
        %4394 = vst.msk [vmem:[%s439 + $0x498] sm:$0xff] %vm817, %v4226
        %4395 = vst [vmem:[%s439 + $0x4a0] sm:$0xff] %v4227
        %4396 = vst.msk [vmem:[%s439 + $0x4a8] sm:$0xff] %vm817, %v4228
        %4397 = vst [vmem:[%s439 + $0x4b0] sm:$0xff] %v4229
        %4398 = vst.msk [vmem:[%s439 + $0x4b8] sm:$0xff] %vm817, %v4230
        %4399 = vst [vmem:[%s439 + $0x4c0] sm:$0xff] %v4231
        %4400 = vst.msk [vmem:[%s439 + $0x4c8] sm:$0xff] %vm817, %v4232
        %4401 = vst [vmem:[%s439 + $0x4d0] sm:$0xff] %v4233
        %4402 = vst.msk [vmem:[%s439 + $0x4d8] sm:$0xff] %vm817, %v4234
        %4403 = vst [vmem:[%s439 + $0x4e0] sm:$0xff] %v4235
        %4404 = vst.msk [vmem:[%s439 + $0x4e8] sm:$0xff] %vm817, %v4236
        %4405 = vst [vmem:[%s439 + $0x4f0] sm:$0xff] %v4237
        %4406 = vst.msk [vmem:[%s439 + $0x4f8] sm:$0xff] %vm817, %v4238
        %4407 = vst [vmem:[%s439 + $0x500] sm:$0xff] %v4239
        %4408 = vst.msk [vmem:[%s439 + $0x508] sm:$0xff] %vm817, %v4240
        %4409 = vst [vmem:[%s439 + $0x510] sm:$0xff] %v4241
        %4410 = vst.msk [vmem:[%s439 + $0x518] sm:$0xff] %vm817, %v4242
        %4411 = vst [vmem:[%s439 + $0x520] sm:$0xff] %v4243
        %4412 = vst.msk [vmem:[%s439 + $0x528] sm:$0xff] %vm817, %v4244
        %4413 = vst [vmem:[%s439 + $0x530] sm:$0xff] %v4245
        %4414 = vst.msk [vmem:[%s439 + $0x538] sm:$0xff] %vm817, %v4246
        %s4415 = scalar_lea.vmem %s374, 1344 [#allocation2]
        %v4416 = vld [vmem:[%s4415] sm:$0xff]
        %v4417 = vld [vmem:[%s4415 + $0x8] sm:$0xff]
        %v4418 = vld [vmem:[%s4415 + $0x10] sm:$0xff]
        %v4419 = vld [vmem:[%s4415 + $0x18] sm:$0xff]
        %v4420 = vld [vmem:[%s4415 + $0x20] sm:$0xff]
        %v4421 = vld [vmem:[%s4415 + $0x28] sm:$0xff]
        %v4422 = vld [vmem:[%s4415 + $0x30] sm:$0xff]
        %v4423 = vld [vmem:[%s4415 + $0x38] sm:$0xff]
        %v4424 = vld [vmem:[%s4415 + $0x40] sm:$0xff]
        %v4425 = vld [vmem:[%s4415 + $0x48] sm:$0xff]
        %v4426 = vld [vmem:[%s4415 + $0x50] sm:$0xff]
        %v4427 = vld [vmem:[%s4415 + $0x58] sm:$0xff]
        %v4428 = vld [vmem:[%s4415 + $0x60] sm:$0xff]
        %v4429 = vld [vmem:[%s4415 + $0x68] sm:$0xff]
        %v4430 = vld [vmem:[%s4415 + $0x70] sm:$0xff]
        %v4431 = vld [vmem:[%s4415 + $0x78] sm:$0xff]
        %v4432 = vld [vmem:[%s4415 + $0x80] sm:$0xff]
        %v4433 = vld [vmem:[%s4415 + $0x88] sm:$0xff]
        %v4434 = vld [vmem:[%s4415 + $0x90] sm:$0xff]
        %v4435 = vld [vmem:[%s4415 + $0x98] sm:$0xff]
        %v4436 = vld [vmem:[%s4415 + $0xa0] sm:$0xff]
        %v4437 = vld [vmem:[%s4415 + $0xa8] sm:$0xff]
        %v4438 = vld [vmem:[%s4415 + $0xb0] sm:$0xff]
        %v4439 = vld [vmem:[%s4415 + $0xb8] sm:$0xff]
        %v4440 = vld [vmem:[%s4415 + $0xc0] sm:$0xff]
        %v4441 = vld [vmem:[%s4415 + $0xc8] sm:$0xff]
        %v4442 = vld [vmem:[%s4415 + $0xd0] sm:$0xff]
        %v4443 = vld [vmem:[%s4415 + $0xd8] sm:$0xff]
        %v4444 = vld [vmem:[%s4415 + $0xe0] sm:$0xff]
        %v4445 = vld [vmem:[%s4415 + $0xe8] sm:$0xff]
        %v4446 = vld [vmem:[%s4415 + $0xf0] sm:$0xff]
        %v4447 = vld [vmem:[%s4415 + $0xf8] sm:$0xff]
        %v4448 = vld [vmem:[%s4415 + $0x100] sm:$0xff]
        %v4449 = vld [vmem:[%s4415 + $0x108] sm:$0xff]
        %v4450 = vld [vmem:[%s4415 + $0x110] sm:$0xff]
        %v4451 = vld [vmem:[%s4415 + $0x118] sm:$0xff]
        %v4452 = vld [vmem:[%s4415 + $0x120] sm:$0xff]
        %v4453 = vld [vmem:[%s4415 + $0x128] sm:$0xff]
        %v4454 = vld [vmem:[%s4415 + $0x130] sm:$0xff]
        %v4455 = vld [vmem:[%s4415 + $0x138] sm:$0xff]
        %v4456 = vld [vmem:[%s4415 + $0x140] sm:$0xff]
        %v4457 = vld [vmem:[%s4415 + $0x148] sm:$0xff]
        %v4458 = vld [vmem:[%s4415 + $0x150] sm:$0xff]
        %v4459 = vld [vmem:[%s4415 + $0x158] sm:$0xff]
        %v4460 = vld [vmem:[%s4415 + $0x160] sm:$0xff]
        %v4461 = vld [vmem:[%s4415 + $0x168] sm:$0xff]
        %v4462 = vld [vmem:[%s4415 + $0x170] sm:$0xff]
        %v4463 = vld [vmem:[%s4415 + $0x178] sm:$0xff]
        %v4464 = vld [vmem:[%s4415 + $0x180] sm:$0xff]
        %v4465 = vld [vmem:[%s4415 + $0x188] sm:$0xff]
        %v4466 = vld [vmem:[%s4415 + $0x190] sm:$0xff]
        %v4467 = vld [vmem:[%s4415 + $0x198] sm:$0xff]
        %v4468 = vld [vmem:[%s4415 + $0x1a0] sm:$0xff]
        %v4469 = vld [vmem:[%s4415 + $0x1a8] sm:$0xff]
        %v4470 = vld [vmem:[%s4415 + $0x1b0] sm:$0xff]
        %v4471 = vld [vmem:[%s4415 + $0x1b8] sm:$0xff]
        %v4472 = vld [vmem:[%s2] sm:$0xff]
        %v4473 = vld [vmem:[%s2 + $0x8] sm:$0xff]
        %v4474 = vld [vmem:[%s2 + $0x10] sm:$0xff]
        %v4475 = vld [vmem:[%s2 + $0x18] sm:$0xff]
        %v4476 = vld [vmem:[%s2 + $0x20] sm:$0xff]
        %v4477 = vld [vmem:[%s2 + $0x28] sm:$0xff]
        %v4478 = vld [vmem:[%s2 + $0x30] sm:$0xff]
        %v4479 = vld [vmem:[%s2 + $0x38] sm:$0xff]
        %v4480 = vld [vmem:[%s2 + $0x40] sm:$0xff]
        %v4481 = vld [vmem:[%s2 + $0x48] sm:$0xff]
        %v4482 = vld [vmem:[%s2 + $0x50] sm:$0xff]
        %v4483 = vld [vmem:[%s2 + $0x58] sm:$0xff]
        %v4484 = vld [vmem:[%s2 + $0x60] sm:$0xff]
        %v4485 = vld [vmem:[%s2 + $0x68] sm:$0xff]
        %v4486 = vld [vmem:[%s2 + $0x70] sm:$0xff]
        %v4487 = vld [vmem:[%s2 + $0x78] sm:$0xff]
        %v4488 = vld [vmem:[%s2 + $0x80] sm:$0xff]
        %v4489 = vld [vmem:[%s2 + $0x88] sm:$0xff]
        %v4490 = vld [vmem:[%s2 + $0x90] sm:$0xff]
        %v4491 = vld [vmem:[%s2 + $0x98] sm:$0xff]
        %v4492 = vld [vmem:[%s2 + $0xa0] sm:$0xff]
        %v4493 = vld [vmem:[%s2 + $0xa8] sm:$0xff]
        %v4494 = vld [vmem:[%s2 + $0xb0] sm:$0xff]
        %v4495 = vld [vmem:[%s2 + $0xb8] sm:$0xff]
        %v4496 = vld [vmem:[%s2 + $0xc0] sm:$0xff]
        %v4497 = vld [vmem:[%s2 + $0xc8] sm:$0xff]
        %v4498 = vld [vmem:[%s2 + $0xd0] sm:$0xff]
        %v4499 = vld [vmem:[%s2 + $0xd8] sm:$0xff]
        %s4500 = scalar_lea.vmem %s374, 1792 [#allocation2]
        %v4501 = vld [vmem:[%s4500] sm:$0xff]
        %v4502 = vld [vmem:[%s4500 + $0x8] sm:$0xff]
        %v4503 = vld [vmem:[%s4500 + $0x10] sm:$0xff]
        %v4504 = vld [vmem:[%s4500 + $0x18] sm:$0xff]
        %v4505 = vld [vmem:[%s4500 + $0x20] sm:$0xff]
        %v4506 = vld [vmem:[%s4500 + $0x28] sm:$0xff]
        %v4507 = vld [vmem:[%s4500 + $0x30] sm:$0xff]
        %v4508 = vld [vmem:[%s4500 + $0x38] sm:$0xff]
        %v4509 = vld [vmem:[%s4500 + $0x40] sm:$0xff]
        %v4510 = vld [vmem:[%s4500 + $0x48] sm:$0xff]
        %v4511 = vld [vmem:[%s4500 + $0x50] sm:$0xff]
        %v4512 = vld [vmem:[%s4500 + $0x58] sm:$0xff]
        %v4513 = vld [vmem:[%s4500 + $0x60] sm:$0xff]
        %v4514 = vld [vmem:[%s4500 + $0x68] sm:$0xff]
        %v4515 = vld [vmem:[%s4500 + $0x70] sm:$0xff]
        %v4516 = vld [vmem:[%s4500 + $0x78] sm:$0xff]
        %v4517 = vld [vmem:[%s4500 + $0x80] sm:$0xff]
        %v4518 = vld [vmem:[%s4500 + $0x88] sm:$0xff]
        %v4519 = vld [vmem:[%s4500 + $0x90] sm:$0xff]
        %v4520 = vld [vmem:[%s4500 + $0x98] sm:$0xff]
        %v4521 = vld [vmem:[%s4500 + $0xa0] sm:$0xff]
        %v4522 = vld [vmem:[%s4500 + $0xa8] sm:$0xff]
        %v4523 = vld [vmem:[%s4500 + $0xb0] sm:$0xff]
        %v4524 = vld [vmem:[%s4500 + $0xb8] sm:$0xff]
        %v4525 = vld [vmem:[%s4500 + $0xc0] sm:$0xff]
        %v4526 = vld [vmem:[%s4500 + $0xc8] sm:$0xff]
        %v4527 = vld [vmem:[%s4500 + $0xd0] sm:$0xff]
        %v4528 = vld [vmem:[%s4500 + $0xd8] sm:$0xff]
        %v4529 = vld [vmem:[%s4500 + $0xe0] sm:$0xff]
        %v4530 = vld [vmem:[%s4500 + $0xe8] sm:$0xff]
        %v4531 = vld [vmem:[%s4500 + $0xf0] sm:$0xff]
        %v4532 = vld [vmem:[%s4500 + $0xf8] sm:$0xff]
        %v4533 = vld [vmem:[%s4500 + $0x100] sm:$0xff]
        %v4534 = vld [vmem:[%s4500 + $0x108] sm:$0xff]
        %v4535 = vld [vmem:[%s4500 + $0x110] sm:$0xff]
        %v4536 = vld [vmem:[%s4500 + $0x118] sm:$0xff]
        %v4537 = vld [vmem:[%s4500 + $0x120] sm:$0xff]
        %v4538 = vld [vmem:[%s4500 + $0x128] sm:$0xff]
        %v4539 = vld [vmem:[%s4500 + $0x130] sm:$0xff]
        %v4540 = vld [vmem:[%s4500 + $0x138] sm:$0xff]
        %v4541 = vld [vmem:[%s4500 + $0x140] sm:$0xff]
        %v4542 = vld [vmem:[%s4500 + $0x148] sm:$0xff]
        %v4543 = vld [vmem:[%s4500 + $0x150] sm:$0xff]
        %v4544 = vld [vmem:[%s4500 + $0x158] sm:$0xff]
        %v4545 = vld [vmem:[%s4500 + $0x160] sm:$0xff]
        %v4546 = vld [vmem:[%s4500 + $0x168] sm:$0xff]
        %v4547 = vld [vmem:[%s4500 + $0x170] sm:$0xff]
        %v4548 = vld [vmem:[%s4500 + $0x178] sm:$0xff]
        %v4549 = vld [vmem:[%s4500 + $0x180] sm:$0xff]
        %v4550 = vld [vmem:[%s4500 + $0x188] sm:$0xff]
        %v4551 = vld [vmem:[%s4500 + $0x190] sm:$0xff]
        %v4552 = vld [vmem:[%s4500 + $0x198] sm:$0xff]
        %v4553 = vld [vmem:[%s4500 + $0x1a0] sm:$0xff]
        %v4554 = vld [vmem:[%s4500 + $0x1a8] sm:$0xff]
        %v4555 = vld [vmem:[%s4500 + $0x1b0] sm:$0xff]
        %v4556 = vld [vmem:[%s4500 + $0x1b8] sm:$0xff]
        %v4557 = vld [vmem:[%s788] sm:$0xff]
        %v4558 = vld [vmem:[%s788 + $0x8] sm:$0xff]
        %v4559 = vld [vmem:[%s788 + $0x10] sm:$0xff]
        %v4560 = vld [vmem:[%s788 + $0x18] sm:$0xff]
        %v4561 = vld [vmem:[%s788 + $0x20] sm:$0xff]
        %v4562 = vld [vmem:[%s788 + $0x28] sm:$0xff]
        %v4563 = vld [vmem:[%s788 + $0x30] sm:$0xff]
        %v4564 = vld [vmem:[%s788 + $0x38] sm:$0xff]
        %v4565 = vld [vmem:[%s788 + $0x40] sm:$0xff]
        %v4566 = vld [vmem:[%s788 + $0x48] sm:$0xff]
        %v4567 = vld [vmem:[%s788 + $0x50] sm:$0xff]
        %v4568 = vld [vmem:[%s788 + $0x58] sm:$0xff]
        %v4569 = vld [vmem:[%s788 + $0x60] sm:$0xff]
        %v4570 = vld [vmem:[%s788 + $0x68] sm:$0xff]
        %v4571 = vld [vmem:[%s788 + $0x70] sm:$0xff]
        %v4572 = vld [vmem:[%s788 + $0x78] sm:$0xff]
        %v4573 = vld [vmem:[%s788 + $0x80] sm:$0xff]
        %v4574 = vld [vmem:[%s788 + $0x88] sm:$0xff]
        %v4575 = vld [vmem:[%s788 + $0x90] sm:$0xff]
        %v4576 = vld [vmem:[%s788 + $0x98] sm:$0xff]
        %v4577 = vld [vmem:[%s788 + $0xa0] sm:$0xff]
        %v4578 = vld [vmem:[%s788 + $0xa8] sm:$0xff]
        %v4579 = vld [vmem:[%s788 + $0xb0] sm:$0xff]
        %v4580 = vld [vmem:[%s788 + $0xb8] sm:$0xff]
        %v4581 = vld [vmem:[%s788 + $0xc0] sm:$0xff]
        %v4582 = vld [vmem:[%s788 + $0xc8] sm:$0xff]
        %v4583 = vld [vmem:[%s788 + $0xd0] sm:$0xff]
        %v4584 = vld [vmem:[%s788 + $0xd8] sm:$0xff]
        %v4586 = vsel %vm817, %v4502, 0
        %v4589 = vsel %vm817, %v4504, 0
        %v4592 = vsel %vm817, %v4506, 0
        %v4595 = vsel %vm817, %v4508, 0
        %v4598 = vsel %vm817, %v4510, 0
        %v4601 = vsel %vm817, %v4512, 0
        %v4604 = vsel %vm817, %v4514, 0
        %v4607 = vsel %vm817, %v4516, 0
        %v4610 = vsel %vm817, %v4518, 0
        %v4613 = vsel %vm817, %v4520, 0
        %v4616 = vsel %vm817, %v4522, 0
        %v4619 = vsel %vm817, %v4524, 0
        %v4622 = vsel %vm817, %v4526, 0
        %v4625 = vsel %vm817, %v4528, 0
        %v4628 = vsel %vm817, %v4530, 0
        %v4631 = vsel %vm817, %v4532, 0
        %v4634 = vsel %vm817, %v4534, 0
        %v4637 = vsel %vm817, %v4536, 0
        %v4640 = vsel %vm817, %v4538, 0
        %v4643 = vsel %vm817, %v4540, 0
        %v4646 = vsel %vm817, %v4542, 0
        %v4649 = vsel %vm817, %v4544, 0
        %v4652 = vsel %vm817, %v4546, 0
        %v4655 = vsel %vm817, %v4548, 0
        %v4658 = vsel %vm817, %v4550, 0
        %v4661 = vsel %vm817, %v4552, 0
        %v4664 = vsel %vm817, %v4554, 0
        %v4667 = vsel %vm817, %v4556, 0
        %4669 = vmatpush.msra.mxu0 %v4572
        %4670 = vmatpush.msra.mxu0 %v4571
        %4671 = vmatpush.msra.mxu0 %v4570
        %4672 = vmatpush.msra.mxu0 %v4569
        %4673 = vmatpush.msra.mxu0 %v4568
        %4674 = vmatpush.msra.mxu0 %v4567
        %4675 = vmatpush.msra.mxu0 %v4566
        %4676 = vmatpush.msra.mxu0 %v4565
        %4677 = vmatpush.msra.mxu0 %v4564
        %4678 = vmatpush.msra.mxu0 %v4563
        %4679 = vmatpush.msra.mxu0 %v4562
        %4680 = vmatpush.msra.mxu0 %v4561
        %4681 = vmatpush.msra.mxu0 %v4560
        %4682 = vmatpush.msra.mxu0 %v4559
        %4683 = vmatpush.msra.mxu0 %v4558
        %4684 = vmatpush.msra.mxu0 %v4557
        %4685 = vmatmul.f32.gmra.mxu0 %v4501
        %v4686 = vpop.f32.mrf.mxu0
        %v4687 = vadd.f32 0.0, %v4686
        %4688 = vmatmul.f32.gmra.mxu0 %v4503
        %v4689 = vpop.f32.mrf.mxu0
        %v4690 = vadd.f32 0.0, %v4689
        %4691 = vmatmul.f32.gmra.mxu0 %v4505
        %v4692 = vpop.f32.mrf.mxu0
        %v4693 = vadd.f32 0.0, %v4692
        %4694 = vmatmul.f32.gmra.mxu0 %v4507
        %v4695 = vpop.f32.mrf.mxu0
        %v4696 = vadd.f32 0.0, %v4695
        %4697 = vmatmul.f32.gmra.mxu0 %v4509
        %v4698 = vpop.f32.mrf.mxu0
        %v4699 = vadd.f32 0.0, %v4698
        %4700 = vmatmul.f32.gmra.mxu0 %v4511
        %v4701 = vpop.f32.mrf.mxu0
        %v4702 = vadd.f32 0.0, %v4701
        %4703 = vmatmul.f32.gmra.mxu0 %v4513
        %v4704 = vpop.f32.mrf.mxu0
        %v4705 = vadd.f32 0.0, %v4704
        %4706 = vmatmul.f32.gmra.mxu0 %v4515
        %v4707 = vpop.f32.mrf.mxu0
        %v4708 = vadd.f32 0.0, %v4707
        %4709 = vmatmul.f32.gmra.mxu0 %v4517
        %v4710 = vpop.f32.mrf.mxu0
        %v4711 = vadd.f32 0.0, %v4710
        %4712 = vmatmul.f32.gmra.mxu0 %v4519
        %v4713 = vpop.f32.mrf.mxu0
        %v4714 = vadd.f32 0.0, %v4713
        %4715 = vmatmul.f32.gmra.mxu0 %v4521
        %v4716 = vpop.f32.mrf.mxu0
        %v4717 = vadd.f32 0.0, %v4716
        %4718 = vmatmul.f32.gmra.mxu0 %v4523
        %v4719 = vpop.f32.mrf.mxu0
        %v4720 = vadd.f32 0.0, %v4719
        %4721 = vmatmul.f32.gmra.mxu0 %v4525
        %v4722 = vpop.f32.mrf.mxu0
        %v4723 = vadd.f32 0.0, %v4722
        %4724 = vmatmul.f32.gmra.mxu0 %v4527
        %v4725 = vpop.f32.mrf.mxu0
        %v4726 = vadd.f32 0.0, %v4725
        %4727 = vmatmul.f32.gmra.mxu0 %v4529
        %v4728 = vpop.f32.mrf.mxu0
        %v4729 = vadd.f32 0.0, %v4728
        %4730 = vmatmul.f32.gmra.mxu0 %v4531
        %v4731 = vpop.f32.mrf.mxu0
        %v4732 = vadd.f32 0.0, %v4731
        %4733 = vmatmul.f32.gmra.mxu0 %v4533
        %v4734 = vpop.f32.mrf.mxu0
        %v4735 = vadd.f32 0.0, %v4734
        %4736 = vmatmul.f32.gmra.mxu0 %v4535
        %v4737 = vpop.f32.mrf.mxu0
        %v4738 = vadd.f32 0.0, %v4737
        %4739 = vmatmul.f32.gmra.mxu0 %v4537
        %v4740 = vpop.f32.mrf.mxu0
        %v4741 = vadd.f32 0.0, %v4740
        %4742 = vmatmul.f32.gmra.mxu0 %v4539
        %v4743 = vpop.f32.mrf.mxu0
        %v4744 = vadd.f32 0.0, %v4743
        %4745 = vmatmul.f32.gmra.mxu0 %v4541
        %v4746 = vpop.f32.mrf.mxu0
        %v4747 = vadd.f32 0.0, %v4746
        %4748 = vmatmul.f32.gmra.mxu0 %v4543
        %v4749 = vpop.f32.mrf.mxu0
        %v4750 = vadd.f32 0.0, %v4749
        %4751 = vmatmul.f32.gmra.mxu0 %v4545
        %v4752 = vpop.f32.mrf.mxu0
        %v4753 = vadd.f32 0.0, %v4752
        %4754 = vmatmul.f32.gmra.mxu0 %v4547
        %v4755 = vpop.f32.mrf.mxu0
        %v4756 = vadd.f32 0.0, %v4755
        %4757 = vmatmul.f32.gmra.mxu0 %v4549
        %v4758 = vpop.f32.mrf.mxu0
        %v4759 = vadd.f32 0.0, %v4758
        %4760 = vmatmul.f32.gmra.mxu0 %v4551
        %v4761 = vpop.f32.mrf.mxu0
        %v4762 = vadd.f32 0.0, %v4761
        %4763 = vmatmul.f32.gmra.mxu0 %v4553
        %v4764 = vpop.f32.mrf.mxu0
        %v4765 = vadd.f32 0.0, %v4764
        %4766 = vmatmul.f32.gmra.mxu0 %v4555
        %v4767 = vpop.f32.mrf.mxu0
        %v4768 = vadd.f32 0.0, %v4767
        %4769 = vdwg.mxu0
        %4770 = vmatpush.msra.mxu0 0.0
        %4771 = vmatpush.msra.mxu0 0.0
        %4772 = vmatpush.msra.mxu0 0.0
        %4773 = vmatpush.msra.mxu0 0.0
        %4774 = vmatpush.msra.mxu0 %v4584
        %4775 = vmatpush.msra.mxu0 %v4583
        %4776 = vmatpush.msra.mxu0 %v4582
        %4777 = vmatpush.msra.mxu0 %v4581
        %4778 = vmatpush.msra.mxu0 %v4580
        %4779 = vmatpush.msra.mxu0 %v4579
        %4780 = vmatpush.msra.mxu0 %v4578
        %4781 = vmatpush.msra.mxu0 %v4577
        %4782 = vmatpush.msra.mxu0 %v4576
        %4783 = vmatpush.msra.mxu0 %v4575
        %4784 = vmatpush.msra.mxu0 %v4574
        %4785 = vmatpush.msra.mxu0 %v4573
        %4786 = vmatmul.f32.gmra.mxu0 %v4586
        %v4787 = vpop.f32.mrf.mxu0
        %v4788 = vadd.f32 %v4687, %v4787
        %4789 = vmatmul.f32.gmra.mxu0 %v4589
        %v4790 = vpop.f32.mrf.mxu0
        %v4791 = vadd.f32 %v4690, %v4790
        %4792 = vmatmul.f32.gmra.mxu0 %v4592
        %v4793 = vpop.f32.mrf.mxu0
        %v4794 = vadd.f32 %v4693, %v4793
        %4795 = vmatmul.f32.gmra.mxu0 %v4595
        %v4796 = vpop.f32.mrf.mxu0
        %v4797 = vadd.f32 %v4696, %v4796
        %4798 = vmatmul.f32.gmra.mxu0 %v4598
        %v4799 = vpop.f32.mrf.mxu0
        %v4800 = vadd.f32 %v4699, %v4799
        %4801 = vmatmul.f32.gmra.mxu0 %v4601
        %v4802 = vpop.f32.mrf.mxu0
        %v4803 = vadd.f32 %v4702, %v4802
        %4804 = vmatmul.f32.gmra.mxu0 %v4604
        %v4805 = vpop.f32.mrf.mxu0
        %v4806 = vadd.f32 %v4705, %v4805
        %4807 = vmatmul.f32.gmra.mxu0 %v4607
        %v4808 = vpop.f32.mrf.mxu0
        %v4809 = vadd.f32 %v4708, %v4808
        %4810 = vmatmul.f32.gmra.mxu0 %v4610
        %v4811 = vpop.f32.mrf.mxu0
        %v4812 = vadd.f32 %v4711, %v4811
        %4813 = vmatmul.f32.gmra.mxu0 %v4613
        %v4814 = vpop.f32.mrf.mxu0
        %v4815 = vadd.f32 %v4714, %v4814
        %4816 = vmatmul.f32.gmra.mxu0 %v4616
        %v4817 = vpop.f32.mrf.mxu0
        %v4818 = vadd.f32 %v4717, %v4817
        %4819 = vmatmul.f32.gmra.mxu0 %v4619
        %v4820 = vpop.f32.mrf.mxu0
        %v4821 = vadd.f32 %v4720, %v4820
        %4822 = vmatmul.f32.gmra.mxu0 %v4622
        %v4823 = vpop.f32.mrf.mxu0
        %v4824 = vadd.f32 %v4723, %v4823
        %4825 = vmatmul.f32.gmra.mxu0 %v4625
        %v4826 = vpop.f32.mrf.mxu0
        %v4827 = vadd.f32 %v4726, %v4826
        %4828 = vmatmul.f32.gmra.mxu0 %v4628
        %v4829 = vpop.f32.mrf.mxu0
        %v4830 = vadd.f32 %v4729, %v4829
        %4831 = vmatmul.f32.gmra.mxu0 %v4631
        %v4832 = vpop.f32.mrf.mxu0
        %v4833 = vadd.f32 %v4732, %v4832
        %4834 = vmatmul.f32.gmra.mxu0 %v4634
        %v4835 = vpop.f32.mrf.mxu0
        %v4836 = vadd.f32 %v4735, %v4835
        %4837 = vmatmul.f32.gmra.mxu0 %v4637
        %v4838 = vpop.f32.mrf.mxu0
        %v4839 = vadd.f32 %v4738, %v4838
        %4840 = vmatmul.f32.gmra.mxu0 %v4640
        %v4841 = vpop.f32.mrf.mxu0
        %v4842 = vadd.f32 %v4741, %v4841
        %4843 = vmatmul.f32.gmra.mxu0 %v4643
        %v4844 = vpop.f32.mrf.mxu0
        %v4845 = vadd.f32 %v4744, %v4844
        %4846 = vmatmul.f32.gmra.mxu0 %v4646
        %v4847 = vpop.f32.mrf.mxu0
        %v4848 = vadd.f32 %v4747, %v4847
        %4849 = vmatmul.f32.gmra.mxu0 %v4649
        %v4850 = vpop.f32.mrf.mxu0
        %v4851 = vadd.f32 %v4750, %v4850
        %4852 = vmatmul.f32.gmra.mxu0 %v4652
        %v4853 = vpop.f32.mrf.mxu0
        %v4854 = vadd.f32 %v4753, %v4853
        %4855 = vmatmul.f32.gmra.mxu0 %v4655
        %v4856 = vpop.f32.mrf.mxu0
        %v4857 = vadd.f32 %v4756, %v4856
        %4858 = vmatmul.f32.gmra.mxu0 %v4658
        %v4859 = vpop.f32.mrf.mxu0
        %v4860 = vadd.f32 %v4759, %v4859
        %4861 = vmatmul.f32.gmra.mxu0 %v4661
        %v4862 = vpop.f32.mrf.mxu0
        %v4863 = vadd.f32 %v4762, %v4862
        %4864 = vmatmul.f32.gmra.mxu0 %v4664
        %v4865 = vpop.f32.mrf.mxu0
        %v4866 = vadd.f32 %v4765, %v4865
        %4867 = vmatmul.f32.gmra.mxu0 %v4667
        %v4868 = vpop.f32.mrf.mxu0
        %v4869 = vadd.f32 %v4768, %v4868
        %4870 = vdwg.mxu0
        %v4872 = vsel %vm817, %v4417, 0
        %v4875 = vsel %vm817, %v4419, 0
        %v4878 = vsel %vm817, %v4421, 0
        %v4881 = vsel %vm817, %v4423, 0
        %v4884 = vsel %vm817, %v4425, 0
        %v4887 = vsel %vm817, %v4427, 0
        %v4890 = vsel %vm817, %v4429, 0
        %v4893 = vsel %vm817, %v4431, 0
        %v4896 = vsel %vm817, %v4433, 0
        %v4899 = vsel %vm817, %v4435, 0
        %v4902 = vsel %vm817, %v4437, 0
        %v4905 = vsel %vm817, %v4439, 0
        %v4908 = vsel %vm817, %v4441, 0
        %v4911 = vsel %vm817, %v4443, 0
        %v4914 = vsel %vm817, %v4445, 0
        %v4917 = vsel %vm817, %v4447, 0
        %v4920 = vsel %vm817, %v4449, 0
        %v4923 = vsel %vm817, %v4451, 0
        %v4926 = vsel %vm817, %v4453, 0
        %v4929 = vsel %vm817, %v4455, 0
        %v4932 = vsel %vm817, %v4457, 0
        %v4935 = vsel %vm817, %v4459, 0
        %v4938 = vsel %vm817, %v4461, 0
        %v4941 = vsel %vm817, %v4463, 0
        %v4944 = vsel %vm817, %v4465, 0
        %v4947 = vsel %vm817, %v4467, 0
        %v4950 = vsel %vm817, %v4469, 0
        %v4953 = vsel %vm817, %v4471, 0
        %4955 = vmatpush.msra.mxu0 %v4487
        %4956 = vmatpush.msra.mxu0 %v4486
        %4957 = vmatpush.msra.mxu0 %v4485
        %4958 = vmatpush.msra.mxu0 %v4484
        %4959 = vmatpush.msra.mxu0 %v4483
        %4960 = vmatpush.msra.mxu0 %v4482
        %4961 = vmatpush.msra.mxu0 %v4481
        %4962 = vmatpush.msra.mxu0 %v4480
        %4963 = vmatpush.msra.mxu0 %v4479
        %4964 = vmatpush.msra.mxu0 %v4478
        %4965 = vmatpush.msra.mxu0 %v4477
        %4966 = vmatpush.msra.mxu0 %v4476
        %4967 = vmatpush.msra.mxu0 %v4475
        %4968 = vmatpush.msra.mxu0 %v4474
        %4969 = vmatpush.msra.mxu0 %v4473
        %4970 = vmatpush.msra.mxu0 %v4472
        %4971 = vmatmul.f32.gmra.mxu0 %v4416
        %v4972 = vpop.f32.mrf.mxu0
        %v4973 = vadd.f32 %v4788, %v4972
        %4974 = vmatmul.f32.gmra.mxu0 %v4418
        %v4975 = vpop.f32.mrf.mxu0
        %v4976 = vadd.f32 %v4791, %v4975
        %4977 = vmatmul.f32.gmra.mxu0 %v4420
        %v4978 = vpop.f32.mrf.mxu0
        %v4979 = vadd.f32 %v4794, %v4978
        %4980 = vmatmul.f32.gmra.mxu0 %v4422
        %v4981 = vpop.f32.mrf.mxu0
        %v4982 = vadd.f32 %v4797, %v4981
        %4983 = vmatmul.f32.gmra.mxu0 %v4424
        %v4984 = vpop.f32.mrf.mxu0
        %v4985 = vadd.f32 %v4800, %v4984
        %4986 = vmatmul.f32.gmra.mxu0 %v4426
        %v4987 = vpop.f32.mrf.mxu0
        %v4988 = vadd.f32 %v4803, %v4987
        %4989 = vmatmul.f32.gmra.mxu0 %v4428
        %v4990 = vpop.f32.mrf.mxu0
        %v4991 = vadd.f32 %v4806, %v4990
        %4992 = vmatmul.f32.gmra.mxu0 %v4430
        %v4993 = vpop.f32.mrf.mxu0
        %v4994 = vadd.f32 %v4809, %v4993
        %4995 = vmatmul.f32.gmra.mxu0 %v4432
        %v4996 = vpop.f32.mrf.mxu0
        %v4997 = vadd.f32 %v4812, %v4996
        %4998 = vmatmul.f32.gmra.mxu0 %v4434
        %v4999 = vpop.f32.mrf.mxu0
        %v5000 = vadd.f32 %v4815, %v4999
        %5001 = vmatmul.f32.gmra.mxu0 %v4436
        %v5002 = vpop.f32.mrf.mxu0
        %v5003 = vadd.f32 %v4818, %v5002
        %5004 = vmatmul.f32.gmra.mxu0 %v4438
        %v5005 = vpop.f32.mrf.mxu0
        %v5006 = vadd.f32 %v4821, %v5005
        %5007 = vmatmul.f32.gmra.mxu0 %v4440
        %v5008 = vpop.f32.mrf.mxu0
        %v5009 = vadd.f32 %v4824, %v5008
        %5010 = vmatmul.f32.gmra.mxu0 %v4442
        %v5011 = vpop.f32.mrf.mxu0
        %v5012 = vadd.f32 %v4827, %v5011
        %5013 = vmatmul.f32.gmra.mxu0 %v4444
        %v5014 = vpop.f32.mrf.mxu0
        %v5015 = vadd.f32 %v4830, %v5014
        %5016 = vmatmul.f32.gmra.mxu0 %v4446
        %v5017 = vpop.f32.mrf.mxu0
        %v5018 = vadd.f32 %v4833, %v5017
        %5019 = vmatmul.f32.gmra.mxu0 %v4448
        %v5020 = vpop.f32.mrf.mxu0
        %v5021 = vadd.f32 %v4836, %v5020
        %5022 = vmatmul.f32.gmra.mxu0 %v4450
        %v5023 = vpop.f32.mrf.mxu0
        %v5024 = vadd.f32 %v4839, %v5023
        %5025 = vmatmul.f32.gmra.mxu0 %v4452
        %v5026 = vpop.f32.mrf.mxu0
        %v5027 = vadd.f32 %v4842, %v5026
        %5028 = vmatmul.f32.gmra.mxu0 %v4454
        %v5029 = vpop.f32.mrf.mxu0
        %v5030 = vadd.f32 %v4845, %v5029
        %5031 = vmatmul.f32.gmra.mxu0 %v4456
        %v5032 = vpop.f32.mrf.mxu0
        %v5033 = vadd.f32 %v4848, %v5032
        %5034 = vmatmul.f32.gmra.mxu0 %v4458
        %v5035 = vpop.f32.mrf.mxu0
        %v5036 = vadd.f32 %v4851, %v5035
        %5037 = vmatmul.f32.gmra.mxu0 %v4460
        %v5038 = vpop.f32.mrf.mxu0
        %v5039 = vadd.f32 %v4854, %v5038
        %5040 = vmatmul.f32.gmra.mxu0 %v4462
        %v5041 = vpop.f32.mrf.mxu0
        %v5042 = vadd.f32 %v4857, %v5041
        %5043 = vmatmul.f32.gmra.mxu0 %v4464
        %v5044 = vpop.f32.mrf.mxu0
        %v5045 = vadd.f32 %v4860, %v5044
        %5046 = vmatmul.f32.gmra.mxu0 %v4466
        %v5047 = vpop.f32.mrf.mxu0
        %v5048 = vadd.f32 %v4863, %v5047
        %5049 = vmatmul.f32.gmra.mxu0 %v4468
        %v5050 = vpop.f32.mrf.mxu0
        %v5051 = vadd.f32 %v4866, %v5050
        %5052 = vmatmul.f32.gmra.mxu0 %v4470
        %v5053 = vpop.f32.mrf.mxu0
        %v5054 = vadd.f32 %v4869, %v5053
        %5055 = vdwg.mxu0
        %5056 = vmatpush.msra.mxu0 0.0
        %5057 = vmatpush.msra.mxu0 0.0
        %5058 = vmatpush.msra.mxu0 0.0
        %5059 = vmatpush.msra.mxu0 0.0
        %5060 = vmatpush.msra.mxu0 %v4499
        %5061 = vmatpush.msra.mxu0 %v4498
        %5062 = vmatpush.msra.mxu0 %v4497
        %5063 = vmatpush.msra.mxu0 %v4496
        %5064 = vmatpush.msra.mxu0 %v4495
        %5065 = vmatpush.msra.mxu0 %v4494
        %5066 = vmatpush.msra.mxu0 %v4493
        %5067 = vmatpush.msra.mxu0 %v4492
        %5068 = vmatpush.msra.mxu0 %v4491
        %5069 = vmatpush.msra.mxu0 %v4490
        %5070 = vmatpush.msra.mxu0 %v4489
        %5071 = vmatpush.msra.mxu0 %v4488
        %5072 = vmatmul.f32.gmra.mxu0 %v4872
        %v5073 = vpop.f32.mrf.mxu0
        %v5074 = vadd.f32 %v4973, %v5073
        %5075 = vmatmul.f32.gmra.mxu0 %v4875
        %v5076 = vpop.f32.mrf.mxu0
        %v5077 = vadd.f32 %v4976, %v5076
        %5078 = vmatmul.f32.gmra.mxu0 %v4878
        %v5079 = vpop.f32.mrf.mxu0
        %v5080 = vadd.f32 %v4979, %v5079
        %5081 = vmatmul.f32.gmra.mxu0 %v4881
        %v5082 = vpop.f32.mrf.mxu0
        %v5083 = vadd.f32 %v4982, %v5082
        %5084 = vmatmul.f32.gmra.mxu0 %v4884
        %v5085 = vpop.f32.mrf.mxu0
        %v5086 = vadd.f32 %v4985, %v5085
        %5087 = vmatmul.f32.gmra.mxu0 %v4887
        %v5088 = vpop.f32.mrf.mxu0
        %v5089 = vadd.f32 %v4988, %v5088
        %5090 = vmatmul.f32.gmra.mxu0 %v4890
        %v5091 = vpop.f32.mrf.mxu0
        %v5092 = vadd.f32 %v4991, %v5091
        %5093 = vmatmul.f32.gmra.mxu0 %v4893
        %v5094 = vpop.f32.mrf.mxu0
        %v5095 = vadd.f32 %v4994, %v5094
        %5096 = vmatmul.f32.gmra.mxu0 %v4896
        %v5097 = vpop.f32.mrf.mxu0
        %v5098 = vadd.f32 %v4997, %v5097
        %5099 = vmatmul.f32.gmra.mxu0 %v4899
        %v5100 = vpop.f32.mrf.mxu0
        %v5101 = vadd.f32 %v5000, %v5100
        %5102 = vmatmul.f32.gmra.mxu0 %v4902
        %v5103 = vpop.f32.mrf.mxu0
        %v5104 = vadd.f32 %v5003, %v5103
        %5105 = vmatmul.f32.gmra.mxu0 %v4905
        %v5106 = vpop.f32.mrf.mxu0
        %v5107 = vadd.f32 %v5006, %v5106
        %5108 = vmatmul.f32.gmra.mxu0 %v4908
        %v5109 = vpop.f32.mrf.mxu0
        %v5110 = vadd.f32 %v5009, %v5109
        %5111 = vmatmul.f32.gmra.mxu0 %v4911
        %v5112 = vpop.f32.mrf.mxu0
        %v5113 = vadd.f32 %v5012, %v5112
        %5114 = vmatmul.f32.gmra.mxu0 %v4914
        %v5115 = vpop.f32.mrf.mxu0
        %v5116 = vadd.f32 %v5015, %v5115
        %5117 = vmatmul.f32.gmra.mxu0 %v4917
        %v5118 = vpop.f32.mrf.mxu0
        %v5119 = vadd.f32 %v5018, %v5118
        %5120 = vmatmul.f32.gmra.mxu0 %v4920
        %v5121 = vpop.f32.mrf.mxu0
        %v5122 = vadd.f32 %v5021, %v5121
        %5123 = vmatmul.f32.gmra.mxu0 %v4923
        %v5124 = vpop.f32.mrf.mxu0
        %v5125 = vadd.f32 %v5024, %v5124
        %5126 = vmatmul.f32.gmra.mxu0 %v4926
        %v5127 = vpop.f32.mrf.mxu0
        %v5128 = vadd.f32 %v5027, %v5127
        %5129 = vmatmul.f32.gmra.mxu0 %v4929
        %v5130 = vpop.f32.mrf.mxu0
        %v5131 = vadd.f32 %v5030, %v5130
        %5132 = vmatmul.f32.gmra.mxu0 %v4932
        %v5133 = vpop.f32.mrf.mxu0
        %v5134 = vadd.f32 %v5033, %v5133
        %5135 = vmatmul.f32.gmra.mxu0 %v4935
        %v5136 = vpop.f32.mrf.mxu0
        %v5137 = vadd.f32 %v5036, %v5136
        %5138 = vmatmul.f32.gmra.mxu0 %v4938
        %v5139 = vpop.f32.mrf.mxu0
        %v5140 = vadd.f32 %v5039, %v5139
        %5141 = vmatmul.f32.gmra.mxu0 %v4941
        %v5142 = vpop.f32.mrf.mxu0
        %v5143 = vadd.f32 %v5042, %v5142
        %5144 = vmatmul.f32.gmra.mxu0 %v4944
        %v5145 = vpop.f32.mrf.mxu0
        %v5146 = vadd.f32 %v5045, %v5145
        %5147 = vmatmul.f32.gmra.mxu0 %v4947
        %v5148 = vpop.f32.mrf.mxu0
        %v5149 = vadd.f32 %v5048, %v5148
        %5150 = vmatmul.f32.gmra.mxu0 %v4950
        %v5151 = vpop.f32.mrf.mxu0
        %v5152 = vadd.f32 %v5051, %v5151
        %5153 = vmatmul.f32.gmra.mxu0 %v4953
        %v5154 = vpop.f32.mrf.mxu0
        %v5155 = vadd.f32 %v5054, %v5154
        %5156 = vdwg.mxu0
        %s5157 = scalar_lea.vmem %s374, 2240 [#allocation2]
        %v5158 = vld [vmem:[%s5157] sm:$0xff]
        %v5159 = vld [vmem:[%s5157 + $0x8] sm:$0xff]
        %v5160 = vld [vmem:[%s5157 + $0x10] sm:$0xff]
        %v5161 = vld [vmem:[%s5157 + $0x18] sm:$0xff]
        %v5162 = vld [vmem:[%s5157 + $0x20] sm:$0xff]
        %v5163 = vld [vmem:[%s5157 + $0x28] sm:$0xff]
        %v5164 = vld [vmem:[%s5157 + $0x30] sm:$0xff]
        %v5165 = vld [vmem:[%s5157 + $0x38] sm:$0xff]
        %v5166 = vld [vmem:[%s5157 + $0x40] sm:$0xff]
        %v5167 = vld [vmem:[%s5157 + $0x48] sm:$0xff]
        %v5168 = vld [vmem:[%s5157 + $0x50] sm:$0xff]
        %v5169 = vld [vmem:[%s5157 + $0x58] sm:$0xff]
        %v5170 = vld [vmem:[%s5157 + $0x60] sm:$0xff]
        %v5171 = vld [vmem:[%s5157 + $0x68] sm:$0xff]
        %v5172 = vld [vmem:[%s5157 + $0x70] sm:$0xff]
        %v5173 = vld [vmem:[%s5157 + $0x78] sm:$0xff]
        %v5174 = vld [vmem:[%s5157 + $0x80] sm:$0xff]
        %v5175 = vld [vmem:[%s5157 + $0x88] sm:$0xff]
        %v5176 = vld [vmem:[%s5157 + $0x90] sm:$0xff]
        %v5177 = vld [vmem:[%s5157 + $0x98] sm:$0xff]
        %v5178 = vld [vmem:[%s5157 + $0xa0] sm:$0xff]
        %v5179 = vld [vmem:[%s5157 + $0xa8] sm:$0xff]
        %v5180 = vld [vmem:[%s5157 + $0xb0] sm:$0xff]
        %v5181 = vld [vmem:[%s5157 + $0xb8] sm:$0xff]
        %v5182 = vld [vmem:[%s5157 + $0xc0] sm:$0xff]
        %v5183 = vld [vmem:[%s5157 + $0xc8] sm:$0xff]
        %v5184 = vld [vmem:[%s5157 + $0xd0] sm:$0xff]
        %v5185 = vld [vmem:[%s5157 + $0xd8] sm:$0xff]
        %v5186 = vld [vmem:[%s5157 + $0xe0] sm:$0xff]
        %v5187 = vld [vmem:[%s5157 + $0xe8] sm:$0xff]
        %v5188 = vld [vmem:[%s5157 + $0xf0] sm:$0xff]
        %v5189 = vld [vmem:[%s5157 + $0xf8] sm:$0xff]
        %v5190 = vld [vmem:[%s5157 + $0x100] sm:$0xff]
        %v5191 = vld [vmem:[%s5157 + $0x108] sm:$0xff]
        %v5192 = vld [vmem:[%s5157 + $0x110] sm:$0xff]
        %v5193 = vld [vmem:[%s5157 + $0x118] sm:$0xff]
        %v5194 = vld [vmem:[%s5157 + $0x120] sm:$0xff]
        %v5195 = vld [vmem:[%s5157 + $0x128] sm:$0xff]
        %v5196 = vld [vmem:[%s5157 + $0x130] sm:$0xff]
        %v5197 = vld [vmem:[%s5157 + $0x138] sm:$0xff]
        %v5198 = vld [vmem:[%s5157 + $0x140] sm:$0xff]
        %v5199 = vld [vmem:[%s5157 + $0x148] sm:$0xff]
        %v5200 = vld [vmem:[%s5157 + $0x150] sm:$0xff]
        %v5201 = vld [vmem:[%s5157 + $0x158] sm:$0xff]
        %v5202 = vld [vmem:[%s5157 + $0x160] sm:$0xff]
        %v5203 = vld [vmem:[%s5157 + $0x168] sm:$0xff]
        %v5204 = vld [vmem:[%s5157 + $0x170] sm:$0xff]
        %v5205 = vld [vmem:[%s5157 + $0x178] sm:$0xff]
        %v5206 = vld [vmem:[%s5157 + $0x180] sm:$0xff]
        %v5207 = vld [vmem:[%s5157 + $0x188] sm:$0xff]
        %v5208 = vld [vmem:[%s5157 + $0x190] sm:$0xff]
        %v5209 = vld [vmem:[%s5157 + $0x198] sm:$0xff]
        %v5210 = vld [vmem:[%s5157 + $0x1a0] sm:$0xff]
        %v5211 = vld [vmem:[%s5157 + $0x1a8] sm:$0xff]
        %v5212 = vld [vmem:[%s5157 + $0x1b0] sm:$0xff]
        %v5213 = vld [vmem:[%s5157 + $0x1b8] sm:$0xff]
        %v5214 = vld [vmem:[%s1447] sm:$0xff]
        %v5215 = vld [vmem:[%s1447 + $0x8] sm:$0xff]
        %v5216 = vld [vmem:[%s1447 + $0x10] sm:$0xff]
        %v5217 = vld [vmem:[%s1447 + $0x18] sm:$0xff]
        %v5218 = vld [vmem:[%s1447 + $0x20] sm:$0xff]
        %v5219 = vld [vmem:[%s1447 + $0x28] sm:$0xff]
        %v5220 = vld [vmem:[%s1447 + $0x30] sm:$0xff]
        %v5221 = vld [vmem:[%s1447 + $0x38] sm:$0xff]
        %v5222 = vld [vmem:[%s1447 + $0x40] sm:$0xff]
        %v5223 = vld [vmem:[%s1447 + $0x48] sm:$0xff]
        %v5224 = vld [vmem:[%s1447 + $0x50] sm:$0xff]
        %v5225 = vld [vmem:[%s1447 + $0x58] sm:$0xff]
        %v5226 = vld [vmem:[%s1447 + $0x60] sm:$0xff]
        %v5227 = vld [vmem:[%s1447 + $0x68] sm:$0xff]
        %v5228 = vld [vmem:[%s1447 + $0x70] sm:$0xff]
        %v5229 = vld [vmem:[%s1447 + $0x78] sm:$0xff]
        %v5230 = vld [vmem:[%s1447 + $0x80] sm:$0xff]
        %v5231 = vld [vmem:[%s1447 + $0x88] sm:$0xff]
        %v5232 = vld [vmem:[%s1447 + $0x90] sm:$0xff]
        %v5233 = vld [vmem:[%s1447 + $0x98] sm:$0xff]
        %v5234 = vld [vmem:[%s1447 + $0xa0] sm:$0xff]
        %v5235 = vld [vmem:[%s1447 + $0xa8] sm:$0xff]
        %v5236 = vld [vmem:[%s1447 + $0xb0] sm:$0xff]
        %v5237 = vld [vmem:[%s1447 + $0xb8] sm:$0xff]
        %v5238 = vld [vmem:[%s1447 + $0xc0] sm:$0xff]
        %v5239 = vld [vmem:[%s1447 + $0xc8] sm:$0xff]
        %v5240 = vld [vmem:[%s1447 + $0xd0] sm:$0xff]
        %v5241 = vld [vmem:[%s1447 + $0xd8] sm:$0xff]
        %v5243 = vsel %vm817, %v5159, 0
        %v5246 = vsel %vm817, %v5161, 0
        %v5249 = vsel %vm817, %v5163, 0
        %v5252 = vsel %vm817, %v5165, 0
        %v5255 = vsel %vm817, %v5167, 0
        %v5258 = vsel %vm817, %v5169, 0
        %v5261 = vsel %vm817, %v5171, 0
        %v5264 = vsel %vm817, %v5173, 0
        %v5267 = vsel %vm817, %v5175, 0
        %v5270 = vsel %vm817, %v5177, 0
        %v5273 = vsel %vm817, %v5179, 0
        %v5276 = vsel %vm817, %v5181, 0
        %v5279 = vsel %vm817, %v5183, 0
        %v5282 = vsel %vm817, %v5185, 0
        %v5285 = vsel %vm817, %v5187, 0
        %v5288 = vsel %vm817, %v5189, 0
        %v5291 = vsel %vm817, %v5191, 0
        %v5294 = vsel %vm817, %v5193, 0
        %v5297 = vsel %vm817, %v5195, 0
        %v5300 = vsel %vm817, %v5197, 0
        %v5303 = vsel %vm817, %v5199, 0
        %v5306 = vsel %vm817, %v5201, 0
        %v5309 = vsel %vm817, %v5203, 0
        %v5312 = vsel %vm817, %v5205, 0
        %v5315 = vsel %vm817, %v5207, 0
        %v5318 = vsel %vm817, %v5209, 0
        %v5321 = vsel %vm817, %v5211, 0
        %v5324 = vsel %vm817, %v5213, 0
        %5326 = vmatpush.msra.mxu0 %v5229
        %5327 = vmatpush.msra.mxu0 %v5228
        %5328 = vmatpush.msra.mxu0 %v5227
        %5329 = vmatpush.msra.mxu0 %v5226
        %5330 = vmatpush.msra.mxu0 %v5225
        %5331 = vmatpush.msra.mxu0 %v5224
        %5332 = vmatpush.msra.mxu0 %v5223
        %5333 = vmatpush.msra.mxu0 %v5222
        %5334 = vmatpush.msra.mxu0 %v5221
        %5335 = vmatpush.msra.mxu0 %v5220
        %5336 = vmatpush.msra.mxu0 %v5219
        %5337 = vmatpush.msra.mxu0 %v5218
        %5338 = vmatpush.msra.mxu0 %v5217
        %5339 = vmatpush.msra.mxu0 %v5216
        %5340 = vmatpush.msra.mxu0 %v5215
        %5341 = vmatpush.msra.mxu0 %v5214
        %5342 = vmatmul.f32.gmra.mxu0 %v5158
        %v5343 = vpop.f32.mrf.mxu0
        %v5344 = vadd.f32 0.0, %v5343
        %5345 = vmatmul.f32.gmra.mxu0 %v5160
        %v5346 = vpop.f32.mrf.mxu0
        %v5347 = vadd.f32 0.0, %v5346
        %5348 = vmatmul.f32.gmra.mxu0 %v5162
        %v5349 = vpop.f32.mrf.mxu0
        %v5350 = vadd.f32 0.0, %v5349
        %5351 = vmatmul.f32.gmra.mxu0 %v5164
        %v5352 = vpop.f32.mrf.mxu0
        %v5353 = vadd.f32 0.0, %v5352
        %5354 = vmatmul.f32.gmra.mxu0 %v5166
        %v5355 = vpop.f32.mrf.mxu0
        %v5356 = vadd.f32 0.0, %v5355
        %5357 = vmatmul.f32.gmra.mxu0 %v5168
        %v5358 = vpop.f32.mrf.mxu0
        %v5359 = vadd.f32 0.0, %v5358
        %5360 = vmatmul.f32.gmra.mxu0 %v5170
        %v5361 = vpop.f32.mrf.mxu0
        %v5362 = vadd.f32 0.0, %v5361
        %5363 = vmatmul.f32.gmra.mxu0 %v5172
        %v5364 = vpop.f32.mrf.mxu0
        %v5365 = vadd.f32 0.0, %v5364
        %5366 = vmatmul.f32.gmra.mxu0 %v5174
        %v5367 = vpop.f32.mrf.mxu0
        %v5368 = vadd.f32 0.0, %v5367
        %5369 = vmatmul.f32.gmra.mxu0 %v5176
        %v5370 = vpop.f32.mrf.mxu0
        %v5371 = vadd.f32 0.0, %v5370
        %5372 = vmatmul.f32.gmra.mxu0 %v5178
        %v5373 = vpop.f32.mrf.mxu0
        %v5374 = vadd.f32 0.0, %v5373
        %5375 = vmatmul.f32.gmra.mxu0 %v5180
        %v5376 = vpop.f32.mrf.mxu0
        %v5377 = vadd.f32 0.0, %v5376
        %5378 = vmatmul.f32.gmra.mxu0 %v5182
        %v5379 = vpop.f32.mrf.mxu0
        %v5380 = vadd.f32 0.0, %v5379
        %5381 = vmatmul.f32.gmra.mxu0 %v5184
        %v5382 = vpop.f32.mrf.mxu0
        %v5383 = vadd.f32 0.0, %v5382
        %5384 = vmatmul.f32.gmra.mxu0 %v5186
        %v5385 = vpop.f32.mrf.mxu0
        %v5386 = vadd.f32 0.0, %v5385
        %5387 = vmatmul.f32.gmra.mxu0 %v5188
        %v5388 = vpop.f32.mrf.mxu0
        %v5389 = vadd.f32 0.0, %v5388
        %5390 = vmatmul.f32.gmra.mxu0 %v5190
        %v5391 = vpop.f32.mrf.mxu0
        %v5392 = vadd.f32 0.0, %v5391
        %5393 = vmatmul.f32.gmra.mxu0 %v5192
        %v5394 = vpop.f32.mrf.mxu0
        %v5395 = vadd.f32 0.0, %v5394
        %5396 = vmatmul.f32.gmra.mxu0 %v5194
        %v5397 = vpop.f32.mrf.mxu0
        %v5398 = vadd.f32 0.0, %v5397
        %5399 = vmatmul.f32.gmra.mxu0 %v5196
        %v5400 = vpop.f32.mrf.mxu0
        %v5401 = vadd.f32 0.0, %v5400
        %5402 = vmatmul.f32.gmra.mxu0 %v5198
        %v5403 = vpop.f32.mrf.mxu0
        %v5404 = vadd.f32 0.0, %v5403
        %5405 = vmatmul.f32.gmra.mxu0 %v5200
        %v5406 = vpop.f32.mrf.mxu0
        %v5407 = vadd.f32 0.0, %v5406
        %5408 = vmatmul.f32.gmra.mxu0 %v5202
        %v5409 = vpop.f32.mrf.mxu0
        %v5410 = vadd.f32 0.0, %v5409
        %5411 = vmatmul.f32.gmra.mxu0 %v5204
        %v5412 = vpop.f32.mrf.mxu0
        %v5413 = vadd.f32 0.0, %v5412
        %5414 = vmatmul.f32.gmra.mxu0 %v5206
        %v5415 = vpop.f32.mrf.mxu0
        %v5416 = vadd.f32 0.0, %v5415
        %5417 = vmatmul.f32.gmra.mxu0 %v5208
        %v5418 = vpop.f32.mrf.mxu0
        %v5419 = vadd.f32 0.0, %v5418
        %5420 = vmatmul.f32.gmra.mxu0 %v5210
        %v5421 = vpop.f32.mrf.mxu0
        %v5422 = vadd.f32 0.0, %v5421
        %5423 = vmatmul.f32.gmra.mxu0 %v5212
        %v5424 = vpop.f32.mrf.mxu0
        %v5425 = vadd.f32 0.0, %v5424
        %5426 = vdwg.mxu0
        %5427 = vmatpush.msra.mxu0 0.0
        %5428 = vmatpush.msra.mxu0 0.0
        %5429 = vmatpush.msra.mxu0 0.0
        %5430 = vmatpush.msra.mxu0 0.0
        %5431 = vmatpush.msra.mxu0 %v5241
        %5432 = vmatpush.msra.mxu0 %v5240
        %5433 = vmatpush.msra.mxu0 %v5239
        %5434 = vmatpush.msra.mxu0 %v5238
        %5435 = vmatpush.msra.mxu0 %v5237
        %5436 = vmatpush.msra.mxu0 %v5236
        %5437 = vmatpush.msra.mxu0 %v5235
        %5438 = vmatpush.msra.mxu0 %v5234
        %5439 = vmatpush.msra.mxu0 %v5233
        %5440 = vmatpush.msra.mxu0 %v5232
        %5441 = vmatpush.msra.mxu0 %v5231
        %5442 = vmatpush.msra.mxu0 %v5230
        %5443 = vmatmul.f32.gmra.mxu0 %v5243
        %v5444 = vpop.f32.mrf.mxu0
        %v5445 = vadd.f32 %v5344, %v5444
        %5446 = vmatmul.f32.gmra.mxu0 %v5246
        %v5447 = vpop.f32.mrf.mxu0
        %v5448 = vadd.f32 %v5347, %v5447
        %5449 = vmatmul.f32.gmra.mxu0 %v5249
        %v5450 = vpop.f32.mrf.mxu0
        %v5451 = vadd.f32 %v5350, %v5450
        %5452 = vmatmul.f32.gmra.mxu0 %v5252
        %v5453 = vpop.f32.mrf.mxu0
        %v5454 = vadd.f32 %v5353, %v5453
        %5455 = vmatmul.f32.gmra.mxu0 %v5255
        %v5456 = vpop.f32.mrf.mxu0
        %v5457 = vadd.f32 %v5356, %v5456
        %5458 = vmatmul.f32.gmra.mxu0 %v5258
        %v5459 = vpop.f32.mrf.mxu0
        %v5460 = vadd.f32 %v5359, %v5459
        %5461 = vmatmul.f32.gmra.mxu0 %v5261
        %v5462 = vpop.f32.mrf.mxu0
        %v5463 = vadd.f32 %v5362, %v5462
        %5464 = vmatmul.f32.gmra.mxu0 %v5264
        %v5465 = vpop.f32.mrf.mxu0
        %v5466 = vadd.f32 %v5365, %v5465
        %5467 = vmatmul.f32.gmra.mxu0 %v5267
        %v5468 = vpop.f32.mrf.mxu0
        %v5469 = vadd.f32 %v5368, %v5468
        %5470 = vmatmul.f32.gmra.mxu0 %v5270
        %v5471 = vpop.f32.mrf.mxu0
        %v5472 = vadd.f32 %v5371, %v5471
        %5473 = vmatmul.f32.gmra.mxu0 %v5273
        %v5474 = vpop.f32.mrf.mxu0
        %v5475 = vadd.f32 %v5374, %v5474
        %5476 = vmatmul.f32.gmra.mxu0 %v5276
        %v5477 = vpop.f32.mrf.mxu0
        %v5478 = vadd.f32 %v5377, %v5477
        %5479 = vmatmul.f32.gmra.mxu0 %v5279
        %v5480 = vpop.f32.mrf.mxu0
        %v5481 = vadd.f32 %v5380, %v5480
        %5482 = vmatmul.f32.gmra.mxu0 %v5282
        %v5483 = vpop.f32.mrf.mxu0
        %v5484 = vadd.f32 %v5383, %v5483
        %5485 = vmatmul.f32.gmra.mxu0 %v5285
        %v5486 = vpop.f32.mrf.mxu0
        %v5487 = vadd.f32 %v5386, %v5486
        %5488 = vmatmul.f32.gmra.mxu0 %v5288
        %v5489 = vpop.f32.mrf.mxu0
        %v5490 = vadd.f32 %v5389, %v5489
        %5491 = vmatmul.f32.gmra.mxu0 %v5291
        %v5492 = vpop.f32.mrf.mxu0
        %v5493 = vadd.f32 %v5392, %v5492
        %5494 = vmatmul.f32.gmra.mxu0 %v5294
        %v5495 = vpop.f32.mrf.mxu0
        %v5496 = vadd.f32 %v5395, %v5495
        %5497 = vmatmul.f32.gmra.mxu0 %v5297
        %v5498 = vpop.f32.mrf.mxu0
        %v5499 = vadd.f32 %v5398, %v5498
        %5500 = vmatmul.f32.gmra.mxu0 %v5300
        %v5501 = vpop.f32.mrf.mxu0
        %v5502 = vadd.f32 %v5401, %v5501
        %5503 = vmatmul.f32.gmra.mxu0 %v5303
        %v5504 = vpop.f32.mrf.mxu0
        %v5505 = vadd.f32 %v5404, %v5504
        %5506 = vmatmul.f32.gmra.mxu0 %v5306
        %v5507 = vpop.f32.mrf.mxu0
        %v5508 = vadd.f32 %v5407, %v5507
        %5509 = vmatmul.f32.gmra.mxu0 %v5309
        %v5510 = vpop.f32.mrf.mxu0
        %v5511 = vadd.f32 %v5410, %v5510
        %5512 = vmatmul.f32.gmra.mxu0 %v5312
        %v5513 = vpop.f32.mrf.mxu0
        %v5514 = vadd.f32 %v5413, %v5513
        %5515 = vmatmul.f32.gmra.mxu0 %v5315
        %v5516 = vpop.f32.mrf.mxu0
        %v5517 = vadd.f32 %v5416, %v5516
        %5518 = vmatmul.f32.gmra.mxu0 %v5318
        %v5519 = vpop.f32.mrf.mxu0
        %v5520 = vadd.f32 %v5419, %v5519
        %5521 = vmatmul.f32.gmra.mxu0 %v5321
        %v5522 = vpop.f32.mrf.mxu0
        %v5523 = vadd.f32 %v5422, %v5522
        %5524 = vmatmul.f32.gmra.mxu0 %v5324
        %v5525 = vpop.f32.mrf.mxu0
        %v5526 = vadd.f32 %v5425, %v5525
        %5527 = vdwg.mxu0
        %v5528 = vadd.f32 %v5074, %v5445
        %v5529 = vadd.f32 %v5077, %v5448
        %v5530 = vadd.f32 %v5080, %v5451
        %v5531 = vadd.f32 %v5083, %v5454
        %v5532 = vadd.f32 %v5086, %v5457
        %v5533 = vadd.f32 %v5089, %v5460
        %v5534 = vadd.f32 %v5092, %v5463
        %v5535 = vadd.f32 %v5095, %v5466
        %v5536 = vadd.f32 %v5098, %v5469
        %v5537 = vadd.f32 %v5101, %v5472
        %v5538 = vadd.f32 %v5104, %v5475
        %v5539 = vadd.f32 %v5107, %v5478
        %v5540 = vadd.f32 %v5110, %v5481
        %v5541 = vadd.f32 %v5113, %v5484
        %v5542 = vadd.f32 %v5116, %v5487
        %v5543 = vadd.f32 %v5119, %v5490
        %v5544 = vadd.f32 %v5122, %v5493
        %v5545 = vadd.f32 %v5125, %v5496
        %v5546 = vadd.f32 %v5128, %v5499
        %v5547 = vadd.f32 %v5131, %v5502
        %v5548 = vadd.f32 %v5134, %v5505
        %v5549 = vadd.f32 %v5137, %v5508
        %v5550 = vadd.f32 %v5140, %v5511
        %v5551 = vadd.f32 %v5143, %v5514
        %v5552 = vadd.f32 %v5146, %v5517
        %v5553 = vadd.f32 %v5149, %v5520
        %v5554 = vadd.f32 %v5152, %v5523
        %v5555 = vadd.f32 %v5155, %v5526
        %v5556 = vld [vmem:[#allocation7] sm:$0x1]
        %v5558 = vperm.slane %v5556, 0
        %v5560 = vadd.f32 %v5528, %v5558
        %v5561 = vadd.f32 %v5529, %v5558
        %v5562 = vadd.f32 %v5530, %v5558
        %v5563 = vadd.f32 %v5531, %v5558
        %v5564 = vadd.f32 %v5532, %v5558
        %v5565 = vadd.f32 %v5533, %v5558
        %v5566 = vadd.f32 %v5534, %v5558
        %v5567 = vadd.f32 %v5535, %v5558
        %v5568 = vadd.f32 %v5536, %v5558
        %v5569 = vadd.f32 %v5537, %v5558
        %v5570 = vadd.f32 %v5538, %v5558
        %v5571 = vadd.f32 %v5539, %v5558
        %v5572 = vadd.f32 %v5540, %v5558
        %v5573 = vadd.f32 %v5541, %v5558
        %v5574 = vadd.f32 %v5542, %v5558
        %v5575 = vadd.f32 %v5543, %v5558
        %v5576 = vadd.f32 %v5544, %v5558
        %v5577 = vadd.f32 %v5545, %v5558
        %v5578 = vadd.f32 %v5546, %v5558
        %v5579 = vadd.f32 %v5547, %v5558
        %v5580 = vadd.f32 %v5548, %v5558
        %v5581 = vadd.f32 %v5549, %v5558
        %v5582 = vadd.f32 %v5550, %v5558
        %v5583 = vadd.f32 %v5551, %v5558
        %v5584 = vadd.f32 %v5552, %v5558
        %v5585 = vadd.f32 %v5553, %v5558
        %v5586 = vadd.f32 %v5554, %v5558
        %v5587 = vadd.f32 %v5555, %v5558
        %v5588 = vmax.f32 %v5560, 0.0
        %v5589 = vmax.f32 %v5561, 0.0
        %v5590 = vmax.f32 %v5562, 0.0
        %v5591 = vmax.f32 %v5563, 0.0
        %v5592 = vmax.f32 %v5564, 0.0
        %v5593 = vmax.f32 %v5565, 0.0
        %v5594 = vmax.f32 %v5566, 0.0
        %v5595 = vmax.f32 %v5567, 0.0
        %v5596 = vmax.f32 %v5568, 0.0
        %v5597 = vmax.f32 %v5569, 0.0
        %v5598 = vmax.f32 %v5570, 0.0
        %v5599 = vmax.f32 %v5571, 0.0
        %v5600 = vmax.f32 %v5572, 0.0
        %v5601 = vmax.f32 %v5573, 0.0
        %v5602 = vmax.f32 %v5574, 0.0
        %v5603 = vmax.f32 %v5575, 0.0
        %v5604 = vmax.f32 %v5576, 0.0
        %v5605 = vmax.f32 %v5577, 0.0
        %v5606 = vmax.f32 %v5578, 0.0
        %v5607 = vmax.f32 %v5579, 0.0
        %v5608 = vmax.f32 %v5580, 0.0
        %v5609 = vmax.f32 %v5581, 0.0
        %v5610 = vmax.f32 %v5582, 0.0
        %v5611 = vmax.f32 %v5583, 0.0
        %v5612 = vmax.f32 %v5584, 0.0
        %v5613 = vmax.f32 %v5585, 0.0
        %v5614 = vmax.f32 %v5586, 0.0
        %v5615 = vmax.f32 %v5587, 0.0
        %v5616 = vsel %vm1850, %v5588, 0.0
        %v5617 = vsel %vm1850, %v5589, 0.0
        %v5618 = vadd.f32 %v5616, %v5617
        %v5619 = vsel %vm1850, %v5590, 0.0
        %v5620 = vadd.f32 %v5618, %v5619
        %v5621 = vsel %vm1850, %v5591, 0.0
        %v5622 = vadd.f32 %v5620, %v5621
        %v5623 = vsel %vm1850, %v5592, 0.0
        %v5624 = vadd.f32 %v5622, %v5623
        %v5625 = vsel %vm1850, %v5593, 0.0
        %v5626 = vadd.f32 %v5624, %v5625
        %v5627 = vsel %vm1850, %v5594, 0.0
        %v5628 = vadd.f32 %v5626, %v5627
        %v5629 = vsel %vm1850, %v5595, 0.0
        %v5630 = vadd.f32 %v5628, %v5629
        %v5631 = vsel %vm1850, %v5596, 0.0
        %v5632 = vadd.f32 %v5630, %v5631
        %v5633 = vsel %vm1850, %v5597, 0.0
        %v5634 = vadd.f32 %v5632, %v5633
        %v5635 = vsel %vm1850, %v5598, 0.0
        %v5636 = vadd.f32 %v5634, %v5635
        %v5637 = vsel %vm1850, %v5599, 0.0
        %v5638 = vadd.f32 %v5636, %v5637
        %v5639 = vsel %vm1850, %v5600, 0.0
        %v5640 = vadd.f32 %v5638, %v5639
        %v5641 = vsel %vm1850, %v5601, 0.0
        %v5642 = vadd.f32 %v5640, %v5641
        %v5643 = vsel %vm1850, %v5602, 0.0
        %v5644 = vadd.f32 %v5642, %v5643
        %v5645 = vsel %vm1850, %v5603, 0.0
        %v5646 = vadd.f32 %v5644, %v5645
        %v5647 = vsel %vm1850, %v5604, 0.0
        %v5648 = vadd.f32 %v5646, %v5647
        %v5649 = vsel %vm1850, %v5605, 0.0
        %v5650 = vadd.f32 %v5648, %v5649
        %v5651 = vsel %vm1850, %v5606, 0.0
        %v5652 = vadd.f32 %v5650, %v5651
        %v5653 = vsel %vm1850, %v5607, 0.0
        %v5654 = vadd.f32 %v5652, %v5653
        %v5655 = vsel %vm1850, %v5608, 0.0
        %v5656 = vadd.f32 %v5654, %v5655
        %v5657 = vsel %vm1850, %v5609, 0.0
        %v5658 = vadd.f32 %v5656, %v5657
        %v5659 = vsel %vm1850, %v5610, 0.0
        %v5660 = vadd.f32 %v5658, %v5659
        %v5661 = vsel %vm1850, %v5611, 0.0
        %v5662 = vadd.f32 %v5660, %v5661
        %v5663 = vsel %vm1850, %v5612, 0.0
        %v5664 = vadd.f32 %v5662, %v5663
        %v5665 = vsel %vm1850, %v5613, 0.0
        %v5666 = vadd.f32 %v5664, %v5665
        %v5667 = vsel %vm1850, %v5614, 0.0
        %v5668 = vadd.f32 %v5666, %v5667
        %v5669 = vsel %vm1850, %v5615, 0.0
        %v5670 = vadd.f32 %v5668, %v5669
        %v5671 = vrot.slane %v5670, 4
        %v5672 = vadd.f32 %v5670, %v5671
        %v5673 = vrot.slane %v5672, 2
        %v5674 = vadd.f32 %v5672, %v5673
        %v5675 = vrot.slane %v5674, 1
        %v5676 = vadd.f32 %v5674, %v5675
        %v5677 = vmul.f32 %v5676, %v1918
        %s5678 = scalar_lea.vmem %s384, 1344 [#allocation5]
        %v5679 = vld [vmem:[%s5678] sm:$0xff]
        %v5680 = vld [vmem:[%s5678 + $0x8] sm:$0xff]
        %v5681 = vld [vmem:[%s5678 + $0x10] sm:$0xff]
        %v5682 = vld [vmem:[%s5678 + $0x18] sm:$0xff]
        %v5683 = vld [vmem:[%s5678 + $0x20] sm:$0xff]
        %v5684 = vld [vmem:[%s5678 + $0x28] sm:$0xff]
        %v5685 = vld [vmem:[%s5678 + $0x30] sm:$0xff]
        %v5686 = vld [vmem:[%s5678 + $0x38] sm:$0xff]
        %v5687 = vld [vmem:[%s5678 + $0x40] sm:$0xff]
        %v5688 = vld [vmem:[%s5678 + $0x48] sm:$0xff]
        %v5689 = vld [vmem:[%s5678 + $0x50] sm:$0xff]
        %v5690 = vld [vmem:[%s5678 + $0x58] sm:$0xff]
        %v5691 = vld [vmem:[%s5678 + $0x60] sm:$0xff]
        %v5692 = vld [vmem:[%s5678 + $0x68] sm:$0xff]
        %v5693 = vld [vmem:[%s5678 + $0x70] sm:$0xff]
        %v5694 = vld [vmem:[%s5678 + $0x78] sm:$0xff]
        %v5695 = vld [vmem:[%s5678 + $0x80] sm:$0xff]
        %v5696 = vld [vmem:[%s5678 + $0x88] sm:$0xff]
        %v5697 = vld [vmem:[%s5678 + $0x90] sm:$0xff]
        %v5698 = vld [vmem:[%s5678 + $0x98] sm:$0xff]
        %v5699 = vld [vmem:[%s5678 + $0xa0] sm:$0xff]
        %v5700 = vld [vmem:[%s5678 + $0xa8] sm:$0xff]
        %v5701 = vld [vmem:[%s5678 + $0xb0] sm:$0xff]
        %v5702 = vld [vmem:[%s5678 + $0xb8] sm:$0xff]
        %v5703 = vld [vmem:[%s5678 + $0xc0] sm:$0xff]
        %v5704 = vld [vmem:[%s5678 + $0xc8] sm:$0xff]
        %v5705 = vld [vmem:[%s5678 + $0xd0] sm:$0xff]
        %v5706 = vld [vmem:[%s5678 + $0xd8] sm:$0xff]
        %v5707 = vld [vmem:[%s5678 + $0xe0] sm:$0xff]
        %v5708 = vld [vmem:[%s5678 + $0xe8] sm:$0xff]
        %v5709 = vld [vmem:[%s5678 + $0xf0] sm:$0xff]
        %v5710 = vld [vmem:[%s5678 + $0xf8] sm:$0xff]
        %v5711 = vld [vmem:[%s5678 + $0x100] sm:$0xff]
        %v5712 = vld [vmem:[%s5678 + $0x108] sm:$0xff]
        %v5713 = vld [vmem:[%s5678 + $0x110] sm:$0xff]
        %v5714 = vld [vmem:[%s5678 + $0x118] sm:$0xff]
        %v5715 = vld [vmem:[%s5678 + $0x120] sm:$0xff]
        %v5716 = vld [vmem:[%s5678 + $0x128] sm:$0xff]
        %v5717 = vld [vmem:[%s5678 + $0x130] sm:$0xff]
        %v5718 = vld [vmem:[%s5678 + $0x138] sm:$0xff]
        %v5719 = vld [vmem:[%s5678 + $0x140] sm:$0xff]
        %v5720 = vld [vmem:[%s5678 + $0x148] sm:$0xff]
        %v5721 = vld [vmem:[%s5678 + $0x150] sm:$0xff]
        %v5722 = vld [vmem:[%s5678 + $0x158] sm:$0xff]
        %v5723 = vld [vmem:[%s5678 + $0x160] sm:$0xff]
        %v5724 = vld [vmem:[%s5678 + $0x168] sm:$0xff]
        %v5725 = vld [vmem:[%s5678 + $0x170] sm:$0xff]
        %v5726 = vld [vmem:[%s5678 + $0x178] sm:$0xff]
        %v5727 = vld [vmem:[%s5678 + $0x180] sm:$0xff]
        %v5728 = vld [vmem:[%s5678 + $0x188] sm:$0xff]
        %v5729 = vld [vmem:[%s5678 + $0x190] sm:$0xff]
        %v5730 = vld [vmem:[%s5678 + $0x198] sm:$0xff]
        %v5731 = vld [vmem:[%s5678 + $0x1a0] sm:$0xff]
        %v5732 = vld [vmem:[%s5678 + $0x1a8] sm:$0xff]
        %v5733 = vld [vmem:[%s5678 + $0x1b0] sm:$0xff]
        %v5734 = vld [vmem:[%s5678 + $0x1b8] sm:$0xff]
        %v5735 = vld [vmem:[%s4] sm:$0xff]
        %v5736 = vld [vmem:[%s4 + $0x8] sm:$0xff]
        %v5737 = vld [vmem:[%s4 + $0x10] sm:$0xff]
        %v5738 = vld [vmem:[%s4 + $0x18] sm:$0xff]
        %v5739 = vld [vmem:[%s4 + $0x20] sm:$0xff]
        %v5740 = vld [vmem:[%s4 + $0x28] sm:$0xff]
        %v5741 = vld [vmem:[%s4 + $0x30] sm:$0xff]
        %v5742 = vld [vmem:[%s4 + $0x38] sm:$0xff]
        %v5743 = vld [vmem:[%s4 + $0x40] sm:$0xff]
        %v5744 = vld [vmem:[%s4 + $0x48] sm:$0xff]
        %v5745 = vld [vmem:[%s4 + $0x50] sm:$0xff]
        %v5746 = vld [vmem:[%s4 + $0x58] sm:$0xff]
        %v5747 = vld [vmem:[%s4 + $0x60] sm:$0xff]
        %v5748 = vld [vmem:[%s4 + $0x68] sm:$0xff]
        %v5749 = vld [vmem:[%s4 + $0x70] sm:$0xff]
        %v5750 = vld [vmem:[%s4 + $0x78] sm:$0xff]
        %v5751 = vld [vmem:[%s4 + $0x80] sm:$0xff]
        %v5752 = vld [vmem:[%s4 + $0x88] sm:$0xff]
        %v5753 = vld [vmem:[%s4 + $0x90] sm:$0xff]
        %v5754 = vld [vmem:[%s4 + $0x98] sm:$0xff]
        %v5755 = vld [vmem:[%s4 + $0xa0] sm:$0xff]
        %v5756 = vld [vmem:[%s4 + $0xa8] sm:$0xff]
        %v5757 = vld [vmem:[%s4 + $0xb0] sm:$0xff]
        %v5758 = vld [vmem:[%s4 + $0xb8] sm:$0xff]
        %v5759 = vld [vmem:[%s4 + $0xc0] sm:$0xff]
        %v5760 = vld [vmem:[%s4 + $0xc8] sm:$0xff]
        %v5761 = vld [vmem:[%s4 + $0xd0] sm:$0xff]
        %v5762 = vld [vmem:[%s4 + $0xd8] sm:$0xff]
        %s5763 = scalar_lea.vmem %s384, 1792 [#allocation5]
        %v5764 = vld [vmem:[%s5763] sm:$0xff]
        %v5765 = vld [vmem:[%s5763 + $0x8] sm:$0xff]
        %v5766 = vld [vmem:[%s5763 + $0x10] sm:$0xff]
        %v5767 = vld [vmem:[%s5763 + $0x18] sm:$0xff]
        %v5768 = vld [vmem:[%s5763 + $0x20] sm:$0xff]
        %v5769 = vld [vmem:[%s5763 + $0x28] sm:$0xff]
        %v5770 = vld [vmem:[%s5763 + $0x30] sm:$0xff]
        %v5771 = vld [vmem:[%s5763 + $0x38] sm:$0xff]
        %v5772 = vld [vmem:[%s5763 + $0x40] sm:$0xff]
        %v5773 = vld [vmem:[%s5763 + $0x48] sm:$0xff]
        %v5774 = vld [vmem:[%s5763 + $0x50] sm:$0xff]
        %v5775 = vld [vmem:[%s5763 + $0x58] sm:$0xff]
        %v5776 = vld [vmem:[%s5763 + $0x60] sm:$0xff]
        %v5777 = vld [vmem:[%s5763 + $0x68] sm:$0xff]
        %v5778 = vld [vmem:[%s5763 + $0x70] sm:$0xff]
        %v5779 = vld [vmem:[%s5763 + $0x78] sm:$0xff]
        %v5780 = vld [vmem:[%s5763 + $0x80] sm:$0xff]
        %v5781 = vld [vmem:[%s5763 + $0x88] sm:$0xff]
        %v5782 = vld [vmem:[%s5763 + $0x90] sm:$0xff]
        %v5783 = vld [vmem:[%s5763 + $0x98] sm:$0xff]
        %v5784 = vld [vmem:[%s5763 + $0xa0] sm:$0xff]
        %v5785 = vld [vmem:[%s5763 + $0xa8] sm:$0xff]
        %v5786 = vld [vmem:[%s5763 + $0xb0] sm:$0xff]
        %v5787 = vld [vmem:[%s5763 + $0xb8] sm:$0xff]
        %v5788 = vld [vmem:[%s5763 + $0xc0] sm:$0xff]
        %v5789 = vld [vmem:[%s5763 + $0xc8] sm:$0xff]
        %v5790 = vld [vmem:[%s5763 + $0xd0] sm:$0xff]
        %v5791 = vld [vmem:[%s5763 + $0xd8] sm:$0xff]
        %v5792 = vld [vmem:[%s5763 + $0xe0] sm:$0xff]
        %v5793 = vld [vmem:[%s5763 + $0xe8] sm:$0xff]
        %v5794 = vld [vmem:[%s5763 + $0xf0] sm:$0xff]
        %v5795 = vld [vmem:[%s5763 + $0xf8] sm:$0xff]
        %v5796 = vld [vmem:[%s5763 + $0x100] sm:$0xff]
        %v5797 = vld [vmem:[%s5763 + $0x108] sm:$0xff]
        %v5798 = vld [vmem:[%s5763 + $0x110] sm:$0xff]
        %v5799 = vld [vmem:[%s5763 + $0x118] sm:$0xff]
        %v5800 = vld [vmem:[%s5763 + $0x120] sm:$0xff]
        %v5801 = vld [vmem:[%s5763 + $0x128] sm:$0xff]
        %v5802 = vld [vmem:[%s5763 + $0x130] sm:$0xff]
        %v5803 = vld [vmem:[%s5763 + $0x138] sm:$0xff]
        %v5804 = vld [vmem:[%s5763 + $0x140] sm:$0xff]
        %v5805 = vld [vmem:[%s5763 + $0x148] sm:$0xff]
        %v5806 = vld [vmem:[%s5763 + $0x150] sm:$0xff]
        %v5807 = vld [vmem:[%s5763 + $0x158] sm:$0xff]
        %v5808 = vld [vmem:[%s5763 + $0x160] sm:$0xff]
        %v5809 = vld [vmem:[%s5763 + $0x168] sm:$0xff]
        %v5810 = vld [vmem:[%s5763 + $0x170] sm:$0xff]
        %v5811 = vld [vmem:[%s5763 + $0x178] sm:$0xff]
        %v5812 = vld [vmem:[%s5763 + $0x180] sm:$0xff]
        %v5813 = vld [vmem:[%s5763 + $0x188] sm:$0xff]
        %v5814 = vld [vmem:[%s5763 + $0x190] sm:$0xff]
        %v5815 = vld [vmem:[%s5763 + $0x198] sm:$0xff]
        %v5816 = vld [vmem:[%s5763 + $0x1a0] sm:$0xff]
        %v5817 = vld [vmem:[%s5763 + $0x1a8] sm:$0xff]
        %v5818 = vld [vmem:[%s5763 + $0x1b0] sm:$0xff]
        %v5819 = vld [vmem:[%s5763 + $0x1b8] sm:$0xff]
        %v5820 = vld [vmem:[%s2061] sm:$0xff]
        %v5821 = vld [vmem:[%s2061 + $0x8] sm:$0xff]
        %v5822 = vld [vmem:[%s2061 + $0x10] sm:$0xff]
        %v5823 = vld [vmem:[%s2061 + $0x18] sm:$0xff]
        %v5824 = vld [vmem:[%s2061 + $0x20] sm:$0xff]
        %v5825 = vld [vmem:[%s2061 + $0x28] sm:$0xff]
        %v5826 = vld [vmem:[%s2061 + $0x30] sm:$0xff]
        %v5827 = vld [vmem:[%s2061 + $0x38] sm:$0xff]
        %v5828 = vld [vmem:[%s2061 + $0x40] sm:$0xff]
        %v5829 = vld [vmem:[%s2061 + $0x48] sm:$0xff]
        %v5830 = vld [vmem:[%s2061 + $0x50] sm:$0xff]
        %v5831 = vld [vmem:[%s2061 + $0x58] sm:$0xff]
        %v5832 = vld [vmem:[%s2061 + $0x60] sm:$0xff]
        %v5833 = vld [vmem:[%s2061 + $0x68] sm:$0xff]
        %v5834 = vld [vmem:[%s2061 + $0x70] sm:$0xff]
        %v5835 = vld [vmem:[%s2061 + $0x78] sm:$0xff]
        %v5836 = vld [vmem:[%s2061 + $0x80] sm:$0xff]
        %v5837 = vld [vmem:[%s2061 + $0x88] sm:$0xff]
        %v5838 = vld [vmem:[%s2061 + $0x90] sm:$0xff]
        %v5839 = vld [vmem:[%s2061 + $0x98] sm:$0xff]
        %v5840 = vld [vmem:[%s2061 + $0xa0] sm:$0xff]
        %v5841 = vld [vmem:[%s2061 + $0xa8] sm:$0xff]
        %v5842 = vld [vmem:[%s2061 + $0xb0] sm:$0xff]
        %v5843 = vld [vmem:[%s2061 + $0xb8] sm:$0xff]
        %v5844 = vld [vmem:[%s2061 + $0xc0] sm:$0xff]
        %v5845 = vld [vmem:[%s2061 + $0xc8] sm:$0xff]
        %v5846 = vld [vmem:[%s2061 + $0xd0] sm:$0xff]
        %v5847 = vld [vmem:[%s2061 + $0xd8] sm:$0xff]
        %v5849 = vsel %vm817, %v5765, 0
        %v5852 = vsel %vm817, %v5767, 0
        %v5855 = vsel %vm817, %v5769, 0
        %v5858 = vsel %vm817, %v5771, 0
        %v5861 = vsel %vm817, %v5773, 0
        %v5864 = vsel %vm817, %v5775, 0
        %v5867 = vsel %vm817, %v5777, 0
        %v5870 = vsel %vm817, %v5779, 0
        %v5873 = vsel %vm817, %v5781, 0
        %v5876 = vsel %vm817, %v5783, 0
        %v5879 = vsel %vm817, %v5785, 0
        %v5882 = vsel %vm817, %v5787, 0
        %v5885 = vsel %vm817, %v5789, 0
        %v5888 = vsel %vm817, %v5791, 0
        %v5891 = vsel %vm817, %v5793, 0
        %v5894 = vsel %vm817, %v5795, 0
        %v5897 = vsel %vm817, %v5797, 0
        %v5900 = vsel %vm817, %v5799, 0
        %v5903 = vsel %vm817, %v5801, 0
        %v5906 = vsel %vm817, %v5803, 0
        %v5909 = vsel %vm817, %v5805, 0
        %v5912 = vsel %vm817, %v5807, 0
        %v5915 = vsel %vm817, %v5809, 0
        %v5918 = vsel %vm817, %v5811, 0
        %v5921 = vsel %vm817, %v5813, 0
        %v5924 = vsel %vm817, %v5815, 0
        %v5927 = vsel %vm817, %v5817, 0
        %v5930 = vsel %vm817, %v5819, 0
        %5932 = vmatpush.msra.mxu0 %v5835
        %5933 = vmatpush.msra.mxu0 %v5834
        %5934 = vmatpush.msra.mxu0 %v5833
        %5935 = vmatpush.msra.mxu0 %v5832
        %5936 = vmatpush.msra.mxu0 %v5831
        %5937 = vmatpush.msra.mxu0 %v5830
        %5938 = vmatpush.msra.mxu0 %v5829
        %5939 = vmatpush.msra.mxu0 %v5828
        %5940 = vmatpush.msra.mxu0 %v5827
        %5941 = vmatpush.msra.mxu0 %v5826
        %5942 = vmatpush.msra.mxu0 %v5825
        %5943 = vmatpush.msra.mxu0 %v5824
        %5944 = vmatpush.msra.mxu0 %v5823
        %5945 = vmatpush.msra.mxu0 %v5822
        %5946 = vmatpush.msra.mxu0 %v5821
        %5947 = vmatpush.msra.mxu0 %v5820
        %5948 = vmatmul.f32.gmra.mxu0 %v5764
        %v5949 = vpop.f32.mrf.mxu0
        %v5950 = vadd.f32 0.0, %v5949
        %5951 = vmatmul.f32.gmra.mxu0 %v5766
        %v5952 = vpop.f32.mrf.mxu0
        %v5953 = vadd.f32 0.0, %v5952
        %5954 = vmatmul.f32.gmra.mxu0 %v5768
        %v5955 = vpop.f32.mrf.mxu0
        %v5956 = vadd.f32 0.0, %v5955
        %5957 = vmatmul.f32.gmra.mxu0 %v5770
        %v5958 = vpop.f32.mrf.mxu0
        %v5959 = vadd.f32 0.0, %v5958
        %5960 = vmatmul.f32.gmra.mxu0 %v5772
        %v5961 = vpop.f32.mrf.mxu0
        %v5962 = vadd.f32 0.0, %v5961
        %5963 = vmatmul.f32.gmra.mxu0 %v5774
        %v5964 = vpop.f32.mrf.mxu0
        %v5965 = vadd.f32 0.0, %v5964
        %5966 = vmatmul.f32.gmra.mxu0 %v5776
        %v5967 = vpop.f32.mrf.mxu0
        %v5968 = vadd.f32 0.0, %v5967
        %5969 = vmatmul.f32.gmra.mxu0 %v5778
        %v5970 = vpop.f32.mrf.mxu0
        %v5971 = vadd.f32 0.0, %v5970
        %5972 = vmatmul.f32.gmra.mxu0 %v5780
        %v5973 = vpop.f32.mrf.mxu0
        %v5974 = vadd.f32 0.0, %v5973
        %5975 = vmatmul.f32.gmra.mxu0 %v5782
        %v5976 = vpop.f32.mrf.mxu0
        %v5977 = vadd.f32 0.0, %v5976
        %5978 = vmatmul.f32.gmra.mxu0 %v5784
        %v5979 = vpop.f32.mrf.mxu0
        %v5980 = vadd.f32 0.0, %v5979
        %5981 = vmatmul.f32.gmra.mxu0 %v5786
        %v5982 = vpop.f32.mrf.mxu0
        %v5983 = vadd.f32 0.0, %v5982
        %5984 = vmatmul.f32.gmra.mxu0 %v5788
        %v5985 = vpop.f32.mrf.mxu0
        %v5986 = vadd.f32 0.0, %v5985
        %5987 = vmatmul.f32.gmra.mxu0 %v5790
        %v5988 = vpop.f32.mrf.mxu0
        %v5989 = vadd.f32 0.0, %v5988
        %5990 = vmatmul.f32.gmra.mxu0 %v5792
        %v5991 = vpop.f32.mrf.mxu0
        %v5992 = vadd.f32 0.0, %v5991
        %5993 = vmatmul.f32.gmra.mxu0 %v5794
        %v5994 = vpop.f32.mrf.mxu0
        %v5995 = vadd.f32 0.0, %v5994
        %5996 = vmatmul.f32.gmra.mxu0 %v5796
        %v5997 = vpop.f32.mrf.mxu0
        %v5998 = vadd.f32 0.0, %v5997
        %5999 = vmatmul.f32.gmra.mxu0 %v5798
        %v6000 = vpop.f32.mrf.mxu0
        %v6001 = vadd.f32 0.0, %v6000
        %6002 = vmatmul.f32.gmra.mxu0 %v5800
        %v6003 = vpop.f32.mrf.mxu0
        %v6004 = vadd.f32 0.0, %v6003
        %6005 = vmatmul.f32.gmra.mxu0 %v5802
        %v6006 = vpop.f32.mrf.mxu0
        %v6007 = vadd.f32 0.0, %v6006
        %6008 = vmatmul.f32.gmra.mxu0 %v5804
        %v6009 = vpop.f32.mrf.mxu0
        %v6010 = vadd.f32 0.0, %v6009
        %6011 = vmatmul.f32.gmra.mxu0 %v5806
        %v6012 = vpop.f32.mrf.mxu0
        %v6013 = vadd.f32 0.0, %v6012
        %6014 = vmatmul.f32.gmra.mxu0 %v5808
        %v6015 = vpop.f32.mrf.mxu0
        %v6016 = vadd.f32 0.0, %v6015
        %6017 = vmatmul.f32.gmra.mxu0 %v5810
        %v6018 = vpop.f32.mrf.mxu0
        %v6019 = vadd.f32 0.0, %v6018
        %6020 = vmatmul.f32.gmra.mxu0 %v5812
        %v6021 = vpop.f32.mrf.mxu0
        %v6022 = vadd.f32 0.0, %v6021
        %6023 = vmatmul.f32.gmra.mxu0 %v5814
        %v6024 = vpop.f32.mrf.mxu0
        %v6025 = vadd.f32 0.0, %v6024
        %6026 = vmatmul.f32.gmra.mxu0 %v5816
        %v6027 = vpop.f32.mrf.mxu0
        %v6028 = vadd.f32 0.0, %v6027
        %6029 = vmatmul.f32.gmra.mxu0 %v5818
        %v6030 = vpop.f32.mrf.mxu0
        %v6031 = vadd.f32 0.0, %v6030
        %6032 = vdwg.mxu0
        %6033 = vmatpush.msra.mxu0 0.0
        %6034 = vmatpush.msra.mxu0 0.0
        %6035 = vmatpush.msra.mxu0 0.0
        %6036 = vmatpush.msra.mxu0 0.0
        %6037 = vmatpush.msra.mxu0 %v5847
        %6038 = vmatpush.msra.mxu0 %v5846
        %6039 = vmatpush.msra.mxu0 %v5845
        %6040 = vmatpush.msra.mxu0 %v5844
        %6041 = vmatpush.msra.mxu0 %v5843
        %6042 = vmatpush.msra.mxu0 %v5842
        %6043 = vmatpush.msra.mxu0 %v5841
        %6044 = vmatpush.msra.mxu0 %v5840
        %6045 = vmatpush.msra.mxu0 %v5839
        %6046 = vmatpush.msra.mxu0 %v5838
        %6047 = vmatpush.msra.mxu0 %v5837
        %6048 = vmatpush.msra.mxu0 %v5836
        %6049 = vmatmul.f32.gmra.mxu0 %v5849
        %v6050 = vpop.f32.mrf.mxu0
        %v6051 = vadd.f32 %v5950, %v6050
        %6052 = vmatmul.f32.gmra.mxu0 %v5852
        %v6053 = vpop.f32.mrf.mxu0
        %v6054 = vadd.f32 %v5953, %v6053
        %6055 = vmatmul.f32.gmra.mxu0 %v5855
        %v6056 = vpop.f32.mrf.mxu0
        %v6057 = vadd.f32 %v5956, %v6056
        %6058 = vmatmul.f32.gmra.mxu0 %v5858
        %v6059 = vpop.f32.mrf.mxu0
        %v6060 = vadd.f32 %v5959, %v6059
        %6061 = vmatmul.f32.gmra.mxu0 %v5861
        %v6062 = vpop.f32.mrf.mxu0
        %v6063 = vadd.f32 %v5962, %v6062
        %6064 = vmatmul.f32.gmra.mxu0 %v5864
        %v6065 = vpop.f32.mrf.mxu0
        %v6066 = vadd.f32 %v5965, %v6065
        %6067 = vmatmul.f32.gmra.mxu0 %v5867
        %v6068 = vpop.f32.mrf.mxu0
        %v6069 = vadd.f32 %v5968, %v6068
        %6070 = vmatmul.f32.gmra.mxu0 %v5870
        %v6071 = vpop.f32.mrf.mxu0
        %v6072 = vadd.f32 %v5971, %v6071
        %6073 = vmatmul.f32.gmra.mxu0 %v5873
        %v6074 = vpop.f32.mrf.mxu0
        %v6075 = vadd.f32 %v5974, %v6074
        %6076 = vmatmul.f32.gmra.mxu0 %v5876
        %v6077 = vpop.f32.mrf.mxu0
        %v6078 = vadd.f32 %v5977, %v6077
        %6079 = vmatmul.f32.gmra.mxu0 %v5879
        %v6080 = vpop.f32.mrf.mxu0
        %v6081 = vadd.f32 %v5980, %v6080
        %6082 = vmatmul.f32.gmra.mxu0 %v5882
        %v6083 = vpop.f32.mrf.mxu0
        %v6084 = vadd.f32 %v5983, %v6083
        %6085 = vmatmul.f32.gmra.mxu0 %v5885
        %v6086 = vpop.f32.mrf.mxu0
        %v6087 = vadd.f32 %v5986, %v6086
        %6088 = vmatmul.f32.gmra.mxu0 %v5888
        %v6089 = vpop.f32.mrf.mxu0
        %v6090 = vadd.f32 %v5989, %v6089
        %6091 = vmatmul.f32.gmra.mxu0 %v5891
        %v6092 = vpop.f32.mrf.mxu0
        %v6093 = vadd.f32 %v5992, %v6092
        %6094 = vmatmul.f32.gmra.mxu0 %v5894
        %v6095 = vpop.f32.mrf.mxu0
        %v6096 = vadd.f32 %v5995, %v6095
        %6097 = vmatmul.f32.gmra.mxu0 %v5897
        %v6098 = vpop.f32.mrf.mxu0
        %v6099 = vadd.f32 %v5998, %v6098
        %6100 = vmatmul.f32.gmra.mxu0 %v5900
        %v6101 = vpop.f32.mrf.mxu0
        %v6102 = vadd.f32 %v6001, %v6101
        %6103 = vmatmul.f32.gmra.mxu0 %v5903
        %v6104 = vpop.f32.mrf.mxu0
        %v6105 = vadd.f32 %v6004, %v6104
        %6106 = vmatmul.f32.gmra.mxu0 %v5906
        %v6107 = vpop.f32.mrf.mxu0
        %v6108 = vadd.f32 %v6007, %v6107
        %6109 = vmatmul.f32.gmra.mxu0 %v5909
        %v6110 = vpop.f32.mrf.mxu0
        %v6111 = vadd.f32 %v6010, %v6110
        %6112 = vmatmul.f32.gmra.mxu0 %v5912
        %v6113 = vpop.f32.mrf.mxu0
        %v6114 = vadd.f32 %v6013, %v6113
        %6115 = vmatmul.f32.gmra.mxu0 %v5915
        %v6116 = vpop.f32.mrf.mxu0
        %v6117 = vadd.f32 %v6016, %v6116
        %6118 = vmatmul.f32.gmra.mxu0 %v5918
        %v6119 = vpop.f32.mrf.mxu0
        %v6120 = vadd.f32 %v6019, %v6119
        %6121 = vmatmul.f32.gmra.mxu0 %v5921
        %v6122 = vpop.f32.mrf.mxu0
        %v6123 = vadd.f32 %v6022, %v6122
        %6124 = vmatmul.f32.gmra.mxu0 %v5924
        %v6125 = vpop.f32.mrf.mxu0
        %v6126 = vadd.f32 %v6025, %v6125
        %6127 = vmatmul.f32.gmra.mxu0 %v5927
        %v6128 = vpop.f32.mrf.mxu0
        %v6129 = vadd.f32 %v6028, %v6128
        %6130 = vmatmul.f32.gmra.mxu0 %v5930
        %v6131 = vpop.f32.mrf.mxu0
        %v6132 = vadd.f32 %v6031, %v6131
        %6133 = vdwg.mxu0
        %v6135 = vsel %vm817, %v5680, 0
        %v6138 = vsel %vm817, %v5682, 0
        %v6141 = vsel %vm817, %v5684, 0
        %v6144 = vsel %vm817, %v5686, 0
        %v6147 = vsel %vm817, %v5688, 0
        %v6150 = vsel %vm817, %v5690, 0
        %v6153 = vsel %vm817, %v5692, 0
        %v6156 = vsel %vm817, %v5694, 0
        %v6159 = vsel %vm817, %v5696, 0
        %v6162 = vsel %vm817, %v5698, 0
        %v6165 = vsel %vm817, %v5700, 0
        %v6168 = vsel %vm817, %v5702, 0
        %v6171 = vsel %vm817, %v5704, 0
        %v6174 = vsel %vm817, %v5706, 0
        %v6177 = vsel %vm817, %v5708, 0
        %v6180 = vsel %vm817, %v5710, 0
        %v6183 = vsel %vm817, %v5712, 0
        %v6186 = vsel %vm817, %v5714, 0
        %v6189 = vsel %vm817, %v5716, 0
        %v6192 = vsel %vm817, %v5718, 0
        %v6195 = vsel %vm817, %v5720, 0
        %v6198 = vsel %vm817, %v5722, 0
        %v6201 = vsel %vm817, %v5724, 0
        %v6204 = vsel %vm817, %v5726, 0
        %v6207 = vsel %vm817, %v5728, 0
        %v6210 = vsel %vm817, %v5730, 0
        %v6213 = vsel %vm817, %v5732, 0
        %v6216 = vsel %vm817, %v5734, 0
        %6218 = vmatpush.msra.mxu0 %v5750
        %6219 = vmatpush.msra.mxu0 %v5749
        %6220 = vmatpush.msra.mxu0 %v5748
        %6221 = vmatpush.msra.mxu0 %v5747
        %6222 = vmatpush.msra.mxu0 %v5746
        %6223 = vmatpush.msra.mxu0 %v5745
        %6224 = vmatpush.msra.mxu0 %v5744
        %6225 = vmatpush.msra.mxu0 %v5743
        %6226 = vmatpush.msra.mxu0 %v5742
        %6227 = vmatpush.msra.mxu0 %v5741
        %6228 = vmatpush.msra.mxu0 %v5740
        %6229 = vmatpush.msra.mxu0 %v5739
        %6230 = vmatpush.msra.mxu0 %v5738
        %6231 = vmatpush.msra.mxu0 %v5737
        %6232 = vmatpush.msra.mxu0 %v5736
        %6233 = vmatpush.msra.mxu0 %v5735
        %6234 = vmatmul.f32.gmra.mxu0 %v5679
        %v6235 = vpop.f32.mrf.mxu0
        %v6236 = vadd.f32 %v6051, %v6235
        %6237 = vmatmul.f32.gmra.mxu0 %v5681
        %v6238 = vpop.f32.mrf.mxu0
        %v6239 = vadd.f32 %v6054, %v6238
        %6240 = vmatmul.f32.gmra.mxu0 %v5683
        %v6241 = vpop.f32.mrf.mxu0
        %v6242 = vadd.f32 %v6057, %v6241
        %6243 = vmatmul.f32.gmra.mxu0 %v5685
        %v6244 = vpop.f32.mrf.mxu0
        %v6245 = vadd.f32 %v6060, %v6244
        %6246 = vmatmul.f32.gmra.mxu0 %v5687
        %v6247 = vpop.f32.mrf.mxu0
        %v6248 = vadd.f32 %v6063, %v6247
        %6249 = vmatmul.f32.gmra.mxu0 %v5689
        %v6250 = vpop.f32.mrf.mxu0
        %v6251 = vadd.f32 %v6066, %v6250
        %6252 = vmatmul.f32.gmra.mxu0 %v5691
        %v6253 = vpop.f32.mrf.mxu0
        %v6254 = vadd.f32 %v6069, %v6253
        %6255 = vmatmul.f32.gmra.mxu0 %v5693
        %v6256 = vpop.f32.mrf.mxu0
        %v6257 = vadd.f32 %v6072, %v6256
        %6258 = vmatmul.f32.gmra.mxu0 %v5695
        %v6259 = vpop.f32.mrf.mxu0
        %v6260 = vadd.f32 %v6075, %v6259
        %6261 = vmatmul.f32.gmra.mxu0 %v5697
        %v6262 = vpop.f32.mrf.mxu0
        %v6263 = vadd.f32 %v6078, %v6262
        %6264 = vmatmul.f32.gmra.mxu0 %v5699
        %v6265 = vpop.f32.mrf.mxu0
        %v6266 = vadd.f32 %v6081, %v6265
        %6267 = vmatmul.f32.gmra.mxu0 %v5701
        %v6268 = vpop.f32.mrf.mxu0
        %v6269 = vadd.f32 %v6084, %v6268
        %6270 = vmatmul.f32.gmra.mxu0 %v5703
        %v6271 = vpop.f32.mrf.mxu0
        %v6272 = vadd.f32 %v6087, %v6271
        %6273 = vmatmul.f32.gmra.mxu0 %v5705
        %v6274 = vpop.f32.mrf.mxu0
        %v6275 = vadd.f32 %v6090, %v6274
        %6276 = vmatmul.f32.gmra.mxu0 %v5707
        %v6277 = vpop.f32.mrf.mxu0
        %v6278 = vadd.f32 %v6093, %v6277
        %6279 = vmatmul.f32.gmra.mxu0 %v5709
        %v6280 = vpop.f32.mrf.mxu0
        %v6281 = vadd.f32 %v6096, %v6280
        %6282 = vmatmul.f32.gmra.mxu0 %v5711
        %v6283 = vpop.f32.mrf.mxu0
        %v6284 = vadd.f32 %v6099, %v6283
        %6285 = vmatmul.f32.gmra.mxu0 %v5713
        %v6286 = vpop.f32.mrf.mxu0
        %v6287 = vadd.f32 %v6102, %v6286
        %6288 = vmatmul.f32.gmra.mxu0 %v5715
        %v6289 = vpop.f32.mrf.mxu0
        %v6290 = vadd.f32 %v6105, %v6289
        %6291 = vmatmul.f32.gmra.mxu0 %v5717
        %v6292 = vpop.f32.mrf.mxu0
        %v6293 = vadd.f32 %v6108, %v6292
        %6294 = vmatmul.f32.gmra.mxu0 %v5719
        %v6295 = vpop.f32.mrf.mxu0
        %v6296 = vadd.f32 %v6111, %v6295
        %6297 = vmatmul.f32.gmra.mxu0 %v5721
        %v6298 = vpop.f32.mrf.mxu0
        %v6299 = vadd.f32 %v6114, %v6298
        %6300 = vmatmul.f32.gmra.mxu0 %v5723
        %v6301 = vpop.f32.mrf.mxu0
        %v6302 = vadd.f32 %v6117, %v6301
        %6303 = vmatmul.f32.gmra.mxu0 %v5725
        %v6304 = vpop.f32.mrf.mxu0
        %v6305 = vadd.f32 %v6120, %v6304
        %6306 = vmatmul.f32.gmra.mxu0 %v5727
        %v6307 = vpop.f32.mrf.mxu0
        %v6308 = vadd.f32 %v6123, %v6307
        %6309 = vmatmul.f32.gmra.mxu0 %v5729
        %v6310 = vpop.f32.mrf.mxu0
        %v6311 = vadd.f32 %v6126, %v6310
        %6312 = vmatmul.f32.gmra.mxu0 %v5731
        %v6313 = vpop.f32.mrf.mxu0
        %v6314 = vadd.f32 %v6129, %v6313
        %6315 = vmatmul.f32.gmra.mxu0 %v5733
        %v6316 = vpop.f32.mrf.mxu0
        %v6317 = vadd.f32 %v6132, %v6316
        %6318 = vdwg.mxu0
        %6319 = vmatpush.msra.mxu0 0.0
        %6320 = vmatpush.msra.mxu0 0.0
        %6321 = vmatpush.msra.mxu0 0.0
        %6322 = vmatpush.msra.mxu0 0.0
        %6323 = vmatpush.msra.mxu0 %v5762
        %6324 = vmatpush.msra.mxu0 %v5761
        %6325 = vmatpush.msra.mxu0 %v5760
        %6326 = vmatpush.msra.mxu0 %v5759
        %6327 = vmatpush.msra.mxu0 %v5758
        %6328 = vmatpush.msra.mxu0 %v5757
        %6329 = vmatpush.msra.mxu0 %v5756
        %6330 = vmatpush.msra.mxu0 %v5755
        %6331 = vmatpush.msra.mxu0 %v5754
        %6332 = vmatpush.msra.mxu0 %v5753
        %6333 = vmatpush.msra.mxu0 %v5752
        %6334 = vmatpush.msra.mxu0 %v5751
        %6335 = vmatmul.f32.gmra.mxu0 %v6135
        %v6336 = vpop.f32.mrf.mxu0
        %v6337 = vadd.f32 %v6236, %v6336
        %6338 = vmatmul.f32.gmra.mxu0 %v6138
        %v6339 = vpop.f32.mrf.mxu0
        %v6340 = vadd.f32 %v6239, %v6339
        %6341 = vmatmul.f32.gmra.mxu0 %v6141
        %v6342 = vpop.f32.mrf.mxu0
        %v6343 = vadd.f32 %v6242, %v6342
        %6344 = vmatmul.f32.gmra.mxu0 %v6144
        %v6345 = vpop.f32.mrf.mxu0
        %v6346 = vadd.f32 %v6245, %v6345
        %6347 = vmatmul.f32.gmra.mxu0 %v6147
        %v6348 = vpop.f32.mrf.mxu0
        %v6349 = vadd.f32 %v6248, %v6348
        %6350 = vmatmul.f32.gmra.mxu0 %v6150
        %v6351 = vpop.f32.mrf.mxu0
        %v6352 = vadd.f32 %v6251, %v6351
        %6353 = vmatmul.f32.gmra.mxu0 %v6153
        %v6354 = vpop.f32.mrf.mxu0
        %v6355 = vadd.f32 %v6254, %v6354
        %6356 = vmatmul.f32.gmra.mxu0 %v6156
        %v6357 = vpop.f32.mrf.mxu0
        %v6358 = vadd.f32 %v6257, %v6357
        %6359 = vmatmul.f32.gmra.mxu0 %v6159
        %v6360 = vpop.f32.mrf.mxu0
        %v6361 = vadd.f32 %v6260, %v6360
        %6362 = vmatmul.f32.gmra.mxu0 %v6162
        %v6363 = vpop.f32.mrf.mxu0
        %v6364 = vadd.f32 %v6263, %v6363
        %6365 = vmatmul.f32.gmra.mxu0 %v6165
        %v6366 = vpop.f32.mrf.mxu0
        %v6367 = vadd.f32 %v6266, %v6366
        %6368 = vmatmul.f32.gmra.mxu0 %v6168
        %v6369 = vpop.f32.mrf.mxu0
        %v6370 = vadd.f32 %v6269, %v6369
        %6371 = vmatmul.f32.gmra.mxu0 %v6171
        %v6372 = vpop.f32.mrf.mxu0
        %v6373 = vadd.f32 %v6272, %v6372
        %6374 = vmatmul.f32.gmra.mxu0 %v6174
        %v6375 = vpop.f32.mrf.mxu0
        %v6376 = vadd.f32 %v6275, %v6375
        %6377 = vmatmul.f32.gmra.mxu0 %v6177
        %v6378 = vpop.f32.mrf.mxu0
        %v6379 = vadd.f32 %v6278, %v6378
        %6380 = vmatmul.f32.gmra.mxu0 %v6180
        %v6381 = vpop.f32.mrf.mxu0
        %v6382 = vadd.f32 %v6281, %v6381
        %6383 = vmatmul.f32.gmra.mxu0 %v6183
        %v6384 = vpop.f32.mrf.mxu0
        %v6385 = vadd.f32 %v6284, %v6384
        %6386 = vmatmul.f32.gmra.mxu0 %v6186
        %v6387 = vpop.f32.mrf.mxu0
        %v6388 = vadd.f32 %v6287, %v6387
        %6389 = vmatmul.f32.gmra.mxu0 %v6189
        %v6390 = vpop.f32.mrf.mxu0
        %v6391 = vadd.f32 %v6290, %v6390
        %6392 = vmatmul.f32.gmra.mxu0 %v6192
        %v6393 = vpop.f32.mrf.mxu0
        %v6394 = vadd.f32 %v6293, %v6393
        %6395 = vmatmul.f32.gmra.mxu0 %v6195
        %v6396 = vpop.f32.mrf.mxu0
        %v6397 = vadd.f32 %v6296, %v6396
        %6398 = vmatmul.f32.gmra.mxu0 %v6198
        %v6399 = vpop.f32.mrf.mxu0
        %v6400 = vadd.f32 %v6299, %v6399
        %6401 = vmatmul.f32.gmra.mxu0 %v6201
        %v6402 = vpop.f32.mrf.mxu0
        %v6403 = vadd.f32 %v6302, %v6402
        %6404 = vmatmul.f32.gmra.mxu0 %v6204
        %v6405 = vpop.f32.mrf.mxu0
        %v6406 = vadd.f32 %v6305, %v6405
        %6407 = vmatmul.f32.gmra.mxu0 %v6207
        %v6408 = vpop.f32.mrf.mxu0
        %v6409 = vadd.f32 %v6308, %v6408
        %6410 = vmatmul.f32.gmra.mxu0 %v6210
        %v6411 = vpop.f32.mrf.mxu0
        %v6412 = vadd.f32 %v6311, %v6411
        %6413 = vmatmul.f32.gmra.mxu0 %v6213
        %v6414 = vpop.f32.mrf.mxu0
        %v6415 = vadd.f32 %v6314, %v6414
        %6416 = vmatmul.f32.gmra.mxu0 %v6216
        %v6417 = vpop.f32.mrf.mxu0
        %v6418 = vadd.f32 %v6317, %v6417
        %6419 = vdwg.mxu0
        %s6420 = scalar_lea.vmem %s384, 2240 [#allocation5]
        %v6421 = vld [vmem:[%s6420] sm:$0xff]
        %v6422 = vld [vmem:[%s6420 + $0x8] sm:$0xff]
        %v6423 = vld [vmem:[%s6420 + $0x10] sm:$0xff]
        %v6424 = vld [vmem:[%s6420 + $0x18] sm:$0xff]
        %v6425 = vld [vmem:[%s6420 + $0x20] sm:$0xff]
        %v6426 = vld [vmem:[%s6420 + $0x28] sm:$0xff]
        %v6427 = vld [vmem:[%s6420 + $0x30] sm:$0xff]
        %v6428 = vld [vmem:[%s6420 + $0x38] sm:$0xff]
        %v6429 = vld [vmem:[%s6420 + $0x40] sm:$0xff]
        %v6430 = vld [vmem:[%s6420 + $0x48] sm:$0xff]
        %v6431 = vld [vmem:[%s6420 + $0x50] sm:$0xff]
        %v6432 = vld [vmem:[%s6420 + $0x58] sm:$0xff]
        %v6433 = vld [vmem:[%s6420 + $0x60] sm:$0xff]
        %v6434 = vld [vmem:[%s6420 + $0x68] sm:$0xff]
        %v6435 = vld [vmem:[%s6420 + $0x70] sm:$0xff]
        %v6436 = vld [vmem:[%s6420 + $0x78] sm:$0xff]
        %v6437 = vld [vmem:[%s6420 + $0x80] sm:$0xff]
        %v6438 = vld [vmem:[%s6420 + $0x88] sm:$0xff]
        %v6439 = vld [vmem:[%s6420 + $0x90] sm:$0xff]
        %v6440 = vld [vmem:[%s6420 + $0x98] sm:$0xff]
        %v6441 = vld [vmem:[%s6420 + $0xa0] sm:$0xff]
        %v6442 = vld [vmem:[%s6420 + $0xa8] sm:$0xff]
        %v6443 = vld [vmem:[%s6420 + $0xb0] sm:$0xff]
        %v6444 = vld [vmem:[%s6420 + $0xb8] sm:$0xff]
        %v6445 = vld [vmem:[%s6420 + $0xc0] sm:$0xff]
        %v6446 = vld [vmem:[%s6420 + $0xc8] sm:$0xff]
        %v6447 = vld [vmem:[%s6420 + $0xd0] sm:$0xff]
        %v6448 = vld [vmem:[%s6420 + $0xd8] sm:$0xff]
        %v6449 = vld [vmem:[%s6420 + $0xe0] sm:$0xff]
        %v6450 = vld [vmem:[%s6420 + $0xe8] sm:$0xff]
        %v6451 = vld [vmem:[%s6420 + $0xf0] sm:$0xff]
        %v6452 = vld [vmem:[%s6420 + $0xf8] sm:$0xff]
        %v6453 = vld [vmem:[%s6420 + $0x100] sm:$0xff]
        %v6454 = vld [vmem:[%s6420 + $0x108] sm:$0xff]
        %v6455 = vld [vmem:[%s6420 + $0x110] sm:$0xff]
        %v6456 = vld [vmem:[%s6420 + $0x118] sm:$0xff]
        %v6457 = vld [vmem:[%s6420 + $0x120] sm:$0xff]
        %v6458 = vld [vmem:[%s6420 + $0x128] sm:$0xff]
        %v6459 = vld [vmem:[%s6420 + $0x130] sm:$0xff]
        %v6460 = vld [vmem:[%s6420 + $0x138] sm:$0xff]
        %v6461 = vld [vmem:[%s6420 + $0x140] sm:$0xff]
        %v6462 = vld [vmem:[%s6420 + $0x148] sm:$0xff]
        %v6463 = vld [vmem:[%s6420 + $0x150] sm:$0xff]
        %v6464 = vld [vmem:[%s6420 + $0x158] sm:$0xff]
        %v6465 = vld [vmem:[%s6420 + $0x160] sm:$0xff]
        %v6466 = vld [vmem:[%s6420 + $0x168] sm:$0xff]
        %v6467 = vld [vmem:[%s6420 + $0x170] sm:$0xff]
        %v6468 = vld [vmem:[%s6420 + $0x178] sm:$0xff]
        %v6469 = vld [vmem:[%s6420 + $0x180] sm:$0xff]
        %v6470 = vld [vmem:[%s6420 + $0x188] sm:$0xff]
        %v6471 = vld [vmem:[%s6420 + $0x190] sm:$0xff]
        %v6472 = vld [vmem:[%s6420 + $0x198] sm:$0xff]
        %v6473 = vld [vmem:[%s6420 + $0x1a0] sm:$0xff]
        %v6474 = vld [vmem:[%s6420 + $0x1a8] sm:$0xff]
        %v6475 = vld [vmem:[%s6420 + $0x1b0] sm:$0xff]
        %v6476 = vld [vmem:[%s6420 + $0x1b8] sm:$0xff]
        %v6477 = vld [vmem:[%s2719] sm:$0xff]
        %v6478 = vld [vmem:[%s2719 + $0x8] sm:$0xff]
        %v6479 = vld [vmem:[%s2719 + $0x10] sm:$0xff]
        %v6480 = vld [vmem:[%s2719 + $0x18] sm:$0xff]
        %v6481 = vld [vmem:[%s2719 + $0x20] sm:$0xff]
        %v6482 = vld [vmem:[%s2719 + $0x28] sm:$0xff]
        %v6483 = vld [vmem:[%s2719 + $0x30] sm:$0xff]
        %v6484 = vld [vmem:[%s2719 + $0x38] sm:$0xff]
        %v6485 = vld [vmem:[%s2719 + $0x40] sm:$0xff]
        %v6486 = vld [vmem:[%s2719 + $0x48] sm:$0xff]
        %v6487 = vld [vmem:[%s2719 + $0x50] sm:$0xff]
        %v6488 = vld [vmem:[%s2719 + $0x58] sm:$0xff]
        %v6489 = vld [vmem:[%s2719 + $0x60] sm:$0xff]
        %v6490 = vld [vmem:[%s2719 + $0x68] sm:$0xff]
        %v6491 = vld [vmem:[%s2719 + $0x70] sm:$0xff]
        %v6492 = vld [vmem:[%s2719 + $0x78] sm:$0xff]
        %v6493 = vld [vmem:[%s2719 + $0x80] sm:$0xff]
        %v6494 = vld [vmem:[%s2719 + $0x88] sm:$0xff]
        %v6495 = vld [vmem:[%s2719 + $0x90] sm:$0xff]
        %v6496 = vld [vmem:[%s2719 + $0x98] sm:$0xff]
        %v6497 = vld [vmem:[%s2719 + $0xa0] sm:$0xff]
        %v6498 = vld [vmem:[%s2719 + $0xa8] sm:$0xff]
        %v6499 = vld [vmem:[%s2719 + $0xb0] sm:$0xff]
        %v6500 = vld [vmem:[%s2719 + $0xb8] sm:$0xff]
        %v6501 = vld [vmem:[%s2719 + $0xc0] sm:$0xff]
        %v6502 = vld [vmem:[%s2719 + $0xc8] sm:$0xff]
        %v6503 = vld [vmem:[%s2719 + $0xd0] sm:$0xff]
        %v6504 = vld [vmem:[%s2719 + $0xd8] sm:$0xff]
        %v6506 = vsel %vm817, %v6422, 0
        %v6509 = vsel %vm817, %v6424, 0
        %v6512 = vsel %vm817, %v6426, 0
        %v6515 = vsel %vm817, %v6428, 0
        %v6518 = vsel %vm817, %v6430, 0
        %v6521 = vsel %vm817, %v6432, 0
        %v6524 = vsel %vm817, %v6434, 0
        %v6527 = vsel %vm817, %v6436, 0
        %v6530 = vsel %vm817, %v6438, 0
        %v6533 = vsel %vm817, %v6440, 0
        %v6536 = vsel %vm817, %v6442, 0
        %v6539 = vsel %vm817, %v6444, 0
        %v6542 = vsel %vm817, %v6446, 0
        %v6545 = vsel %vm817, %v6448, 0
        %v6548 = vsel %vm817, %v6450, 0
        %v6551 = vsel %vm817, %v6452, 0
        %v6554 = vsel %vm817, %v6454, 0
        %v6557 = vsel %vm817, %v6456, 0
        %v6560 = vsel %vm817, %v6458, 0
        %v6563 = vsel %vm817, %v6460, 0
        %v6566 = vsel %vm817, %v6462, 0
        %v6569 = vsel %vm817, %v6464, 0
        %v6572 = vsel %vm817, %v6466, 0
        %v6575 = vsel %vm817, %v6468, 0
        %v6578 = vsel %vm817, %v6470, 0
        %v6581 = vsel %vm817, %v6472, 0
        %v6584 = vsel %vm817, %v6474, 0
        %v6587 = vsel %vm817, %v6476, 0
        %6589 = vmatpush.msra.mxu0 %v6492
        %6590 = vmatpush.msra.mxu0 %v6491
        %6591 = vmatpush.msra.mxu0 %v6490
        %6592 = vmatpush.msra.mxu0 %v6489
        %6593 = vmatpush.msra.mxu0 %v6488
        %6594 = vmatpush.msra.mxu0 %v6487
        %6595 = vmatpush.msra.mxu0 %v6486
        %6596 = vmatpush.msra.mxu0 %v6485
        %6597 = vmatpush.msra.mxu0 %v6484
        %6598 = vmatpush.msra.mxu0 %v6483
        %6599 = vmatpush.msra.mxu0 %v6482
        %6600 = vmatpush.msra.mxu0 %v6481
        %6601 = vmatpush.msra.mxu0 %v6480
        %6602 = vmatpush.msra.mxu0 %v6479
        %6603 = vmatpush.msra.mxu0 %v6478
        %6604 = vmatpush.msra.mxu0 %v6477
        %6605 = vmatmul.f32.gmra.mxu0 %v6421
        %v6606 = vpop.f32.mrf.mxu0
        %v6607 = vadd.f32 0.0, %v6606
        %6608 = vmatmul.f32.gmra.mxu0 %v6423
        %v6609 = vpop.f32.mrf.mxu0
        %v6610 = vadd.f32 0.0, %v6609
        %6611 = vmatmul.f32.gmra.mxu0 %v6425
        %v6612 = vpop.f32.mrf.mxu0
        %v6613 = vadd.f32 0.0, %v6612
        %6614 = vmatmul.f32.gmra.mxu0 %v6427
        %v6615 = vpop.f32.mrf.mxu0
        %v6616 = vadd.f32 0.0, %v6615
        %6617 = vmatmul.f32.gmra.mxu0 %v6429
        %v6618 = vpop.f32.mrf.mxu0
        %v6619 = vadd.f32 0.0, %v6618
        %6620 = vmatmul.f32.gmra.mxu0 %v6431
        %v6621 = vpop.f32.mrf.mxu0
        %v6622 = vadd.f32 0.0, %v6621
        %6623 = vmatmul.f32.gmra.mxu0 %v6433
        %v6624 = vpop.f32.mrf.mxu0
        %v6625 = vadd.f32 0.0, %v6624
        %6626 = vmatmul.f32.gmra.mxu0 %v6435
        %v6627 = vpop.f32.mrf.mxu0
        %v6628 = vadd.f32 0.0, %v6627
        %6629 = vmatmul.f32.gmra.mxu0 %v6437
        %v6630 = vpop.f32.mrf.mxu0
        %v6631 = vadd.f32 0.0, %v6630
        %6632 = vmatmul.f32.gmra.mxu0 %v6439
        %v6633 = vpop.f32.mrf.mxu0
        %v6634 = vadd.f32 0.0, %v6633
        %6635 = vmatmul.f32.gmra.mxu0 %v6441
        %v6636 = vpop.f32.mrf.mxu0
        %v6637 = vadd.f32 0.0, %v6636
        %6638 = vmatmul.f32.gmra.mxu0 %v6443
        %v6639 = vpop.f32.mrf.mxu0
        %v6640 = vadd.f32 0.0, %v6639
        %6641 = vmatmul.f32.gmra.mxu0 %v6445
        %v6642 = vpop.f32.mrf.mxu0
        %v6643 = vadd.f32 0.0, %v6642
        %6644 = vmatmul.f32.gmra.mxu0 %v6447
        %v6645 = vpop.f32.mrf.mxu0
        %v6646 = vadd.f32 0.0, %v6645
        %6647 = vmatmul.f32.gmra.mxu0 %v6449
        %v6648 = vpop.f32.mrf.mxu0
        %v6649 = vadd.f32 0.0, %v6648
        %6650 = vmatmul.f32.gmra.mxu0 %v6451
        %v6651 = vpop.f32.mrf.mxu0
        %v6652 = vadd.f32 0.0, %v6651
        %6653 = vmatmul.f32.gmra.mxu0 %v6453
        %v6654 = vpop.f32.mrf.mxu0
        %v6655 = vadd.f32 0.0, %v6654
        %6656 = vmatmul.f32.gmra.mxu0 %v6455
        %v6657 = vpop.f32.mrf.mxu0
        %v6658 = vadd.f32 0.0, %v6657
        %6659 = vmatmul.f32.gmra.mxu0 %v6457
        %v6660 = vpop.f32.mrf.mxu0
        %v6661 = vadd.f32 0.0, %v6660
        %6662 = vmatmul.f32.gmra.mxu0 %v6459
        %v6663 = vpop.f32.mrf.mxu0
        %v6664 = vadd.f32 0.0, %v6663
        %6665 = vmatmul.f32.gmra.mxu0 %v6461
        %v6666 = vpop.f32.mrf.mxu0
        %v6667 = vadd.f32 0.0, %v6666
        %6668 = vmatmul.f32.gmra.mxu0 %v6463
        %v6669 = vpop.f32.mrf.mxu0
        %v6670 = vadd.f32 0.0, %v6669
        %6671 = vmatmul.f32.gmra.mxu0 %v6465
        %v6672 = vpop.f32.mrf.mxu0
        %v6673 = vadd.f32 0.0, %v6672
        %6674 = vmatmul.f32.gmra.mxu0 %v6467
        %v6675 = vpop.f32.mrf.mxu0
        %v6676 = vadd.f32 0.0, %v6675
        %6677 = vmatmul.f32.gmra.mxu0 %v6469
        %v6678 = vpop.f32.mrf.mxu0
        %v6679 = vadd.f32 0.0, %v6678
        %6680 = vmatmul.f32.gmra.mxu0 %v6471
        %v6681 = vpop.f32.mrf.mxu0
        %v6682 = vadd.f32 0.0, %v6681
        %6683 = vmatmul.f32.gmra.mxu0 %v6473
        %v6684 = vpop.f32.mrf.mxu0
        %v6685 = vadd.f32 0.0, %v6684
        %6686 = vmatmul.f32.gmra.mxu0 %v6475
        %v6687 = vpop.f32.mrf.mxu0
        %v6688 = vadd.f32 0.0, %v6687
        %6689 = vdwg.mxu0
        %6690 = vmatpush.msra.mxu0 0.0
        %6691 = vmatpush.msra.mxu0 0.0
        %6692 = vmatpush.msra.mxu0 0.0
        %6693 = vmatpush.msra.mxu0 0.0
        %6694 = vmatpush.msra.mxu0 %v6504
        %6695 = vmatpush.msra.mxu0 %v6503
        %6696 = vmatpush.msra.mxu0 %v6502
        %6697 = vmatpush.msra.mxu0 %v6501
        %6698 = vmatpush.msra.mxu0 %v6500
        %6699 = vmatpush.msra.mxu0 %v6499
        %6700 = vmatpush.msra.mxu0 %v6498
        %6701 = vmatpush.msra.mxu0 %v6497
        %6702 = vmatpush.msra.mxu0 %v6496
        %6703 = vmatpush.msra.mxu0 %v6495
        %6704 = vmatpush.msra.mxu0 %v6494
        %6705 = vmatpush.msra.mxu0 %v6493
        %6706 = vmatmul.f32.gmra.mxu0 %v6506
        %v6707 = vpop.f32.mrf.mxu0
        %v6708 = vadd.f32 %v6607, %v6707
        %6709 = vmatmul.f32.gmra.mxu0 %v6509
        %v6710 = vpop.f32.mrf.mxu0
        %v6711 = vadd.f32 %v6610, %v6710
        %6712 = vmatmul.f32.gmra.mxu0 %v6512
        %v6713 = vpop.f32.mrf.mxu0
        %v6714 = vadd.f32 %v6613, %v6713
        %6715 = vmatmul.f32.gmra.mxu0 %v6515
        %v6716 = vpop.f32.mrf.mxu0
        %v6717 = vadd.f32 %v6616, %v6716
        %6718 = vmatmul.f32.gmra.mxu0 %v6518
        %v6719 = vpop.f32.mrf.mxu0
        %v6720 = vadd.f32 %v6619, %v6719
        %6721 = vmatmul.f32.gmra.mxu0 %v6521
        %v6722 = vpop.f32.mrf.mxu0
        %v6723 = vadd.f32 %v6622, %v6722
        %6724 = vmatmul.f32.gmra.mxu0 %v6524
        %v6725 = vpop.f32.mrf.mxu0
        %v6726 = vadd.f32 %v6625, %v6725
        %6727 = vmatmul.f32.gmra.mxu0 %v6527
        %v6728 = vpop.f32.mrf.mxu0
        %v6729 = vadd.f32 %v6628, %v6728
        %6730 = vmatmul.f32.gmra.mxu0 %v6530
        %v6731 = vpop.f32.mrf.mxu0
        %v6732 = vadd.f32 %v6631, %v6731
        %6733 = vmatmul.f32.gmra.mxu0 %v6533
        %v6734 = vpop.f32.mrf.mxu0
        %v6735 = vadd.f32 %v6634, %v6734
        %6736 = vmatmul.f32.gmra.mxu0 %v6536
        %v6737 = vpop.f32.mrf.mxu0
        %v6738 = vadd.f32 %v6637, %v6737
        %6739 = vmatmul.f32.gmra.mxu0 %v6539
        %v6740 = vpop.f32.mrf.mxu0
        %v6741 = vadd.f32 %v6640, %v6740
        %6742 = vmatmul.f32.gmra.mxu0 %v6542
        %v6743 = vpop.f32.mrf.mxu0
        %v6744 = vadd.f32 %v6643, %v6743
        %6745 = vmatmul.f32.gmra.mxu0 %v6545
        %v6746 = vpop.f32.mrf.mxu0
        %v6747 = vadd.f32 %v6646, %v6746
        %6748 = vmatmul.f32.gmra.mxu0 %v6548
        %v6749 = vpop.f32.mrf.mxu0
        %v6750 = vadd.f32 %v6649, %v6749
        %6751 = vmatmul.f32.gmra.mxu0 %v6551
        %v6752 = vpop.f32.mrf.mxu0
        %v6753 = vadd.f32 %v6652, %v6752
        %6754 = vmatmul.f32.gmra.mxu0 %v6554
        %v6755 = vpop.f32.mrf.mxu0
        %v6756 = vadd.f32 %v6655, %v6755
        %6757 = vmatmul.f32.gmra.mxu0 %v6557
        %v6758 = vpop.f32.mrf.mxu0
        %v6759 = vadd.f32 %v6658, %v6758
        %6760 = vmatmul.f32.gmra.mxu0 %v6560
        %v6761 = vpop.f32.mrf.mxu0
        %v6762 = vadd.f32 %v6661, %v6761
        %6763 = vmatmul.f32.gmra.mxu0 %v6563
        %v6764 = vpop.f32.mrf.mxu0
        %v6765 = vadd.f32 %v6664, %v6764
        %6766 = vmatmul.f32.gmra.mxu0 %v6566
        %v6767 = vpop.f32.mrf.mxu0
        %v6768 = vadd.f32 %v6667, %v6767
        %6769 = vmatmul.f32.gmra.mxu0 %v6569
        %v6770 = vpop.f32.mrf.mxu0
        %v6771 = vadd.f32 %v6670, %v6770
        %6772 = vmatmul.f32.gmra.mxu0 %v6572
        %v6773 = vpop.f32.mrf.mxu0
        %v6774 = vadd.f32 %v6673, %v6773
        %6775 = vmatmul.f32.gmra.mxu0 %v6575
        %v6776 = vpop.f32.mrf.mxu0
        %v6777 = vadd.f32 %v6676, %v6776
        %6778 = vmatmul.f32.gmra.mxu0 %v6578
        %v6779 = vpop.f32.mrf.mxu0
        %v6780 = vadd.f32 %v6679, %v6779
        %6781 = vmatmul.f32.gmra.mxu0 %v6581
        %v6782 = vpop.f32.mrf.mxu0
        %v6783 = vadd.f32 %v6682, %v6782
        %6784 = vmatmul.f32.gmra.mxu0 %v6584
        %v6785 = vpop.f32.mrf.mxu0
        %v6786 = vadd.f32 %v6685, %v6785
        %6787 = vmatmul.f32.gmra.mxu0 %v6587
        %v6788 = vpop.f32.mrf.mxu0
        %v6789 = vadd.f32 %v6688, %v6788
        %6790 = vdwg.mxu0
        %v6791 = vadd.f32 %v6337, %v6708
        %v6792 = vadd.f32 %v6340, %v6711
        %v6793 = vadd.f32 %v6343, %v6714
        %v6794 = vadd.f32 %v6346, %v6717
        %v6795 = vadd.f32 %v6349, %v6720
        %v6796 = vadd.f32 %v6352, %v6723
        %v6797 = vadd.f32 %v6355, %v6726
        %v6798 = vadd.f32 %v6358, %v6729
        %v6799 = vadd.f32 %v6361, %v6732
        %v6800 = vadd.f32 %v6364, %v6735
        %v6801 = vadd.f32 %v6367, %v6738
        %v6802 = vadd.f32 %v6370, %v6741
        %v6803 = vadd.f32 %v6373, %v6744
        %v6804 = vadd.f32 %v6376, %v6747
        %v6805 = vadd.f32 %v6379, %v6750
        %v6806 = vadd.f32 %v6382, %v6753
        %v6807 = vadd.f32 %v6385, %v6756
        %v6808 = vadd.f32 %v6388, %v6759
        %v6809 = vadd.f32 %v6391, %v6762
        %v6810 = vadd.f32 %v6394, %v6765
        %v6811 = vadd.f32 %v6397, %v6768
        %v6812 = vadd.f32 %v6400, %v6771
        %v6813 = vadd.f32 %v6403, %v6774
        %v6814 = vadd.f32 %v6406, %v6777
        %v6815 = vadd.f32 %v6409, %v6780
        %v6816 = vadd.f32 %v6412, %v6783
        %v6817 = vadd.f32 %v6415, %v6786
        %v6818 = vadd.f32 %v6418, %v6789
        %v6819 = vld [vmem:[#allocation8] sm:$0x1]
        %v6821 = vperm.slane %v6819, 0
        %v6823 = vadd.f32 %v6791, %v6821
        %v6824 = vadd.f32 %v6792, %v6821
        %v6825 = vadd.f32 %v6793, %v6821
        %v6826 = vadd.f32 %v6794, %v6821
        %v6827 = vadd.f32 %v6795, %v6821
        %v6828 = vadd.f32 %v6796, %v6821
        %v6829 = vadd.f32 %v6797, %v6821
        %v6830 = vadd.f32 %v6798, %v6821
        %v6831 = vadd.f32 %v6799, %v6821
        %v6832 = vadd.f32 %v6800, %v6821
        %v6833 = vadd.f32 %v6801, %v6821
        %v6834 = vadd.f32 %v6802, %v6821
        %v6835 = vadd.f32 %v6803, %v6821
        %v6836 = vadd.f32 %v6804, %v6821
        %v6837 = vadd.f32 %v6805, %v6821
        %v6838 = vadd.f32 %v6806, %v6821
        %v6839 = vadd.f32 %v6807, %v6821
        %v6840 = vadd.f32 %v6808, %v6821
        %v6841 = vadd.f32 %v6809, %v6821
        %v6842 = vadd.f32 %v6810, %v6821
        %v6843 = vadd.f32 %v6811, %v6821
        %v6844 = vadd.f32 %v6812, %v6821
        %v6845 = vadd.f32 %v6813, %v6821
        %v6846 = vadd.f32 %v6814, %v6821
        %v6847 = vadd.f32 %v6815, %v6821
        %v6848 = vadd.f32 %v6816, %v6821
        %v6849 = vadd.f32 %v6817, %v6821
        %v6850 = vadd.f32 %v6818, %v6821
        %v6851 = vmax.f32 %v6823, 0.0
        %v6852 = vmax.f32 %v6824, 0.0
        %v6853 = vmax.f32 %v6825, 0.0
        %v6854 = vmax.f32 %v6826, 0.0
        %v6855 = vmax.f32 %v6827, 0.0
        %v6856 = vmax.f32 %v6828, 0.0
        %v6857 = vmax.f32 %v6829, 0.0
        %v6858 = vmax.f32 %v6830, 0.0
        %v6859 = vmax.f32 %v6831, 0.0
        %v6860 = vmax.f32 %v6832, 0.0
        %v6861 = vmax.f32 %v6833, 0.0
        %v6862 = vmax.f32 %v6834, 0.0
        %v6863 = vmax.f32 %v6835, 0.0
        %v6864 = vmax.f32 %v6836, 0.0
        %v6865 = vmax.f32 %v6837, 0.0
        %v6866 = vmax.f32 %v6838, 0.0
        %v6867 = vmax.f32 %v6839, 0.0
        %v6868 = vmax.f32 %v6840, 0.0
        %v6869 = vmax.f32 %v6841, 0.0
        %v6870 = vmax.f32 %v6842, 0.0
        %v6871 = vmax.f32 %v6843, 0.0
        %v6872 = vmax.f32 %v6844, 0.0
        %v6873 = vmax.f32 %v6845, 0.0
        %v6874 = vmax.f32 %v6846, 0.0
        %v6875 = vmax.f32 %v6847, 0.0
        %v6876 = vmax.f32 %v6848, 0.0
        %v6877 = vmax.f32 %v6849, 0.0
        %v6878 = vmax.f32 %v6850, 0.0
        %v6879 = vsel %vm1850, %v6851, 0.0
        %v6880 = vsel %vm1850, %v6852, 0.0
        %v6881 = vadd.f32 %v6879, %v6880
        %v6882 = vsel %vm1850, %v6853, 0.0
        %v6883 = vadd.f32 %v6881, %v6882
        %v6884 = vsel %vm1850, %v6854, 0.0
        %v6885 = vadd.f32 %v6883, %v6884
        %v6886 = vsel %vm1850, %v6855, 0.0
        %v6887 = vadd.f32 %v6885, %v6886
        %v6888 = vsel %vm1850, %v6856, 0.0
        %v6889 = vadd.f32 %v6887, %v6888
        %v6890 = vsel %vm1850, %v6857, 0.0
        %v6891 = vadd.f32 %v6889, %v6890
        %v6892 = vsel %vm1850, %v6858, 0.0
        %v6893 = vadd.f32 %v6891, %v6892
        %v6894 = vsel %vm1850, %v6859, 0.0
        %v6895 = vadd.f32 %v6893, %v6894
        %v6896 = vsel %vm1850, %v6860, 0.0
        %v6897 = vadd.f32 %v6895, %v6896
        %v6898 = vsel %vm1850, %v6861, 0.0
        %v6899 = vadd.f32 %v6897, %v6898
        %v6900 = vsel %vm1850, %v6862, 0.0
        %v6901 = vadd.f32 %v6899, %v6900
        %v6902 = vsel %vm1850, %v6863, 0.0
        %v6903 = vadd.f32 %v6901, %v6902
        %v6904 = vsel %vm1850, %v6864, 0.0
        %v6905 = vadd.f32 %v6903, %v6904
        %v6906 = vsel %vm1850, %v6865, 0.0
        %v6907 = vadd.f32 %v6905, %v6906
        %v6908 = vsel %vm1850, %v6866, 0.0
        %v6909 = vadd.f32 %v6907, %v6908
        %v6910 = vsel %vm1850, %v6867, 0.0
        %v6911 = vadd.f32 %v6909, %v6910
        %v6912 = vsel %vm1850, %v6868, 0.0
        %v6913 = vadd.f32 %v6911, %v6912
        %v6914 = vsel %vm1850, %v6869, 0.0
        %v6915 = vadd.f32 %v6913, %v6914
        %v6916 = vsel %vm1850, %v6870, 0.0
        %v6917 = vadd.f32 %v6915, %v6916
        %v6918 = vsel %vm1850, %v6871, 0.0
        %v6919 = vadd.f32 %v6917, %v6918
        %v6920 = vsel %vm1850, %v6872, 0.0
        %v6921 = vadd.f32 %v6919, %v6920
        %v6922 = vsel %vm1850, %v6873, 0.0
        %v6923 = vadd.f32 %v6921, %v6922
        %v6924 = vsel %vm1850, %v6874, 0.0
        %v6925 = vadd.f32 %v6923, %v6924
        %v6926 = vsel %vm1850, %v6875, 0.0
        %v6927 = vadd.f32 %v6925, %v6926
        %v6928 = vsel %vm1850, %v6876, 0.0
        %v6929 = vadd.f32 %v6927, %v6928
        %v6930 = vsel %vm1850, %v6877, 0.0
        %v6931 = vadd.f32 %v6929, %v6930
        %v6932 = vsel %vm1850, %v6878, 0.0
        %v6933 = vadd.f32 %v6931, %v6932
        %v6934 = vrot.slane %v6933, 4
        %v6935 = vadd.f32 %v6933, %v6934
        %v6936 = vrot.slane %v6935, 2
        %v6937 = vadd.f32 %v6935, %v6936
        %v6938 = vrot.slane %v6937, 1
        %v6939 = vadd.f32 %v6937, %v6938
        %v6940 = vmul.f32 %v6939, %v1918
        %v6941 = vld [vmem:[%s6] sm:$0xff]
        %v6942 = vld [vmem:[%s6 + $0x8] sm:$0xff]
        %v6943 = vld [vmem:[%s6 + $0x10] sm:$0xff]
        %v6944 = vld [vmem:[%s6 + $0x18] sm:$0xff]
        %v6945 = vld [vmem:[%s7] sm:$0xff]
        %v6946 = vld [vmem:[%s7 + $0x8] sm:$0xff]
        %v6947 = vld [vmem:[%s7 + $0x10] sm:$0xff]
        %v6948 = vld [vmem:[%s7 + $0x18] sm:$0xff]
        %v6950 = vsel %vm1850, %v6940, 0
        %6952 = vmatpush.msra.mxu0 0.0
        %6953 = vmatpush.msra.mxu0 0.0
        %6954 = vmatpush.msra.mxu0 0.0
        %6955 = vmatpush.msra.mxu0 0.0
        %6956 = vmatpush.msra.mxu0 0.0
        %6957 = vmatpush.msra.mxu0 0.0
        %6958 = vmatpush.msra.mxu0 0.0
        %6959 = vmatpush.msra.mxu0 0.0
        %6960 = vmatpush.msra.mxu0 0.0
        %6961 = vmatpush.msra.mxu0 0.0
        %6962 = vmatpush.msra.mxu0 0.0
        %6963 = vmatpush.msra.mxu0 0.0
        %6964 = vmatpush.msra.mxu0 %v6948
        %6965 = vmatpush.msra.mxu0 %v6947
        %6966 = vmatpush.msra.mxu0 %v6946
        %6967 = vmatpush.msra.mxu0 %v6945
        %6968 = vmatmul.f32.gmra.mxu0 %v6950
        %v6969 = vpop.f32.mrf.mxu0
        %v6970 = vadd.f32 0.0, %v6969
        %6971 = vdwg.mxu0
        %v6973 = vsel %vm1850, %v5677, 0
        %6975 = vmatpush.msra.mxu0 0.0
        %6976 = vmatpush.msra.mxu0 0.0
        %6977 = vmatpush.msra.mxu0 0.0
        %6978 = vmatpush.msra.mxu0 0.0
        %6979 = vmatpush.msra.mxu0 0.0
        %6980 = vmatpush.msra.mxu0 0.0
        %6981 = vmatpush.msra.mxu0 0.0
        %6982 = vmatpush.msra.mxu0 0.0
        %6983 = vmatpush.msra.mxu0 0.0
        %6984 = vmatpush.msra.mxu0 0.0
        %6985 = vmatpush.msra.mxu0 0.0
        %6986 = vmatpush.msra.mxu0 0.0
        %6987 = vmatpush.msra.mxu0 %v6944
        %6988 = vmatpush.msra.mxu0 %v6943
        %6989 = vmatpush.msra.mxu0 %v6942
        %6990 = vmatpush.msra.mxu0 %v6941
        %6991 = vmatmul.f32.gmra.mxu0 %v6973
        %v6992 = vpop.f32.mrf.mxu0
        %v6993 = vadd.f32 %v6970, %v6992
        %6994 = vdwg.mxu0
        %v6995 = vld [vmem:[#allocation10] sm:$0x1]
        %v6996 = vadd.f32 %v6993, %v6995
        %6998 = vset.pattern.permute.xlu0 1
        %6999 = vperm.xlu0 %6998, %v6996
        %v7000 = vpop.permute.xlu0 %6999
        %7002 = vset.pattern.permute.xlu0 0
        %7003 = vperm.xlu0 %7002, %v6996
        %v7004 = vpop.permute.xlu0 %7003
        %v7006 = vsel %vm475, %v7000, %v7004
        %v7007 = vsel %vm476, %v7000, %v7004
        %7008 = vset.pattern.permute.xlu0 2
        %7009 = vperm.xlu0 %7008, %v6996
        %v7010 = vpop.permute.xlu0 %7009
        %v7012 = vsel %vm477, %v7010, %v7006
        %v7013 = vsel %vm478, %v7010, %v7007
        %v7014 = vperm.slane %v7012, 0
        %v7015 = vperm.slane %v7013, 0
        %7016 = vset.pattern.permute.xlu0 4
        %7017 = vperm.xlu0 %7016, %v6996
        %v7018 = vpop.permute.xlu0 %7017
        %7020 = vset.pattern.permute.xlu0 3
        %7021 = vperm.xlu0 %7020, %v6996
        %v7022 = vpop.permute.xlu0 %7021
        %v7024 = vsel %vm475, %v7018, %v7022
        %v7025 = vsel %vm476, %v7018, %v7022
        %7026 = vset.pattern.permute.xlu0 5
        %7027 = vperm.xlu0 %7026, %v6996
        %v7028 = vpop.permute.xlu0 %7027
        %v7030 = vsel %vm477, %v7028, %v7024
        %v7031 = vsel %vm478, %v7028, %v7025
        %v7032 = vperm.slane %v7030, 0
        %v7033 = vperm.slane %v7031, 0
        %7034 = vset.pattern.permute.xlu0 7
        %7035 = vperm.xlu0 %7034, %v6996
        %v7036 = vpop.permute.xlu0 %7035
        %7038 = vset.pattern.permute.xlu0 6
        %7039 = vperm.xlu0 %7038, %v6996
        %v7040 = vpop.permute.xlu0 %7039
        %v7042 = vsel %vm475, %v7036, %v7040
        %v7043 = vsel %vm476, %v7036, %v7040
        %7044 = vset.pattern.permute.xlu0 8
        %7045 = vperm.xlu0 %7044, %v6996
        %v7046 = vpop.permute.xlu0 %7045
        %v7048 = vsel %vm477, %v7046, %v7042
        %v7049 = vsel %vm478, %v7046, %v7043
        %v7050 = vperm.slane %v7048, 0
        %v7051 = vperm.slane %v7049, 0
        %v7052 = vsel %vm535, %v7032, %v7014
        %v7053 = vsel %vm535, %v7033, %v7015
        %v7054 = vsel %vm536, %v7032, %v7014
        %v7055 = vsel %vm536, %v7033, %v7015
        %v7056 = vsel %vm537, %v7032, %v7014
        %v7057 = vsel %vm537, %v7033, %v7015
        %v7058 = vsel %vm538, %v7032, %v7014
        %v7059 = vsel %vm538, %v7033, %v7015
        %v7060 = vsel %vm539, %v7032, %v7014
        %v7061 = vsel %vm539, %v7033, %v7015
        %v7062 = vsel %vm540, %v7032, %v7014
        %v7063 = vsel %vm540, %v7033, %v7015
        %v7064 = vsel %vm541, %v7032, %v7014
        %v7065 = vsel %vm541, %v7033, %v7015
        %v7066 = vsel %vm542, %v7032, %v7014
        %v7067 = vsel %vm542, %v7033, %v7015
        %v7068 = vsel %vm543, %v7032, %v7014
        %v7069 = vsel %vm543, %v7033, %v7015
        %v7070 = vsel %vm544, %v7032, %v7014
        %v7071 = vsel %vm544, %v7033, %v7015
        %v7072 = vsel %vm545, %v7032, %v7014
        %v7073 = vsel %vm545, %v7033, %v7015
        %v7074 = vsel %vm546, %v7032, %v7014
        %v7075 = vsel %vm546, %v7033, %v7015
        %v7076 = vsel %vm547, %v7032, %v7014
        %v7077 = vsel %vm547, %v7033, %v7015
        %v7078 = vsel %vm548, %v7032, %v7014
        %v7079 = vsel %vm548, %v7033, %v7015
        %v7080 = vsel %vm549, %v7032, %v7014
        %v7081 = vsel %vm549, %v7033, %v7015
        %v7082 = vsel %vm550, %v7032, %v7014
        %v7083 = vsel %vm550, %v7033, %v7015
        %v7084 = vsel %vm551, %v7032, %v7014
        %v7085 = vsel %vm551, %v7033, %v7015
        %v7086 = vsel %vm552, %v7032, %v7014
        %v7087 = vsel %vm552, %v7033, %v7015
        %v7088 = vsel %vm553, %v7032, %v7014
        %v7089 = vsel %vm553, %v7033, %v7015
        %v7090 = vsel %vm554, %v7032, %v7014
        %v7091 = vsel %vm554, %v7033, %v7015
        %v7092 = vsel %vm555, %v7032, %v7014
        %v7093 = vsel %vm555, %v7033, %v7015
        %v7094 = vsel %vm556, %v7032, %v7014
        %v7095 = vsel %vm556, %v7033, %v7015
        %v7096 = vsel %vm557, %v7032, %v7014
        %v7097 = vsel %vm557, %v7033, %v7015
        %v7098 = vsel %vm558, %v7032, %v7014
        %v7099 = vsel %vm558, %v7033, %v7015
        %v7100 = vsel %vm559, %v7032, %v7014
        %v7101 = vsel %vm559, %v7033, %v7015
        %v7102 = vsel %vm560, %v7032, %v7014
        %v7103 = vsel %vm560, %v7033, %v7015
        %v7104 = vsel %vm561, %v7032, %v7014
        %v7105 = vsel %vm561, %v7033, %v7015
        %v7106 = vsel %vm562, %v7032, %v7014
        %v7107 = vsel %vm562, %v7033, %v7015
        %v7108 = vsel %vm619, %v7050, %v7052
        %v7109 = vsel %vm619, %v7051, %v7053
        %v7110 = vsel %vm620, %v7050, %v7054
        %v7111 = vsel %vm620, %v7051, %v7055
        %v7112 = vsel %vm621, %v7050, %v7056
        %v7113 = vsel %vm621, %v7051, %v7057
        %v7114 = vsel %vm622, %v7050, %v7058
        %v7115 = vsel %vm622, %v7051, %v7059
        %v7116 = vsel %vm623, %v7050, %v7060
        %v7117 = vsel %vm623, %v7051, %v7061
        %v7118 = vsel %vm624, %v7050, %v7062
        %v7119 = vsel %vm624, %v7051, %v7063
        %v7120 = vsel %vm625, %v7050, %v7064
        %v7121 = vsel %vm625, %v7051, %v7065
        %v7122 = vsel %vm626, %v7050, %v7066
        %v7123 = vsel %vm626, %v7051, %v7067
        %v7124 = vsel %vm627, %v7050, %v7068
        %v7125 = vsel %vm627, %v7051, %v7069
        %v7126 = vsel %vm628, %v7050, %v7070
        %v7127 = vsel %vm628, %v7051, %v7071
        %v7128 = vsel %vm629, %v7050, %v7072
        %v7129 = vsel %vm629, %v7051, %v7073
        %v7130 = vsel %vm630, %v7050, %v7074
        %v7131 = vsel %vm630, %v7051, %v7075
        %v7132 = vsel %vm631, %v7050, %v7076
        %v7133 = vsel %vm631, %v7051, %v7077
        %v7134 = vsel %vm632, %v7050, %v7078
        %v7135 = vsel %vm632, %v7051, %v7079
        %v7136 = vsel %vm633, %v7050, %v7080
        %v7137 = vsel %vm633, %v7051, %v7081
        %v7138 = vsel %vm634, %v7050, %v7082
        %v7139 = vsel %vm634, %v7051, %v7083
        %v7140 = vsel %vm635, %v7050, %v7084
        %v7141 = vsel %vm635, %v7051, %v7085
        %v7142 = vsel %vm636, %v7050, %v7086
        %v7143 = vsel %vm636, %v7051, %v7087
        %v7144 = vsel %vm637, %v7050, %v7088
        %v7145 = vsel %vm637, %v7051, %v7089
        %v7146 = vsel %vm638, %v7050, %v7090
        %v7147 = vsel %vm638, %v7051, %v7091
        %v7148 = vsel %vm639, %v7050, %v7092
        %v7149 = vsel %vm639, %v7051, %v7093
        %v7150 = vsel %vm640, %v7050, %v7094
        %v7151 = vsel %vm640, %v7051, %v7095
        %v7152 = vsel %vm641, %v7050, %v7096
        %v7153 = vsel %vm641, %v7051, %v7097
        %v7154 = vsel %vm642, %v7050, %v7098
        %v7155 = vsel %vm642, %v7051, %v7099
        %v7156 = vsel %vm643, %v7050, %v7100
        %v7157 = vsel %vm643, %v7051, %v7101
        %v7158 = vsel %vm644, %v7050, %v7102
        %v7159 = vsel %vm644, %v7051, %v7103
        %v7160 = vsel %vm645, %v7050, %v7104
        %v7161 = vsel %vm645, %v7051, %v7105
        %v7162 = vsel %vm646, %v7050, %v7106
        %v7163 = vsel %vm646, %v7051, %v7107
        %v7164 = vld [vmem:[%s4415] sm:$0xff]
        %v7165 = vld [vmem:[%s4415 + $0x8] sm:$0xff]
        %v7166 = vld [vmem:[%s4415 + $0x10] sm:$0xff]
        %v7167 = vld [vmem:[%s4415 + $0x18] sm:$0xff]
        %v7168 = vld [vmem:[%s4415 + $0x20] sm:$0xff]
        %v7169 = vld [vmem:[%s4415 + $0x28] sm:$0xff]
        %v7170 = vld [vmem:[%s4415 + $0x30] sm:$0xff]
        %v7171 = vld [vmem:[%s4415 + $0x38] sm:$0xff]
        %v7172 = vld [vmem:[%s4415 + $0x40] sm:$0xff]
        %v7173 = vld [vmem:[%s4415 + $0x48] sm:$0xff]
        %v7174 = vld [vmem:[%s4415 + $0x50] sm:$0xff]
        %v7175 = vld [vmem:[%s4415 + $0x58] sm:$0xff]
        %v7176 = vld [vmem:[%s4415 + $0x60] sm:$0xff]
        %v7177 = vld [vmem:[%s4415 + $0x68] sm:$0xff]
        %v7178 = vld [vmem:[%s4415 + $0x70] sm:$0xff]
        %v7179 = vld [vmem:[%s4415 + $0x78] sm:$0xff]
        %v7180 = vld [vmem:[%s4415 + $0x80] sm:$0xff]
        %v7181 = vld [vmem:[%s4415 + $0x88] sm:$0xff]
        %v7182 = vld [vmem:[%s4415 + $0x90] sm:$0xff]
        %v7183 = vld [vmem:[%s4415 + $0x98] sm:$0xff]
        %v7184 = vld [vmem:[%s4415 + $0xa0] sm:$0xff]
        %v7185 = vld [vmem:[%s4415 + $0xa8] sm:$0xff]
        %v7186 = vld [vmem:[%s4415 + $0xb0] sm:$0xff]
        %v7187 = vld [vmem:[%s4415 + $0xb8] sm:$0xff]
        %v7188 = vld [vmem:[%s4415 + $0xc0] sm:$0xff]
        %v7189 = vld [vmem:[%s4415 + $0xc8] sm:$0xff]
        %v7190 = vld [vmem:[%s4415 + $0xd0] sm:$0xff]
        %v7191 = vld [vmem:[%s4415 + $0xd8] sm:$0xff]
        %v7192 = vld [vmem:[%s4415 + $0xe0] sm:$0xff]
        %v7193 = vld [vmem:[%s4415 + $0xe8] sm:$0xff]
        %v7194 = vld [vmem:[%s4415 + $0xf0] sm:$0xff]
        %v7195 = vld [vmem:[%s4415 + $0xf8] sm:$0xff]
        %v7196 = vld [vmem:[%s4415 + $0x100] sm:$0xff]
        %v7197 = vld [vmem:[%s4415 + $0x108] sm:$0xff]
        %v7198 = vld [vmem:[%s4415 + $0x110] sm:$0xff]
        %v7199 = vld [vmem:[%s4415 + $0x118] sm:$0xff]
        %v7200 = vld [vmem:[%s4415 + $0x120] sm:$0xff]
        %v7201 = vld [vmem:[%s4415 + $0x128] sm:$0xff]
        %v7202 = vld [vmem:[%s4415 + $0x130] sm:$0xff]
        %v7203 = vld [vmem:[%s4415 + $0x138] sm:$0xff]
        %v7204 = vld [vmem:[%s4415 + $0x140] sm:$0xff]
        %v7205 = vld [vmem:[%s4415 + $0x148] sm:$0xff]
        %v7206 = vld [vmem:[%s4415 + $0x150] sm:$0xff]
        %v7207 = vld [vmem:[%s4415 + $0x158] sm:$0xff]
        %v7208 = vld [vmem:[%s4415 + $0x160] sm:$0xff]
        %v7209 = vld [vmem:[%s4415 + $0x168] sm:$0xff]
        %v7210 = vld [vmem:[%s4415 + $0x170] sm:$0xff]
        %v7211 = vld [vmem:[%s4415 + $0x178] sm:$0xff]
        %v7212 = vld [vmem:[%s4415 + $0x180] sm:$0xff]
        %v7213 = vld [vmem:[%s4415 + $0x188] sm:$0xff]
        %v7214 = vld [vmem:[%s4415 + $0x190] sm:$0xff]
        %v7215 = vld [vmem:[%s4415 + $0x198] sm:$0xff]
        %v7216 = vld [vmem:[%s4415 + $0x1a0] sm:$0xff]
        %v7217 = vld [vmem:[%s4415 + $0x1a8] sm:$0xff]
        %v7218 = vld [vmem:[%s4415 + $0x1b0] sm:$0xff]
        %v7219 = vld [vmem:[%s4415 + $0x1b8] sm:$0xff]
        %v7220 = vld [vmem:[%s4415 + $0x1c0] sm:$0xff]
        %v7221 = vld [vmem:[%s4415 + $0x1c8] sm:$0xff]
        %v7222 = vld [vmem:[%s4415 + $0x1d0] sm:$0xff]
        %v7223 = vld [vmem:[%s4415 + $0x1d8] sm:$0xff]
        %v7224 = vld [vmem:[%s4415 + $0x1e0] sm:$0xff]
        %v7225 = vld [vmem:[%s4415 + $0x1e8] sm:$0xff]
        %v7226 = vld [vmem:[%s4415 + $0x1f0] sm:$0xff]
        %v7227 = vld [vmem:[%s4415 + $0x1f8] sm:$0xff]
        %v7228 = vld [vmem:[%s4415 + $0x200] sm:$0xff]
        %v7229 = vld [vmem:[%s4415 + $0x208] sm:$0xff]
        %v7230 = vld [vmem:[%s4415 + $0x210] sm:$0xff]
        %v7231 = vld [vmem:[%s4415 + $0x218] sm:$0xff]
        %v7232 = vld [vmem:[%s4415 + $0x220] sm:$0xff]
        %v7233 = vld [vmem:[%s4415 + $0x228] sm:$0xff]
        %v7234 = vld [vmem:[%s4415 + $0x230] sm:$0xff]
        %v7235 = vld [vmem:[%s4415 + $0x238] sm:$0xff]
        %v7236 = vld [vmem:[%s4415 + $0x240] sm:$0xff]
        %v7237 = vld [vmem:[%s4415 + $0x248] sm:$0xff]
        %v7238 = vld [vmem:[%s4415 + $0x250] sm:$0xff]
        %v7239 = vld [vmem:[%s4415 + $0x258] sm:$0xff]
        %v7240 = vld [vmem:[%s4415 + $0x260] sm:$0xff]
        %v7241 = vld [vmem:[%s4415 + $0x268] sm:$0xff]
        %v7242 = vld [vmem:[%s4415 + $0x270] sm:$0xff]
        %v7243 = vld [vmem:[%s4415 + $0x278] sm:$0xff]
        %v7244 = vld [vmem:[%s4415 + $0x280] sm:$0xff]
        %v7245 = vld [vmem:[%s4415 + $0x288] sm:$0xff]
        %v7246 = vld [vmem:[%s4415 + $0x290] sm:$0xff]
        %v7247 = vld [vmem:[%s4415 + $0x298] sm:$0xff]
        %v7248 = vld [vmem:[%s4415 + $0x2a0] sm:$0xff]
        %v7249 = vld [vmem:[%s4415 + $0x2a8] sm:$0xff]
        %v7250 = vld [vmem:[%s4415 + $0x2b0] sm:$0xff]
        %v7251 = vld [vmem:[%s4415 + $0x2b8] sm:$0xff]
        %v7252 = vld [vmem:[%s4415 + $0x2c0] sm:$0xff]
        %v7253 = vld [vmem:[%s4415 + $0x2c8] sm:$0xff]
        %v7254 = vld [vmem:[%s4415 + $0x2d0] sm:$0xff]
        %v7255 = vld [vmem:[%s4415 + $0x2d8] sm:$0xff]
        %v7256 = vld [vmem:[%s4415 + $0x2e0] sm:$0xff]
        %v7257 = vld [vmem:[%s4415 + $0x2e8] sm:$0xff]
        %v7258 = vld [vmem:[%s4415 + $0x2f0] sm:$0xff]
        %v7259 = vld [vmem:[%s4415 + $0x2f8] sm:$0xff]
        %v7260 = vld [vmem:[%s4415 + $0x300] sm:$0xff]
        %v7261 = vld [vmem:[%s4415 + $0x308] sm:$0xff]
        %v7262 = vld [vmem:[%s4415 + $0x310] sm:$0xff]
        %v7263 = vld [vmem:[%s4415 + $0x318] sm:$0xff]
        %v7264 = vld [vmem:[%s4415 + $0x320] sm:$0xff]
        %v7265 = vld [vmem:[%s4415 + $0x328] sm:$0xff]
        %v7266 = vld [vmem:[%s4415 + $0x330] sm:$0xff]
        %v7267 = vld [vmem:[%s4415 + $0x338] sm:$0xff]
        %v7268 = vld [vmem:[%s4415 + $0x340] sm:$0xff]
        %v7269 = vld [vmem:[%s4415 + $0x348] sm:$0xff]
        %v7270 = vld [vmem:[%s4415 + $0x350] sm:$0xff]
        %v7271 = vld [vmem:[%s4415 + $0x358] sm:$0xff]
        %v7272 = vld [vmem:[%s4415 + $0x360] sm:$0xff]
        %v7273 = vld [vmem:[%s4415 + $0x368] sm:$0xff]
        %v7274 = vld [vmem:[%s4415 + $0x370] sm:$0xff]
        %v7275 = vld [vmem:[%s4415 + $0x378] sm:$0xff]
        %v7276 = vld [vmem:[%s4415 + $0x380] sm:$0xff]
        %v7277 = vld [vmem:[%s4415 + $0x388] sm:$0xff]
        %v7278 = vld [vmem:[%s4415 + $0x390] sm:$0xff]
        %v7279 = vld [vmem:[%s4415 + $0x398] sm:$0xff]
        %v7280 = vld [vmem:[%s4415 + $0x3a0] sm:$0xff]
        %v7281 = vld [vmem:[%s4415 + $0x3a8] sm:$0xff]
        %v7282 = vld [vmem:[%s4415 + $0x3b0] sm:$0xff]
        %v7283 = vld [vmem:[%s4415 + $0x3b8] sm:$0xff]
        %v7284 = vld [vmem:[%s4415 + $0x3c0] sm:$0xff]
        %v7285 = vld [vmem:[%s4415 + $0x3c8] sm:$0xff]
        %v7286 = vld [vmem:[%s4415 + $0x3d0] sm:$0xff]
        %v7287 = vld [vmem:[%s4415 + $0x3d8] sm:$0xff]
        %v7288 = vld [vmem:[%s4415 + $0x3e0] sm:$0xff]
        %v7289 = vld [vmem:[%s4415 + $0x3e8] sm:$0xff]
        %v7290 = vld [vmem:[%s4415 + $0x3f0] sm:$0xff]
        %v7291 = vld [vmem:[%s4415 + $0x3f8] sm:$0xff]
        %v7292 = vld [vmem:[%s4415 + $0x400] sm:$0xff]
        %v7293 = vld [vmem:[%s4415 + $0x408] sm:$0xff]
        %v7294 = vld [vmem:[%s4415 + $0x410] sm:$0xff]
        %v7295 = vld [vmem:[%s4415 + $0x418] sm:$0xff]
        %v7296 = vld [vmem:[%s4415 + $0x420] sm:$0xff]
        %v7297 = vld [vmem:[%s4415 + $0x428] sm:$0xff]
        %v7298 = vld [vmem:[%s4415 + $0x430] sm:$0xff]
        %v7299 = vld [vmem:[%s4415 + $0x438] sm:$0xff]
        %v7300 = vld [vmem:[%s4415 + $0x440] sm:$0xff]
        %v7301 = vld [vmem:[%s4415 + $0x448] sm:$0xff]
        %v7302 = vld [vmem:[%s4415 + $0x450] sm:$0xff]
        %v7303 = vld [vmem:[%s4415 + $0x458] sm:$0xff]
        %v7304 = vld [vmem:[%s4415 + $0x460] sm:$0xff]
        %v7305 = vld [vmem:[%s4415 + $0x468] sm:$0xff]
        %v7306 = vld [vmem:[%s4415 + $0x470] sm:$0xff]
        %v7307 = vld [vmem:[%s4415 + $0x478] sm:$0xff]
        %v7308 = vld [vmem:[%s4415 + $0x480] sm:$0xff]
        %v7309 = vld [vmem:[%s4415 + $0x488] sm:$0xff]
        %v7310 = vld [vmem:[%s4415 + $0x490] sm:$0xff]
        %v7311 = vld [vmem:[%s4415 + $0x498] sm:$0xff]
        %v7312 = vld [vmem:[%s4415 + $0x4a0] sm:$0xff]
        %v7313 = vld [vmem:[%s4415 + $0x4a8] sm:$0xff]
        %v7314 = vld [vmem:[%s4415 + $0x4b0] sm:$0xff]
        %v7315 = vld [vmem:[%s4415 + $0x4b8] sm:$0xff]
        %v7316 = vld [vmem:[%s4415 + $0x4c0] sm:$0xff]
        %v7317 = vld [vmem:[%s4415 + $0x4c8] sm:$0xff]
        %v7318 = vld [vmem:[%s4415 + $0x4d0] sm:$0xff]
        %v7319 = vld [vmem:[%s4415 + $0x4d8] sm:$0xff]
        %v7320 = vld [vmem:[%s4415 + $0x4e0] sm:$0xff]
        %v7321 = vld [vmem:[%s4415 + $0x4e8] sm:$0xff]
        %v7322 = vld [vmem:[%s4415 + $0x4f0] sm:$0xff]
        %v7323 = vld [vmem:[%s4415 + $0x4f8] sm:$0xff]
        %v7324 = vld [vmem:[%s4415 + $0x500] sm:$0xff]
        %v7325 = vld [vmem:[%s4415 + $0x508] sm:$0xff]
        %v7326 = vld [vmem:[%s4415 + $0x510] sm:$0xff]
        %v7327 = vld [vmem:[%s4415 + $0x518] sm:$0xff]
        %v7328 = vld [vmem:[%s4415 + $0x520] sm:$0xff]
        %v7329 = vld [vmem:[%s4415 + $0x528] sm:$0xff]
        %v7330 = vld [vmem:[%s4415 + $0x530] sm:$0xff]
        %v7331 = vld [vmem:[%s4415 + $0x538] sm:$0xff]
        %v7332 = vld [vmem:[%s5678] sm:$0xff]
        %v7333 = vld [vmem:[%s5678 + $0x8] sm:$0xff]
        %v7334 = vld [vmem:[%s5678 + $0x10] sm:$0xff]
        %v7335 = vld [vmem:[%s5678 + $0x18] sm:$0xff]
        %v7336 = vld [vmem:[%s5678 + $0x20] sm:$0xff]
        %v7337 = vld [vmem:[%s5678 + $0x28] sm:$0xff]
        %v7338 = vld [vmem:[%s5678 + $0x30] sm:$0xff]
        %v7339 = vld [vmem:[%s5678 + $0x38] sm:$0xff]
        %v7340 = vld [vmem:[%s5678 + $0x40] sm:$0xff]
        %v7341 = vld [vmem:[%s5678 + $0x48] sm:$0xff]
        %v7342 = vld [vmem:[%s5678 + $0x50] sm:$0xff]
        %v7343 = vld [vmem:[%s5678 + $0x58] sm:$0xff]
        %v7344 = vld [vmem:[%s5678 + $0x60] sm:$0xff]
        %v7345 = vld [vmem:[%s5678 + $0x68] sm:$0xff]
        %v7346 = vld [vmem:[%s5678 + $0x70] sm:$0xff]
        %v7347 = vld [vmem:[%s5678 + $0x78] sm:$0xff]
        %v7348 = vld [vmem:[%s5678 + $0x80] sm:$0xff]
        %v7349 = vld [vmem:[%s5678 + $0x88] sm:$0xff]
        %v7350 = vld [vmem:[%s5678 + $0x90] sm:$0xff]
        %v7351 = vld [vmem:[%s5678 + $0x98] sm:$0xff]
        %v7352 = vld [vmem:[%s5678 + $0xa0] sm:$0xff]
        %v7353 = vld [vmem:[%s5678 + $0xa8] sm:$0xff]
        %v7354 = vld [vmem:[%s5678 + $0xb0] sm:$0xff]
        %v7355 = vld [vmem:[%s5678 + $0xb8] sm:$0xff]
        %v7356 = vld [vmem:[%s5678 + $0xc0] sm:$0xff]
        %v7357 = vld [vmem:[%s5678 + $0xc8] sm:$0xff]
        %v7358 = vld [vmem:[%s5678 + $0xd0] sm:$0xff]
        %v7359 = vld [vmem:[%s5678 + $0xd8] sm:$0xff]
        %v7360 = vld [vmem:[%s5678 + $0xe0] sm:$0xff]
        %v7361 = vld [vmem:[%s5678 + $0xe8] sm:$0xff]
        %v7362 = vld [vmem:[%s5678 + $0xf0] sm:$0xff]
        %v7363 = vld [vmem:[%s5678 + $0xf8] sm:$0xff]
        %v7364 = vld [vmem:[%s5678 + $0x100] sm:$0xff]
        %v7365 = vld [vmem:[%s5678 + $0x108] sm:$0xff]
        %v7366 = vld [vmem:[%s5678 + $0x110] sm:$0xff]
        %v7367 = vld [vmem:[%s5678 + $0x118] sm:$0xff]
        %v7368 = vld [vmem:[%s5678 + $0x120] sm:$0xff]
        %v7369 = vld [vmem:[%s5678 + $0x128] sm:$0xff]
        %v7370 = vld [vmem:[%s5678 + $0x130] sm:$0xff]
        %v7371 = vld [vmem:[%s5678 + $0x138] sm:$0xff]
        %v7372 = vld [vmem:[%s5678 + $0x140] sm:$0xff]
        %v7373 = vld [vmem:[%s5678 + $0x148] sm:$0xff]
        %v7374 = vld [vmem:[%s5678 + $0x150] sm:$0xff]
        %v7375 = vld [vmem:[%s5678 + $0x158] sm:$0xff]
        %v7376 = vld [vmem:[%s5678 + $0x160] sm:$0xff]
        %v7377 = vld [vmem:[%s5678 + $0x168] sm:$0xff]
        %v7378 = vld [vmem:[%s5678 + $0x170] sm:$0xff]
        %v7379 = vld [vmem:[%s5678 + $0x178] sm:$0xff]
        %v7380 = vld [vmem:[%s5678 + $0x180] sm:$0xff]
        %v7381 = vld [vmem:[%s5678 + $0x188] sm:$0xff]
        %v7382 = vld [vmem:[%s5678 + $0x190] sm:$0xff]
        %v7383 = vld [vmem:[%s5678 + $0x198] sm:$0xff]
        %v7384 = vld [vmem:[%s5678 + $0x1a0] sm:$0xff]
        %v7385 = vld [vmem:[%s5678 + $0x1a8] sm:$0xff]
        %v7386 = vld [vmem:[%s5678 + $0x1b0] sm:$0xff]
        %v7387 = vld [vmem:[%s5678 + $0x1b8] sm:$0xff]
        %v7388 = vld [vmem:[%s5678 + $0x1c0] sm:$0xff]
        %v7389 = vld [vmem:[%s5678 + $0x1c8] sm:$0xff]
        %v7390 = vld [vmem:[%s5678 + $0x1d0] sm:$0xff]
        %v7391 = vld [vmem:[%s5678 + $0x1d8] sm:$0xff]
        %v7392 = vld [vmem:[%s5678 + $0x1e0] sm:$0xff]
        %v7393 = vld [vmem:[%s5678 + $0x1e8] sm:$0xff]
        %v7394 = vld [vmem:[%s5678 + $0x1f0] sm:$0xff]
        %v7395 = vld [vmem:[%s5678 + $0x1f8] sm:$0xff]
        %v7396 = vld [vmem:[%s5678 + $0x200] sm:$0xff]
        %v7397 = vld [vmem:[%s5678 + $0x208] sm:$0xff]
        %v7398 = vld [vmem:[%s5678 + $0x210] sm:$0xff]
        %v7399 = vld [vmem:[%s5678 + $0x218] sm:$0xff]
        %v7400 = vld [vmem:[%s5678 + $0x220] sm:$0xff]
        %v7401 = vld [vmem:[%s5678 + $0x228] sm:$0xff]
        %v7402 = vld [vmem:[%s5678 + $0x230] sm:$0xff]
        %v7403 = vld [vmem:[%s5678 + $0x238] sm:$0xff]
        %v7404 = vld [vmem:[%s5678 + $0x240] sm:$0xff]
        %v7405 = vld [vmem:[%s5678 + $0x248] sm:$0xff]
        %v7406 = vld [vmem:[%s5678 + $0x250] sm:$0xff]
        %v7407 = vld [vmem:[%s5678 + $0x258] sm:$0xff]
        %v7408 = vld [vmem:[%s5678 + $0x260] sm:$0xff]
        %v7409 = vld [vmem:[%s5678 + $0x268] sm:$0xff]
        %v7410 = vld [vmem:[%s5678 + $0x270] sm:$0xff]
        %v7411 = vld [vmem:[%s5678 + $0x278] sm:$0xff]
        %v7412 = vld [vmem:[%s5678 + $0x280] sm:$0xff]
        %v7413 = vld [vmem:[%s5678 + $0x288] sm:$0xff]
        %v7414 = vld [vmem:[%s5678 + $0x290] sm:$0xff]
        %v7415 = vld [vmem:[%s5678 + $0x298] sm:$0xff]
        %v7416 = vld [vmem:[%s5678 + $0x2a0] sm:$0xff]
        %v7417 = vld [vmem:[%s5678 + $0x2a8] sm:$0xff]
        %v7418 = vld [vmem:[%s5678 + $0x2b0] sm:$0xff]
        %v7419 = vld [vmem:[%s5678 + $0x2b8] sm:$0xff]
        %v7420 = vld [vmem:[%s5678 + $0x2c0] sm:$0xff]
        %v7421 = vld [vmem:[%s5678 + $0x2c8] sm:$0xff]
        %v7422 = vld [vmem:[%s5678 + $0x2d0] sm:$0xff]
        %v7423 = vld [vmem:[%s5678 + $0x2d8] sm:$0xff]
        %v7424 = vld [vmem:[%s5678 + $0x2e0] sm:$0xff]
        %v7425 = vld [vmem:[%s5678 + $0x2e8] sm:$0xff]
        %v7426 = vld [vmem:[%s5678 + $0x2f0] sm:$0xff]
        %v7427 = vld [vmem:[%s5678 + $0x2f8] sm:$0xff]
        %v7428 = vld [vmem:[%s5678 + $0x300] sm:$0xff]
        %v7429 = vld [vmem:[%s5678 + $0x308] sm:$0xff]
        %v7430 = vld [vmem:[%s5678 + $0x310] sm:$0xff]
        %v7431 = vld [vmem:[%s5678 + $0x318] sm:$0xff]
        %v7432 = vld [vmem:[%s5678 + $0x320] sm:$0xff]
        %v7433 = vld [vmem:[%s5678 + $0x328] sm:$0xff]
        %v7434 = vld [vmem:[%s5678 + $0x330] sm:$0xff]
        %v7435 = vld [vmem:[%s5678 + $0x338] sm:$0xff]
        %v7436 = vld [vmem:[%s5678 + $0x340] sm:$0xff]
        %v7437 = vld [vmem:[%s5678 + $0x348] sm:$0xff]
        %v7438 = vld [vmem:[%s5678 + $0x350] sm:$0xff]
        %v7439 = vld [vmem:[%s5678 + $0x358] sm:$0xff]
        %v7440 = vld [vmem:[%s5678 + $0x360] sm:$0xff]
        %v7441 = vld [vmem:[%s5678 + $0x368] sm:$0xff]
        %v7442 = vld [vmem:[%s5678 + $0x370] sm:$0xff]
        %v7443 = vld [vmem:[%s5678 + $0x378] sm:$0xff]
        %v7444 = vld [vmem:[%s5678 + $0x380] sm:$0xff]
        %v7445 = vld [vmem:[%s5678 + $0x388] sm:$0xff]
        %v7446 = vld [vmem:[%s5678 + $0x390] sm:$0xff]
        %v7447 = vld [vmem:[%s5678 + $0x398] sm:$0xff]
        %v7448 = vld [vmem:[%s5678 + $0x3a0] sm:$0xff]
        %v7449 = vld [vmem:[%s5678 + $0x3a8] sm:$0xff]
        %v7450 = vld [vmem:[%s5678 + $0x3b0] sm:$0xff]
        %v7451 = vld [vmem:[%s5678 + $0x3b8] sm:$0xff]
        %v7452 = vld [vmem:[%s5678 + $0x3c0] sm:$0xff]
        %v7453 = vld [vmem:[%s5678 + $0x3c8] sm:$0xff]
        %v7454 = vld [vmem:[%s5678 + $0x3d0] sm:$0xff]
        %v7455 = vld [vmem:[%s5678 + $0x3d8] sm:$0xff]
        %v7456 = vld [vmem:[%s5678 + $0x3e0] sm:$0xff]
        %v7457 = vld [vmem:[%s5678 + $0x3e8] sm:$0xff]
        %v7458 = vld [vmem:[%s5678 + $0x3f0] sm:$0xff]
        %v7459 = vld [vmem:[%s5678 + $0x3f8] sm:$0xff]
        %v7460 = vld [vmem:[%s5678 + $0x400] sm:$0xff]
        %v7461 = vld [vmem:[%s5678 + $0x408] sm:$0xff]
        %v7462 = vld [vmem:[%s5678 + $0x410] sm:$0xff]
        %v7463 = vld [vmem:[%s5678 + $0x418] sm:$0xff]
        %v7464 = vld [vmem:[%s5678 + $0x420] sm:$0xff]
        %v7465 = vld [vmem:[%s5678 + $0x428] sm:$0xff]
        %v7466 = vld [vmem:[%s5678 + $0x430] sm:$0xff]
        %v7467 = vld [vmem:[%s5678 + $0x438] sm:$0xff]
        %v7468 = vld [vmem:[%s5678 + $0x440] sm:$0xff]
        %v7469 = vld [vmem:[%s5678 + $0x448] sm:$0xff]
        %v7470 = vld [vmem:[%s5678 + $0x450] sm:$0xff]
        %v7471 = vld [vmem:[%s5678 + $0x458] sm:$0xff]
        %v7472 = vld [vmem:[%s5678 + $0x460] sm:$0xff]
        %v7473 = vld [vmem:[%s5678 + $0x468] sm:$0xff]
        %v7474 = vld [vmem:[%s5678 + $0x470] sm:$0xff]
        %v7475 = vld [vmem:[%s5678 + $0x478] sm:$0xff]
        %v7476 = vld [vmem:[%s5678 + $0x480] sm:$0xff]
        %v7477 = vld [vmem:[%s5678 + $0x488] sm:$0xff]
        %v7478 = vld [vmem:[%s5678 + $0x490] sm:$0xff]
        %v7479 = vld [vmem:[%s5678 + $0x498] sm:$0xff]
        %v7480 = vld [vmem:[%s5678 + $0x4a0] sm:$0xff]
        %v7481 = vld [vmem:[%s5678 + $0x4a8] sm:$0xff]
        %v7482 = vld [vmem:[%s5678 + $0x4b0] sm:$0xff]
        %v7483 = vld [vmem:[%s5678 + $0x4b8] sm:$0xff]
        %v7484 = vld [vmem:[%s5678 + $0x4c0] sm:$0xff]
        %v7485 = vld [vmem:[%s5678 + $0x4c8] sm:$0xff]
        %v7486 = vld [vmem:[%s5678 + $0x4d0] sm:$0xff]
        %v7487 = vld [vmem:[%s5678 + $0x4d8] sm:$0xff]
        %v7488 = vld [vmem:[%s5678 + $0x4e0] sm:$0xff]
        %v7489 = vld [vmem:[%s5678 + $0x4e8] sm:$0xff]
        %v7490 = vld [vmem:[%s5678 + $0x4f0] sm:$0xff]
        %v7491 = vld [vmem:[%s5678 + $0x4f8] sm:$0xff]
        %v7492 = vld [vmem:[%s5678 + $0x500] sm:$0xff]
        %v7493 = vld [vmem:[%s5678 + $0x508] sm:$0xff]
        %v7494 = vld [vmem:[%s5678 + $0x510] sm:$0xff]
        %v7495 = vld [vmem:[%s5678 + $0x518] sm:$0xff]
        %v7496 = vld [vmem:[%s5678 + $0x520] sm:$0xff]
        %v7497 = vld [vmem:[%s5678 + $0x528] sm:$0xff]
        %v7498 = vld [vmem:[%s5678 + $0x530] sm:$0xff]
        %v7499 = vld [vmem:[%s5678 + $0x538] sm:$0xff]
        %v7500 = vsub.f32 %v7164, %v7332
        %v7501 = vsub.f32 %v7165, %v7333
        %v7502 = vsub.f32 %v7166, %v7334
        %v7503 = vsub.f32 %v7167, %v7335
        %v7504 = vsub.f32 %v7168, %v7336
        %v7505 = vsub.f32 %v7169, %v7337
        %v7506 = vsub.f32 %v7170, %v7338
        %v7507 = vsub.f32 %v7171, %v7339
        %v7508 = vsub.f32 %v7172, %v7340
        %v7509 = vsub.f32 %v7173, %v7341
        %v7510 = vsub.f32 %v7174, %v7342
        %v7511 = vsub.f32 %v7175, %v7343
        %v7512 = vsub.f32 %v7176, %v7344
        %v7513 = vsub.f32 %v7177, %v7345
        %v7514 = vsub.f32 %v7178, %v7346
        %v7515 = vsub.f32 %v7179, %v7347
        %v7516 = vsub.f32 %v7180, %v7348
        %v7517 = vsub.f32 %v7181, %v7349
        %v7518 = vsub.f32 %v7182, %v7350
        %v7519 = vsub.f32 %v7183, %v7351
        %v7520 = vsub.f32 %v7184, %v7352
        %v7521 = vsub.f32 %v7185, %v7353
        %v7522 = vsub.f32 %v7186, %v7354
        %v7523 = vsub.f32 %v7187, %v7355
        %v7524 = vsub.f32 %v7188, %v7356
        %v7525 = vsub.f32 %v7189, %v7357
        %v7526 = vsub.f32 %v7190, %v7358
        %v7527 = vsub.f32 %v7191, %v7359
        %v7528 = vsub.f32 %v7192, %v7360
        %v7529 = vsub.f32 %v7193, %v7361
        %v7530 = vsub.f32 %v7194, %v7362
        %v7531 = vsub.f32 %v7195, %v7363
        %v7532 = vsub.f32 %v7196, %v7364
        %v7533 = vsub.f32 %v7197, %v7365
        %v7534 = vsub.f32 %v7198, %v7366
        %v7535 = vsub.f32 %v7199, %v7367
        %v7536 = vsub.f32 %v7200, %v7368
        %v7537 = vsub.f32 %v7201, %v7369
        %v7538 = vsub.f32 %v7202, %v7370
        %v7539 = vsub.f32 %v7203, %v7371
        %v7540 = vsub.f32 %v7204, %v7372
        %v7541 = vsub.f32 %v7205, %v7373
        %v7542 = vsub.f32 %v7206, %v7374
        %v7543 = vsub.f32 %v7207, %v7375
        %v7544 = vsub.f32 %v7208, %v7376
        %v7545 = vsub.f32 %v7209, %v7377
        %v7546 = vsub.f32 %v7210, %v7378
        %v7547 = vsub.f32 %v7211, %v7379
        %v7548 = vsub.f32 %v7212, %v7380
        %v7549 = vsub.f32 %v7213, %v7381
        %v7550 = vsub.f32 %v7214, %v7382
        %v7551 = vsub.f32 %v7215, %v7383
        %v7552 = vsub.f32 %v7216, %v7384
        %v7553 = vsub.f32 %v7217, %v7385
        %v7554 = vsub.f32 %v7218, %v7386
        %v7555 = vsub.f32 %v7219, %v7387
        %v7556 = vsub.f32 %v7220, %v7388
        %v7557 = vsub.f32 %v7221, %v7389
        %v7558 = vsub.f32 %v7222, %v7390
        %v7559 = vsub.f32 %v7223, %v7391
        %v7560 = vsub.f32 %v7224, %v7392
        %v7561 = vsub.f32 %v7225, %v7393
        %v7562 = vsub.f32 %v7226, %v7394
        %v7563 = vsub.f32 %v7227, %v7395
        %v7564 = vsub.f32 %v7228, %v7396
        %v7565 = vsub.f32 %v7229, %v7397
        %v7566 = vsub.f32 %v7230, %v7398
        %v7567 = vsub.f32 %v7231, %v7399
        %v7568 = vsub.f32 %v7232, %v7400
        %v7569 = vsub.f32 %v7233, %v7401
        %v7570 = vsub.f32 %v7234, %v7402
        %v7571 = vsub.f32 %v7235, %v7403
        %v7572 = vsub.f32 %v7236, %v7404
        %v7573 = vsub.f32 %v7237, %v7405
        %v7574 = vsub.f32 %v7238, %v7406
        %v7575 = vsub.f32 %v7239, %v7407
        %v7576 = vsub.f32 %v7240, %v7408
        %v7577 = vsub.f32 %v7241, %v7409
        %v7578 = vsub.f32 %v7242, %v7410
        %v7579 = vsub.f32 %v7243, %v7411
        %v7580 = vsub.f32 %v7244, %v7412
        %v7581 = vsub.f32 %v7245, %v7413
        %v7582 = vsub.f32 %v7246, %v7414
        %v7583 = vsub.f32 %v7247, %v7415
        %v7584 = vsub.f32 %v7248, %v7416
        %v7585 = vsub.f32 %v7249, %v7417
        %v7586 = vsub.f32 %v7250, %v7418
        %v7587 = vsub.f32 %v7251, %v7419
        %v7588 = vsub.f32 %v7252, %v7420
        %v7589 = vsub.f32 %v7253, %v7421
        %v7590 = vsub.f32 %v7254, %v7422
        %v7591 = vsub.f32 %v7255, %v7423
        %v7592 = vsub.f32 %v7256, %v7424
        %v7593 = vsub.f32 %v7257, %v7425
        %v7594 = vsub.f32 %v7258, %v7426
        %v7595 = vsub.f32 %v7259, %v7427
        %v7596 = vsub.f32 %v7260, %v7428
        %v7597 = vsub.f32 %v7261, %v7429
        %v7598 = vsub.f32 %v7262, %v7430
        %v7599 = vsub.f32 %v7263, %v7431
        %v7600 = vsub.f32 %v7264, %v7432
        %v7601 = vsub.f32 %v7265, %v7433
        %v7602 = vsub.f32 %v7266, %v7434
        %v7603 = vsub.f32 %v7267, %v7435
        %v7604 = vsub.f32 %v7268, %v7436
        %v7605 = vsub.f32 %v7269, %v7437
        %v7606 = vsub.f32 %v7270, %v7438
        %v7607 = vsub.f32 %v7271, %v7439
        %v7608 = vsub.f32 %v7272, %v7440
        %v7609 = vsub.f32 %v7273, %v7441
        %v7610 = vsub.f32 %v7274, %v7442
        %v7611 = vsub.f32 %v7275, %v7443
        %v7612 = vsub.f32 %v7276, %v7444
        %v7613 = vsub.f32 %v7277, %v7445
        %v7614 = vsub.f32 %v7278, %v7446
        %v7615 = vsub.f32 %v7279, %v7447
        %v7616 = vsub.f32 %v7280, %v7448
        %v7617 = vsub.f32 %v7281, %v7449
        %v7618 = vsub.f32 %v7282, %v7450
        %v7619 = vsub.f32 %v7283, %v7451
        %v7620 = vsub.f32 %v7284, %v7452
        %v7621 = vsub.f32 %v7285, %v7453
        %v7622 = vsub.f32 %v7286, %v7454
        %v7623 = vsub.f32 %v7287, %v7455
        %v7624 = vsub.f32 %v7288, %v7456
        %v7625 = vsub.f32 %v7289, %v7457
        %v7626 = vsub.f32 %v7290, %v7458
        %v7627 = vsub.f32 %v7291, %v7459
        %v7628 = vsub.f32 %v7292, %v7460
        %v7629 = vsub.f32 %v7293, %v7461
        %v7630 = vsub.f32 %v7294, %v7462
        %v7631 = vsub.f32 %v7295, %v7463
        %v7632 = vsub.f32 %v7296, %v7464
        %v7633 = vsub.f32 %v7297, %v7465
        %v7634 = vsub.f32 %v7298, %v7466
        %v7635 = vsub.f32 %v7299, %v7467
        %v7636 = vsub.f32 %v7300, %v7468
        %v7637 = vsub.f32 %v7301, %v7469
        %v7638 = vsub.f32 %v7302, %v7470
        %v7639 = vsub.f32 %v7303, %v7471
        %v7640 = vsub.f32 %v7304, %v7472
        %v7641 = vsub.f32 %v7305, %v7473
        %v7642 = vsub.f32 %v7306, %v7474
        %v7643 = vsub.f32 %v7307, %v7475
        %v7644 = vsub.f32 %v7308, %v7476
        %v7645 = vsub.f32 %v7309, %v7477
        %v7646 = vsub.f32 %v7310, %v7478
        %v7647 = vsub.f32 %v7311, %v7479
        %v7648 = vsub.f32 %v7312, %v7480
        %v7649 = vsub.f32 %v7313, %v7481
        %v7650 = vsub.f32 %v7314, %v7482
        %v7651 = vsub.f32 %v7315, %v7483
        %v7652 = vsub.f32 %v7316, %v7484
        %v7653 = vsub.f32 %v7317, %v7485
        %v7654 = vsub.f32 %v7318, %v7486
        %v7655 = vsub.f32 %v7319, %v7487
        %v7656 = vsub.f32 %v7320, %v7488
        %v7657 = vsub.f32 %v7321, %v7489
        %v7658 = vsub.f32 %v7322, %v7490
        %v7659 = vsub.f32 %v7323, %v7491
        %v7660 = vsub.f32 %v7324, %v7492
        %v7661 = vsub.f32 %v7325, %v7493
        %v7662 = vsub.f32 %v7326, %v7494
        %v7663 = vsub.f32 %v7327, %v7495
        %v7664 = vsub.f32 %v7328, %v7496
        %v7665 = vsub.f32 %v7329, %v7497
        %v7666 = vsub.f32 %v7330, %v7498
        %v7667 = vsub.f32 %v7331, %v7499
        %v7668 = vmul.f32 %v7108, %v7500
        %v7669 = vmul.f32 %v7109, %v7501
        %v7670 = vmul.f32 %v7110, %v7502
        %v7671 = vmul.f32 %v7111, %v7503
        %v7672 = vmul.f32 %v7112, %v7504
        %v7673 = vmul.f32 %v7113, %v7505
        %v7674 = vmul.f32 %v7114, %v7506
        %v7675 = vmul.f32 %v7115, %v7507
        %v7676 = vmul.f32 %v7116, %v7508
        %v7677 = vmul.f32 %v7117, %v7509
        %v7678 = vmul.f32 %v7118, %v7510
        %v7679 = vmul.f32 %v7119, %v7511
        %v7680 = vmul.f32 %v7120, %v7512
        %v7681 = vmul.f32 %v7121, %v7513
        %v7682 = vmul.f32 %v7122, %v7514
        %v7683 = vmul.f32 %v7123, %v7515
        %v7684 = vmul.f32 %v7124, %v7516
        %v7685 = vmul.f32 %v7125, %v7517
        %v7686 = vmul.f32 %v7126, %v7518
        %v7687 = vmul.f32 %v7127, %v7519
        %v7688 = vmul.f32 %v7128, %v7520
        %v7689 = vmul.f32 %v7129, %v7521
        %v7690 = vmul.f32 %v7130, %v7522
        %v7691 = vmul.f32 %v7131, %v7523
        %v7692 = vmul.f32 %v7132, %v7524
        %v7693 = vmul.f32 %v7133, %v7525
        %v7694 = vmul.f32 %v7134, %v7526
        %v7695 = vmul.f32 %v7135, %v7527
        %v7696 = vmul.f32 %v7136, %v7528
        %v7697 = vmul.f32 %v7137, %v7529
        %v7698 = vmul.f32 %v7138, %v7530
        %v7699 = vmul.f32 %v7139, %v7531
        %v7700 = vmul.f32 %v7140, %v7532
        %v7701 = vmul.f32 %v7141, %v7533
        %v7702 = vmul.f32 %v7142, %v7534
        %v7703 = vmul.f32 %v7143, %v7535
        %v7704 = vmul.f32 %v7144, %v7536
        %v7705 = vmul.f32 %v7145, %v7537
        %v7706 = vmul.f32 %v7146, %v7538
        %v7707 = vmul.f32 %v7147, %v7539
        %v7708 = vmul.f32 %v7148, %v7540
        %v7709 = vmul.f32 %v7149, %v7541
        %v7710 = vmul.f32 %v7150, %v7542
        %v7711 = vmul.f32 %v7151, %v7543
        %v7712 = vmul.f32 %v7152, %v7544
        %v7713 = vmul.f32 %v7153, %v7545
        %v7714 = vmul.f32 %v7154, %v7546
        %v7715 = vmul.f32 %v7155, %v7547
        %v7716 = vmul.f32 %v7156, %v7548
        %v7717 = vmul.f32 %v7157, %v7549
        %v7718 = vmul.f32 %v7158, %v7550
        %v7719 = vmul.f32 %v7159, %v7551
        %v7720 = vmul.f32 %v7160, %v7552
        %v7721 = vmul.f32 %v7161, %v7553
        %v7722 = vmul.f32 %v7162, %v7554
        %v7723 = vmul.f32 %v7163, %v7555
        %v7724 = vmul.f32 %v7108, %v7556
        %v7725 = vmul.f32 %v7109, %v7557
        %v7726 = vmul.f32 %v7110, %v7558
        %v7727 = vmul.f32 %v7111, %v7559
        %v7728 = vmul.f32 %v7112, %v7560
        %v7729 = vmul.f32 %v7113, %v7561
        %v7730 = vmul.f32 %v7114, %v7562
        %v7731 = vmul.f32 %v7115, %v7563
        %v7732 = vmul.f32 %v7116, %v7564
        %v7733 = vmul.f32 %v7117, %v7565
        %v7734 = vmul.f32 %v7118, %v7566
        %v7735 = vmul.f32 %v7119, %v7567
        %v7736 = vmul.f32 %v7120, %v7568
        %v7737 = vmul.f32 %v7121, %v7569
        %v7738 = vmul.f32 %v7122, %v7570
        %v7739 = vmul.f32 %v7123, %v7571
        %v7740 = vmul.f32 %v7124, %v7572
        %v7741 = vmul.f32 %v7125, %v7573
        %v7742 = vmul.f32 %v7126, %v7574
        %v7743 = vmul.f32 %v7127, %v7575
        %v7744 = vmul.f32 %v7128, %v7576
        %v7745 = vmul.f32 %v7129, %v7577
        %v7746 = vmul.f32 %v7130, %v7578
        %v7747 = vmul.f32 %v7131, %v7579
        %v7748 = vmul.f32 %v7132, %v7580
        %v7749 = vmul.f32 %v7133, %v7581
        %v7750 = vmul.f32 %v7134, %v7582
        %v7751 = vmul.f32 %v7135, %v7583
        %v7752 = vmul.f32 %v7136, %v7584
        %v7753 = vmul.f32 %v7137, %v7585
        %v7754 = vmul.f32 %v7138, %v7586
        %v7755 = vmul.f32 %v7139, %v7587
        %v7756 = vmul.f32 %v7140, %v7588
        %v7757 = vmul.f32 %v7141, %v7589
        %v7758 = vmul.f32 %v7142, %v7590
        %v7759 = vmul.f32 %v7143, %v7591
        %v7760 = vmul.f32 %v7144, %v7592
        %v7761 = vmul.f32 %v7145, %v7593
        %v7762 = vmul.f32 %v7146, %v7594
        %v7763 = vmul.f32 %v7147, %v7595
        %v7764 = vmul.f32 %v7148, %v7596
        %v7765 = vmul.f32 %v7149, %v7597
        %v7766 = vmul.f32 %v7150, %v7598
        %v7767 = vmul.f32 %v7151, %v7599
        %v7768 = vmul.f32 %v7152, %v7600
        %v7769 = vmul.f32 %v7153, %v7601
        %v7770 = vmul.f32 %v7154, %v7602
        %v7771 = vmul.f32 %v7155, %v7603
        %v7772 = vmul.f32 %v7156, %v7604
        %v7773 = vmul.f32 %v7157, %v7605
        %v7774 = vmul.f32 %v7158, %v7606
        %v7775 = vmul.f32 %v7159, %v7607
        %v7776 = vmul.f32 %v7160, %v7608
        %v7777 = vmul.f32 %v7161, %v7609
        %v7778 = vmul.f32 %v7162, %v7610
        %v7779 = vmul.f32 %v7163, %v7611
        %v7780 = vmul.f32 %v7108, %v7612
        %v7781 = vmul.f32 %v7109, %v7613
        %v7782 = vmul.f32 %v7110, %v7614
        %v7783 = vmul.f32 %v7111, %v7615
        %v7784 = vmul.f32 %v7112, %v7616
        %v7785 = vmul.f32 %v7113, %v7617
        %v7786 = vmul.f32 %v7114, %v7618
        %v7787 = vmul.f32 %v7115, %v7619
        %v7788 = vmul.f32 %v7116, %v7620
        %v7789 = vmul.f32 %v7117, %v7621
        %v7790 = vmul.f32 %v7118, %v7622
        %v7791 = vmul.f32 %v7119, %v7623
        %v7792 = vmul.f32 %v7120, %v7624
        %v7793 = vmul.f32 %v7121, %v7625
        %v7794 = vmul.f32 %v7122, %v7626
        %v7795 = vmul.f32 %v7123, %v7627
        %v7796 = vmul.f32 %v7124, %v7628
        %v7797 = vmul.f32 %v7125, %v7629
        %v7798 = vmul.f32 %v7126, %v7630
        %v7799 = vmul.f32 %v7127, %v7631
        %v7800 = vmul.f32 %v7128, %v7632
        %v7801 = vmul.f32 %v7129, %v7633
        %v7802 = vmul.f32 %v7130, %v7634
        %v7803 = vmul.f32 %v7131, %v7635
        %v7804 = vmul.f32 %v7132, %v7636
        %v7805 = vmul.f32 %v7133, %v7637
        %v7806 = vmul.f32 %v7134, %v7638
        %v7807 = vmul.f32 %v7135, %v7639
        %v7808 = vmul.f32 %v7136, %v7640
        %v7809 = vmul.f32 %v7137, %v7641
        %v7810 = vmul.f32 %v7138, %v7642
        %v7811 = vmul.f32 %v7139, %v7643
        %v7812 = vmul.f32 %v7140, %v7644
        %v7813 = vmul.f32 %v7141, %v7645
        %v7814 = vmul.f32 %v7142, %v7646
        %v7815 = vmul.f32 %v7143, %v7647
        %v7816 = vmul.f32 %v7144, %v7648
        %v7817 = vmul.f32 %v7145, %v7649
        %v7818 = vmul.f32 %v7146, %v7650
        %v7819 = vmul.f32 %v7147, %v7651
        %v7820 = vmul.f32 %v7148, %v7652
        %v7821 = vmul.f32 %v7149, %v7653
        %v7822 = vmul.f32 %v7150, %v7654
        %v7823 = vmul.f32 %v7151, %v7655
        %v7824 = vmul.f32 %v7152, %v7656
        %v7825 = vmul.f32 %v7153, %v7657
        %v7826 = vmul.f32 %v7154, %v7658
        %v7827 = vmul.f32 %v7155, %v7659
        %v7828 = vmul.f32 %v7156, %v7660
        %v7829 = vmul.f32 %v7157, %v7661
        %v7830 = vmul.f32 %v7158, %v7662
        %v7831 = vmul.f32 %v7159, %v7663
        %v7832 = vmul.f32 %v7160, %v7664
        %v7833 = vmul.f32 %v7161, %v7665
        %v7834 = vmul.f32 %v7162, %v7666
        %v7835 = vmul.f32 %v7163, %v7667
        %v7836 = vadd.f32 %v7332, %v7668
        %v7837 = vadd.f32 %v7333, %v7669
        %v7838 = vadd.f32 %v7334, %v7670
        %v7839 = vadd.f32 %v7335, %v7671
        %v7840 = vadd.f32 %v7336, %v7672
        %v7841 = vadd.f32 %v7337, %v7673
        %v7842 = vadd.f32 %v7338, %v7674
        %v7843 = vadd.f32 %v7339, %v7675
        %v7844 = vadd.f32 %v7340, %v7676
        %v7845 = vadd.f32 %v7341, %v7677
        %v7846 = vadd.f32 %v7342, %v7678
        %v7847 = vadd.f32 %v7343, %v7679
        %v7848 = vadd.f32 %v7344, %v7680
        %v7849 = vadd.f32 %v7345, %v7681
        %v7850 = vadd.f32 %v7346, %v7682
        %v7851 = vadd.f32 %v7347, %v7683
        %v7852 = vadd.f32 %v7348, %v7684
        %v7853 = vadd.f32 %v7349, %v7685
        %v7854 = vadd.f32 %v7350, %v7686
        %v7855 = vadd.f32 %v7351, %v7687
        %v7856 = vadd.f32 %v7352, %v7688
        %v7857 = vadd.f32 %v7353, %v7689
        %v7858 = vadd.f32 %v7354, %v7690
        %v7859 = vadd.f32 %v7355, %v7691
        %v7860 = vadd.f32 %v7356, %v7692
        %v7861 = vadd.f32 %v7357, %v7693
        %v7862 = vadd.f32 %v7358, %v7694
        %v7863 = vadd.f32 %v7359, %v7695
        %v7864 = vadd.f32 %v7360, %v7696
        %v7865 = vadd.f32 %v7361, %v7697
        %v7866 = vadd.f32 %v7362, %v7698
        %v7867 = vadd.f32 %v7363, %v7699
        %v7868 = vadd.f32 %v7364, %v7700
        %v7869 = vadd.f32 %v7365, %v7701
        %v7870 = vadd.f32 %v7366, %v7702
        %v7871 = vadd.f32 %v7367, %v7703
        %v7872 = vadd.f32 %v7368, %v7704
        %v7873 = vadd.f32 %v7369, %v7705
        %v7874 = vadd.f32 %v7370, %v7706
        %v7875 = vadd.f32 %v7371, %v7707
        %v7876 = vadd.f32 %v7372, %v7708
        %v7877 = vadd.f32 %v7373, %v7709
        %v7878 = vadd.f32 %v7374, %v7710
        %v7879 = vadd.f32 %v7375, %v7711
        %v7880 = vadd.f32 %v7376, %v7712
        %v7881 = vadd.f32 %v7377, %v7713
        %v7882 = vadd.f32 %v7378, %v7714
        %v7883 = vadd.f32 %v7379, %v7715
        %v7884 = vadd.f32 %v7380, %v7716
        %v7885 = vadd.f32 %v7381, %v7717
        %v7886 = vadd.f32 %v7382, %v7718
        %v7887 = vadd.f32 %v7383, %v7719
        %v7888 = vadd.f32 %v7384, %v7720
        %v7889 = vadd.f32 %v7385, %v7721
        %v7890 = vadd.f32 %v7386, %v7722
        %v7891 = vadd.f32 %v7387, %v7723
        %v7892 = vadd.f32 %v7388, %v7724
        %v7893 = vadd.f32 %v7389, %v7725
        %v7894 = vadd.f32 %v7390, %v7726
        %v7895 = vadd.f32 %v7391, %v7727
        %v7896 = vadd.f32 %v7392, %v7728
        %v7897 = vadd.f32 %v7393, %v7729
        %v7898 = vadd.f32 %v7394, %v7730
        %v7899 = vadd.f32 %v7395, %v7731
        %v7900 = vadd.f32 %v7396, %v7732
        %v7901 = vadd.f32 %v7397, %v7733
        %v7902 = vadd.f32 %v7398, %v7734
        %v7903 = vadd.f32 %v7399, %v7735
        %v7904 = vadd.f32 %v7400, %v7736
        %v7905 = vadd.f32 %v7401, %v7737
        %v7906 = vadd.f32 %v7402, %v7738
        %v7907 = vadd.f32 %v7403, %v7739
        %v7908 = vadd.f32 %v7404, %v7740
        %v7909 = vadd.f32 %v7405, %v7741
        %v7910 = vadd.f32 %v7406, %v7742
        %v7911 = vadd.f32 %v7407, %v7743
        %v7912 = vadd.f32 %v7408, %v7744
        %v7913 = vadd.f32 %v7409, %v7745
        %v7914 = vadd.f32 %v7410, %v7746
        %v7915 = vadd.f32 %v7411, %v7747
        %v7916 = vadd.f32 %v7412, %v7748
        %v7917 = vadd.f32 %v7413, %v7749
        %v7918 = vadd.f32 %v7414, %v7750
        %v7919 = vadd.f32 %v7415, %v7751
        %v7920 = vadd.f32 %v7416, %v7752
        %v7921 = vadd.f32 %v7417, %v7753
        %v7922 = vadd.f32 %v7418, %v7754
        %v7923 = vadd.f32 %v7419, %v7755
        %v7924 = vadd.f32 %v7420, %v7756
        %v7925 = vadd.f32 %v7421, %v7757
        %v7926 = vadd.f32 %v7422, %v7758
        %v7927 = vadd.f32 %v7423, %v7759
        %v7928 = vadd.f32 %v7424, %v7760
        %v7929 = vadd.f32 %v7425, %v7761
        %v7930 = vadd.f32 %v7426, %v7762
        %v7931 = vadd.f32 %v7427, %v7763
        %v7932 = vadd.f32 %v7428, %v7764
        %v7933 = vadd.f32 %v7429, %v7765
        %v7934 = vadd.f32 %v7430, %v7766
        %v7935 = vadd.f32 %v7431, %v7767
        %v7936 = vadd.f32 %v7432, %v7768
        %v7937 = vadd.f32 %v7433, %v7769
        %v7938 = vadd.f32 %v7434, %v7770
        %v7939 = vadd.f32 %v7435, %v7771
        %v7940 = vadd.f32 %v7436, %v7772
        %v7941 = vadd.f32 %v7437, %v7773
        %v7942 = vadd.f32 %v7438, %v7774
        %v7943 = vadd.f32 %v7439, %v7775
        %v7944 = vadd.f32 %v7440, %v7776
        %v7945 = vadd.f32 %v7441, %v7777
        %v7946 = vadd.f32 %v7442, %v7778
        %v7947 = vadd.f32 %v7443, %v7779
        %v7948 = vadd.f32 %v7444, %v7780
        %v7949 = vadd.f32 %v7445, %v7781
        %v7950 = vadd.f32 %v7446, %v7782
        %v7951 = vadd.f32 %v7447, %v7783
        %v7952 = vadd.f32 %v7448, %v7784
        %v7953 = vadd.f32 %v7449, %v7785
        %v7954 = vadd.f32 %v7450, %v7786
        %v7955 = vadd.f32 %v7451, %v7787
        %v7956 = vadd.f32 %v7452, %v7788
        %v7957 = vadd.f32 %v7453, %v7789
        %v7958 = vadd.f32 %v7454, %v7790
        %v7959 = vadd.f32 %v7455, %v7791
        %v7960 = vadd.f32 %v7456, %v7792
        %v7961 = vadd.f32 %v7457, %v7793
        %v7962 = vadd.f32 %v7458, %v7794
        %v7963 = vadd.f32 %v7459, %v7795
        %v7964 = vadd.f32 %v7460, %v7796
        %v7965 = vadd.f32 %v7461, %v7797
        %v7966 = vadd.f32 %v7462, %v7798
        %v7967 = vadd.f32 %v7463, %v7799
        %v7968 = vadd.f32 %v7464, %v7800
        %v7969 = vadd.f32 %v7465, %v7801
        %v7970 = vadd.f32 %v7466, %v7802
        %v7971 = vadd.f32 %v7467, %v7803
        %v7972 = vadd.f32 %v7468, %v7804
        %v7973 = vadd.f32 %v7469, %v7805
        %v7974 = vadd.f32 %v7470, %v7806
        %v7975 = vadd.f32 %v7471, %v7807
        %v7976 = vadd.f32 %v7472, %v7808
        %v7977 = vadd.f32 %v7473, %v7809
        %v7978 = vadd.f32 %v7474, %v7810
        %v7979 = vadd.f32 %v7475, %v7811
        %v7980 = vadd.f32 %v7476, %v7812
        %v7981 = vadd.f32 %v7477, %v7813
        %v7982 = vadd.f32 %v7478, %v7814
        %v7983 = vadd.f32 %v7479, %v7815
        %v7984 = vadd.f32 %v7480, %v7816
        %v7985 = vadd.f32 %v7481, %v7817
        %v7986 = vadd.f32 %v7482, %v7818
        %v7987 = vadd.f32 %v7483, %v7819
        %v7988 = vadd.f32 %v7484, %v7820
        %v7989 = vadd.f32 %v7485, %v7821
        %v7990 = vadd.f32 %v7486, %v7822
        %v7991 = vadd.f32 %v7487, %v7823
        %v7992 = vadd.f32 %v7488, %v7824
        %v7993 = vadd.f32 %v7489, %v7825
        %v7994 = vadd.f32 %v7490, %v7826
        %v7995 = vadd.f32 %v7491, %v7827
        %v7996 = vadd.f32 %v7492, %v7828
        %v7997 = vadd.f32 %v7493, %v7829
        %v7998 = vadd.f32 %v7494, %v7830
        %v7999 = vadd.f32 %v7495, %v7831
        %v8000 = vadd.f32 %v7496, %v7832
        %v8001 = vadd.f32 %v7497, %v7833
        %v8002 = vadd.f32 %v7498, %v7834
        %v8003 = vadd.f32 %v7499, %v7835
        %s8004 = scalar_lea.vmem %s439, 1344 [#allocation11]
        %8005 = vst [vmem:[%s8004] sm:$0xff] %v7836
        %8006 = vst.msk [vmem:[%s8004 + $0x8] sm:$0xff] %vm817, %v7837
        %8007 = vst [vmem:[%s8004 + $0x10] sm:$0xff] %v7838
        %8008 = vst.msk [vmem:[%s8004 + $0x18] sm:$0xff] %vm817, %v7839
        %8009 = vst [vmem:[%s8004 + $0x20] sm:$0xff] %v7840
        %8010 = vst.msk [vmem:[%s8004 + $0x28] sm:$0xff] %vm817, %v7841
        %8011 = vst [vmem:[%s8004 + $0x30] sm:$0xff] %v7842
        %8012 = vst.msk [vmem:[%s8004 + $0x38] sm:$0xff] %vm817, %v7843
        %8013 = vst [vmem:[%s8004 + $0x40] sm:$0xff] %v7844
        %8014 = vst.msk [vmem:[%s8004 + $0x48] sm:$0xff] %vm817, %v7845
        %8015 = vst [vmem:[%s8004 + $0x50] sm:$0xff] %v7846
        %8016 = vst.msk [vmem:[%s8004 + $0x58] sm:$0xff] %vm817, %v7847
        %8017 = vst [vmem:[%s8004 + $0x60] sm:$0xff] %v7848
        %8018 = vst.msk [vmem:[%s8004 + $0x68] sm:$0xff] %vm817, %v7849
        %8019 = vst [vmem:[%s8004 + $0x70] sm:$0xff] %v7850
        %8020 = vst.msk [vmem:[%s8004 + $0x78] sm:$0xff] %vm817, %v7851
        %8021 = vst [vmem:[%s8004 + $0x80] sm:$0xff] %v7852
        %8022 = vst.msk [vmem:[%s8004 + $0x88] sm:$0xff] %vm817, %v7853
        %8023 = vst [vmem:[%s8004 + $0x90] sm:$0xff] %v7854
        %8024 = vst.msk [vmem:[%s8004 + $0x98] sm:$0xff] %vm817, %v7855
        %8025 = vst [vmem:[%s8004 + $0xa0] sm:$0xff] %v7856
        %8026 = vst.msk [vmem:[%s8004 + $0xa8] sm:$0xff] %vm817, %v7857
        %8027 = vst [vmem:[%s8004 + $0xb0] sm:$0xff] %v7858
        %8028 = vst.msk [vmem:[%s8004 + $0xb8] sm:$0xff] %vm817, %v7859
        %8029 = vst [vmem:[%s8004 + $0xc0] sm:$0xff] %v7860
        %8030 = vst.msk [vmem:[%s8004 + $0xc8] sm:$0xff] %vm817, %v7861
        %8031 = vst [vmem:[%s8004 + $0xd0] sm:$0xff] %v7862
        %8032 = vst.msk [vmem:[%s8004 + $0xd8] sm:$0xff] %vm817, %v7863
        %8033 = vst [vmem:[%s8004 + $0xe0] sm:$0xff] %v7864
        %8034 = vst.msk [vmem:[%s8004 + $0xe8] sm:$0xff] %vm817, %v7865
        %8035 = vst [vmem:[%s8004 + $0xf0] sm:$0xff] %v7866
        %8036 = vst.msk [vmem:[%s8004 + $0xf8] sm:$0xff] %vm817, %v7867
        %8037 = vst [vmem:[%s8004 + $0x100] sm:$0xff] %v7868
        %8038 = vst.msk [vmem:[%s8004 + $0x108] sm:$0xff] %vm817, %v7869
        %8039 = vst [vmem:[%s8004 + $0x110] sm:$0xff] %v7870
        %8040 = vst.msk [vmem:[%s8004 + $0x118] sm:$0xff] %vm817, %v7871
        %8041 = vst [vmem:[%s8004 + $0x120] sm:$0xff] %v7872
        %8042 = vst.msk [vmem:[%s8004 + $0x128] sm:$0xff] %vm817, %v7873
        %8043 = vst [vmem:[%s8004 + $0x130] sm:$0xff] %v7874
        %8044 = vst.msk [vmem:[%s8004 + $0x138] sm:$0xff] %vm817, %v7875
        %8045 = vst [vmem:[%s8004 + $0x140] sm:$0xff] %v7876
        %8046 = vst.msk [vmem:[%s8004 + $0x148] sm:$0xff] %vm817, %v7877
        %8047 = vst [vmem:[%s8004 + $0x150] sm:$0xff] %v7878
        %8048 = vst.msk [vmem:[%s8004 + $0x158] sm:$0xff] %vm817, %v7879
        %8049 = vst [vmem:[%s8004 + $0x160] sm:$0xff] %v7880
        %8050 = vst.msk [vmem:[%s8004 + $0x168] sm:$0xff] %vm817, %v7881
        %8051 = vst [vmem:[%s8004 + $0x170] sm:$0xff] %v7882
        %8052 = vst.msk [vmem:[%s8004 + $0x178] sm:$0xff] %vm817, %v7883
        %8053 = vst [vmem:[%s8004 + $0x180] sm:$0xff] %v7884
        %8054 = vst.msk [vmem:[%s8004 + $0x188] sm:$0xff] %vm817, %v7885
        %8055 = vst [vmem:[%s8004 + $0x190] sm:$0xff] %v7886
        %8056 = vst.msk [vmem:[%s8004 + $0x198] sm:$0xff] %vm817, %v7887
        %8057 = vst [vmem:[%s8004 + $0x1a0] sm:$0xff] %v7888
        %8058 = vst.msk [vmem:[%s8004 + $0x1a8] sm:$0xff] %vm817, %v7889
        %8059 = vst [vmem:[%s8004 + $0x1b0] sm:$0xff] %v7890
        %8060 = vst.msk [vmem:[%s8004 + $0x1b8] sm:$0xff] %vm817, %v7891
        %8061 = vst [vmem:[%s8004 + $0x1c0] sm:$0xff] %v7892
        %8062 = vst.msk [vmem:[%s8004 + $0x1c8] sm:$0xff] %vm817, %v7893
        %8063 = vst [vmem:[%s8004 + $0x1d0] sm:$0xff] %v7894
        %8064 = vst.msk [vmem:[%s8004 + $0x1d8] sm:$0xff] %vm817, %v7895
        %8065 = vst [vmem:[%s8004 + $0x1e0] sm:$0xff] %v7896
        %8066 = vst.msk [vmem:[%s8004 + $0x1e8] sm:$0xff] %vm817, %v7897
        %8067 = vst [vmem:[%s8004 + $0x1f0] sm:$0xff] %v7898
        %8068 = vst.msk [vmem:[%s8004 + $0x1f8] sm:$0xff] %vm817, %v7899
        %8069 = vst [vmem:[%s8004 + $0x200] sm:$0xff] %v7900
        %8070 = vst.msk [vmem:[%s8004 + $0x208] sm:$0xff] %vm817, %v7901
        %8071 = vst [vmem:[%s8004 + $0x210] sm:$0xff] %v7902
        %8072 = vst.msk [vmem:[%s8004 + $0x218] sm:$0xff] %vm817, %v7903
        %8073 = vst [vmem:[%s8004 + $0x220] sm:$0xff] %v7904
        %8074 = vst.msk [vmem:[%s8004 + $0x228] sm:$0xff] %vm817, %v7905
        %8075 = vst [vmem:[%s8004 + $0x230] sm:$0xff] %v7906
        %8076 = vst.msk [vmem:[%s8004 + $0x238] sm:$0xff] %vm817, %v7907
        %8077 = vst [vmem:[%s8004 + $0x240] sm:$0xff] %v7908
        %8078 = vst.msk [vmem:[%s8004 + $0x248] sm:$0xff] %vm817, %v7909
        %8079 = vst [vmem:[%s8004 + $0x250] sm:$0xff] %v7910
        %8080 = vst.msk [vmem:[%s8004 + $0x258] sm:$0xff] %vm817, %v7911
        %8081 = vst [vmem:[%s8004 + $0x260] sm:$0xff] %v7912
        %8082 = vst.msk [vmem:[%s8004 + $0x268] sm:$0xff] %vm817, %v7913
        %8083 = vst [vmem:[%s8004 + $0x270] sm:$0xff] %v7914
        %8084 = vst.msk [vmem:[%s8004 + $0x278] sm:$0xff] %vm817, %v7915
        %8085 = vst [vmem:[%s8004 + $0x280] sm:$0xff] %v7916
        %8086 = vst.msk [vmem:[%s8004 + $0x288] sm:$0xff] %vm817, %v7917
        %8087 = vst [vmem:[%s8004 + $0x290] sm:$0xff] %v7918
        %8088 = vst.msk [vmem:[%s8004 + $0x298] sm:$0xff] %vm817, %v7919
        %8089 = vst [vmem:[%s8004 + $0x2a0] sm:$0xff] %v7920
        %8090 = vst.msk [vmem:[%s8004 + $0x2a8] sm:$0xff] %vm817, %v7921
        %8091 = vst [vmem:[%s8004 + $0x2b0] sm:$0xff] %v7922
        %8092 = vst.msk [vmem:[%s8004 + $0x2b8] sm:$0xff] %vm817, %v7923
        %8093 = vst [vmem:[%s8004 + $0x2c0] sm:$0xff] %v7924
        %8094 = vst.msk [vmem:[%s8004 + $0x2c8] sm:$0xff] %vm817, %v7925
        %8095 = vst [vmem:[%s8004 + $0x2d0] sm:$0xff] %v7926
        %8096 = vst.msk [vmem:[%s8004 + $0x2d8] sm:$0xff] %vm817, %v7927
        %8097 = vst [vmem:[%s8004 + $0x2e0] sm:$0xff] %v7928
        %8098 = vst.msk [vmem:[%s8004 + $0x2e8] sm:$0xff] %vm817, %v7929
        %8099 = vst [vmem:[%s8004 + $0x2f0] sm:$0xff] %v7930
        %8100 = vst.msk [vmem:[%s8004 + $0x2f8] sm:$0xff] %vm817, %v7931
        %8101 = vst [vmem:[%s8004 + $0x300] sm:$0xff] %v7932
        %8102 = vst.msk [vmem:[%s8004 + $0x308] sm:$0xff] %vm817, %v7933
        %8103 = vst [vmem:[%s8004 + $0x310] sm:$0xff] %v7934
        %8104 = vst.msk [vmem:[%s8004 + $0x318] sm:$0xff] %vm817, %v7935
        %8105 = vst [vmem:[%s8004 + $0x320] sm:$0xff] %v7936
        %8106 = vst.msk [vmem:[%s8004 + $0x328] sm:$0xff] %vm817, %v7937
        %8107 = vst [vmem:[%s8004 + $0x330] sm:$0xff] %v7938
        %8108 = vst.msk [vmem:[%s8004 + $0x338] sm:$0xff] %vm817, %v7939
        %8109 = vst [vmem:[%s8004 + $0x340] sm:$0xff] %v7940
        %8110 = vst.msk [vmem:[%s8004 + $0x348] sm:$0xff] %vm817, %v7941
        %8111 = vst [vmem:[%s8004 + $0x350] sm:$0xff] %v7942
        %8112 = vst.msk [vmem:[%s8004 + $0x358] sm:$0xff] %vm817, %v7943
        %8113 = vst [vmem:[%s8004 + $0x360] sm:$0xff] %v7944
        %8114 = vst.msk [vmem:[%s8004 + $0x368] sm:$0xff] %vm817, %v7945
        %8115 = vst [vmem:[%s8004 + $0x370] sm:$0xff] %v7946
        %8116 = vst.msk [vmem:[%s8004 + $0x378] sm:$0xff] %vm817, %v7947
        %8117 = vst [vmem:[%s8004 + $0x380] sm:$0xff] %v7948
        %8118 = vst.msk [vmem:[%s8004 + $0x388] sm:$0xff] %vm817, %v7949
        %8119 = vst [vmem:[%s8004 + $0x390] sm:$0xff] %v7950
        %8120 = vst.msk [vmem:[%s8004 + $0x398] sm:$0xff] %vm817, %v7951
        %8121 = vst [vmem:[%s8004 + $0x3a0] sm:$0xff] %v7952
        %8122 = vst.msk [vmem:[%s8004 + $0x3a8] sm:$0xff] %vm817, %v7953
        %8123 = vst [vmem:[%s8004 + $0x3b0] sm:$0xff] %v7954
        %8124 = vst.msk [vmem:[%s8004 + $0x3b8] sm:$0xff] %vm817, %v7955
        %8125 = vst [vmem:[%s8004 + $0x3c0] sm:$0xff] %v7956
        %8126 = vst.msk [vmem:[%s8004 + $0x3c8] sm:$0xff] %vm817, %v7957
        %8127 = vst [vmem:[%s8004 + $0x3d0] sm:$0xff] %v7958
        %8128 = vst.msk [vmem:[%s8004 + $0x3d8] sm:$0xff] %vm817, %v7959
        %8129 = vst [vmem:[%s8004 + $0x3e0] sm:$0xff] %v7960
        %8130 = vst.msk [vmem:[%s8004 + $0x3e8] sm:$0xff] %vm817, %v7961
        %8131 = vst [vmem:[%s8004 + $0x3f0] sm:$0xff] %v7962
        %8132 = vst.msk [vmem:[%s8004 + $0x3f8] sm:$0xff] %vm817, %v7963
        %8133 = vst [vmem:[%s8004 + $0x400] sm:$0xff] %v7964
        %8134 = vst.msk [vmem:[%s8004 + $0x408] sm:$0xff] %vm817, %v7965
        %8135 = vst [vmem:[%s8004 + $0x410] sm:$0xff] %v7966
        %8136 = vst.msk [vmem:[%s8004 + $0x418] sm:$0xff] %vm817, %v7967
        %8137 = vst [vmem:[%s8004 + $0x420] sm:$0xff] %v7968
        %8138 = vst.msk [vmem:[%s8004 + $0x428] sm:$0xff] %vm817, %v7969
        %8139 = vst [vmem:[%s8004 + $0x430] sm:$0xff] %v7970
        %8140 = vst.msk [vmem:[%s8004 + $0x438] sm:$0xff] %vm817, %v7971
        %8141 = vst [vmem:[%s8004 + $0x440] sm:$0xff] %v7972
        %8142 = vst.msk [vmem:[%s8004 + $0x448] sm:$0xff] %vm817, %v7973
        %8143 = vst [vmem:[%s8004 + $0x450] sm:$0xff] %v7974
        %8144 = vst.msk [vmem:[%s8004 + $0x458] sm:$0xff] %vm817, %v7975
        %8145 = vst [vmem:[%s8004 + $0x460] sm:$0xff] %v7976
        %8146 = vst.msk [vmem:[%s8004 + $0x468] sm:$0xff] %vm817, %v7977
        %8147 = vst [vmem:[%s8004 + $0x470] sm:$0xff] %v7978
        %8148 = vst.msk [vmem:[%s8004 + $0x478] sm:$0xff] %vm817, %v7979
        %8149 = vst [vmem:[%s8004 + $0x480] sm:$0xff] %v7980
        %8150 = vst.msk [vmem:[%s8004 + $0x488] sm:$0xff] %vm817, %v7981
        %8151 = vst [vmem:[%s8004 + $0x490] sm:$0xff] %v7982
        %8152 = vst.msk [vmem:[%s8004 + $0x498] sm:$0xff] %vm817, %v7983
        %8153 = vst [vmem:[%s8004 + $0x4a0] sm:$0xff] %v7984
        %8154 = vst.msk [vmem:[%s8004 + $0x4a8] sm:$0xff] %vm817, %v7985
        %8155 = vst [vmem:[%s8004 + $0x4b0] sm:$0xff] %v7986
        %8156 = vst.msk [vmem:[%s8004 + $0x4b8] sm:$0xff] %vm817, %v7987
        %8157 = vst [vmem:[%s8004 + $0x4c0] sm:$0xff] %v7988
        %8158 = vst.msk [vmem:[%s8004 + $0x4c8] sm:$0xff] %vm817, %v7989
        %8159 = vst [vmem:[%s8004 + $0x4d0] sm:$0xff] %v7990
        %8160 = vst.msk [vmem:[%s8004 + $0x4d8] sm:$0xff] %vm817, %v7991
        %8161 = vst [vmem:[%s8004 + $0x4e0] sm:$0xff] %v7992
        %8162 = vst.msk [vmem:[%s8004 + $0x4e8] sm:$0xff] %vm817, %v7993
        %8163 = vst [vmem:[%s8004 + $0x4f0] sm:$0xff] %v7994
        %8164 = vst.msk [vmem:[%s8004 + $0x4f8] sm:$0xff] %vm817, %v7995
        %8165 = vst [vmem:[%s8004 + $0x500] sm:$0xff] %v7996
        %8166 = vst.msk [vmem:[%s8004 + $0x508] sm:$0xff] %vm817, %v7997
        %8167 = vst [vmem:[%s8004 + $0x510] sm:$0xff] %v7998
        %8168 = vst.msk [vmem:[%s8004 + $0x518] sm:$0xff] %vm817, %v7999
        %8169 = vst [vmem:[%s8004 + $0x520] sm:$0xff] %v8000
        %8170 = vst.msk [vmem:[%s8004 + $0x528] sm:$0xff] %vm817, %v8001
        %8171 = vst [vmem:[%s8004 + $0x530] sm:$0xff] %v8002
        %8172 = vst.msk [vmem:[%s8004 + $0x538] sm:$0xff] %vm817, %v8003
        %s8173 = sand.u32 %s237, 1
        %s8174 = scalar_lea.sflag [#allocation4], %s8173
        %s8175 = sand.u32 %s237, 1
        %s8176 = smul.addr %s8175, 2688
        %s8177 = scalar_lea.vmem [#allocation11], %s8176
        // Predicated region
        $region77: #{tpu_custom_call.1} parent=55 // pred_check
          %p8178 = pneg %p247
        $region78: #{tpu_custom_call.1} parent=55 // pred_check_branch
          %8180 = sbr.rel (%p8178) target = $region80
        $region79: #{tpu_custom_call.1} parent=55 // pred_region
          %s8181 = smul.u32 2, %s30
          %8183 = vsyncadd %s8174, 0
          %s8184 = smul.addr %s8181, 168
          %s8185 = smul.addr %s8184, 8
          %s8186 = scalar_lea.hbm %s9, %s8185
          %s8187 = sshll.u32 %s8177, 4
          %s8188 = int_to_ptr.vmem [resolvable:$true] %s8187
          %s8189 = sshll.u32 %s8186, 4
          %s8190 = int_to_ptr.hbm [resolvable:$true] %s8189
          %8195 = dma.vmem_to_hbm [thread:$0]  %s8188, 43008, %s8190, %s8174, 256, 256, 16
        $region80: #{tpu_custom_call.1} parent=55 // pred_fallthru
          _
      $region56: #{tpu_custom_call.1} parent=5 // pred_fallthru
        _
      %p8196 = scmp.le.s32.totalorder 2, %s25
      // Predicated region
      $region81: #{tpu_custom_call.1} parent=5 // pred_check
        %p8197 = pneg %p8196
      $region82: #{tpu_custom_call.1} parent=5 // pred_check_branch
        %8199 = sbr.rel (%p8197) target = $region84
      $region83: #{tpu_custom_call.1} parent=5 // pred_region
        %s8200 = ssub.s32 %s25, 2
        // Predicated region
        $region85: #{tpu_custom_call.1} parent=83 // pred_check
          %p8201 = pneg %p253
        $region86: #{tpu_custom_call.1} parent=83 // pred_check_branch
          %8203 = sbr.rel (%p8201) target = $region88
        $region87: #{tpu_custom_call.1} parent=83 // pred_region
          %s8204 = sand.u32 %s238, 1
          %s8205 = scalar_lea.sflag [#allocation4], %s8204
          %s8206 = sand.u32 %s238, 1
          %s8207 = smul.addr %s8206, 2688
          %s8208 = scalar_lea.vmem [#allocation11], %s8207
          %8210 = dma.done %s8205, 43008
        $region88: #{tpu_custom_call.1} parent=83 // pred_fallthru
          _
      $region84: #{tpu_custom_call.1} parent=5 // pred_fallthru
        _
    $region6: #{tpu_custom_call.1} parent=1 // loop_footer
      %s29 = sadd.s32 1, %s25
    $region7: #{tpu_custom_call.1} parent=1 // loop_footer_branch
      %24 = sbr.rel target = $region3
    $region8: #{tpu_custom_call.1} parent=1 // loop_exit
      _
    %8211 = vsyncpa [#allocation3], 1
    %s8212 = scalar_lea.sflag [#allocation3], 1
    %8213 = vsyncpa %s8212, 1
    %8214 = vsyncpa [#allocation6], 1
    %s8215 = scalar_lea.sflag [#allocation6], 1
    %8216 = vsyncpa %s8215, 1
    %8217 = vsyncpa [#allocation9], 1
    %8218 = vsyncpa [#allocation4], 1
    %s8219 = scalar_lea.sflag [#allocation4], 1
    %8220 = vsyncpa %s8219, 1

</llo_original>
